<compile_context>
chip_gen: v6e
topology: v6e:2x2x1
jax: 0.10.0
libtpu: 0.0.40
codegen_flags: <defaults>
</compile_context>

<pallas_src>
import functools
import math

import jax
import jax.numpy as jnp
from jax.experimental import pallas as pl
from jax.experimental.pallas import tpu as pltpu

D_MODEL = 32          # config.d_model (small demo size)
NUM_HEADS = 8         # forced to 8 in GateExtractationLayers.__init__
NUM_LAYERS = 3        # forced to 3 in GateExtractationLayers.__init__
FFN_DIM = 3072        # hard-coded in GateExtraLayer
LN_EPS = 1e-5         # nn.LayerNorm default


def _batch_tile(batch, max_tile=8):
    """Largest divisor of `batch` that is <= max_tile (keeps blocks exact)."""
    for bb in range(min(batch, max_tile), 0, -1):
        if batch % bb == 0:
            return bb
    return 1


# ----------------------------------------------------------------------------
# Fused kernel: one (batch_tile, layer) pair per grid step.
# ----------------------------------------------------------------------------
def _fused_stack_kernel(x_ref, kv_ref, attn_w_ref, attn_b_ref, gate_w_ref,
                        gate_b_ref, ln_g_ref, ln_b_ref, fc1_w_ref, fc1_b_ref,
                        fc2_w_ref, fc2_b_ref, out_ref, top_ref):
    layer = pl.program_id(1)
    bb, sq, d = out_ref.shape
    skv = kv_ref.shape[1]
    hd = d // NUM_HEADS

    # Layer 0: seed the resident output block with the input hidden states.
    @pl.when(layer == 0)
    def _():
        out_ref[...] = x_ref[...]

    # Flattened (rows, D) views for all row-wise linear algebra.
    h = out_ref[...].reshape(bb * sq, d)        # carried across the layer axis
    kvf = kv_ref[...].reshape(bb * skv, d)

    def layer_norm(x, idx):
        mean = jnp.mean(x, axis=-1, keepdims=True)
        c = x - mean
        var = jnp.mean(c * c, axis=-1, keepdims=True)
        return c * jax.lax.rsqrt(var + LN_EPS) * ln_g_ref[idx] + ln_b_ref[idx]

    def mha(q_flat, kv_flat, kv_len, base):
        # 1/sqrt(head_dim) is pre-folded into Wq/bq on the host.
        q = jnp.dot(q_flat, attn_w_ref[base + 0],
                    preferred_element_type=jnp.float32) + attn_b_ref[base + 0]
        k = jnp.dot(kv_flat, attn_w_ref[base + 1],
                    preferred_element_type=jnp.float32) + attn_b_ref[base + 1]
        v = jnp.dot(kv_flat, attn_w_ref[base + 2],
                    preferred_element_type=jnp.float32) + attn_b_ref[base + 2]
        q3 = q.reshape(bb, sq, d)
        k3 = k.reshape(bb, kv_len, d)
        v3 = v.reshape(bb, kv_len, d)
        heads = []
        top = None
        for hh in range(NUM_HEADS):
            sl = slice(hh * hd, (hh + 1) * hd)
            s = jnp.einsum('bqd,bkd->bqk', q3[..., sl], k3[..., sl],
                           preferred_element_type=jnp.float32)
            s = s - jnp.max(s, axis=-1, keepdims=True)
            e = jnp.exp(s)
            p = e / jnp.sum(e, axis=-1, keepdims=True)      # exact softmax
            if hh == 0:
                top = p                                      # head-0 probs
            heads.append(jnp.einsum('bqk,bkd->bqd', p, v3[..., sl],
                                    preferred_element_type=jnp.float32))
        ctx = jnp.concatenate(heads, axis=-1).reshape(bb * sq, d)
        out = jnp.dot(ctx, attn_w_ref[base + 3],
                      preferred_element_type=jnp.float32) + attn_b_ref[base + 3]
        return out, top

    # --- self attention + residual + LayerNorm (dropout = identity in eval) ---
    sa_out, _ = mha(h, h, sq, 0)
    h = layer_norm(h + sa_out, 0)

    # --- cross attention + sigmoid gate + residual + LayerNorm ---
    ca_out, top = mha(h, kvf, skv, 4)
    gate = jax.nn.sigmoid(
        jnp.dot(h, gate_w_ref[0], preferred_element_type=jnp.float32)
        + jnp.dot(ca_out, gate_w_ref[1], preferred_element_type=jnp.float32)
        + gate_b_ref[...])
    h = layer_norm(h + gate * ca_out, 1)

    # --- FFN: fc1 -> exact (erf) GELU -> fc2 + residual + LayerNorm ---
    t = (jnp.dot(h, fc1_w_ref[...], preferred_element_type=jnp.float32)
         + fc1_b_ref[...])
    t = 0.5 * t * (1.0 + jax.lax.erf(t * 0.7071067811865476))
    y = (jnp.dot(t, fc2_w_ref[...], preferred_element_type=jnp.float32)
         + fc2_b_ref[...])
    h = layer_norm(h + y, 2)

    out_ref[...] = h.reshape(bb, sq, d)   # resident across layers

    # Only the LAST layer's cross-attn head-0 survives in the reference.
    @pl.when(layer == pl.num_programs(1) - 1)
    def _():
        top_ref[...] = top


# ----------------------------------------------------------------------------
# Wrapper: single pallas_call over the whole 3-layer stack.
# ----------------------------------------------------------------------------
def gate_extractation_layers(packed, hidden, kv, return_top_attn=False):
    B, SQ, D = hidden.shape
    SKV = kv.shape[1]
    L = packed["attn_w"].shape[0]
    BB = _batch_tile(B)                     # batch rows processed per grid step

    im_act = lambda bt, l: (bt, 0, 0)       # activations / outputs: batch tile
    im_w4 = lambda bt, l: (l, 0, 0, 0)      # 4-D per-layer weights
    im_w3 = lambda bt, l: (l, 0, 0)         # 3-D per-layer weights

    in_specs = [
        pl.BlockSpec((BB, SQ, D), im_act),              # hidden_states
        pl.BlockSpec((BB, SKV, D), im_act),             # key_value_states
        pl.BlockSpec((None, 8, D, D), im_w4),           # attn_w  (self+cross qkvo)
        pl.BlockSpec((None, 8, 1, D), im_w4),           # attn_b
        pl.BlockSpec((None, 2, D, D), im_w4),           # gate_w  (wr, wh)
        pl.BlockSpec((None, 1, D), im_w3),              # gate_b
        pl.BlockSpec((None, 3, 1, D), im_w4),           # ln gamma (ln1, ln2, ln3)
        pl.BlockSpec((None, 3, 1, D), im_w4),           # ln beta
        pl.BlockSpec((None, D, FFN_DIM), im_w3),        # fc1_w
        pl.BlockSpec((None, 1, FFN_DIM), im_w3),        # fc1_b
        pl.BlockSpec((None, FFN_DIM, D), im_w3),        # fc2_w
        pl.BlockSpec((None, 1, D), im_w3),              # fc2_b
    ]
    out_specs = (pl.BlockSpec((BB, SQ, D), im_act),
                 pl.BlockSpec((BB, SQ, SKV), im_act))
    out_shape = (jax.ShapeDtypeStruct((B, SQ, D), jnp.float32),
                 jax.ShapeDtypeStruct((B, SQ, SKV), jnp.float32))

    hidden_out, top_attn = pl.pallas_call(
        _fused_stack_kernel,
        grid=(B // BB, L),
        out_shape=out_shape,
        in_specs=in_specs,
        out_specs=out_specs,
        compiler_params=pltpu.CompilerParams(
            dimension_semantics=("parallel", "arbitrary")),
    )(hidden, kv,
      packed["attn_w"], packed["attn_b"], packed["gate_w"], packed["gate_b"],
      packed["ln_g"], packed["ln_b"],
      packed["fc1_w"], packed["fc1_b"], packed["fc2_w"], packed["fc2_b"])

    if return_top_attn:
        return hidden_out, top_attn
    return hidden_out


# ----------------------------------------------------------------------------
# Deterministic parameter init: every tensor ~ U(-0.2, 0.2), as in the module
# ----------------------------------------------------------------------------
def _uniform(key, shape):
    return jax.random.uniform(key, shape, jnp.float32, minval=-0.2, maxval=0.2)


def init_attn_params(key, d):
    ks = jax.random.split(key, 8)
    return {"wq": _uniform(ks[0], (d, d)), "bq": _uniform(ks[1], (d,)),
            "wk": _uniform(ks[2], (d, d)), "bk": _uniform(ks[3], (d,)),
            "wv": _uniform(ks[4], (d, d)), "bv": _uniform(ks[5], (d,)),
            "wo": _uniform(ks[6], (d, d)), "bo": _uniform(ks[7], (d,))}


def init_layer_params(key, d, ffn_dim):
    ks = jax.random.split(key, 16)
    gate_w = _uniform(ks[2], (2 * d, d))   # transposed torch weight (d, 2d)
    return {
        "self_attn": init_attn_params(ks[0], d),
        "cross_attn": init_attn_params(ks[1], d),
        "gate_wr": gate_w[:d], "gate_wh": gate_w[d:], "gate_b": _uniform(ks[3], (d,)),
        "ln1_g": _uniform(ks[4], (d,)), "ln1_b": _uniform(ks[5], (d,)),
        "ln2_g": _uniform(ks[6], (d,)), "ln2_b": _uniform(ks[7], (d,)),
        "fc1_w": _uniform(ks[8], (d, ffn_dim)), "fc1_b": _uniform(ks[9], (ffn_dim,)),
        "fc2_w": _uniform(ks[10], (ffn_dim, d)), "fc2_b": _uniform(ks[11], (d,)),
        "ln3_g": _uniform(ks[12], (d,)), "ln3_b": _uniform(ks[13], (d,)),
    }


def init_params(key, d, ffn_dim, num_layers):
    keys = jax.random.split(key, num_layers)
    return {"layers": [init_layer_params(k, d, ffn_dim) for k in keys]}


def pack_params(params, d):
    """Stack per-layer params along a leading layer dim; fold 1/sqrt(hd) into Wq/bq."""
    hd = d // NUM_HEADS
    scale = 1.0 / math.sqrt(hd)
    layers = params["layers"]

    def per_layer(fn):
        return jnp.stack([fn(p) for p in layers], axis=0)

    def attn_mats(p):
        mats = []
        for name in ("self_attn", "cross_attn"):
            a = p[name]
            mats += [a["wq"] * scale, a["wk"], a["wv"], a["wo"]]
        return jnp.stack(mats, axis=0)                       # (8, d, d)

    def attn_biases(p):
        bs = []
        for name in ("self_attn", "cross_attn"):
            a = p[name]
            bs += [a["bq"] * scale, a["bk"], a["bv"], a["bo"]]
        return jnp.stack(bs, axis=0)[:, None, :]             # (8, 1, d)

    return {
        "attn_w": per_layer(attn_mats),                                   # (L,8,d,d)
        "attn_b": per_layer(attn_biases),                                 # (L,8,1,d)
        "gate_w": per_layer(lambda p: jnp.stack([p["gate_wr"],
                                                 p["gate_wh"]], 0)),      # (L,2,d,d)
        "gate_b": per_layer(lambda p: p["gate_b"][None, :]),              # (L,1,d)
        "ln_g": per_layer(lambda p: jnp.stack([p["ln1_g"], p["ln2_g"],
                                               p["ln3_g"]], 0)[:, None, :]),
        "ln_b": per_layer(lambda p: jnp.stack([p["ln1_b"], p["ln2_b"],
                                               p["ln3_b"]], 0)[:, None, :]),
        "fc1_w": per_layer(lambda p: p["fc1_w"]),                         # (L,d,F)
        "fc1_b": per_layer(lambda p: p["fc1_b"][None, :]),                # (L,1,F)
        "fc2_w": per_layer(lambda p: p["fc2_w"]),                         # (L,F,d)
        "fc2_b": per_layer(lambda p: p["fc2_b"][None, :]),                # (L,1,d)
    }


# ----------------------------------------------------------------------------
if __name__ == "__main__":
    B, SQ, SKV = 2, 8, 8
    root = jax.random.PRNGKey(0)
    p_key, x_key, kv_key = jax.random.split(root, 3)

    params = init_params(p_key, D_MODEL, FFN_DIM, NUM_LAYERS)
    packed = pack_params(params, D_MODEL)
    hidden_states = jax.random.normal(x_key, (B, SQ, D_MODEL), jnp.float32)
    key_value_states = jax.random.normal(kv_key, (B, SKV, D_MODEL), jnp.float32)

    forward = jax.jit(functools.partial(gate_extractation_layers,
                                        return_top_attn=True))
    out, top_attn = forward(packed, hidden_states, key_value_states)
    jax.block_until_ready((out, top_attn))
    assert out.shape == (B, SQ, D_MODEL)
    assert top_attn.shape == (B, SQ, SKV)
    assert bool(jnp.all(jnp.isfinite(out)))
    assert bool(jnp.all(jnp.isfinite(top_attn)))
    print("KERNEL_OK")
</pallas_src>

<mosaic_0001>
module attributes {stable_mosaic.version = 11 : i64} {
  func.func @_fused_stack_kernel(%arg0: i32, %arg1: i32, %arg2: memref<2x8x32xf32, #tpu.memory_space<vmem>>, %arg3: memref<2x8x32xf32, #tpu.memory_space<vmem>>, %arg4: memref<1x8x32x32xf32, #tpu.memory_space<vmem>>, %arg5: memref<1x8x1x32xf32, #tpu.memory_space<vmem>>, %arg6: memref<1x2x32x32xf32, #tpu.memory_space<vmem>>, %arg7: memref<1x1x32xf32, #tpu.memory_space<vmem>>, %arg8: memref<1x3x1x32xf32, #tpu.memory_space<vmem>>, %arg9: memref<1x3x1x32xf32, #tpu.memory_space<vmem>>, %arg10: memref<1x32x3072xf32, #tpu.memory_space<vmem>>, %arg11: memref<1x1x3072xf32, #tpu.memory_space<vmem>>, %arg12: memref<1x3072x32xf32, #tpu.memory_space<vmem>>, %arg13: memref<1x1x32xf32, #tpu.memory_space<vmem>>, %arg14: memref<2x8x32xf32, #tpu.memory_space<vmem>>, %arg15: memref<2x8x8xf32, #tpu.memory_space<vmem>>) attributes {dimension_semantics = [#tpu.dimension_semantics<parallel>, #tpu.dimension_semantics<arbitrary>], iteration_bounds = array<i64: 1, 3>, scalar_prefetch = 0 : i64, scratch_operands = 0 : i64, tpu.core_type = #tpu.core_type<tc>, window_params = [{transform_indices = @transform_0, window_bounds = array<i64: 2, 8, 32>}, {transform_indices = @transform_1, window_bounds = array<i64: 2, 8, 32>}, {transform_indices = @transform_2, window_bounds = array<i64: 1, 8, 32, 32>}, {transform_indices = @transform_3, window_bounds = array<i64: 1, 8, 1, 32>}, {transform_indices = @transform_4, window_bounds = array<i64: 1, 2, 32, 32>}, {transform_indices = @transform_5, window_bounds = array<i64: 1, 1, 32>}, {transform_indices = @transform_6, window_bounds = array<i64: 1, 3, 1, 32>}, {transform_indices = @transform_7, window_bounds = array<i64: 1, 3, 1, 32>}, {transform_indices = @transform_8, window_bounds = array<i64: 1, 32, 3072>}, {transform_indices = @transform_9, window_bounds = array<i64: 1, 1, 3072>}, {transform_indices = @transform_10, window_bounds = array<i64: 1, 3072, 32>}, {transform_indices = @transform_11, window_bounds = array<i64: 1, 1, 32>}, {transform_indices = @transform_12, window_bounds = array<i64: 2, 8, 32>}, {transform_indices = @transform_13, window_bounds = array<i64: 2, 8, 8>}]} {
    %c0_i32 = arith.constant 0 : i32
    %0 = arith.cmpi eq, %arg1, %c0_i32 : i32
    %1 = arith.extui %0 : i1 to i32
    %c0_i32_0 = arith.constant 0 : i32
    %2 = arith.cmpi ne, %1, %c0_i32_0 : i32
    scf.if %2 {
      %c0_208 = arith.constant 0 : index
      %c0_209 = arith.constant 0 : index
      %c0_210 = arith.constant 0 : index
      %416 = vector.load %arg2[%c0_208, %c0_209, %c0_210] : memref<2x8x32xf32, #tpu.memory_space<vmem>>, vector<2x8x32xf32>
      %c0_211 = arith.constant 0 : index
      %c0_212 = arith.constant 0 : index
      %c0_213 = arith.constant 0 : index
      %417 = vector.load %arg14[%c0_211, %c0_212, %c0_213] : memref<2x8x32xf32, #tpu.memory_space<vmem>>, vector<2x8x32xf32>
      tpu.vector_store %arg14[%c0_211, %c0_212, %c0_213], %416 {strides = array<i32>} : memref<2x8x32xf32, #tpu.memory_space<vmem>>, vector<2x8x32xf32>,
    } else {
    }
    %c0 = arith.constant 0 : index
    %c0_1 = arith.constant 0 : index
    %c0_2 = arith.constant 0 : index
    %3 = vector.load %arg14[%c0, %c0_1, %c0_2] : memref<2x8x32xf32, #tpu.memory_space<vmem>>, vector<2x8x32xf32>
    %4 = vector.shape_cast %3 : vector<2x8x32xf32> to vector<16x32xf32>
    %c0_3 = arith.constant 0 : index
    %c0_4 = arith.constant 0 : index
    %c0_5 = arith.constant 0 : index
    %5 = vector.load %arg3[%c0_3, %c0_4, %c0_5] : memref<2x8x32xf32, #tpu.memory_space<vmem>>, vector<2x8x32xf32>
    %6 = vector.shape_cast %5 : vector<2x8x32xf32> to vector<16x32xf32>
    %c0_6 = arith.constant 0 : index
    %c0_7 = arith.constant 0 : index
    %c0_8 = arith.constant 0 : index
    %c0_9 = arith.constant 0 : index
    %7 = vector.load %arg4[%c0_6, %c0_7, %c0_8, %c0_9] : memref<1x8x32x32xf32, #tpu.memory_space<vmem>>, vector<1x1x32x32xf32>
    %8 = vector.shape_cast %7 : vector<1x1x32x32xf32> to vector<32x32xf32>
    %cst = arith.constant dense<0.000000e+00> : vector<16x32xf32>
    %9 = tpu.matmul %4, %8, %cst {dimension_numbers = #tpu.dot_dimension_numbers<[1], [0], [0], [1], [0, 0, 1, 1], [], []>} : vector<16x32xf32>, vector<32x32xf32>, vector<16x32xf32> -> vector<16x32xf32>
    %c0_10 = arith.constant 0 : index
    %c0_11 = arith.constant 0 : index
    %c0_12 = arith.constant 0 : index
    %c0_13 = arith.constant 0 : index
    %10 = vector.load %arg5[%c0_10, %c0_11, %c0_12, %c0_13] : memref<1x8x1x32xf32, #tpu.memory_space<vmem>>, vector<1x1x1x32xf32>
    %11 = vector.shape_cast %10 : vector<1x1x1x32xf32> to vector<1x32xf32>
    %12 = vector.broadcast %11 : vector<1x32xf32> to vector<16x32xf32>
    %13 = arith.addf %9, %12 : vector<16x32xf32>
    %c0_14 = arith.constant 0 : index
    %c1 = arith.constant 1 : index
    %c0_15 = arith.constant 0 : index
    %c0_16 = arith.constant 0 : index
    %14 = vector.load %arg4[%c0_14, %c1, %c0_15, %c0_16] : memref<1x8x32x32xf32, #tpu.memory_space<vmem>>, vector<1x1x32x32xf32>
    %15 = vector.shape_cast %14 : vector<1x1x32x32xf32> to vector<32x32xf32>
    %cst_17 = arith.constant dense<0.000000e+00> : vector<16x32xf32>
    %16 = tpu.matmul %4, %15, %cst_17 {dimension_numbers = #tpu.dot_dimension_numbers<[1], [0], [0], [1], [0, 0, 1, 1], [], []>} : vector<16x32xf32>, vector<32x32xf32>, vector<16x32xf32> -> vector<16x32xf32>
    %c0_18 = arith.constant 0 : index
    %c1_19 = arith.constant 1 : index
    %c0_20 = arith.constant 0 : index
    %c0_21 = arith.constant 0 : index
    %17 = vector.load %arg5[%c0_18, %c1_19, %c0_20, %c0_21] : memref<1x8x1x32xf32, #tpu.memory_space<vmem>>, vector<1x1x1x32xf32>
    %18 = vector.shape_cast %17 : vector<1x1x1x32xf32> to vector<1x32xf32>
    %19 = vector.broadcast %18 : vector<1x32xf32> to vector<16x32xf32>
    %20 = arith.addf %16, %19 : vector<16x32xf32>
    %c0_22 = arith.constant 0 : index
    %c2 = arith.constant 2 : index
    %c0_23 = arith.constant 0 : index
    %c0_24 = arith.constant 0 : index
    %21 = vector.load %arg4[%c0_22, %c2, %c0_23, %c0_24] : memref<1x8x32x32xf32, #tpu.memory_space<vmem>>, vector<1x1x32x32xf32>
    %22 = vector.shape_cast %21 : vector<1x1x32x32xf32> to vector<32x32xf32>
    %cst_25 = arith.constant dense<0.000000e+00> : vector<16x32xf32>
    %23 = tpu.matmul %4, %22, %cst_25 {dimension_numbers = #tpu.dot_dimension_numbers<[1], [0], [0], [1], [0, 0, 1, 1], [], []>} : vector<16x32xf32>, vector<32x32xf32>, vector<16x32xf32> -> vector<16x32xf32>
    %c0_26 = arith.constant 0 : index
    %c2_27 = arith.constant 2 : index
    %c0_28 = arith.constant 0 : index
    %c0_29 = arith.constant 0 : index
    %24 = vector.load %arg5[%c0_26, %c2_27, %c0_28, %c0_29] : memref<1x8x1x32xf32, #tpu.memory_space<vmem>>, vector<1x1x1x32xf32>
    %25 = vector.shape_cast %24 : vector<1x1x1x32xf32> to vector<1x32xf32>
    %26 = vector.broadcast %25 : vector<1x32xf32> to vector<16x32xf32>
    %27 = arith.addf %23, %26 : vector<16x32xf32>
    %28 = vector.shape_cast %13 : vector<16x32xf32> to vector<2x8x32xf32>
    %29 = vector.shape_cast %20 : vector<16x32xf32> to vector<2x8x32xf32>
    %30 = vector.shape_cast %27 : vector<16x32xf32> to vector<2x8x32xf32>
    %31 = vector.extract_strided_slice %28 {offsets = [0, 0, 0], sizes = [2, 8, 4], strides = [1, 1, 1]} : vector<2x8x32xf32> to vector<2x8x4xf32>
    %32 = vector.extract_strided_slice %29 {offsets = [0, 0, 0], sizes = [2, 8, 4], strides = [1, 1, 1]} : vector<2x8x32xf32> to vector<2x8x4xf32>
    "tpu.trace_start"() <{level = 10 : i32, message = "bqd,bkd->bqk"}> : () -> ()
    %cst_30 = arith.constant dense<0.000000e+00> : vector<2x8x8xf32>
    %33 = tpu.matmul %31, %32, %cst_30 {dimension_numbers = #tpu.dot_dimension_numbers<[2], [2], [1], [1], [0, 0, 0, 1, 1, 1], [0], [0]>} : vector<2x8x4xf32>, vector<2x8x4xf32>, vector<2x8x8xf32> -> vector<2x8x8xf32>
    "tpu.trace_stop"() : () -> ()
    %cst_31 = arith.constant dense<0xFF800000> : vector<2x8xf32>
    %34 = vector.multi_reduction <maximumf>, %33, %cst_31 [2] : vector<2x8x8xf32> to vector<2x8xf32>
    %35 = vector.shape_cast %34 : vector<2x8xf32> to vector<2x8x1xf32>
    %36 = vector.broadcast %35 : vector<2x8x1xf32> to vector<2x8x8xf32>
    %37 = arith.subf %33, %36 : vector<2x8x8xf32>
    %38 = math.exp %37 : vector<2x8x8xf32>
    %cst_32 = arith.constant dense<0.000000e+00> : vector<2x8xf32>
    %39 = vector.multi_reduction <add>, %38, %cst_32 [2] : vector<2x8x8xf32> to vector<2x8xf32>
    %40 = vector.shape_cast %39 : vector<2x8xf32> to vector<2x8x1xf32>
    %41 = vector.broadcast %40 : vector<2x8x1xf32> to vector<2x8x8xf32>
    %42 = arith.divf %38, %41 : vector<2x8x8xf32>
    %43 = vector.extract_strided_slice %30 {offsets = [0, 0, 0], sizes = [2, 8, 4], strides = [1, 1, 1]} : vector<2x8x32xf32> to vector<2x8x4xf32>
    "tpu.trace_start"() <{level = 10 : i32, message = "bqk,bkd->bqd"}> : () -> ()
    %cst_33 = arith.constant dense<0.000000e+00> : vector<2x8x4xf32>
    %44 = tpu.matmul %42, %43, %cst_33 {dimension_numbers = #tpu.dot_dimension_numbers<[2], [1], [1], [2], [0, 0, 0, 1, 1, 2], [0], [0]>} : vector<2x8x8xf32>, vector<2x8x4xf32>, vector<2x8x4xf32> -> vector<2x8x4xf32>
    "tpu.trace_stop"() : () -> ()
    %45 = vector.extract_strided_slice %28 {offsets = [0, 0, 4], sizes = [2, 8, 4], strides = [1, 1, 1]} : vector<2x8x32xf32> to vector<2x8x4xf32>
    %46 = vector.extract_strided_slice %29 {offsets = [0, 0, 4], sizes = [2, 8, 4], strides = [1, 1, 1]} : vector<2x8x32xf32> to vector<2x8x4xf32>
    "tpu.trace_start"() <{level = 10 : i32, message = "bqd,bkd->bqk"}> : () -> ()
    %cst_34 = arith.constant dense<0.000000e+00> : vector<2x8x8xf32>
    %47 = tpu.matmul %45, %46, %cst_34 {dimension_numbers = #tpu.dot_dimension_numbers<[2], [2], [1], [1], [0, 0, 0, 1, 1, 1], [0], [0]>} : vector<2x8x4xf32>, vector<2x8x4xf32>, vector<2x8x8xf32> -> vector<2x8x8xf32>
    "tpu.trace_stop"() : () -> ()
    %cst_35 = arith.constant dense<0xFF800000> : vector<2x8xf32>
    %48 = vector.multi_reduction <maximumf>, %47, %cst_35 [2] : vector<2x8x8xf32> to vector<2x8xf32>
    %49 = vector.shape_cast %48 : vector<2x8xf32> to vector<2x8x1xf32>
    %50 = vector.broadcast %49 : vector<2x8x1xf32> to vector<2x8x8xf32>
    %51 = arith.subf %47, %50 : vector<2x8x8xf32>
    %52 = math.exp %51 : vector<2x8x8xf32>
    %cst_36 = arith.constant dense<0.000000e+00> : vector<2x8xf32>
    %53 = vector.multi_reduction <add>, %52, %cst_36 [2] : vector<2x8x8xf32> to vector<2x8xf32>
    %54 = vector.shape_cast %53 : vector<2x8xf32> to vector<2x8x1xf32>
    %55 = vector.broadcast %54 : vector<2x8x1xf32> to vector<2x8x8xf32>
    %56 = arith.divf %52, %55 : vector<2x8x8xf32>
    %57 = vector.extract_strided_slice %30 {offsets = [0, 0, 4], sizes = [2, 8, 4], strides = [1, 1, 1]} : vector<2x8x32xf32> to vector<2x8x4xf32>
    "tpu.trace_start"() <{level = 10 : i32, message = "bqk,bkd->bqd"}> : () -> ()
    %cst_37 = arith.constant dense<0.000000e+00> : vector<2x8x4xf32>
    %58 = tpu.matmul %56, %57, %cst_37 {dimension_numbers = #tpu.dot_dimension_numbers<[2], [1], [1], [2], [0, 0, 0, 1, 1, 2], [0], [0]>} : vector<2x8x8xf32>, vector<2x8x4xf32>, vector<2x8x4xf32> -> vector<2x8x4xf32>
    "tpu.trace_stop"() : () -> ()
    %59 = vector.extract_strided_slice %28 {offsets = [0, 0, 8], sizes = [2, 8, 4], strides = [1, 1, 1]} : vector<2x8x32xf32> to vector<2x8x4xf32>
    %60 = vector.extract_strided_slice %29 {offsets = [0, 0, 8], sizes = [2, 8, 4], strides = [1, 1, 1]} : vector<2x8x32xf32> to vector<2x8x4xf32>
    "tpu.trace_start"() <{level = 10 : i32, message = "bqd,bkd->bqk"}> : () -> ()
    %cst_38 = arith.constant dense<0.000000e+00> : vector<2x8x8xf32>
    %61 = tpu.matmul %59, %60, %cst_38 {dimension_numbers = #tpu.dot_dimension_numbers<[2], [2], [1], [1], [0, 0, 0, 1, 1, 1], [0], [0]>} : vector<2x8x4xf32>, vector<2x8x4xf32>, vector<2x8x8xf32> -> vector<2x8x8xf32>
    "tpu.trace_stop"() : () -> ()
    %cst_39 = arith.constant dense<0xFF800000> : vector<2x8xf32>
    %62 = vector.multi_reduction <maximumf>, %61, %cst_39 [2] : vector<2x8x8xf32> to vector<2x8xf32>
    %63 = vector.shape_cast %62 : vector<2x8xf32> to vector<2x8x1xf32>
    %64 = vector.broadcast %63 : vector<2x8x1xf32> to vector<2x8x8xf32>
    %65 = arith.subf %61, %64 : vector<2x8x8xf32>
    %66 = math.exp %65 : vector<2x8x8xf32>
    %cst_40 = arith.constant dense<0.000000e+00> : vector<2x8xf32>
    %67 = vector.multi_reduction <add>, %66, %cst_40 [2] : vector<2x8x8xf32> to vector<2x8xf32>
    %68 = vector.shape_cast %67 : vector<2x8xf32> to vector<2x8x1xf32>
    %69 = vector.broadcast %68 : vector<2x8x1xf32> to vector<2x8x8xf32>
    %70 = arith.divf %66, %69 : vector<2x8x8xf32>
    %71 = vector.extract_strided_slice %30 {offsets = [0, 0, 8], sizes = [2, 8, 4], strides = [1, 1, 1]} : vector<2x8x32xf32> to vector<2x8x4xf32>
    "tpu.trace_start"() <{level = 10 : i32, message = "bqk,bkd->bqd"}> : () -> ()
    %cst_41 = arith.constant dense<0.000000e+00> : vector<2x8x4xf32>
    %72 = tpu.matmul %70, %71, %cst_41 {dimension_numbers = #tpu.dot_dimension_numbers<[2], [1], [1], [2], [0, 0, 0, 1, 1, 2], [0], [0]>} : vector<2x8x8xf32>, vector<2x8x4xf32>, vector<2x8x4xf32> -> vector<2x8x4xf32>
    "tpu.trace_stop"() : () -> ()
    %73 = vector.extract_strided_slice %28 {offsets = [0, 0, 12], sizes = [2, 8, 4], strides = [1, 1, 1]} : vector<2x8x32xf32> to vector<2x8x4xf32>
    %74 = vector.extract_strided_slice %29 {offsets = [0, 0, 12], sizes = [2, 8, 4], strides = [1, 1, 1]} : vector<2x8x32xf32> to vector<2x8x4xf32>
    "tpu.trace_start"() <{level = 10 : i32, message = "bqd,bkd->bqk"}> : () -> ()
    %cst_42 = arith.constant dense<0.000000e+00> : vector<2x8x8xf32>
    %75 = tpu.matmul %73, %74, %cst_42 {dimension_numbers = #tpu.dot_dimension_numbers<[2], [2], [1], [1], [0, 0, 0, 1, 1, 1], [0], [0]>} : vector<2x8x4xf32>, vector<2x8x4xf32>, vector<2x8x8xf32> -> vector<2x8x8xf32>
    "tpu.trace_stop"() : () -> ()
    %cst_43 = arith.constant dense<0xFF800000> : vector<2x8xf32>
    %76 = vector.multi_reduction <maximumf>, %75, %cst_43 [2] : vector<2x8x8xf32> to vector<2x8xf32>
    %77 = vector.shape_cast %76 : vector<2x8xf32> to vector<2x8x1xf32>
    %78 = vector.broadcast %77 : vector<2x8x1xf32> to vector<2x8x8xf32>
    %79 = arith.subf %75, %78 : vector<2x8x8xf32>
    %80 = math.exp %79 : vector<2x8x8xf32>
    %cst_44 = arith.constant dense<0.000000e+00> : vector<2x8xf32>
    %81 = vector.multi_reduction <add>, %80, %cst_44 [2] : vector<2x8x8xf32> to vector<2x8xf32>
    %82 = vector.shape_cast %81 : vector<2x8xf32> to vector<2x8x1xf32>
    %83 = vector.broadcast %82 : vector<2x8x1xf32> to vector<2x8x8xf32>
    %84 = arith.divf %80, %83 : vector<2x8x8xf32>
    %85 = vector.extract_strided_slice %30 {offsets = [0, 0, 12], sizes = [2, 8, 4], strides = [1, 1, 1]} : vector<2x8x32xf32> to vector<2x8x4xf32>
    "tpu.trace_start"() <{level = 10 : i32, message = "bqk,bkd->bqd"}> : () -> ()
    %cst_45 = arith.constant dense<0.000000e+00> : vector<2x8x4xf32>
    %86 = tpu.matmul %84, %85, %cst_45 {dimension_numbers = #tpu.dot_dimension_numbers<[2], [1], [1], [2], [0, 0, 0, 1, 1, 2], [0], [0]>} : vector<2x8x8xf32>, vector<2x8x4xf32>, vector<2x8x4xf32> -> vector<2x8x4xf32>
    "tpu.trace_stop"() : () -> ()
    %87 = vector.extract_strided_slice %28 {offsets = [0, 0, 16], sizes = [2, 8, 4], strides = [1, 1, 1]} : vector<2x8x32xf32> to vector<2x8x4xf32>
    %88 = vector.extract_strided_slice %29 {offsets = [0, 0, 16], sizes = [2, 8, 4], strides = [1, 1, 1]} : vector<2x8x32xf32> to vector<2x8x4xf32>
    "tpu.trace_start"() <{level = 10 : i32, message = "bqd,bkd->bqk"}> : () -> ()
    %cst_46 = arith.constant dense<0.000000e+00> : vector<2x8x8xf32>
    %89 = tpu.matmul %87, %88, %cst_46 {dimension_numbers = #tpu.dot_dimension_numbers<[2], [2], [1], [1], [0, 0, 0, 1, 1, 1], [0], [0]>} : vector<2x8x4xf32>, vector<2x8x4xf32>, vector<2x8x8xf32> -> vector<2x8x8xf32>
    "tpu.trace_stop"() : () -> ()
    %cst_47 = arith.constant dense<0xFF800000> : vector<2x8xf32>
    %90 = vector.multi_reduction <maximumf>, %89, %cst_47 [2] : vector<2x8x8xf32> to vector<2x8xf32>
    %91 = vector.shape_cast %90 : vector<2x8xf32> to vector<2x8x1xf32>
    %92 = vector.broadcast %91 : vector<2x8x1xf32> to vector<2x8x8xf32>
    %93 = arith.subf %89, %92 : vector<2x8x8xf32>
    %94 = math.exp %93 : vector<2x8x8xf32>
    %cst_48 = arith.constant dense<0.000000e+00> : vector<2x8xf32>
    %95 = vector.multi_reduction <add>, %94, %cst_48 [2] : vector<2x8x8xf32> to vector<2x8xf32>
    %96 = vector.shape_cast %95 : vector<2x8xf32> to vector<2x8x1xf32>
    %97 = vector.broadcast %96 : vector<2x8x1xf32> to vector<2x8x8xf32>
    %98 = arith.divf %94, %97 : vector<2x8x8xf32>
    %99 = vector.extract_strided_slice %30 {offsets = [0, 0, 16], sizes = [2, 8, 4], strides = [1, 1, 1]} : vector<2x8x32xf32> to vector<2x8x4xf32>
    "tpu.trace_start"() <{level = 10 : i32, message = "bqk,bkd->bqd"}> : () -> ()
    %cst_49 = arith.constant dense<0.000000e+00> : vector<2x8x4xf32>
    %100 = tpu.matmul %98, %99, %cst_49 {dimension_numbers = #tpu.dot_dimension_numbers<[2], [1], [1], [2], [0, 0, 0, 1, 1, 2], [0], [0]>} : vector<2x8x8xf32>, vector<2x8x4xf32>, vector<2x8x4xf32> -> vector<2x8x4xf32>
    "tpu.trace_stop"() : () -> ()
    %101 = vector.extract_strided_slice %28 {offsets = [0, 0, 20], sizes = [2, 8, 4], strides = [1, 1, 1]} : vector<2x8x32xf32> to vector<2x8x4xf32>
    %102 = vector.extract_strided_slice %29 {offsets = [0, 0, 20], sizes = [2, 8, 4], strides = [1, 1, 1]} : vector<2x8x32xf32> to vector<2x8x4xf32>
    "tpu.trace_start"() <{level = 10 : i32, message = "bqd,bkd->bqk"}> : () -> ()
    %cst_50 = arith.constant dense<0.000000e+00> : vector<2x8x8xf32>
    %103 = tpu.matmul %101, %102, %cst_50 {dimension_numbers = #tpu.dot_dimension_numbers<[2], [2], [1], [1], [0, 0, 0, 1, 1, 1], [0], [0]>} : vector<2x8x4xf32>, vector<2x8x4xf32>, vector<2x8x8xf32> -> vector<2x8x8xf32>
    "tpu.trace_stop"() : () -> ()
    %cst_51 = arith.constant dense<0xFF800000> : vector<2x8xf32>
    %104 = vector.multi_reduction <maximumf>, %103, %cst_51 [2] : vector<2x8x8xf32> to vector<2x8xf32>
    %105 = vector.shape_cast %104 : vector<2x8xf32> to vector<2x8x1xf32>
    %106 = vector.broadcast %105 : vector<2x8x1xf32> to vector<2x8x8xf32>
    %107 = arith.subf %103, %106 : vector<2x8x8xf32>
    %108 = math.exp %107 : vector<2x8x8xf32>
    %cst_52 = arith.constant dense<0.000000e+00> : vector<2x8xf32>
    %109 = vector.multi_reduction <add>, %108, %cst_52 [2] : vector<2x8x8xf32> to vector<2x8xf32>
    %110 = vector.shape_cast %109 : vector<2x8xf32> to vector<2x8x1xf32>
    %111 = vector.broadcast %110 : vector<2x8x1xf32> to vector<2x8x8xf32>
    %112 = arith.divf %108, %111 : vector<2x8x8xf32>
    %113 = vector.extract_strided_slice %30 {offsets = [0, 0, 20], sizes = [2, 8, 4], strides = [1, 1, 1]} : vector<2x8x32xf32> to vector<2x8x4xf32>
    "tpu.trace_start"() <{level = 10 : i32, message = "bqk,bkd->bqd"}> : () -> ()
    %cst_53 = arith.constant dense<0.000000e+00> : vector<2x8x4xf32>
    %114 = tpu.matmul %112, %113, %cst_53 {dimension_numbers = #tpu.dot_dimension_numbers<[2], [1], [1], [2], [0, 0, 0, 1, 1, 2], [0], [0]>} : vector<2x8x8xf32>, vector<2x8x4xf32>, vector<2x8x4xf32> -> vector<2x8x4xf32>
    "tpu.trace_stop"() : () -> ()
    %115 = vector.extract_strided_slice %28 {offsets = [0, 0, 24], sizes = [2, 8, 4], strides = [1, 1, 1]} : vector<2x8x32xf32> to vector<2x8x4xf32>
    %116 = vector.extract_strided_slice %29 {offsets = [0, 0, 24], sizes = [2, 8, 4], strides = [1, 1, 1]} : vector<2x8x32xf32> to vector<2x8x4xf32>
    "tpu.trace_start"() <{level = 10 : i32, message = "bqd,bkd->bqk"}> : () -> ()
    %cst_54 = arith.constant dense<0.000000e+00> : vector<2x8x8xf32>
    %117 = tpu.matmul %115, %116, %cst_54 {dimension_numbers = #tpu.dot_dimension_numbers<[2], [2], [1], [1], [0, 0, 0, 1, 1, 1], [0], [0]>} : vector<2x8x4xf32>, vector<2x8x4xf32>, vector<2x8x8xf32> -> vector<2x8x8xf32>
    "tpu.trace_stop"() : () -> ()
    %cst_55 = arith.constant dense<0xFF800000> : vector<2x8xf32>
    %118 = vector.multi_reduction <maximumf>, %117, %cst_55 [2] : vector<2x8x8xf32> to vector<2x8xf32>
    %119 = vector.shape_cast %118 : vector<2x8xf32> to vector<2x8x1xf32>
    %120 = vector.broadcast %119 : vector<2x8x1xf32> to vector<2x8x8xf32>
    %121 = arith.subf %117, %120 : vector<2x8x8xf32>
    %122 = math.exp %121 : vector<2x8x8xf32>
    %cst_56 = arith.constant dense<0.000000e+00> : vector<2x8xf32>
    %123 = vector.multi_reduction <add>, %122, %cst_56 [2] : vector<2x8x8xf32> to vector<2x8xf32>
    %124 = vector.shape_cast %123 : vector<2x8xf32> to vector<2x8x1xf32>
    %125 = vector.broadcast %124 : vector<2x8x1xf32> to vector<2x8x8xf32>
    %126 = arith.divf %122, %125 : vector<2x8x8xf32>
    %127 = vector.extract_strided_slice %30 {offsets = [0, 0, 24], sizes = [2, 8, 4], strides = [1, 1, 1]} : vector<2x8x32xf32> to vector<2x8x4xf32>
    "tpu.trace_start"() <{level = 10 : i32, message = "bqk,bkd->bqd"}> : () -> ()
    %cst_57 = arith.constant dense<0.000000e+00> : vector<2x8x4xf32>
    %128 = tpu.matmul %126, %127, %cst_57 {dimension_numbers = #tpu.dot_dimension_numbers<[2], [1], [1], [2], [0, 0, 0, 1, 1, 2], [0], [0]>} : vector<2x8x8xf32>, vector<2x8x4xf32>, vector<2x8x4xf32> -> vector<2x8x4xf32>
    "tpu.trace_stop"() : () -> ()
    %129 = vector.extract_strided_slice %28 {offsets = [0, 0, 28], sizes = [2, 8, 4], strides = [1, 1, 1]} : vector<2x8x32xf32> to vector<2x8x4xf32>
    %130 = vector.extract_strided_slice %29 {offsets = [0, 0, 28], sizes = [2, 8, 4], strides = [1, 1, 1]} : vector<2x8x32xf32> to vector<2x8x4xf32>
    "tpu.trace_start"() <{level = 10 : i32, message = "bqd,bkd->bqk"}> : () -> ()
    %cst_58 = arith.constant dense<0.000000e+00> : vector<2x8x8xf32>
    %131 = tpu.matmul %129, %130, %cst_58 {dimension_numbers = #tpu.dot_dimension_numbers<[2], [2], [1], [1], [0, 0, 0, 1, 1, 1], [0], [0]>} : vector<2x8x4xf32>, vector<2x8x4xf32>, vector<2x8x8xf32> -> vector<2x8x8xf32>
    "tpu.trace_stop"() : () -> ()
    %cst_59 = arith.constant dense<0xFF800000> : vector<2x8xf32>
    %132 = vector.multi_reduction <maximumf>, %131, %cst_59 [2] : vector<2x8x8xf32> to vector<2x8xf32>
    %133 = vector.shape_cast %132 : vector<2x8xf32> to vector<2x8x1xf32>
    %134 = vector.broadcast %133 : vector<2x8x1xf32> to vector<2x8x8xf32>
    %135 = arith.subf %131, %134 : vector<2x8x8xf32>
    %136 = math.exp %135 : vector<2x8x8xf32>
    %cst_60 = arith.constant dense<0.000000e+00> : vector<2x8xf32>
    %137 = vector.multi_reduction <add>, %136, %cst_60 [2] : vector<2x8x8xf32> to vector<2x8xf32>
    %138 = vector.shape_cast %137 : vector<2x8xf32> to vector<2x8x1xf32>
    %139 = vector.broadcast %138 : vector<2x8x1xf32> to vector<2x8x8xf32>
    %140 = arith.divf %136, %139 : vector<2x8x8xf32>
    %141 = vector.extract_strided_slice %30 {offsets = [0, 0, 28], sizes = [2, 8, 4], strides = [1, 1, 1]} : vector<2x8x32xf32> to vector<2x8x4xf32>
    "tpu.trace_start"() <{level = 10 : i32, message = "bqk,bkd->bqd"}> : () -> ()
    %cst_61 = arith.constant dense<0.000000e+00> : vector<2x8x4xf32>
    %142 = tpu.matmul %140, %141, %cst_61 {dimension_numbers = #tpu.dot_dimension_numbers<[2], [1], [1], [2], [0, 0, 0, 1, 1, 2], [0], [0]>} : vector<2x8x8xf32>, vector<2x8x4xf32>, vector<2x8x4xf32> -> vector<2x8x4xf32>
    "tpu.trace_stop"() : () -> ()
    %143 = tpu.concatenate %44, %58, %72, %86, %100, %114, %128, %142 in 2 : vector<2x8x4xf32>, vector<2x8x4xf32>, vector<2x8x4xf32>, vector<2x8x4xf32>, vector<2x8x4xf32>, vector<2x8x4xf32>, vector<2x8x4xf32>, vector<2x8x4xf32> -> vector<2x8x32xf32>
    %144 = vector.shape_cast %143 : vector<2x8x32xf32> to vector<16x32xf32>
    %c0_62 = arith.constant 0 : index
    %c3 = arith.constant 3 : index
    %c0_63 = arith.constant 0 : index
    %c0_64 = arith.constant 0 : index
    %145 = vector.load %arg4[%c0_62, %c3, %c0_63, %c0_64] : memref<1x8x32x32xf32, #tpu.memory_space<vmem>>, vector<1x1x32x32xf32>
    %146 = vector.shape_cast %145 : vector<1x1x32x32xf32> to vector<32x32xf32>
    %cst_65 = arith.constant dense<0.000000e+00> : vector<16x32xf32>
    %147 = tpu.matmul %144, %146, %cst_65 {dimension_numbers = #tpu.dot_dimension_numbers<[1], [0], [0], [1], [0, 0, 1, 1], [], []>} : vector<16x32xf32>, vector<32x32xf32>, vector<16x32xf32> -> vector<16x32xf32>
    %c0_66 = arith.constant 0 : index
    %c3_67 = arith.constant 3 : index
    %c0_68 = arith.constant 0 : index
    %c0_69 = arith.constant 0 : index
    %148 = vector.load %arg5[%c0_66, %c3_67, %c0_68, %c0_69] : memref<1x8x1x32xf32, #tpu.memory_space<vmem>>, vector<1x1x1x32xf32>
    %149 = vector.shape_cast %148 : vector<1x1x1x32xf32> to vector<1x32xf32>
    %150 = vector.broadcast %149 : vector<1x32xf32> to vector<16x32xf32>
    %151 = arith.addf %147, %150 : vector<16x32xf32>
    %152 = arith.addf %4, %151 : vector<16x32xf32>
    %cst_70 = arith.constant dense<0.000000e+00> : vector<16xf32>
    %153 = vector.multi_reduction <add>, %152, %cst_70 [1] : vector<16x32xf32> to vector<16xf32>
    %154 = vector.shape_cast %153 : vector<16xf32> to vector<16x1xf32>
    %cst_71 = arith.constant 3.200000e+01 : f32
    %155 = vector.broadcast %cst_71 : f32 to vector<16x1xf32>
    %156 = arith.divf %154, %155 : vector<16x1xf32>
    %157 = vector.broadcast %156 : vector<16x1xf32> to vector<16x32xf32>
    %158 = arith.subf %152, %157 : vector<16x32xf32>
    %159 = arith.mulf %158, %158 : vector<16x32xf32>
    %cst_72 = arith.constant dense<0.000000e+00> : vector<16xf32>
    %160 = vector.multi_reduction <add>, %159, %cst_72 [1] : vector<16x32xf32> to vector<16xf32>
    %161 = vector.shape_cast %160 : vector<16xf32> to vector<16x1xf32>
    %cst_73 = arith.constant 3.200000e+01 : f32
    %162 = vector.broadcast %cst_73 : f32 to vector<16x1xf32>
    %163 = arith.divf %161, %162 : vector<16x1xf32>
    %cst_74 = arith.constant 9.99999974E-6 : f32
    %164 = vector.broadcast %cst_74 : f32 to vector<16x1xf32>
    %165 = arith.addf %163, %164 : vector<16x1xf32>
    %166 = math.rsqrt %165 : vector<16x1xf32>
    %167 = vector.broadcast %166 : vector<16x1xf32> to vector<16x32xf32>
    %168 = arith.mulf %158, %167 : vector<16x32xf32>
    %c0_75 = arith.constant 0 : index
    %c0_76 = arith.constant 0 : index
    %c0_77 = arith.constant 0 : index
    %c0_78 = arith.constant 0 : index
    %169 = vector.load %arg8[%c0_75, %c0_76, %c0_77, %c0_78] : memref<1x3x1x32xf32, #tpu.memory_space<vmem>>, vector<1x1x1x32xf32>
    %170 = vector.shape_cast %169 : vector<1x1x1x32xf32> to vector<1x32xf32>
    %171 = vector.broadcast %170 : vector<1x32xf32> to vector<16x32xf32>
    %172 = arith.mulf %168, %171 : vector<16x32xf32>
    %c0_79 = arith.constant 0 : index
    %c0_80 = arith.constant 0 : index
    %c0_81 = arith.constant 0 : index
    %c0_82 = arith.constant 0 : index
    %173 = vector.load %arg9[%c0_79, %c0_80, %c0_81, %c0_82] : memref<1x3x1x32xf32, #tpu.memory_space<vmem>>, vector<1x1x1x32xf32>
    %174 = vector.shape_cast %173 : vector<1x1x1x32xf32> to vector<1x32xf32>
    %175 = vector.broadcast %174 : vector<1x32xf32> to vector<16x32xf32>
    %176 = arith.addf %172, %175 : vector<16x32xf32>
    %c0_83 = arith.constant 0 : index
    %c4 = arith.constant 4 : index
    %c0_84 = arith.constant 0 : index
    %c0_85 = arith.constant 0 : index
    %177 = vector.load %arg4[%c0_83, %c4, %c0_84, %c0_85] : memref<1x8x32x32xf32, #tpu.memory_space<vmem>>, vector<1x1x32x32xf32>
    %178 = vector.shape_cast %177 : vector<1x1x32x32xf32> to vector<32x32xf32>
    %cst_86 = arith.constant dense<0.000000e+00> : vector<16x32xf32>
    %179 = tpu.matmul %176, %178, %cst_86 {dimension_numbers = #tpu.dot_dimension_numbers<[1], [0], [0], [1], [0, 0, 1, 1], [], []>} : vector<16x32xf32>, vector<32x32xf32>, vector<16x32xf32> -> vector<16x32xf32>
    %c0_87 = arith.constant 0 : index
    %c4_88 = arith.constant 4 : index
    %c0_89 = arith.constant 0 : index
    %c0_90 = arith.constant 0 : index
    %180 = vector.load %arg5[%c0_87, %c4_88, %c0_89, %c0_90] : memref<1x8x1x32xf32, #tpu.memory_space<vmem>>, vector<1x1x1x32xf32>
    %181 = vector.shape_cast %180 : vector<1x1x1x32xf32> to vector<1x32xf32>
    %182 = vector.broadcast %181 : vector<1x32xf32> to vector<16x32xf32>
    %183 = arith.addf %179, %182 : vector<16x32xf32>
    %c0_91 = arith.constant 0 : index
    %c5 = arith.constant 5 : index
    %c0_92 = arith.constant 0 : index
    %c0_93 = arith.constant 0 : index
    %184 = vector.load %arg4[%c0_91, %c5, %c0_92, %c0_93] : memref<1x8x32x32xf32, #tpu.memory_space<vmem>>, vector<1x1x32x32xf32>
    %185 = vector.shape_cast %184 : vector<1x1x32x32xf32> to vector<32x32xf32>
    %cst_94 = arith.constant dense<0.000000e+00> : vector<16x32xf32>
    %186 = tpu.matmul %6, %185, %cst_94 {dimension_numbers = #tpu.dot_dimension_numbers<[1], [0], [0], [1], [0, 0, 1, 1], [], []>} : vector<16x32xf32>, vector<32x32xf32>, vector<16x32xf32> -> vector<16x32xf32>
    %c0_95 = arith.constant 0 : index
    %c5_96 = arith.constant 5 : index
    %c0_97 = arith.constant 0 : index
    %c0_98 = arith.constant 0 : index
    %187 = vector.load %arg5[%c0_95, %c5_96, %c0_97, %c0_98] : memref<1x8x1x32xf32, #tpu.memory_space<vmem>>, vector<1x1x1x32xf32>
    %188 = vector.shape_cast %187 : vector<1x1x1x32xf32> to vector<1x32xf32>
    %189 = vector.broadcast %188 : vector<1x32xf32> to vector<16x32xf32>
    %190 = arith.addf %186, %189 : vector<16x32xf32>
    %c0_99 = arith.constant 0 : index
    %c6 = arith.constant 6 : index
    %c0_100 = arith.constant 0 : index
    %c0_101 = arith.constant 0 : index
    %191 = vector.load %arg4[%c0_99, %c6, %c0_100, %c0_101] : memref<1x8x32x32xf32, #tpu.memory_space<vmem>>, vector<1x1x32x32xf32>
    %192 = vector.shape_cast %191 : vector<1x1x32x32xf32> to vector<32x32xf32>
    %cst_102 = arith.constant dense<0.000000e+00> : vector<16x32xf32>
    %193 = tpu.matmul %6, %192, %cst_102 {dimension_numbers = #tpu.dot_dimension_numbers<[1], [0], [0], [1], [0, 0, 1, 1], [], []>} : vector<16x32xf32>, vector<32x32xf32>, vector<16x32xf32> -> vector<16x32xf32>
    %c0_103 = arith.constant 0 : index
    %c6_104 = arith.constant 6 : index
    %c0_105 = arith.constant 0 : index
    %c0_106 = arith.constant 0 : index
    %194 = vector.load %arg5[%c0_103, %c6_104, %c0_105, %c0_106] : memref<1x8x1x32xf32, #tpu.memory_space<vmem>>, vector<1x1x1x32xf32>
    %195 = vector.shape_cast %194 : vector<1x1x1x32xf32> to vector<1x32xf32>
    %196 = vector.broadcast %195 : vector<1x32xf32> to vector<16x32xf32>
    %197 = arith.addf %193, %196 : vector<16x32xf32>
    %198 = vector.shape_cast %183 : vector<16x32xf32> to vector<2x8x32xf32>
    %199 = vector.shape_cast %190 : vector<16x32xf32> to vector<2x8x32xf32>
    %200 = vector.shape_cast %197 : vector<16x32xf32> to vector<2x8x32xf32>
    %201 = vector.extract_strided_slice %198 {offsets = [0, 0, 0], sizes = [2, 8, 4], strides = [1, 1, 1]} : vector<2x8x32xf32> to vector<2x8x4xf32>
    %202 = vector.extract_strided_slice %199 {offsets = [0, 0, 0], sizes = [2, 8, 4], strides = [1, 1, 1]} : vector<2x8x32xf32> to vector<2x8x4xf32>
    "tpu.trace_start"() <{level = 10 : i32, message = "bqd,bkd->bqk"}> : () -> ()
    %cst_107 = arith.constant dense<0.000000e+00> : vector<2x8x8xf32>
    %203 = tpu.matmul %201, %202, %cst_107 {dimension_numbers = #tpu.dot_dimension_numbers<[2], [2], [1], [1], [0, 0, 0, 1, 1, 1], [0], [0]>} : vector<2x8x4xf32>, vector<2x8x4xf32>, vector<2x8x8xf32> -> vector<2x8x8xf32>
    "tpu.trace_stop"() : () -> ()
    %cst_108 = arith.constant dense<0xFF800000> : vector<2x8xf32>
    %204 = vector.multi_reduction <maximumf>, %203, %cst_108 [2] : vector<2x8x8xf32> to vector<2x8xf32>
    %205 = vector.shape_cast %204 : vector<2x8xf32> to vector<2x8x1xf32>
    %206 = vector.broadcast %205 : vector<2x8x1xf32> to vector<2x8x8xf32>
    %207 = arith.subf %203, %206 : vector<2x8x8xf32>
    %208 = math.exp %207 : vector<2x8x8xf32>
    %cst_109 = arith.constant dense<0.000000e+00> : vector<2x8xf32>
    %209 = vector.multi_reduction <add>, %208, %cst_109 [2] : vector<2x8x8xf32> to vector<2x8xf32>
    %210 = vector.shape_cast %209 : vector<2x8xf32> to vector<2x8x1xf32>
    %211 = vector.broadcast %210 : vector<2x8x1xf32> to vector<2x8x8xf32>
    %212 = arith.divf %208, %211 : vector<2x8x8xf32>
    %213 = vector.extract_strided_slice %200 {offsets = [0, 0, 0], sizes = [2, 8, 4], strides = [1, 1, 1]} : vector<2x8x32xf32> to vector<2x8x4xf32>
    "tpu.trace_start"() <{level = 10 : i32, message = "bqk,bkd->bqd"}> : () -> ()
    %cst_110 = arith.constant dense<0.000000e+00> : vector<2x8x4xf32>
    %214 = tpu.matmul %212, %213, %cst_110 {dimension_numbers = #tpu.dot_dimension_numbers<[2], [1], [1], [2], [0, 0, 0, 1, 1, 2], [0], [0]>} : vector<2x8x8xf32>, vector<2x8x4xf32>, vector<2x8x4xf32> -> vector<2x8x4xf32>
    "tpu.trace_stop"() : () -> ()
    %215 = vector.extract_strided_slice %198 {offsets = [0, 0, 4], sizes = [2, 8, 4], strides = [1, 1, 1]} : vector<2x8x32xf32> to vector<2x8x4xf32>
    %216 = vector.extract_strided_slice %199 {offsets = [0, 0, 4], sizes = [2, 8, 4], strides = [1, 1, 1]} : vector<2x8x32xf32> to vector<2x8x4xf32>
    "tpu.trace_start"() <{level = 10 : i32, message = "bqd,bkd->bqk"}> : () -> ()
    %cst_111 = arith.constant dense<0.000000e+00> : vector<2x8x8xf32>
    %217 = tpu.matmul %215, %216, %cst_111 {dimension_numbers = #tpu.dot_dimension_numbers<[2], [2], [1], [1], [0, 0, 0, 1, 1, 1], [0], [0]>} : vector<2x8x4xf32>, vector<2x8x4xf32>, vector<2x8x8xf32> -> vector<2x8x8xf32>
    "tpu.trace_stop"() : () -> ()
    %cst_112 = arith.constant dense<0xFF800000> : vector<2x8xf32>
    %218 = vector.multi_reduction <maximumf>, %217, %cst_112 [2] : vector<2x8x8xf32> to vector<2x8xf32>
    %219 = vector.shape_cast %218 : vector<2x8xf32> to vector<2x8x1xf32>
    %220 = vector.broadcast %219 : vector<2x8x1xf32> to vector<2x8x8xf32>
    %221 = arith.subf %217, %220 : vector<2x8x8xf32>
    %222 = math.exp %221 : vector<2x8x8xf32>
    %cst_113 = arith.constant dense<0.000000e+00> : vector<2x8xf32>
    %223 = vector.multi_reduction <add>, %222, %cst_113 [2] : vector<2x8x8xf32> to vector<2x8xf32>
    %224 = vector.shape_cast %223 : vector<2x8xf32> to vector<2x8x1xf32>
    %225 = vector.broadcast %224 : vector<2x8x1xf32> to vector<2x8x8xf32>
    %226 = arith.divf %222, %225 : vector<2x8x8xf32>
    %227 = vector.extract_strided_slice %200 {offsets = [0, 0, 4], sizes = [2, 8, 4], strides = [1, 1, 1]} : vector<2x8x32xf32> to vector<2x8x4xf32>
    "tpu.trace_start"() <{level = 10 : i32, message = "bqk,bkd->bqd"}> : () -> ()
    %cst_114 = arith.constant dense<0.000000e+00> : vector<2x8x4xf32>
    %228 = tpu.matmul %226, %227, %cst_114 {dimension_numbers = #tpu.dot_dimension_numbers<[2], [1], [1], [2], [0, 0, 0, 1, 1, 2], [0], [0]>} : vector<2x8x8xf32>, vector<2x8x4xf32>, vector<2x8x4xf32> -> vector<2x8x4xf32>
    "tpu.trace_stop"() : () -> ()
    %229 = vector.extract_strided_slice %198 {offsets = [0, 0, 8], sizes = [2, 8, 4], strides = [1, 1, 1]} : vector<2x8x32xf32> to vector<2x8x4xf32>
    %230 = vector.extract_strided_slice %199 {offsets = [0, 0, 8], sizes = [2, 8, 4], strides = [1, 1, 1]} : vector<2x8x32xf32> to vector<2x8x4xf32>
    "tpu.trace_start"() <{level = 10 : i32, message = "bqd,bkd->bqk"}> : () -> ()
    %cst_115 = arith.constant dense<0.000000e+00> : vector<2x8x8xf32>
    %231 = tpu.matmul %229, %230, %cst_115 {dimension_numbers = #tpu.dot_dimension_numbers<[2], [2], [1], [1], [0, 0, 0, 1, 1, 1], [0], [0]>} : vector<2x8x4xf32>, vector<2x8x4xf32>, vector<2x8x8xf32> -> vector<2x8x8xf32>
    "tpu.trace_stop"() : () -> ()
    %cst_116 = arith.constant dense<0xFF800000> : vector<2x8xf32>
    %232 = vector.multi_reduction <maximumf>, %231, %cst_116 [2] : vector<2x8x8xf32> to vector<2x8xf32>
    %233 = vector.shape_cast %232 : vector<2x8xf32> to vector<2x8x1xf32>
    %234 = vector.broadcast %233 : vector<2x8x1xf32> to vector<2x8x8xf32>
    %235 = arith.subf %231, %234 : vector<2x8x8xf32>
    %236 = math.exp %235 : vector<2x8x8xf32>
    %cst_117 = arith.constant dense<0.000000e+00> : vector<2x8xf32>
    %237 = vector.multi_reduction <add>, %236, %cst_117 [2] : vector<2x8x8xf32> to vector<2x8xf32>
    %238 = vector.shape_cast %237 : vector<2x8xf32> to vector<2x8x1xf32>
    %239 = vector.broadcast %238 : vector<2x8x1xf32> to vector<2x8x8xf32>
    %240 = arith.divf %236, %239 : vector<2x8x8xf32>
    %241 = vector.extract_strided_slice %200 {offsets = [0, 0, 8], sizes = [2, 8, 4], strides = [1, 1, 1]} : vector<2x8x32xf32> to vector<2x8x4xf32>
    "tpu.trace_start"() <{level = 10 : i32, message = "bqk,bkd->bqd"}> : () -> ()
    %cst_118 = arith.constant dense<0.000000e+00> : vector<2x8x4xf32>
    %242 = tpu.matmul %240, %241, %cst_118 {dimension_numbers = #tpu.dot_dimension_numbers<[2], [1], [1], [2], [0, 0, 0, 1, 1, 2], [0], [0]>} : vector<2x8x8xf32>, vector<2x8x4xf32>, vector<2x8x4xf32> -> vector<2x8x4xf32>
    "tpu.trace_stop"() : () -> ()
    %243 = vector.extract_strided_slice %198 {offsets = [0, 0, 12], sizes = [2, 8, 4], strides = [1, 1, 1]} : vector<2x8x32xf32> to vector<2x8x4xf32>
    %244 = vector.extract_strided_slice %199 {offsets = [0, 0, 12], sizes = [2, 8, 4], strides = [1, 1, 1]} : vector<2x8x32xf32> to vector<2x8x4xf32>
    "tpu.trace_start"() <{level = 10 : i32, message = "bqd,bkd->bqk"}> : () -> ()
    %cst_119 = arith.constant dense<0.000000e+00> : vector<2x8x8xf32>
    %245 = tpu.matmul %243, %244, %cst_119 {dimension_numbers = #tpu.dot_dimension_numbers<[2], [2], [1], [1], [0, 0, 0, 1, 1, 1], [0], [0]>} : vector<2x8x4xf32>, vector<2x8x4xf32>, vector<2x8x8xf32> -> vector<2x8x8xf32>
    "tpu.trace_stop"() : () -> ()
    %cst_120 = arith.constant dense<0xFF800000> : vector<2x8xf32>
    %246 = vector.multi_reduction <maximumf>, %245, %cst_120 [2] : vector<2x8x8xf32> to vector<2x8xf32>
    %247 = vector.shape_cast %246 : vector<2x8xf32> to vector<2x8x1xf32>
    %248 = vector.broadcast %247 : vector<2x8x1xf32> to vector<2x8x8xf32>
    %249 = arith.subf %245, %248 : vector<2x8x8xf32>
    %250 = math.exp %249 : vector<2x8x8xf32>
    %cst_121 = arith.constant dense<0.000000e+00> : vector<2x8xf32>
    %251 = vector.multi_reduction <add>, %250, %cst_121 [2] : vector<2x8x8xf32> to vector<2x8xf32>
    %252 = vector.shape_cast %251 : vector<2x8xf32> to vector<2x8x1xf32>
    %253 = vector.broadcast %252 : vector<2x8x1xf32> to vector<2x8x8xf32>
    %254 = arith.divf %250, %253 : vector<2x8x8xf32>
    %255 = vector.extract_strided_slice %200 {offsets = [0, 0, 12], sizes = [2, 8, 4], strides = [1, 1, 1]} : vector<2x8x32xf32> to vector<2x8x4xf32>
    "tpu.trace_start"() <{level = 10 : i32, message = "bqk,bkd->bqd"}> : () -> ()
    %cst_122 = arith.constant dense<0.000000e+00> : vector<2x8x4xf32>
    %256 = tpu.matmul %254, %255, %cst_122 {dimension_numbers = #tpu.dot_dimension_numbers<[2], [1], [1], [2], [0, 0, 0, 1, 1, 2], [0], [0]>} : vector<2x8x8xf32>, vector<2x8x4xf32>, vector<2x8x4xf32> -> vector<2x8x4xf32>
    "tpu.trace_stop"() : () -> ()
    %257 = vector.extract_strided_slice %198 {offsets = [0, 0, 16], sizes = [2, 8, 4], strides = [1, 1, 1]} : vector<2x8x32xf32> to vector<2x8x4xf32>
    %258 = vector.extract_strided_slice %199 {offsets = [0, 0, 16], sizes = [2, 8, 4], strides = [1, 1, 1]} : vector<2x8x32xf32> to vector<2x8x4xf32>
    "tpu.trace_start"() <{level = 10 : i32, message = "bqd,bkd->bqk"}> : () -> ()
    %cst_123 = arith.constant dense<0.000000e+00> : vector<2x8x8xf32>
    %259 = tpu.matmul %257, %258, %cst_123 {dimension_numbers = #tpu.dot_dimension_numbers<[2], [2], [1], [1], [0, 0, 0, 1, 1, 1], [0], [0]>} : vector<2x8x4xf32>, vector<2x8x4xf32>, vector<2x8x8xf32> -> vector<2x8x8xf32>
    "tpu.trace_stop"() : () -> ()
    %cst_124 = arith.constant dense<0xFF800000> : vector<2x8xf32>
    %260 = vector.multi_reduction <maximumf>, %259, %cst_124 [2] : vector<2x8x8xf32> to vector<2x8xf32>
    %261 = vector.shape_cast %260 : vector<2x8xf32> to vector<2x8x1xf32>
    %262 = vector.broadcast %261 : vector<2x8x1xf32> to vector<2x8x8xf32>
    %263 = arith.subf %259, %262 : vector<2x8x8xf32>
    %264 = math.exp %263 : vector<2x8x8xf32>
    %cst_125 = arith.constant dense<0.000000e+00> : vector<2x8xf32>
    %265 = vector.multi_reduction <add>, %264, %cst_125 [2] : vector<2x8x8xf32> to vector<2x8xf32>
    %266 = vector.shape_cast %265 : vector<2x8xf32> to vector<2x8x1xf32>
    %267 = vector.broadcast %266 : vector<2x8x1xf32> to vector<2x8x8xf32>
    %268 = arith.divf %264, %267 : vector<2x8x8xf32>
    %269 = vector.extract_strided_slice %200 {offsets = [0, 0, 16], sizes = [2, 8, 4], strides = [1, 1, 1]} : vector<2x8x32xf32> to vector<2x8x4xf32>
    "tpu.trace_start"() <{level = 10 : i32, message = "bqk,bkd->bqd"}> : () -> ()
    %cst_126 = arith.constant dense<0.000000e+00> : vector<2x8x4xf32>
    %270 = tpu.matmul %268, %269, %cst_126 {dimension_numbers = #tpu.dot_dimension_numbers<[2], [1], [1], [2], [0, 0, 0, 1, 1, 2], [0], [0]>} : vector<2x8x8xf32>, vector<2x8x4xf32>, vector<2x8x4xf32> -> vector<2x8x4xf32>
    "tpu.trace_stop"() : () -> ()
    %271 = vector.extract_strided_slice %198 {offsets = [0, 0, 20], sizes = [2, 8, 4], strides = [1, 1, 1]} : vector<2x8x32xf32> to vector<2x8x4xf32>
    %272 = vector.extract_strided_slice %199 {offsets = [0, 0, 20], sizes = [2, 8, 4], strides = [1, 1, 1]} : vector<2x8x32xf32> to vector<2x8x4xf32>
    "tpu.trace_start"() <{level = 10 : i32, message = "bqd,bkd->bqk"}> : () -> ()
    %cst_127 = arith.constant dense<0.000000e+00> : vector<2x8x8xf32>
    %273 = tpu.matmul %271, %272, %cst_127 {dimension_numbers = #tpu.dot_dimension_numbers<[2], [2], [1], [1], [0, 0, 0, 1, 1, 1], [0], [0]>} : vector<2x8x4xf32>, vector<2x8x4xf32>, vector<2x8x8xf32> -> vector<2x8x8xf32>
    "tpu.trace_stop"() : () -> ()
    %cst_128 = arith.constant dense<0xFF800000> : vector<2x8xf32>
    %274 = vector.multi_reduction <maximumf>, %273, %cst_128 [2] : vector<2x8x8xf32> to vector<2x8xf32>
    %275 = vector.shape_cast %274 : vector<2x8xf32> to vector<2x8x1xf32>
    %276 = vector.broadcast %275 : vector<2x8x1xf32> to vector<2x8x8xf32>
    %277 = arith.subf %273, %276 : vector<2x8x8xf32>
    %278 = math.exp %277 : vector<2x8x8xf32>
    %cst_129 = arith.constant dense<0.000000e+00> : vector<2x8xf32>
    %279 = vector.multi_reduction <add>, %278, %cst_129 [2] : vector<2x8x8xf32> to vector<2x8xf32>
    %280 = vector.shape_cast %279 : vector<2x8xf32> to vector<2x8x1xf32>
    %281 = vector.broadcast %280 : vector<2x8x1xf32> to vector<2x8x8xf32>
    %282 = arith.divf %278, %281 : vector<2x8x8xf32>
    %283 = vector.extract_strided_slice %200 {offsets = [0, 0, 20], sizes = [2, 8, 4], strides = [1, 1, 1]} : vector<2x8x32xf32> to vector<2x8x4xf32>
    "tpu.trace_start"() <{level = 10 : i32, message = "bqk,bkd->bqd"}> : () -> ()
    %cst_130 = arith.constant dense<0.000000e+00> : vector<2x8x4xf32>
    %284 = tpu.matmul %282, %283, %cst_130 {dimension_numbers = #tpu.dot_dimension_numbers<[2], [1], [1], [2], [0, 0, 0, 1, 1, 2], [0], [0]>} : vector<2x8x8xf32>, vector<2x8x4xf32>, vector<2x8x4xf32> -> vector<2x8x4xf32>
    "tpu.trace_stop"() : () -> ()
    %285 = vector.extract_strided_slice %198 {offsets = [0, 0, 24], sizes = [2, 8, 4], strides = [1, 1, 1]} : vector<2x8x32xf32> to vector<2x8x4xf32>
    %286 = vector.extract_strided_slice %199 {offsets = [0, 0, 24], sizes = [2, 8, 4], strides = [1, 1, 1]} : vector<2x8x32xf32> to vector<2x8x4xf32>
    "tpu.trace_start"() <{level = 10 : i32, message = "bqd,bkd->bqk"}> : () -> ()
    %cst_131 = arith.constant dense<0.000000e+00> : vector<2x8x8xf32>
    %287 = tpu.matmul %285, %286, %cst_131 {dimension_numbers = #tpu.dot_dimension_numbers<[2], [2], [1], [1], [0, 0, 0, 1, 1, 1], [0], [0]>} : vector<2x8x4xf32>, vector<2x8x4xf32>, vector<2x8x8xf32> -> vector<2x8x8xf32>
    "tpu.trace_stop"() : () -> ()
    %cst_132 = arith.constant dense<0xFF800000> : vector<2x8xf32>
    %288 = vector.multi_reduction <maximumf>, %287, %cst_132 [2] : vector<2x8x8xf32> to vector<2x8xf32>
    %289 = vector.shape_cast %288 : vector<2x8xf32> to vector<2x8x1xf32>
    %290 = vector.broadcast %289 : vector<2x8x1xf32> to vector<2x8x8xf32>
    %291 = arith.subf %287, %290 : vector<2x8x8xf32>
    %292 = math.exp %291 : vector<2x8x8xf32>
    %cst_133 = arith.constant dense<0.000000e+00> : vector<2x8xf32>
    %293 = vector.multi_reduction <add>, %292, %cst_133 [2] : vector<2x8x8xf32> to vector<2x8xf32>
    %294 = vector.shape_cast %293 : vector<2x8xf32> to vector<2x8x1xf32>
    %295 = vector.broadcast %294 : vector<2x8x1xf32> to vector<2x8x8xf32>
    %296 = arith.divf %292, %295 : vector<2x8x8xf32>
    %297 = vector.extract_strided_slice %200 {offsets = [0, 0, 24], sizes = [2, 8, 4], strides = [1, 1, 1]} : vector<2x8x32xf32> to vector<2x8x4xf32>
    "tpu.trace_start"() <{level = 10 : i32, message = "bqk,bkd->bqd"}> : () -> ()
    %cst_134 = arith.constant dense<0.000000e+00> : vector<2x8x4xf32>
    %298 = tpu.matmul %296, %297, %cst_134 {dimension_numbers = #tpu.dot_dimension_numbers<[2], [1], [1], [2], [0, 0, 0, 1, 1, 2], [0], [0]>} : vector<2x8x8xf32>, vector<2x8x4xf32>, vector<2x8x4xf32> -> vector<2x8x4xf32>
    "tpu.trace_stop"() : () -> ()
    %299 = vector.extract_strided_slice %198 {offsets = [0, 0, 28], sizes = [2, 8, 4], strides = [1, 1, 1]} : vector<2x8x32xf32> to vector<2x8x4xf32>
    %300 = vector.extract_strided_slice %199 {offsets = [0, 0, 28], sizes = [2, 8, 4], strides = [1, 1, 1]} : vector<2x8x32xf32> to vector<2x8x4xf32>
    "tpu.trace_start"() <{level = 10 : i32, message = "bqd,bkd->bqk"}> : () -> ()
    %cst_135 = arith.constant dense<0.000000e+00> : vector<2x8x8xf32>
    %301 = tpu.matmul %299, %300, %cst_135 {dimension_numbers = #tpu.dot_dimension_numbers<[2], [2], [1], [1], [0, 0, 0, 1, 1, 1], [0], [0]>} : vector<2x8x4xf32>, vector<2x8x4xf32>, vector<2x8x8xf32> -> vector<2x8x8xf32>
    "tpu.trace_stop"() : () -> ()
    %cst_136 = arith.constant dense<0xFF800000> : vector<2x8xf32>
    %302 = vector.multi_reduction <maximumf>, %301, %cst_136 [2] : vector<2x8x8xf32> to vector<2x8xf32>
    %303 = vector.shape_cast %302 : vector<2x8xf32> to vector<2x8x1xf32>
    %304 = vector.broadcast %303 : vector<2x8x1xf32> to vector<2x8x8xf32>
    %305 = arith.subf %301, %304 : vector<2x8x8xf32>
    %306 = math.exp %305 : vector<2x8x8xf32>
    %cst_137 = arith.constant dense<0.000000e+00> : vector<2x8xf32>
    %307 = vector.multi_reduction <add>, %306, %cst_137 [2] : vector<2x8x8xf32> to vector<2x8xf32>
    %308 = vector.shape_cast %307 : vector<2x8xf32> to vector<2x8x1xf32>
    %309 = vector.broadcast %308 : vector<2x8x1xf32> to vector<2x8x8xf32>
    %310 = arith.divf %306, %309 : vector<2x8x8xf32>
    %311 = vector.extract_strided_slice %200 {offsets = [0, 0, 28], sizes = [2, 8, 4], strides = [1, 1, 1]} : vector<2x8x32xf32> to vector<2x8x4xf32>
    "tpu.trace_start"() <{level = 10 : i32, message = "bqk,bkd->bqd"}> : () -> ()
    %cst_138 = arith.constant dense<0.000000e+00> : vector<2x8x4xf32>
    %312 = tpu.matmul %310, %311, %cst_138 {dimension_numbers = #tpu.dot_dimension_numbers<[2], [1], [1], [2], [0, 0, 0, 1, 1, 2], [0], [0]>} : vector<2x8x8xf32>, vector<2x8x4xf32>, vector<2x8x4xf32> -> vector<2x8x4xf32>
    "tpu.trace_stop"() : () -> ()
    %313 = tpu.concatenate %214, %228, %242, %256, %270, %284, %298, %312 in 2 : vector<2x8x4xf32>, vector<2x8x4xf32>, vector<2x8x4xf32>, vector<2x8x4xf32>, vector<2x8x4xf32>, vector<2x8x4xf32>, vector<2x8x4xf32>, vector<2x8x4xf32> -> vector<2x8x32xf32>
    %314 = vector.shape_cast %313 : vector<2x8x32xf32> to vector<16x32xf32>
    %c0_139 = arith.constant 0 : index
    %c7 = arith.constant 7 : index
    %c0_140 = arith.constant 0 : index
    %c0_141 = arith.constant 0 : index
    %315 = vector.load %arg4[%c0_139, %c7, %c0_140, %c0_141] : memref<1x8x32x32xf32, #tpu.memory_space<vmem>>, vector<1x1x32x32xf32>
    %316 = vector.shape_cast %315 : vector<1x1x32x32xf32> to vector<32x32xf32>
    %cst_142 = arith.constant dense<0.000000e+00> : vector<16x32xf32>
    %317 = tpu.matmul %314, %316, %cst_142 {dimension_numbers = #tpu.dot_dimension_numbers<[1], [0], [0], [1], [0, 0, 1, 1], [], []>} : vector<16x32xf32>, vector<32x32xf32>, vector<16x32xf32> -> vector<16x32xf32>
    %c0_143 = arith.constant 0 : index
    %c7_144 = arith.constant 7 : index
    %c0_145 = arith.constant 0 : index
    %c0_146 = arith.constant 0 : index
    %318 = vector.load %arg5[%c0_143, %c7_144, %c0_145, %c0_146] : memref<1x8x1x32xf32, #tpu.memory_space<vmem>>, vector<1x1x1x32xf32>
    %319 = vector.shape_cast %318 : vector<1x1x1x32xf32> to vector<1x32xf32>
    %320 = vector.broadcast %319 : vector<1x32xf32> to vector<16x32xf32>
    %321 = arith.addf %317, %320 : vector<16x32xf32>
    %c0_147 = arith.constant 0 : index
    %c0_148 = arith.constant 0 : index
    %c0_149 = arith.constant 0 : index
    %c0_150 = arith.constant 0 : index
    %322 = vector.load %arg6[%c0_147, %c0_148, %c0_149, %c0_150] : memref<1x2x32x32xf32, #tpu.memory_space<vmem>>, vector<1x1x32x32xf32>
    %323 = vector.shape_cast %322 : vector<1x1x32x32xf32> to vector<32x32xf32>
    %cst_151 = arith.constant dense<0.000000e+00> : vector<16x32xf32>
    %324 = tpu.matmul %176, %323, %cst_151 {dimension_numbers = #tpu.dot_dimension_numbers<[1], [0], [0], [1], [0, 0, 1, 1], [], []>} : vector<16x32xf32>, vector<32x32xf32>, vector<16x32xf32> -> vector<16x32xf32>
    %c0_152 = arith.constant 0 : index
    %c1_153 = arith.constant 1 : index
    %c0_154 = arith.constant 0 : index
    %c0_155 = arith.constant 0 : index
    %325 = vector.load %arg6[%c0_152, %c1_153, %c0_154, %c0_155] : memref<1x2x32x32xf32, #tpu.memory_space<vmem>>, vector<1x1x32x32xf32>
    %326 = vector.shape_cast %325 : vector<1x1x32x32xf32> to vector<32x32xf32>
    %cst_156 = arith.constant dense<0.000000e+00> : vector<16x32xf32>
    %327 = tpu.matmul %321, %326, %cst_156 {dimension_numbers = #tpu.dot_dimension_numbers<[1], [0], [0], [1], [0, 0, 1, 1], [], []>} : vector<16x32xf32>, vector<32x32xf32>, vector<16x32xf32> -> vector<16x32xf32>
    %328 = arith.addf %324, %327 : vector<16x32xf32>
    %c0_157 = arith.constant 0 : index
    %c0_158 = arith.constant 0 : index
    %c0_159 = arith.constant 0 : index
    %329 = vector.load %arg7[%c0_157, %c0_158, %c0_159] : memref<1x1x32xf32, #tpu.memory_space<vmem>>, vector<1x1x32xf32>
    %330 = vector.shape_cast %329 : vector<1x1x32xf32> to vector<1x32xf32>
    %331 = vector.broadcast %330 : vector<1x32xf32> to vector<16x32xf32>
    %332 = arith.addf %328, %331 : vector<16x32xf32>
    %333 = arith.negf %332 : vector<16x32xf32>
    %334 = math.exp %333 : vector<16x32xf32>
    %cst_160 = arith.constant 1.000000e+00 : f32
    %335 = vector.broadcast %cst_160 : f32 to vector<16x32xf32>
    %336 = arith.addf %335, %334 : vector<16x32xf32>
    %337 = arith.divf %335, %336 : vector<16x32xf32>
    %338 = arith.mulf %337, %321 : vector<16x32xf32>
    %339 = arith.addf %176, %338 : vector<16x32xf32>
    %cst_161 = arith.constant dense<0.000000e+00> : vector<16xf32>
    %340 = vector.multi_reduction <add>, %339, %cst_161 [1] : vector<16x32xf32> to vector<16xf32>
    %341 = vector.shape_cast %340 : vector<16xf32> to vector<16x1xf32>
    %cst_162 = arith.constant 3.200000e+01 : f32
    %342 = vector.broadcast %cst_162 : f32 to vector<16x1xf32>
    %343 = arith.divf %341, %342 : vector<16x1xf32>
    %344 = vector.broadcast %343 : vector<16x1xf32> to vector<16x32xf32>
    %345 = arith.subf %339, %344 : vector<16x32xf32>
    %346 = arith.mulf %345, %345 : vector<16x32xf32>
    %cst_163 = arith.constant dense<0.000000e+00> : vector<16xf32>
    %347 = vector.multi_reduction <add>, %346, %cst_163 [1] : vector<16x32xf32> to vector<16xf32>
    %348 = vector.shape_cast %347 : vector<16xf32> to vector<16x1xf32>
    %cst_164 = arith.constant 3.200000e+01 : f32
    %349 = vector.broadcast %cst_164 : f32 to vector<16x1xf32>
    %350 = arith.divf %348, %349 : vector<16x1xf32>
    %cst_165 = arith.constant 9.99999974E-6 : f32
    %351 = vector.broadcast %cst_165 : f32 to vector<16x1xf32>
    %352 = arith.addf %350, %351 : vector<16x1xf32>
    %353 = math.rsqrt %352 : vector<16x1xf32>
    %354 = vector.broadcast %353 : vector<16x1xf32> to vector<16x32xf32>
    %355 = arith.mulf %345, %354 : vector<16x32xf32>
    %c0_166 = arith.constant 0 : index
    %c1_167 = arith.constant 1 : index
    %c0_168 = arith.constant 0 : index
    %c0_169 = arith.constant 0 : index
    %356 = vector.load %arg8[%c0_166, %c1_167, %c0_168, %c0_169] : memref<1x3x1x32xf32, #tpu.memory_space<vmem>>, vector<1x1x1x32xf32>
    %357 = vector.shape_cast %356 : vector<1x1x1x32xf32> to vector<1x32xf32>
    %358 = vector.broadcast %357 : vector<1x32xf32> to vector<16x32xf32>
    %359 = arith.mulf %355, %358 : vector<16x32xf32>
    %c0_170 = arith.constant 0 : index
    %c1_171 = arith.constant 1 : index
    %c0_172 = arith.constant 0 : index
    %c0_173 = arith.constant 0 : index
    %360 = vector.load %arg9[%c0_170, %c1_171, %c0_172, %c0_173] : memref<1x3x1x32xf32, #tpu.memory_space<vmem>>, vector<1x1x1x32xf32>
    %361 = vector.shape_cast %360 : vector<1x1x1x32xf32> to vector<1x32xf32>
    %362 = vector.broadcast %361 : vector<1x32xf32> to vector<16x32xf32>
    %363 = arith.addf %359, %362 : vector<16x32xf32>
    %c0_174 = arith.constant 0 : index
    %c0_175 = arith.constant 0 : index
    %c0_176 = arith.constant 0 : index
    %364 = vector.load %arg10[%c0_174, %c0_175, %c0_176] : memref<1x32x3072xf32, #tpu.memory_space<vmem>>, vector<1x32x3072xf32>
    %365 = vector.shape_cast %364 : vector<1x32x3072xf32> to vector<32x3072xf32>
    %cst_177 = arith.constant dense<0.000000e+00> : vector<16x3072xf32>
    %366 = tpu.matmul %363, %365, %cst_177 {dimension_numbers = #tpu.dot_dimension_numbers<[1], [0], [0], [1], [0, 0, 1, 1], [], []>} : vector<16x32xf32>, vector<32x3072xf32>, vector<16x3072xf32> -> vector<16x3072xf32>
    %c0_178 = arith.constant 0 : index
    %c0_179 = arith.constant 0 : index
    %c0_180 = arith.constant 0 : index
    %367 = vector.load %arg11[%c0_178, %c0_179, %c0_180] : memref<1x1x3072xf32, #tpu.memory_space<vmem>>, vector<1x1x3072xf32>
    %368 = vector.shape_cast %367 : vector<1x1x3072xf32> to vector<1x3072xf32>
    %369 = vector.broadcast %368 : vector<1x3072xf32> to vector<16x3072xf32>
    %370 = arith.addf %366, %369 : vector<16x3072xf32>
    %cst_181 = arith.constant 5.000000e-01 : f32
    %371 = vector.broadcast %cst_181 : f32 to vector<16x3072xf32>
    %372 = arith.mulf %371, %370 : vector<16x3072xf32>
    %cst_182 = arith.constant 0.707106769 : f32
    %373 = vector.broadcast %cst_182 : f32 to vector<16x3072xf32>
    %374 = arith.mulf %370, %373 : vector<16x3072xf32>
    %375 = math.erf %374 : vector<16x3072xf32>
    %cst_183 = arith.constant 1.000000e+00 : f32
    %376 = vector.broadcast %cst_183 : f32 to vector<16x3072xf32>
    %377 = arith.addf %376, %375 : vector<16x3072xf32>
    %378 = arith.mulf %372, %377 : vector<16x3072xf32>
    %c0_184 = arith.constant 0 : index
    %c0_185 = arith.constant 0 : index
    %c0_186 = arith.constant 0 : index
    %379 = vector.load %arg12[%c0_184, %c0_185, %c0_186] : memref<1x3072x32xf32, #tpu.memory_space<vmem>>, vector<1x3072x32xf32>
    %380 = vector.shape_cast %379 : vector<1x3072x32xf32> to vector<3072x32xf32>
    %cst_187 = arith.constant dense<0.000000e+00> : vector<16x32xf32>
    %381 = tpu.matmul %378, %380, %cst_187 {dimension_numbers = #tpu.dot_dimension_numbers<[1], [0], [0], [1], [0, 0, 1, 1], [], []>} : vector<16x3072xf32>, vector<3072x32xf32>, vector<16x32xf32> -> vector<16x32xf32>
    %c0_188 = arith.constant 0 : index
    %c0_189 = arith.constant 0 : index
    %c0_190 = arith.constant 0 : index
    %382 = vector.load %arg13[%c0_188, %c0_189, %c0_190] : memref<1x1x32xf32, #tpu.memory_space<vmem>>, vector<1x1x32xf32>
    %383 = vector.shape_cast %382 : vector<1x1x32xf32> to vector<1x32xf32>
    %384 = vector.broadcast %383 : vector<1x32xf32> to vector<16x32xf32>
    %385 = arith.addf %381, %384 : vector<16x32xf32>
    %386 = arith.addf %363, %385 : vector<16x32xf32>
    %cst_191 = arith.constant dense<0.000000e+00> : vector<16xf32>
    %387 = vector.multi_reduction <add>, %386, %cst_191 [1] : vector<16x32xf32> to vector<16xf32>
    %388 = vector.shape_cast %387 : vector<16xf32> to vector<16x1xf32>
    %cst_192 = arith.constant 3.200000e+01 : f32
    %389 = vector.broadcast %cst_192 : f32 to vector<16x1xf32>
    %390 = arith.divf %388, %389 : vector<16x1xf32>
    %391 = vector.broadcast %390 : vector<16x1xf32> to vector<16x32xf32>
    %392 = arith.subf %386, %391 : vector<16x32xf32>
    %393 = arith.mulf %392, %392 : vector<16x32xf32>
    %cst_193 = arith.constant dense<0.000000e+00> : vector<16xf32>
    %394 = vector.multi_reduction <add>, %393, %cst_193 [1] : vector<16x32xf32> to vector<16xf32>
    %395 = vector.shape_cast %394 : vector<16xf32> to vector<16x1xf32>
    %cst_194 = arith.constant 3.200000e+01 : f32
    %396 = vector.broadcast %cst_194 : f32 to vector<16x1xf32>
    %397 = arith.divf %395, %396 : vector<16x1xf32>
    %cst_195 = arith.constant 9.99999974E-6 : f32
    %398 = vector.broadcast %cst_195 : f32 to vector<16x1xf32>
    %399 = arith.addf %397, %398 : vector<16x1xf32>
    %400 = math.rsqrt %399 : vector<16x1xf32>
    %401 = vector.broadcast %400 : vector<16x1xf32> to vector<16x32xf32>
    %402 = arith.mulf %392, %401 : vector<16x32xf32>
    %c0_196 = arith.constant 0 : index
    %c2_197 = arith.constant 2 : index
    %c0_198 = arith.constant 0 : index
    %c0_199 = arith.constant 0 : index
    %403 = vector.load %arg8[%c0_196, %c2_197, %c0_198, %c0_199] : memref<1x3x1x32xf32, #tpu.memory_space<vmem>>, vector<1x1x1x32xf32>
    %404 = vector.shape_cast %403 : vector<1x1x1x32xf32> to vector<1x32xf32>
    %405 = vector.broadcast %404 : vector<1x32xf32> to vector<16x32xf32>
    %406 = arith.mulf %402, %405 : vector<16x32xf32>
    %c0_200 = arith.constant 0 : index
    %c2_201 = arith.constant 2 : index
    %c0_202 = arith.constant 0 : index
    %c0_203 = arith.constant 0 : index
    %407 = vector.load %arg9[%c0_200, %c2_201, %c0_202, %c0_203] : memref<1x3x1x32xf32, #tpu.memory_space<vmem>>, vector<1x1x1x32xf32>
    %408 = vector.shape_cast %407 : vector<1x1x1x32xf32> to vector<1x32xf32>
    %409 = vector.broadcast %408 : vector<1x32xf32> to vector<16x32xf32>
    %410 = arith.addf %406, %409 : vector<16x32xf32>
    %411 = vector.shape_cast %410 : vector<16x32xf32> to vector<2x8x32xf32>
    %c0_204 = arith.constant 0 : index
    %c0_205 = arith.constant 0 : index
    %c0_206 = arith.constant 0 : index
    %412 = vector.load %arg14[%c0_204, %c0_205, %c0_206] : memref<2x8x32xf32, #tpu.memory_space<vmem>>, vector<2x8x32xf32>
    tpu.vector_store %arg14[%c0_204, %c0_205, %c0_206], %411 {strides = array<i32>} : memref<2x8x32xf32, #tpu.memory_space<vmem>>, vector<2x8x32xf32>,
    %c2_i32 = arith.constant 2 : i32
    %413 = arith.cmpi eq, %arg1, %c2_i32 : i32
    %414 = arith.extui %413 : i1 to i32
    %c0_i32_207 = arith.constant 0 : i32
    %415 = arith.cmpi ne, %414, %c0_i32_207 : i32
    scf.if %415 {
      %c0_208 = arith.constant 0 : index
      %c0_209 = arith.constant 0 : index
      %c0_210 = arith.constant 0 : index
      %416 = vector.load %arg15[%c0_208, %c0_209, %c0_210] : memref<2x8x8xf32, #tpu.memory_space<vmem>>, vector<2x8x8xf32>
      tpu.vector_store %arg15[%c0_208, %c0_209, %c0_210], %212 {strides = array<i32>} : memref<2x8x8xf32, #tpu.memory_space<vmem>>, vector<2x8x8xf32>,
    } else {
    }
    return
  }
  func.func @transform_0(%arg0: i32, %arg1: i32) -> (i32, i32, i32) {
    %c0_i32 = arith.constant 0 : i32
    %c0_i32_0 = arith.constant 0 : i32
    %c0_i32_1 = arith.constant 0 : i32
    return %arg0, %c0_i32, %c0_i32_0 : i32, i32, i32
  }
  func.func @transform_1(%arg0: i32, %arg1: i32) -> (i32, i32, i32) {
    %c0_i32 = arith.constant 0 : i32
    %c0_i32_0 = arith.constant 0 : i32
    %c0_i32_1 = arith.constant 0 : i32
    return %arg0, %c0_i32, %c0_i32_0 : i32, i32, i32
  }
  func.func @transform_2(%arg0: i32, %arg1: i32) -> (i32, i32, i32, i32) {
    %c0_i32 = arith.constant 0 : i32
    %c0_i32_0 = arith.constant 0 : i32
    %c0_i32_1 = arith.constant 0 : i32
    %c0_i32_2 = arith.constant 0 : i32
    return %arg1, %c0_i32, %c0_i32_0, %c0_i32_1 : i32, i32, i32, i32
  }
  func.func @transform_3(%arg0: i32, %arg1: i32) -> (i32, i32, i32, i32) {
    %c0_i32 = arith.constant 0 : i32
    %c0_i32_0 = arith.constant 0 : i32
    %c0_i32_1 = arith.constant 0 : i32
    %c0_i32_2 = arith.constant 0 : i32
    return %arg1, %c0_i32, %c0_i32_0, %c0_i32_1 : i32, i32, i32, i32
  }
  func.func @transform_4(%arg0: i32, %arg1: i32) -> (i32, i32, i32, i32) {
    %c0_i32 = arith.constant 0 : i32
    %c0_i32_0 = arith.constant 0 : i32
    %c0_i32_1 = arith.constant 0 : i32
    %c0_i32_2 = arith.constant 0 : i32
    return %arg1, %c0_i32, %c0_i32_0, %c0_i32_1 : i32, i32, i32, i32
  }
  func.func @transform_5(%arg0: i32, %arg1: i32) -> (i32, i32, i32) {
    %c0_i32 = arith.constant 0 : i32
    %c0_i32_0 = arith.constant 0 : i32
    %c0_i32_1 = arith.constant 0 : i32
    return %arg1, %c0_i32, %c0_i32_0 : i32, i32, i32
  }
  func.func @transform_6(%arg0: i32, %arg1: i32) -> (i32, i32, i32, i32) {
    %c0_i32 = arith.constant 0 : i32
    %c0_i32_0 = arith.constant 0 : i32
    %c0_i32_1 = arith.constant 0 : i32
    %c0_i32_2 = arith.constant 0 : i32
    return %arg1, %c0_i32, %c0_i32_0, %c0_i32_1 : i32, i32, i32, i32
  }
  func.func @transform_7(%arg0: i32, %arg1: i32) -> (i32, i32, i32, i32) {
    %c0_i32 = arith.constant 0 : i32
    %c0_i32_0 = arith.constant 0 : i32
    %c0_i32_1 = arith.constant 0 : i32
    %c0_i32_2 = arith.constant 0 : i32
    return %arg1, %c0_i32, %c0_i32_0, %c0_i32_1 : i32, i32, i32, i32
  }
  func.func @transform_8(%arg0: i32, %arg1: i32) -> (i32, i32, i32) {
    %c0_i32 = arith.constant 0 : i32
    %c0_i32_0 = arith.constant 0 : i32
    %c0_i32_1 = arith.constant 0 : i32
    return %arg1, %c0_i32, %c0_i32_0 : i32, i32, i32
  }
  func.func @transform_9(%arg0: i32, %arg1: i32) -> (i32, i32, i32) {
    %c0_i32 = arith.constant 0 : i32
    %c0_i32_0 = arith.constant 0 : i32
    %c0_i32_1 = arith.constant 0 : i32
    return %arg1, %c0_i32, %c0_i32_0 : i32, i32, i32
  }
  func.func @transform_10(%arg0: i32, %arg1: i32) -> (i32, i32, i32) {
    %c0_i32 = arith.constant 0 : i32
    %c0_i32_0 = arith.constant 0 : i32
    %c0_i32_1 = arith.constant 0 : i32
    return %arg1, %c0_i32, %c0_i32_0 : i32, i32, i32
  }
  func.func @transform_11(%arg0: i32, %arg1: i32) -> (i32, i32, i32) {
    %c0_i32 = arith.constant 0 : i32
    %c0_i32_0 = arith.constant 0 : i32
    %c0_i32_1 = arith.constant 0 : i32
    return %arg1, %c0_i32, %c0_i32_0 : i32, i32, i32
  }
  func.func @transform_12(%arg0: i32, %arg1: i32) -> (i32, i32, i32) {
    %c0_i32 = arith.constant 0 : i32
    %c0_i32_0 = arith.constant 0 : i32
    %c0_i32_1 = arith.constant 0 : i32
    return %arg0, %c0_i32, %c0_i32_0 : i32, i32, i32
  }
  func.func @transform_13(%arg0: i32, %arg1: i32) -> (i32, i32, i32) {
    %c0_i32 = arith.constant 0 : i32
    %c0_i32_0 = arith.constant 0 : i32
    %c0_i32_1 = arith.constant 0 : i32
    return %arg0, %c0_i32, %c0_i32_0 : i32, i32, i32
  }
}

</mosaic_0001>

<llo_original>
// kernel: gate_extractation_layers.1
$region0: #{gate_extractation_layers.1}
  #allocation0 [shape = 'u32[]', space=smem, size = 0x4, offset = 0x4, fixed_abs, tag = 'smem constant byte address 0x4 - core index']
  #allocation1 [shape = 'u32[144,128]{1,0:T(1,128)}', space=vmem, size = 0x12000, scoped, tag = 'internal scratch']
  %s0 = inlined_call_operand.vmem [shape: f32[2,8,32], index: 0, kind: input, shape index: {}]
  %s1 = inlined_call_operand.vmem [shape: f32[2,8,32], index: 1, kind: input, shape index: {}]
  %s2 = inlined_call_operand.vmem [shape: f32[3,8,32,32], index: 2, kind: input, shape index: {}]
  %s3 = inlined_call_operand.vmem [shape: f32[3,8,1,32], index: 3, kind: input, shape index: {}]
  %s4 = inlined_call_operand.vmem [shape: f32[3,2,32,32], index: 4, kind: input, shape index: {}]
  %s5 = inlined_call_operand.vmem [shape: f32[3,1,32], index: 5, kind: input, shape index: {}]
  %s6 = inlined_call_operand.vmem [shape: f32[3,3,1,32], index: 6, kind: input, shape index: {}]
  %s7 = inlined_call_operand.vmem [shape: f32[3,3,1,32], index: 7, kind: input, shape index: {}]
  %s8 = inlined_call_operand.vmem [shape: f32[3,32,3072], index: 8, kind: input, shape index: {}]
  %s9 = inlined_call_operand.vmem [shape: f32[3,1,3072], index: 9, kind: input, shape index: {}]
  %s10 = inlined_call_operand.vmem [shape: f32[3,3072,32], index: 10, kind: input, shape index: {}]
  %s11 = inlined_call_operand.vmem [shape: f32[3,1,32], index: 11, kind: input, shape index: {}]
  %s12 = inlined_call_operand.hbm [shape: f32[2,8,32], index: 12, kind: output, shape index: {0}]
  %s13 = inlined_call_operand.hbm [shape: f32[2,8,8], index: 13, kind: output, shape index: {1}]
  %14 = xla_tuple %s12, %s13
  %s15 = sld [smem:[#allocation0]]
  $region97: #{gate_extractation_layers.1} parent=0
    _
  %s17 = ssub.s32 1, %s15
  %s18 = scalar_select 0, %s17, %s15
  $region1: #{gate_extractation_layers.1} parent=0
    #allocation2 [shape = 'u8[8192]{0}', space=vmem, size = 0x2000, scoped, tag = 'output window, operand 0, single buffered']
    #allocation3 [shape = 's32[2]{0}', space=sflag, size = 0x8, scoped, tag = 'scoped memory for gate_extractation_layers.1']
    #allocation4 [shape = 'u8[8192]{0}', space=vmem, size = 0x2000, scoped, tag = 'output window, operand 1, single buffered']
    #allocation5 [shape = 's32[1]{0}', space=sflag, size = 0x4, scoped, tag = 'scoped memory for gate_extractation_layers.1']
    %19 = vsyncpa [#allocation3], 0
    %20 = vsyncpa [#allocation5], 0
    loop: start=0, step=1, limit=5
    $region2: #{gate_extractation_layers.1} parent=1 // loop_pre_header
      _
    $region3: #{gate_extractation_layers.1} parent=1 // loop_header
      %s22 = sphi 0, %s26
      %p23 = scmp.ge.s32.totalorder %s22, 5
      %s29 = sphi 0, %s41
      %s30 = sphi 0, %s37
      %s31 = sphi 0, %s29
      %s32 = sphi 0, %s30
      %s33 = sphi 0, %s31
      %s34 = sphi 0, %s32
      %s44 = sphi 0, %s46
      %s47 = sphi 0, %s44
      %s48 = sphi 0, %s47
      %s64 = sphi 0, %s48
      %s70 = sphi 0, %s72
      %s73 = sphi 0, %s70
      %s74 = sphi 0, %s73
      %s90 = sphi 0, %s74
      %s96 = sphi 0, %s98
      %s99 = sphi 0, %s96
      %s100 = sphi 0, %s99
      %s116 = sphi 0, %s100
      %s122 = sphi 0, %s124
      %s125 = sphi 0, %s122
      %s126 = sphi 0, %s125
      %s142 = sphi 0, %s126
      %s148 = sphi 0, %s150
      %s151 = sphi 0, %s148
      %s152 = sphi 0, %s151
      %s168 = sphi 0, %s152
      %s174 = sphi 0, %s176
      %s177 = sphi 0, %s174
      %s178 = sphi 0, %s177
      %s194 = sphi 0, %s178
      %s200 = sphi 0, %s202
      %s203 = sphi 0, %s200
      %s204 = sphi 0, %s203
      %s220 = sphi 0, %s204
      %s226 = sphi 0, %s228
      %s229 = sphi 0, %s226
      %s230 = sphi 0, %s229
      %s246 = sphi 0, %s230
      %s252 = sphi 0, %s254
      %s255 = sphi 0, %s252
      %s256 = sphi 0, %s255
      %s272 = sphi 0, %s256
      %s278 = sphi 0, %s280
      %s281 = sphi 0, %s278
      %s282 = sphi 0, %s281
      %s298 = sphi 0, %s282
      %s304 = sphi 0, %s306
      %s307 = sphi 0, %s304
      %s308 = sphi 0, %s307
      %s324 = sphi 0, %s308
      %s330 = sphi 0, %s332
      %s333 = sphi 0, %s330
      %s334 = sphi 0, %s333
      %s350 = sphi 0, %s334
      %s356 = sphi 0, %s358
      %s359 = sphi 0, %s356
      %s360 = sphi 0, %s359
      %s376 = sphi 0, %s360
      %s382 = sphi 0, %s384
      %s385 = sphi 0, %s382
      %s386 = sphi 0, %s385
      %s402 = sphi 0, %s386
    $region4: #{gate_extractation_layers.1} parent=1 // loop_header_branch
      %25 = sbr.rel (%p23) target = $region8
    $region5: #{gate_extractation_layers.1} parent=1 // loop_body
      %s27 = ssub.s32 %s22, 1
      %s28 = ssub.s32 %s22, 2
      %s35 = sadd.s32 1, %s30
      %p36 = scmp.ge.s32.totalorder %s35, 3
      %s37 = scalar_select %p36, 0, %s35
      %s38 = sadd.s32 1, %s29
      %s39 = scalar_select %p36, %s38, %s29
      %p40 = scmp.ge.s32.totalorder %s39, 1
      %s41 = scalar_select %p40, 0, %s39
      %s42 = ssub.s32 %s29, %s41
      %p43 = scmp.eq.s32.totalorder %s42, 0
      %s45 = sadd.s32 %s44, 1
      %s46 = scalar_select %p43, %s44, %s45
      %p49 = pneg %p43
      %p50 = scmp.eq.s32.totalorder %s22, 2
      %p51 = por %p49, %p50
      %p52 = scmp.ne.s32.totalorder %s44, %s47
      %p53 = scmp.eq.s32.totalorder %s22, 0
      %p54 = por %p52, %p53
      %p55 = scmp.ne.s32.totalorder %s44, %s47
      %p56 = scmp.eq.s32.totalorder %s27, 2
      %p57 = por %p55, %p56
      %p58 = scmp.ne.s32.totalorder %s47, %s48
      %p59 = scmp.eq.s32.totalorder %s27, 0
      %p60 = por %p58, %p59
      %p61 = scmp.ne.s32.totalorder %s47, %s48
      %p62 = scmp.eq.s32.totalorder %s28, 2
      %p63 = por %p61, %p62
      %p65 = scmp.ne.s32.totalorder %s48, %s64
      %p66 = scmp.eq.s32.totalorder %s28, 0
      %p67 = por %p65, %p66
      %s68 = ssub.s32 %s29, %s41
      %p69 = scmp.eq.s32.totalorder %s68, 0
      %s71 = sadd.s32 %s70, 1
      %s72 = scalar_select %p69, %s70, %s71
      %p75 = pneg %p69
      %p76 = scmp.eq.s32.totalorder %s22, 2
      %p77 = por %p75, %p76
      %p78 = scmp.ne.s32.totalorder %s70, %s73
      %p79 = scmp.eq.s32.totalorder %s22, 0
      %p80 = por %p78, %p79
      %p81 = scmp.ne.s32.totalorder %s70, %s73
      %p82 = scmp.eq.s32.totalorder %s27, 2
      %p83 = por %p81, %p82
      %p84 = scmp.ne.s32.totalorder %s73, %s74
      %p85 = scmp.eq.s32.totalorder %s27, 0
      %p86 = por %p84, %p85
      %p87 = scmp.ne.s32.totalorder %s73, %s74
      %p88 = scmp.eq.s32.totalorder %s28, 2
      %p89 = por %p87, %p88
      %p91 = scmp.ne.s32.totalorder %s74, %s90
      %p92 = scmp.eq.s32.totalorder %s28, 0
      %p93 = por %p91, %p92
      %s94 = ssub.s32 %s30, %s37
      %p95 = scmp.eq.s32.totalorder %s94, 0
      %s97 = sadd.s32 %s96, 1
      %s98 = scalar_select %p95, %s96, %s97
      %p101 = pneg %p95
      %p102 = scmp.eq.s32.totalorder %s22, 2
      %p103 = por %p101, %p102
      %p104 = scmp.ne.s32.totalorder %s96, %s99
      %p105 = scmp.eq.s32.totalorder %s22, 0
      %p106 = por %p104, %p105
      %p107 = scmp.ne.s32.totalorder %s96, %s99
      %p108 = scmp.eq.s32.totalorder %s27, 2
      %p109 = por %p107, %p108
      %p110 = scmp.ne.s32.totalorder %s99, %s100
      %p111 = scmp.eq.s32.totalorder %s27, 0
      %p112 = por %p110, %p111
      %p113 = scmp.ne.s32.totalorder %s99, %s100
      %p114 = scmp.eq.s32.totalorder %s28, 2
      %p115 = por %p113, %p114
      %p117 = scmp.ne.s32.totalorder %s100, %s116
      %p118 = scmp.eq.s32.totalorder %s28, 0
      %p119 = por %p117, %p118
      %s120 = ssub.s32 %s30, %s37
      %p121 = scmp.eq.s32.totalorder %s120, 0
      %s123 = sadd.s32 %s122, 1
      %s124 = scalar_select %p121, %s122, %s123
      %p127 = pneg %p121
      %p128 = scmp.eq.s32.totalorder %s22, 2
      %p129 = por %p127, %p128
      %p130 = scmp.ne.s32.totalorder %s122, %s125
      %p131 = scmp.eq.s32.totalorder %s22, 0
      %p132 = por %p130, %p131
      %p133 = scmp.ne.s32.totalorder %s122, %s125
      %p134 = scmp.eq.s32.totalorder %s27, 2
      %p135 = por %p133, %p134
      %p136 = scmp.ne.s32.totalorder %s125, %s126
      %p137 = scmp.eq.s32.totalorder %s27, 0
      %p138 = por %p136, %p137
      %p139 = scmp.ne.s32.totalorder %s125, %s126
      %p140 = scmp.eq.s32.totalorder %s28, 2
      %p141 = por %p139, %p140
      %p143 = scmp.ne.s32.totalorder %s126, %s142
      %p144 = scmp.eq.s32.totalorder %s28, 0
      %p145 = por %p143, %p144
      %s146 = ssub.s32 %s30, %s37
      %p147 = scmp.eq.s32.totalorder %s146, 0
      %s149 = sadd.s32 %s148, 1
      %s150 = scalar_select %p147, %s148, %s149
      %p153 = pneg %p147
      %p154 = scmp.eq.s32.totalorder %s22, 2
      %p155 = por %p153, %p154
      %p156 = scmp.ne.s32.totalorder %s148, %s151
      %p157 = scmp.eq.s32.totalorder %s22, 0
      %p158 = por %p156, %p157
      %p159 = scmp.ne.s32.totalorder %s148, %s151
      %p160 = scmp.eq.s32.totalorder %s27, 2
      %p161 = por %p159, %p160
      %p162 = scmp.ne.s32.totalorder %s151, %s152
      %p163 = scmp.eq.s32.totalorder %s27, 0
      %p164 = por %p162, %p163
      %p165 = scmp.ne.s32.totalorder %s151, %s152
      %p166 = scmp.eq.s32.totalorder %s28, 2
      %p167 = por %p165, %p166
      %p169 = scmp.ne.s32.totalorder %s152, %s168
      %p170 = scmp.eq.s32.totalorder %s28, 0
      %p171 = por %p169, %p170
      %s172 = ssub.s32 %s30, %s37
      %p173 = scmp.eq.s32.totalorder %s172, 0
      %s175 = sadd.s32 %s174, 1
      %s176 = scalar_select %p173, %s174, %s175
      %p179 = pneg %p173
      %p180 = scmp.eq.s32.totalorder %s22, 2
      %p181 = por %p179, %p180
      %p182 = scmp.ne.s32.totalorder %s174, %s177
      %p183 = scmp.eq.s32.totalorder %s22, 0
      %p184 = por %p182, %p183
      %p185 = scmp.ne.s32.totalorder %s174, %s177
      %p186 = scmp.eq.s32.totalorder %s27, 2
      %p187 = por %p185, %p186
      %p188 = scmp.ne.s32.totalorder %s177, %s178
      %p189 = scmp.eq.s32.totalorder %s27, 0
      %p190 = por %p188, %p189
      %p191 = scmp.ne.s32.totalorder %s177, %s178
      %p192 = scmp.eq.s32.totalorder %s28, 2
      %p193 = por %p191, %p192
      %p195 = scmp.ne.s32.totalorder %s178, %s194
      %p196 = scmp.eq.s32.totalorder %s28, 0
      %p197 = por %p195, %p196
      %s198 = ssub.s32 %s30, %s37
      %p199 = scmp.eq.s32.totalorder %s198, 0
      %s201 = sadd.s32 %s200, 1
      %s202 = scalar_select %p199, %s200, %s201
      %p205 = pneg %p199
      %p206 = scmp.eq.s32.totalorder %s22, 2
      %p207 = por %p205, %p206
      %p208 = scmp.ne.s32.totalorder %s200, %s203
      %p209 = scmp.eq.s32.totalorder %s22, 0
      %p210 = por %p208, %p209
      %p211 = scmp.ne.s32.totalorder %s200, %s203
      %p212 = scmp.eq.s32.totalorder %s27, 2
      %p213 = por %p211, %p212
      %p214 = scmp.ne.s32.totalorder %s203, %s204
      %p215 = scmp.eq.s32.totalorder %s27, 0
      %p216 = por %p214, %p215
      %p217 = scmp.ne.s32.totalorder %s203, %s204
      %p218 = scmp.eq.s32.totalorder %s28, 2
      %p219 = por %p217, %p218
      %p221 = scmp.ne.s32.totalorder %s204, %s220
      %p222 = scmp.eq.s32.totalorder %s28, 0
      %p223 = por %p221, %p222
      %s224 = ssub.s32 %s30, %s37
      %p225 = scmp.eq.s32.totalorder %s224, 0
      %s227 = sadd.s32 %s226, 1
      %s228 = scalar_select %p225, %s226, %s227
      %p231 = pneg %p225
      %p232 = scmp.eq.s32.totalorder %s22, 2
      %p233 = por %p231, %p232
      %p234 = scmp.ne.s32.totalorder %s226, %s229
      %p235 = scmp.eq.s32.totalorder %s22, 0
      %p236 = por %p234, %p235
      %p237 = scmp.ne.s32.totalorder %s226, %s229
      %p238 = scmp.eq.s32.totalorder %s27, 2
      %p239 = por %p237, %p238
      %p240 = scmp.ne.s32.totalorder %s229, %s230
      %p241 = scmp.eq.s32.totalorder %s27, 0
      %p242 = por %p240, %p241
      %p243 = scmp.ne.s32.totalorder %s229, %s230
      %p244 = scmp.eq.s32.totalorder %s28, 2
      %p245 = por %p243, %p244
      %p247 = scmp.ne.s32.totalorder %s230, %s246
      %p248 = scmp.eq.s32.totalorder %s28, 0
      %p249 = por %p247, %p248
      %s250 = ssub.s32 %s30, %s37
      %p251 = scmp.eq.s32.totalorder %s250, 0
      %s253 = sadd.s32 %s252, 1
      %s254 = scalar_select %p251, %s252, %s253
      %p257 = pneg %p251
      %p258 = scmp.eq.s32.totalorder %s22, 2
      %p259 = por %p257, %p258
      %p260 = scmp.ne.s32.totalorder %s252, %s255
      %p261 = scmp.eq.s32.totalorder %s22, 0
      %p262 = por %p260, %p261
      %p263 = scmp.ne.s32.totalorder %s252, %s255
      %p264 = scmp.eq.s32.totalorder %s27, 2
      %p265 = por %p263, %p264
      %p266 = scmp.ne.s32.totalorder %s255, %s256
      %p267 = scmp.eq.s32.totalorder %s27, 0
      %p268 = por %p266, %p267
      %p269 = scmp.ne.s32.totalorder %s255, %s256
      %p270 = scmp.eq.s32.totalorder %s28, 2
      %p271 = por %p269, %p270
      %p273 = scmp.ne.s32.totalorder %s256, %s272
      %p274 = scmp.eq.s32.totalorder %s28, 0
      %p275 = por %p273, %p274
      %s276 = ssub.s32 %s30, %s37
      %p277 = scmp.eq.s32.totalorder %s276, 0
      %s279 = sadd.s32 %s278, 1
      %s280 = scalar_select %p277, %s278, %s279
      %p283 = pneg %p277
      %p284 = scmp.eq.s32.totalorder %s22, 2
      %p285 = por %p283, %p284
      %p286 = scmp.ne.s32.totalorder %s278, %s281
      %p287 = scmp.eq.s32.totalorder %s22, 0
      %p288 = por %p286, %p287
      %p289 = scmp.ne.s32.totalorder %s278, %s281
      %p290 = scmp.eq.s32.totalorder %s27, 2
      %p291 = por %p289, %p290
      %p292 = scmp.ne.s32.totalorder %s281, %s282
      %p293 = scmp.eq.s32.totalorder %s27, 0
      %p294 = por %p292, %p293
      %p295 = scmp.ne.s32.totalorder %s281, %s282
      %p296 = scmp.eq.s32.totalorder %s28, 2
      %p297 = por %p295, %p296
      %p299 = scmp.ne.s32.totalorder %s282, %s298
      %p300 = scmp.eq.s32.totalorder %s28, 0
      %p301 = por %p299, %p300
      %s302 = ssub.s32 %s30, %s37
      %p303 = scmp.eq.s32.totalorder %s302, 0
      %s305 = sadd.s32 %s304, 1
      %s306 = scalar_select %p303, %s304, %s305
      %p309 = pneg %p303
      %p310 = scmp.eq.s32.totalorder %s22, 2
      %p311 = por %p309, %p310
      %p312 = scmp.ne.s32.totalorder %s304, %s307
      %p313 = scmp.eq.s32.totalorder %s22, 0
      %p314 = por %p312, %p313
      %p315 = scmp.ne.s32.totalorder %s304, %s307
      %p316 = scmp.eq.s32.totalorder %s27, 2
      %p317 = por %p315, %p316
      %p318 = scmp.ne.s32.totalorder %s307, %s308
      %p319 = scmp.eq.s32.totalorder %s27, 0
      %p320 = por %p318, %p319
      %p321 = scmp.ne.s32.totalorder %s307, %s308
      %p322 = scmp.eq.s32.totalorder %s28, 2
      %p323 = por %p321, %p322
      %p325 = scmp.ne.s32.totalorder %s308, %s324
      %p326 = scmp.eq.s32.totalorder %s28, 0
      %p327 = por %p325, %p326
      %s328 = ssub.s32 %s30, %s37
      %p329 = scmp.eq.s32.totalorder %s328, 0
      %s331 = sadd.s32 %s330, 1
      %s332 = scalar_select %p329, %s330, %s331
      %p335 = pneg %p329
      %p336 = scmp.eq.s32.totalorder %s22, 2
      %p337 = por %p335, %p336
      %p338 = scmp.ne.s32.totalorder %s330, %s333
      %p339 = scmp.eq.s32.totalorder %s22, 0
      %p340 = por %p338, %p339
      %p341 = scmp.ne.s32.totalorder %s330, %s333
      %p342 = scmp.eq.s32.totalorder %s27, 2
      %p343 = por %p341, %p342
      %p344 = scmp.ne.s32.totalorder %s333, %s334
      %p345 = scmp.eq.s32.totalorder %s27, 0
      %p346 = por %p344, %p345
      %p347 = scmp.ne.s32.totalorder %s333, %s334
      %p348 = scmp.eq.s32.totalorder %s28, 2
      %p349 = por %p347, %p348
      %p351 = scmp.ne.s32.totalorder %s334, %s350
      %p352 = scmp.eq.s32.totalorder %s28, 0
      %p353 = por %p351, %p352
      %s354 = ssub.s32 %s29, %s41
      %p355 = scmp.eq.s32.totalorder %s354, 0
      %s357 = sadd.s32 %s356, 1
      %s358 = scalar_select %p355, %s356, %s357
      %p361 = pneg %p355
      %p362 = scmp.eq.s32.totalorder %s22, 2
      %p363 = por %p361, %p362
      %p364 = scmp.ne.s32.totalorder %s356, %s359
      %p365 = scmp.eq.s32.totalorder %s22, 0
      %p366 = por %p364, %p365
      %p367 = scmp.ne.s32.totalorder %s356, %s359
      %p368 = scmp.eq.s32.totalorder %s27, 2
      %p369 = por %p367, %p368
      %p370 = scmp.ne.s32.totalorder %s359, %s360
      %p371 = scmp.eq.s32.totalorder %s27, 0
      %p372 = por %p370, %p371
      %p373 = scmp.ne.s32.totalorder %s359, %s360
      %p374 = scmp.eq.s32.totalorder %s28, 2
      %p375 = por %p373, %p374
      %p377 = scmp.ne.s32.totalorder %s360, %s376
      %p378 = scmp.eq.s32.totalorder %s28, 0
      %p379 = por %p377, %p378
      %s380 = ssub.s32 %s29, %s41
      %p381 = scmp.eq.s32.totalorder %s380, 0
      %s383 = sadd.s32 %s382, 1
      %s384 = scalar_select %p381, %s382, %s383
      %p387 = pneg %p381
      %p388 = scmp.eq.s32.totalorder %s22, 2
      %p389 = por %p387, %p388
      %p390 = scmp.ne.s32.totalorder %s382, %s385
      %p391 = scmp.eq.s32.totalorder %s22, 0
      %p392 = por %p390, %p391
      %p393 = scmp.ne.s32.totalorder %s382, %s385
      %p394 = scmp.eq.s32.totalorder %s27, 2
      %p395 = por %p393, %p394
      %p396 = scmp.ne.s32.totalorder %s385, %s386
      %p397 = scmp.eq.s32.totalorder %s27, 0
      %p398 = por %p396, %p397
      %p399 = scmp.ne.s32.totalorder %s385, %s386
      %p400 = scmp.eq.s32.totalorder %s28, 2
      %p401 = por %p399, %p400
      %p403 = scmp.ne.s32.totalorder %s386, %s402
      %p404 = scmp.eq.s32.totalorder %s28, 0
      %p405 = por %p403, %p404
      %p406 = scmp.le.s32.totalorder 1, %s22
      %p407 = scmp.lt.s32.totalorder %s22, 4
      %p408 = pnand %p406, %p407
      %p409 = pneg %p408
      // Predicated region
      $region9: #{gate_extractation_layers.1} parent=5 // pred_check
        _
      $region10: #{gate_extractation_layers.1} parent=5 // pred_check_branch
        %411 = sbr.rel (%p408) target = $region12
      $region11: #{gate_extractation_layers.1} parent=5 // pred_region
        %s412 = ssub.s32 %s22, 1
        // Predicated region
        $region13: #{gate_extractation_layers.1} parent=11 // pred_check
          %p413 = pneg %p60
        $region14: #{gate_extractation_layers.1} parent=11 // pred_check_branch
          %415 = sbr.rel (%p413) target = $region16
        $region15: #{gate_extractation_layers.1} parent=11 // pred_region
          %s416 = smul.u32 2, %s31
          %p417 = scmp.lt.s32.totalorder %s416, 1
          %s418 = scalar_select %p417, %s416, 1
          %s419 = smul.addr %s418, 8
          %s420 = scalar_lea.vmem %s0, %s419
          %s421 = smul.u32 2, %s31
        $region16: #{gate_extractation_layers.1} parent=11 // pred_fallthru
          _
        // Predicated region
        $region17: #{gate_extractation_layers.1} parent=11 // pred_check
          %p422 = pneg %p86
        $region18: #{gate_extractation_layers.1} parent=11 // pred_check_branch
          %424 = sbr.rel (%p422) target = $region20
        $region19: #{gate_extractation_layers.1} parent=11 // pred_region
          %s425 = smul.u32 2, %s31
          %p426 = scmp.lt.s32.totalorder %s425, 1
          %s427 = scalar_select %p426, %s425, 1
          %s428 = smul.addr %s427, 8
          %s429 = scalar_lea.vmem %s1, %s428
          %s430 = smul.u32 2, %s31
        $region20: #{gate_extractation_layers.1} parent=11 // pred_fallthru
          _
      $region12: #{gate_extractation_layers.1} parent=5 // pred_fallthru
        _
      %p431 = scmp.lt.s32.totalorder %s22, 3
      // Predicated region
      $region21: #{gate_extractation_layers.1} parent=5 // pred_check
        %p432 = pneg %p431
      $region22: #{gate_extractation_layers.1} parent=5 // pred_check_branch
        %434 = sbr.rel (%p432) target = $region24
      $region23: #{gate_extractation_layers.1} parent=5 // pred_region
        // Predicated region
        $region25: #{gate_extractation_layers.1} parent=23 // pred_check
          %p435 = pneg %p106
        $region26: #{gate_extractation_layers.1} parent=23 // pred_check_branch
          %437 = sbr.rel (%p435) target = $region28
        $region27: #{gate_extractation_layers.1} parent=23 // pred_region
          %p438 = scmp.lt.s32.totalorder %s30, 2
          %s439 = scalar_select %p438, %s30, 2
          %s440 = smul.addr %s439, 32
          %s441 = smul.addr %s440, 8
          %s442 = scalar_lea.vmem %s2, %s441
        $region28: #{gate_extractation_layers.1} parent=23 // pred_fallthru
          _
        // Predicated region
        $region29: #{gate_extractation_layers.1} parent=23 // pred_check
          %p443 = pneg %p132
        $region30: #{gate_extractation_layers.1} parent=23 // pred_check_branch
          %445 = sbr.rel (%p443) target = $region32
        $region31: #{gate_extractation_layers.1} parent=23 // pred_region
          %p446 = scmp.lt.s32.totalorder %s30, 2
          %s447 = scalar_select %p446, %s30, 2
          %s448 = smul.addr %s447, 8
          %s449 = scalar_lea.vmem %s3, %s448
        $region32: #{gate_extractation_layers.1} parent=23 // pred_fallthru
          _
        // Predicated region
        $region33: #{gate_extractation_layers.1} parent=23 // pred_check
          %p450 = pneg %p158
        $region34: #{gate_extractation_layers.1} parent=23 // pred_check_branch
          %452 = sbr.rel (%p450) target = $region36
        $region35: #{gate_extractation_layers.1} parent=23 // pred_region
          %p453 = scmp.lt.s32.totalorder %s30, 2
          %s454 = scalar_select %p453, %s30, 2
          %s455 = smul.addr %s454, 8
          %s456 = smul.addr %s455, 8
          %s457 = scalar_lea.vmem %s4, %s456
        $region36: #{gate_extractation_layers.1} parent=23 // pred_fallthru
          _
        // Predicated region
        $region37: #{gate_extractation_layers.1} parent=23 // pred_check
          %p458 = pneg %p184
        $region38: #{gate_extractation_layers.1} parent=23 // pred_check_branch
          %460 = sbr.rel (%p458) target = $region40
        $region39: #{gate_extractation_layers.1} parent=23 // pred_region
          %p461 = scmp.lt.s32.totalorder %s30, 2
          %s462 = scalar_select %p461, %s30, 2
          %s463 = scalar_lea.vmem %s5, %s462
        $region40: #{gate_extractation_layers.1} parent=23 // pred_fallthru
          _
        // Predicated region
        $region41: #{gate_extractation_layers.1} parent=23 // pred_check
          %p464 = pneg %p210
        $region42: #{gate_extractation_layers.1} parent=23 // pred_check_branch
          %466 = sbr.rel (%p464) target = $region44
        $region43: #{gate_extractation_layers.1} parent=23 // pred_region
          %p467 = scmp.lt.s32.totalorder %s30, 2
          %s468 = scalar_select %p467, %s30, 2
          %s469 = smul.addr %s468, 3
          %s470 = scalar_lea.vmem %s6, %s469
        $region44: #{gate_extractation_layers.1} parent=23 // pred_fallthru
          _
        // Predicated region
        $region45: #{gate_extractation_layers.1} parent=23 // pred_check
          %p471 = pneg %p236
        $region46: #{gate_extractation_layers.1} parent=23 // pred_check_branch
          %473 = sbr.rel (%p471) target = $region48
        $region47: #{gate_extractation_layers.1} parent=23 // pred_region
          %p474 = scmp.lt.s32.totalorder %s30, 2
          %s475 = scalar_select %p474, %s30, 2
          %s476 = smul.addr %s475, 3
          %s477 = scalar_lea.vmem %s7, %s476
        $region48: #{gate_extractation_layers.1} parent=23 // pred_fallthru
          _
        // Predicated region
        $region49: #{gate_extractation_layers.1} parent=23 // pred_check
          %p478 = pneg %p262
        $region50: #{gate_extractation_layers.1} parent=23 // pred_check_branch
          %480 = sbr.rel (%p478) target = $region52
        $region51: #{gate_extractation_layers.1} parent=23 // pred_region
          %p481 = scmp.lt.s32.totalorder %s30, 2
          %s482 = scalar_select %p481, %s30, 2
          %s483 = smul.addr %s482, 96
          %s484 = smul.addr %s483, 8
          %s485 = scalar_lea.vmem %s8, %s484
        $region52: #{gate_extractation_layers.1} parent=23 // pred_fallthru
          _
        // Predicated region
        $region53: #{gate_extractation_layers.1} parent=23 // pred_check
          %p486 = pneg %p288
        $region54: #{gate_extractation_layers.1} parent=23 // pred_check_branch
          %488 = sbr.rel (%p486) target = $region56
        $region55: #{gate_extractation_layers.1} parent=23 // pred_region
          %p489 = scmp.lt.s32.totalorder %s30, 2
          %s490 = scalar_select %p489, %s30, 2
          %s491 = smul.addr %s490, 24
          %s492 = scalar_lea.vmem %s9, %s491
        $region56: #{gate_extractation_layers.1} parent=23 // pred_fallthru
          _
        // Predicated region
        $region57: #{gate_extractation_layers.1} parent=23 // pred_check
          %p493 = pneg %p314
        $region58: #{gate_extractation_layers.1} parent=23 // pred_check_branch
          %495 = sbr.rel (%p493) target = $region60
        $region59: #{gate_extractation_layers.1} parent=23 // pred_region
          %p496 = scmp.lt.s32.totalorder %s30, 2
          %s497 = scalar_select %p496, %s30, 2
          %s498 = smul.addr %s497, 384
          %s499 = smul.addr %s498, 8
          %s500 = scalar_lea.vmem %s10, %s499
        $region60: #{gate_extractation_layers.1} parent=23 // pred_fallthru
          _
        // Predicated region
        $region61: #{gate_extractation_layers.1} parent=23 // pred_check
          %p501 = pneg %p340
        $region62: #{gate_extractation_layers.1} parent=23 // pred_check_branch
          %503 = sbr.rel (%p501) target = $region64
        $region63: #{gate_extractation_layers.1} parent=23 // pred_region
          %p504 = scmp.lt.s32.totalorder %s30, 2
          %s505 = scalar_select %p504, %s30, 2
          %s506 = scalar_lea.vmem %s11, %s505
        $region64: #{gate_extractation_layers.1} parent=23 // pred_fallthru
          _
      $region24: #{gate_extractation_layers.1} parent=5 // pred_fallthru
        _
      %p507 = scmp.le.s32.totalorder 1, %s22
      %p508 = scmp.lt.s32.totalorder %s22, 4
      %p509 = pnand %p507, %p508
      %p510 = pneg %p509
      // Predicated region
      $region65: #{gate_extractation_layers.1} parent=5 // pred_check
        _
      $region66: #{gate_extractation_layers.1} parent=5 // pred_check_branch
        %512 = sbr.rel (%p509) target = $region68
      $region67: #{gate_extractation_layers.1} parent=5 // pred_region
        %s513 = ssub.s32 %s22, 1
        %s514 = smul.u32 2, %s31
        %p515 = scmp.lt.s32.totalorder %s514, 1
        %s516 = scalar_select %p515, %s514, 1
        %s517 = smul.addr %s516, 8
        %s518 = scalar_lea.vmem %s0, %s517
        %p519 = pneg %p60
        %p520 = pneg %p57
        %s521 = smul.u32 2, %s31
        %p522 = scmp.lt.s32.totalorder %s521, 1
        %s523 = scalar_select %p522, %s521, 1
        %s524 = smul.addr %s523, 8
        %s525 = scalar_lea.vmem %s1, %s524
        %p526 = pneg %p86
        %p527 = pneg %p83
        %p528 = scmp.lt.s32.totalorder %s32, 2
        %s529 = scalar_select %p528, %s32, 2
        %s530 = smul.addr %s529, 32
        %s531 = smul.addr %s530, 8
        %s532 = scalar_lea.vmem %s2, %s531
        %p533 = pneg %p112
        %p534 = pneg %p109
        %p535 = scmp.lt.s32.totalorder %s32, 2
        %s536 = scalar_select %p535, %s32, 2
        %s537 = smul.addr %s536, 8
        %s538 = scalar_lea.vmem %s3, %s537
        %p539 = pneg %p138
        %p540 = pneg %p135
        %p541 = scmp.lt.s32.totalorder %s32, 2
        %s542 = scalar_select %p541, %s32, 2
        %s543 = smul.addr %s542, 8
        %s544 = smul.addr %s543, 8
        %s545 = scalar_lea.vmem %s4, %s544
        %p546 = pneg %p164
        %p547 = pneg %p161
        %p548 = scmp.lt.s32.totalorder %s32, 2
        %s549 = scalar_select %p548, %s32, 2
        %s550 = scalar_lea.vmem %s5, %s549
        %p551 = pneg %p190
        %p552 = pneg %p187
        %p553 = scmp.lt.s32.totalorder %s32, 2
        %s554 = scalar_select %p553, %s32, 2
        %s555 = smul.addr %s554, 3
        %s556 = scalar_lea.vmem %s6, %s555
        %p557 = pneg %p216
        %p558 = pneg %p213
        %p559 = scmp.lt.s32.totalorder %s32, 2
        %s560 = scalar_select %p559, %s32, 2
        %s561 = smul.addr %s560, 3
        %s562 = scalar_lea.vmem %s7, %s561
        %p563 = pneg %p242
        %p564 = pneg %p239
        %p565 = scmp.lt.s32.totalorder %s32, 2
        %s566 = scalar_select %p565, %s32, 2
        %s567 = smul.addr %s566, 96
        %s568 = smul.addr %s567, 8
        %s569 = scalar_lea.vmem %s8, %s568
        %p570 = pneg %p268
        %p571 = pneg %p265
        %p572 = scmp.lt.s32.totalorder %s32, 2
        %s573 = scalar_select %p572, %s32, 2
        %s574 = smul.addr %s573, 24
        %s575 = scalar_lea.vmem %s9, %s574
        %p576 = pneg %p294
        %p577 = pneg %p291
        %p578 = scmp.lt.s32.totalorder %s32, 2
        %s579 = scalar_select %p578, %s32, 2
        %s580 = smul.addr %s579, 384
        %s581 = smul.addr %s580, 8
        %s582 = scalar_lea.vmem %s10, %s581
        %p583 = pneg %p320
        %p584 = pneg %p317
        %p585 = scmp.lt.s32.totalorder %s32, 2
        %s586 = scalar_select %p585, %s32, 2
        %s587 = scalar_lea.vmem %s11, %s586
        %p588 = pneg %p346
        %p589 = pneg %p343
        %p590 = pneg %p372
        %p591 = pneg %p369
        %p592 = pneg %p398
        %p593 = pneg %p395
        %s594 = smul.u32 2, %s31
        %p595 = scmp.lt.s32.totalorder %s594, 1
        %s596 = scalar_select %p595, %s594, 1
        %s597 = smul.addr %s596, 8
        %s598 = scalar_lea.vmem %s0, %s597
        %s599 = smul.u32 2, %s31
        %s600 = smul.u32 2, %s31
        %p601 = scmp.lt.s32.totalorder %s600, 1
        %s602 = scalar_select %p601, %s600, 1
        %s603 = smul.addr %s602, 8
        %s604 = scalar_lea.vmem %s1, %s603
        %s605 = smul.u32 2, %s31
        %p606 = scmp.lt.s32.totalorder %s32, 2
        %s607 = scalar_select %p606, %s32, 2
        %s608 = smul.addr %s607, 32
        %s609 = smul.addr %s608, 8
        %s610 = scalar_lea.vmem %s2, %s609
        %p611 = scmp.lt.s32.totalorder %s32, 2
        %s612 = scalar_select %p611, %s32, 2
        %s613 = smul.addr %s612, 8
        %s614 = scalar_lea.vmem %s3, %s613
        %p615 = scmp.lt.s32.totalorder %s32, 2
        %s616 = scalar_select %p615, %s32, 2
        %s617 = smul.addr %s616, 8
        %s618 = smul.addr %s617, 8
        %s619 = scalar_lea.vmem %s4, %s618
        %p620 = scmp.lt.s32.totalorder %s32, 2
        %s621 = scalar_select %p620, %s32, 2
        %s622 = scalar_lea.vmem %s5, %s621
        %p623 = scmp.lt.s32.totalorder %s32, 2
        %s624 = scalar_select %p623, %s32, 2
        %s625 = smul.addr %s624, 3
        %s626 = scalar_lea.vmem %s6, %s625
        %p627 = scmp.lt.s32.totalorder %s32, 2
        %s628 = scalar_select %p627, %s32, 2
        %s629 = smul.addr %s628, 3
        %s630 = scalar_lea.vmem %s7, %s629
        %p631 = scmp.lt.s32.totalorder %s32, 2
        %s632 = scalar_select %p631, %s32, 2
        %s633 = smul.addr %s632, 96
        %s634 = smul.addr %s633, 8
        %s635 = scalar_lea.vmem %s8, %s634
        %p636 = scmp.lt.s32.totalorder %s32, 2
        %s637 = scalar_select %p636, %s32, 2
        %s638 = smul.addr %s637, 24
        %s639 = scalar_lea.vmem %s9, %s638
        %p640 = scmp.lt.s32.totalorder %s32, 2
        %s641 = scalar_select %p640, %s32, 2
        %s642 = smul.addr %s641, 384
        %s643 = smul.addr %s642, 8
        %s644 = scalar_lea.vmem %s10, %s643
        %p645 = scmp.lt.s32.totalorder %s32, 2
        %s646 = scalar_select %p645, %s32, 2
        %s647 = scalar_lea.vmem %s11, %s646
        %s648 = smul.u32 2, %s31
        %s649 = smul.u32 2, %s31
        %p650 = scmp.eq.s32.totalorder %s32, 0
        // Predicated region
        $region69: #{gate_extractation_layers.1} parent=67 // pred_check
          %p651 = pneg %p650
        $region70: #{gate_extractation_layers.1} parent=67 // pred_check_branch
          %653 = sbr.rel (%p651) target = $region72
        $region71: #{gate_extractation_layers.1} parent=67 // pred_region
          %v654 = vld [vmem:[%s598] sm:$0xff]
          %v655 = vld [vmem:[%s598 + $0x8] sm:$0xff]
          %vm656 = vcmask 261120
          %657 = vst.msk [vmem:[#allocation2] sm:$0xff] %vm656, %v654
          %658 = vst.msk [vmem:[#allocation2 + $0x8] sm:$0xff] %vm656, %v655
        $region72: #{gate_extractation_layers.1} parent=67 // pred_fallthru
          _
        %v659 = vld [vmem:[#allocation2] sm:$0xff]
        %v660 = vld [vmem:[#allocation2 + $0x8] sm:$0xff]
        %v661 = vld [vmem:[%s604] sm:$0xff]
        %v662 = vld [vmem:[%s604 + $0x8] sm:$0xff]
        %v663 = vld [vmem:[%s610] sm:$0xff]
        %v664 = vld [vmem:[%s610 + $0x8] sm:$0xff]
        %v665 = vld [vmem:[%s610 + $0x10] sm:$0xff]
        %v666 = vld [vmem:[%s610 + $0x18] sm:$0xff]
        %v667 = vld [vmem:[%s614] sm:$0x1]
        %v669 = vlaneseq
        %v670 = vshrl.u32 %v669, 7
        %v671 = vsub.s32 0, %v670
        %v672 = vrot.slane %v667, %v671
        %vm674 = vcmask 261120
        %v676 = vsel %vm674, %v659, 0
        %v679 = vsel %vm674, %v660, 0
        %681 = vmatprep.subr.mxu0 0.0
        %682 = vmatpush1.msra.mxu0 0.0
        %683 = vmatprep.subr.mxu0 0.0
        %684 = vmatpush1.msra.mxu0 0.0
        %685 = vmatprep.subr.mxu0 0.0
        %686 = vmatpush1.msra.mxu0 0.0
        %687 = vmatprep.subr.mxu0 0.0
        %688 = vmatpush1.msra.mxu0 0.0
        %689 = vmatprep.subr.mxu0 0.0
        %690 = vmatpush1.msra.mxu0 0.0
        %691 = vmatprep.subr.mxu0 0.0
        %692 = vmatpush1.msra.mxu0 0.0
        %693 = vmatprep.subr.mxu0 0.0
        %694 = vmatpush1.msra.mxu0 0.0
        %695 = vmatprep.subr.mxu0 0.0
        %696 = vmatpush1.msra.mxu0 0.0
        %697 = vmatprep.subr.mxu0 0.0
        %698 = vmatpush1.msra.mxu0 0.0
        %699 = vmatprep.subr.mxu0 0.0
        %700 = vmatpush1.msra.mxu0 0.0
        %701 = vmatprep.subr.mxu0 0.0
        %702 = vmatpush1.msra.mxu0 0.0
        %703 = vmatprep.subr.mxu0 0.0
        %704 = vmatpush1.msra.mxu0 0.0
        %705 = vmatprep.subr.mxu0 0.0
        %706 = vmatpush1.msra.mxu0 %v666
        %707 = vmatprep.subr.mxu0 0.0
        %708 = vmatpush1.msra.mxu0 %v665
        %709 = vmatprep.subr.mxu0 0.0
        %710 = vmatpush1.msra.mxu0 %v664
        %711 = vmatprep.subr.mxu0 0.0
        %712 = vmatpush1.msra.mxu0 %v663
        %713 = vmatprep.subr.mxu0 0.0
        %714 = vmatpush2.msra.mxu0 0.0
        %715 = vmatprep.subr.mxu0 0.0
        %716 = vmatpush2.msra.mxu0 0.0
        %717 = vmatprep.subr.mxu0 0.0
        %718 = vmatpush2.msra.mxu0 0.0
        %719 = vmatprep.subr.mxu0 0.0
        %720 = vmatpush2.msra.mxu0 0.0
        %721 = vmatprep.subr.mxu0 0.0
        %722 = vmatpush2.msra.mxu0 0.0
        %723 = vmatprep.subr.mxu0 0.0
        %724 = vmatpush2.msra.mxu0 0.0
        %725 = vmatprep.subr.mxu0 0.0
        %726 = vmatpush2.msra.mxu0 0.0
        %727 = vmatprep.subr.mxu0 0.0
        %728 = vmatpush2.msra.mxu0 0.0
        %729 = vmatprep.subr.mxu0 0.0
        %730 = vmatpush2.msra.mxu0 0.0
        %731 = vmatprep.subr.mxu0 0.0
        %732 = vmatpush2.msra.mxu0 0.0
        %733 = vmatprep.subr.mxu0 0.0
        %734 = vmatpush2.msra.mxu0 0.0
        %735 = vmatprep.subr.mxu0 0.0
        %736 = vmatpush2.msra.mxu0 0.0
        %737 = vmatprep.subr.mxu0 0.0
        %738 = vmatpush2.msra.mxu0 0.0
        %739 = vmatprep.subr.mxu0 0.0
        %740 = vmatpush2.msra.mxu0 0.0
        %741 = vmatprep.subr.mxu0 0.0
        %742 = vmatpush2.msra.mxu0 0.0
        %743 = vmatprep.subr.mxu0 0.0
        %744 = vmatpush2.msra.mxu0 0.0
        %745 = vmatprep.mubr.f32.mxu0 0.0
        %746 = vmatmul.mubr.f32.gmra.mxu0 %v676
        %v747 = vpop.f32.mrf.mxu0
        %v748 = vadd.f32 %v672, %v747
        %v749 = vpop.f32.mrf.mxu0
        %750 = vmatprep.mubr.f32.mxu0 0.0
        %751 = vmatmul.mubr.f32.gmra.mxu0 %v679
        %v752 = vpop.f32.mrf.mxu0
        %v753 = vadd.f32 %v672, %v752
        %v754 = vpop.f32.mrf.mxu0
        %755 = vdwg.mxu0
        %s756 = scalar_lea.vmem %s610, 32
        %v757 = vld [vmem:[%s756] sm:$0xff]
        %v758 = vld [vmem:[%s756 + $0x8] sm:$0xff]
        %v759 = vld [vmem:[%s756 + $0x10] sm:$0xff]
        %v760 = vld [vmem:[%s756 + $0x18] sm:$0xff]
        %s761 = scalar_lea.vmem %s614, 1
        %v762 = vld [vmem:[%s761] sm:$0x1]
        %v764 = vlaneseq
        %v765 = vshrl.u32 %v764, 7
        %v766 = vsub.s32 0, %v765
        %v767 = vrot.slane %v762, %v766
        %769 = vmatprep.subr.mxu0 0.0
        %770 = vmatpush1.msra.mxu0 0.0
        %771 = vmatprep.subr.mxu0 0.0
        %772 = vmatpush1.msra.mxu0 0.0
        %773 = vmatprep.subr.mxu0 0.0
        %774 = vmatpush1.msra.mxu0 0.0
        %775 = vmatprep.subr.mxu0 0.0
        %776 = vmatpush1.msra.mxu0 0.0
        %777 = vmatprep.subr.mxu0 0.0
        %778 = vmatpush1.msra.mxu0 0.0
        %779 = vmatprep.subr.mxu0 0.0
        %780 = vmatpush1.msra.mxu0 0.0
        %781 = vmatprep.subr.mxu0 0.0
        %782 = vmatpush1.msra.mxu0 0.0
        %783 = vmatprep.subr.mxu0 0.0
        %784 = vmatpush1.msra.mxu0 0.0
        %785 = vmatprep.subr.mxu0 0.0
        %786 = vmatpush1.msra.mxu0 0.0
        %787 = vmatprep.subr.mxu0 0.0
        %788 = vmatpush1.msra.mxu0 0.0
        %789 = vmatprep.subr.mxu0 0.0
        %790 = vmatpush1.msra.mxu0 0.0
        %791 = vmatprep.subr.mxu0 0.0
        %792 = vmatpush1.msra.mxu0 0.0
        %793 = vmatprep.subr.mxu0 0.0
        %794 = vmatpush1.msra.mxu0 %v760
        %795 = vmatprep.subr.mxu0 0.0
        %796 = vmatpush1.msra.mxu0 %v759
        %797 = vmatprep.subr.mxu0 0.0
        %798 = vmatpush1.msra.mxu0 %v758
        %799 = vmatprep.subr.mxu0 0.0
        %800 = vmatpush1.msra.mxu0 %v757
        %801 = vmatprep.subr.mxu0 0.0
        %802 = vmatpush2.msra.mxu0 0.0
        %803 = vmatprep.subr.mxu0 0.0
        %804 = vmatpush2.msra.mxu0 0.0
        %805 = vmatprep.subr.mxu0 0.0
        %806 = vmatpush2.msra.mxu0 0.0
        %807 = vmatprep.subr.mxu0 0.0
        %808 = vmatpush2.msra.mxu0 0.0
        %809 = vmatprep.subr.mxu0 0.0
        %810 = vmatpush2.msra.mxu0 0.0
        %811 = vmatprep.subr.mxu0 0.0
        %812 = vmatpush2.msra.mxu0 0.0
        %813 = vmatprep.subr.mxu0 0.0
        %814 = vmatpush2.msra.mxu0 0.0
        %815 = vmatprep.subr.mxu0 0.0
        %816 = vmatpush2.msra.mxu0 0.0
        %817 = vmatprep.subr.mxu0 0.0
        %818 = vmatpush2.msra.mxu0 0.0
        %819 = vmatprep.subr.mxu0 0.0
        %820 = vmatpush2.msra.mxu0 0.0
        %821 = vmatprep.subr.mxu0 0.0
        %822 = vmatpush2.msra.mxu0 0.0
        %823 = vmatprep.subr.mxu0 0.0
        %824 = vmatpush2.msra.mxu0 0.0
        %825 = vmatprep.subr.mxu0 0.0
        %826 = vmatpush2.msra.mxu0 0.0
        %827 = vmatprep.subr.mxu0 0.0
        %828 = vmatpush2.msra.mxu0 0.0
        %829 = vmatprep.subr.mxu0 0.0
        %830 = vmatpush2.msra.mxu0 0.0
        %831 = vmatprep.subr.mxu0 0.0
        %832 = vmatpush2.msra.mxu0 0.0
        %833 = vmatprep.mubr.f32.mxu0 0.0
        %834 = vmatmul.mubr.f32.gmra.mxu0 %v676
        %v835 = vpop.f32.mrf.mxu0
        %v836 = vadd.f32 %v767, %v835
        %v837 = vpop.f32.mrf.mxu0
        %838 = vmatprep.mubr.f32.mxu0 0.0
        %839 = vmatmul.mubr.f32.gmra.mxu0 %v679
        %v840 = vpop.f32.mrf.mxu0
        %v841 = vadd.f32 %v767, %v840
        %v842 = vpop.f32.mrf.mxu0
        %843 = vdwg.mxu0
        %s844 = scalar_lea.vmem %s610, 64
        %v845 = vld [vmem:[%s844] sm:$0xff]
        %v846 = vld [vmem:[%s844 + $0x8] sm:$0xff]
        %v847 = vld [vmem:[%s844 + $0x10] sm:$0xff]
        %v848 = vld [vmem:[%s844 + $0x18] sm:$0xff]
        %s849 = scalar_lea.vmem %s614, 2
        %v850 = vld [vmem:[%s849] sm:$0x1]
        %v852 = vlaneseq
        %v853 = vshrl.u32 %v852, 7
        %v854 = vsub.s32 0, %v853
        %v855 = vrot.slane %v850, %v854
        %857 = vmatprep.subr.mxu0 0.0
        %858 = vmatpush1.msra.mxu0 0.0
        %859 = vmatprep.subr.mxu0 0.0
        %860 = vmatpush1.msra.mxu0 0.0
        %861 = vmatprep.subr.mxu0 0.0
        %862 = vmatpush1.msra.mxu0 0.0
        %863 = vmatprep.subr.mxu0 0.0
        %864 = vmatpush1.msra.mxu0 0.0
        %865 = vmatprep.subr.mxu0 0.0
        %866 = vmatpush1.msra.mxu0 0.0
        %867 = vmatprep.subr.mxu0 0.0
        %868 = vmatpush1.msra.mxu0 0.0
        %869 = vmatprep.subr.mxu0 0.0
        %870 = vmatpush1.msra.mxu0 0.0
        %871 = vmatprep.subr.mxu0 0.0
        %872 = vmatpush1.msra.mxu0 0.0
        %873 = vmatprep.subr.mxu0 0.0
        %874 = vmatpush1.msra.mxu0 0.0
        %875 = vmatprep.subr.mxu0 0.0
        %876 = vmatpush1.msra.mxu0 0.0
        %877 = vmatprep.subr.mxu0 0.0
        %878 = vmatpush1.msra.mxu0 0.0
        %879 = vmatprep.subr.mxu0 0.0
        %880 = vmatpush1.msra.mxu0 0.0
        %881 = vmatprep.subr.mxu0 0.0
        %882 = vmatpush1.msra.mxu0 %v848
        %883 = vmatprep.subr.mxu0 0.0
        %884 = vmatpush1.msra.mxu0 %v847
        %885 = vmatprep.subr.mxu0 0.0
        %886 = vmatpush1.msra.mxu0 %v846
        %887 = vmatprep.subr.mxu0 0.0
        %888 = vmatpush1.msra.mxu0 %v845
        %889 = vmatprep.subr.mxu0 0.0
        %890 = vmatpush2.msra.mxu0 0.0
        %891 = vmatprep.subr.mxu0 0.0
        %892 = vmatpush2.msra.mxu0 0.0
        %893 = vmatprep.subr.mxu0 0.0
        %894 = vmatpush2.msra.mxu0 0.0
        %895 = vmatprep.subr.mxu0 0.0
        %896 = vmatpush2.msra.mxu0 0.0
        %897 = vmatprep.subr.mxu0 0.0
        %898 = vmatpush2.msra.mxu0 0.0
        %899 = vmatprep.subr.mxu0 0.0
        %900 = vmatpush2.msra.mxu0 0.0
        %901 = vmatprep.subr.mxu0 0.0
        %902 = vmatpush2.msra.mxu0 0.0
        %903 = vmatprep.subr.mxu0 0.0
        %904 = vmatpush2.msra.mxu0 0.0
        %905 = vmatprep.subr.mxu0 0.0
        %906 = vmatpush2.msra.mxu0 0.0
        %907 = vmatprep.subr.mxu0 0.0
        %908 = vmatpush2.msra.mxu0 0.0
        %909 = vmatprep.subr.mxu0 0.0
        %910 = vmatpush2.msra.mxu0 0.0
        %911 = vmatprep.subr.mxu0 0.0
        %912 = vmatpush2.msra.mxu0 0.0
        %913 = vmatprep.subr.mxu0 0.0
        %914 = vmatpush2.msra.mxu0 0.0
        %915 = vmatprep.subr.mxu0 0.0
        %916 = vmatpush2.msra.mxu0 0.0
        %917 = vmatprep.subr.mxu0 0.0
        %918 = vmatpush2.msra.mxu0 0.0
        %919 = vmatprep.subr.mxu0 0.0
        %920 = vmatpush2.msra.mxu0 0.0
        %921 = vmatprep.mubr.f32.mxu0 0.0
        %922 = vmatmul.mubr.f32.gmra.mxu0 %v676
        %v923 = vpop.f32.mrf.mxu0
        %v924 = vadd.f32 %v855, %v923
        %v925 = vpop.f32.mrf.mxu0
        %926 = vmatprep.mubr.f32.mxu0 0.0
        %927 = vmatmul.mubr.f32.gmra.mxu0 %v679
        %v928 = vpop.f32.mrf.mxu0
        %v929 = vadd.f32 %v855, %v928
        %v930 = vpop.f32.mrf.mxu0
        %931 = vdwg.mxu0
        %vm932 = vcmask 31744
        %v934 = vsel %vm932, %v748, 0
        %v937 = vsel %vm932, %v836, 0
        %939 = vmatprep.subr.mxu0 0.0
        %940 = vmatpush1.xpose.msra.mxu0 0.0
        %941 = vmatprep.subr.mxu0 0.0
        %942 = vmatpush1.xpose.msra.mxu0 0.0
        %943 = vmatprep.subr.mxu0 0.0
        %944 = vmatpush1.xpose.msra.mxu0 0.0
        %945 = vmatprep.subr.mxu0 0.0
        %946 = vmatpush1.xpose.msra.mxu0 0.0
        %947 = vmatprep.subr.mxu0 0.0
        %948 = vmatpush1.xpose.msra.mxu0 0.0
        %949 = vmatprep.subr.mxu0 0.0
        %950 = vmatpush1.xpose.msra.mxu0 0.0
        %951 = vmatprep.subr.mxu0 0.0
        %952 = vmatpush1.xpose.msra.mxu0 0.0
        %953 = vmatprep.subr.mxu0 0.0
        %954 = vmatpush1.xpose.msra.mxu0 0.0
        %955 = vmatprep.subr.mxu0 0.0
        %956 = vmatpush1.xpose.msra.mxu0 0.0
        %957 = vmatprep.subr.mxu0 0.0
        %958 = vmatpush1.xpose.msra.mxu0 0.0
        %959 = vmatprep.subr.mxu0 0.0
        %960 = vmatpush1.xpose.msra.mxu0 0.0
        %961 = vmatprep.subr.mxu0 0.0
        %962 = vmatpush1.xpose.msra.mxu0 0.0
        %963 = vmatprep.subr.mxu0 0.0
        %964 = vmatpush1.xpose.msra.mxu0 0.0
        %965 = vmatprep.subr.mxu0 0.0
        %966 = vmatpush1.xpose.msra.mxu0 0.0
        %967 = vmatprep.subr.mxu0 0.0
        %968 = vmatpush1.xpose.msra.mxu0 0.0
        %969 = vmatprep.subr.mxu0 0.0
        %970 = vmatpush1.xpose.msra.mxu0 %v937
        %971 = vmatprep.subr.mxu0 0.0
        %972 = vmatpush2.xpose.msra.mxu0 0.0
        %973 = vmatprep.subr.mxu0 0.0
        %974 = vmatpush2.xpose.msra.mxu0 0.0
        %975 = vmatprep.subr.mxu0 0.0
        %976 = vmatpush2.xpose.msra.mxu0 0.0
        %977 = vmatprep.subr.mxu0 0.0
        %978 = vmatpush2.xpose.msra.mxu0 0.0
        %979 = vmatprep.subr.mxu0 0.0
        %980 = vmatpush2.xpose.msra.mxu0 0.0
        %981 = vmatprep.subr.mxu0 0.0
        %982 = vmatpush2.xpose.msra.mxu0 0.0
        %983 = vmatprep.subr.mxu0 0.0
        %984 = vmatpush2.xpose.msra.mxu0 0.0
        %985 = vmatprep.subr.mxu0 0.0
        %986 = vmatpush2.xpose.msra.mxu0 0.0
        %987 = vmatprep.subr.mxu0 0.0
        %988 = vmatpush2.xpose.msra.mxu0 0.0
        %989 = vmatprep.subr.mxu0 0.0
        %990 = vmatpush2.xpose.msra.mxu0 0.0
        %991 = vmatprep.subr.mxu0 0.0
        %992 = vmatpush2.xpose.msra.mxu0 0.0
        %993 = vmatprep.subr.mxu0 0.0
        %994 = vmatpush2.xpose.msra.mxu0 0.0
        %995 = vmatprep.subr.mxu0 0.0
        %996 = vmatpush2.xpose.msra.mxu0 0.0
        %997 = vmatprep.subr.mxu0 0.0
        %998 = vmatpush2.xpose.msra.mxu0 0.0
        %999 = vmatprep.subr.mxu0 0.0
        %1000 = vmatpush2.xpose.msra.mxu0 0.0
        %1001 = vmatprep.subr.mxu0 0.0
        %1002 = vmatpush2.xpose.msra.mxu0 0.0
        %1003 = vmatprep.mubr.f32.mxu0 0.0
        %1004 = vmatmul.mubr.f32.gmra.mxu0 %v934
        %v1005 = vpop.f32.mrf.mxu0
        %v1006 = vadd.f32 0.0, %v1005
        %v1007 = vpop.f32.mrf.mxu0
        %1008 = vdwg.mxu0
        %v1010 = vsel %vm932, %v753, 0
        %v1013 = vsel %vm932, %v841, 0
        %1015 = vmatprep.subr.mxu0 0.0
        %1016 = vmatpush1.xpose.msra.mxu0 0.0
        %1017 = vmatprep.subr.mxu0 0.0
        %1018 = vmatpush1.xpose.msra.mxu0 0.0
        %1019 = vmatprep.subr.mxu0 0.0
        %1020 = vmatpush1.xpose.msra.mxu0 0.0
        %1021 = vmatprep.subr.mxu0 0.0
        %1022 = vmatpush1.xpose.msra.mxu0 0.0
        %1023 = vmatprep.subr.mxu0 0.0
        %1024 = vmatpush1.xpose.msra.mxu0 0.0
        %1025 = vmatprep.subr.mxu0 0.0
        %1026 = vmatpush1.xpose.msra.mxu0 0.0
        %1027 = vmatprep.subr.mxu0 0.0
        %1028 = vmatpush1.xpose.msra.mxu0 0.0
        %1029 = vmatprep.subr.mxu0 0.0
        %1030 = vmatpush1.xpose.msra.mxu0 0.0
        %1031 = vmatprep.subr.mxu0 0.0
        %1032 = vmatpush1.xpose.msra.mxu0 0.0
        %1033 = vmatprep.subr.mxu0 0.0
        %1034 = vmatpush1.xpose.msra.mxu0 0.0
        %1035 = vmatprep.subr.mxu0 0.0
        %1036 = vmatpush1.xpose.msra.mxu0 0.0
        %1037 = vmatprep.subr.mxu0 0.0
        %1038 = vmatpush1.xpose.msra.mxu0 0.0
        %1039 = vmatprep.subr.mxu0 0.0
        %1040 = vmatpush1.xpose.msra.mxu0 0.0
        %1041 = vmatprep.subr.mxu0 0.0
        %1042 = vmatpush1.xpose.msra.mxu0 0.0
        %1043 = vmatprep.subr.mxu0 0.0
        %1044 = vmatpush1.xpose.msra.mxu0 0.0
        %1045 = vmatprep.subr.mxu0 0.0
        %1046 = vmatpush1.xpose.msra.mxu0 %v1013
        %1047 = vmatprep.subr.mxu0 0.0
        %1048 = vmatpush2.xpose.msra.mxu0 0.0
        %1049 = vmatprep.subr.mxu0 0.0
        %1050 = vmatpush2.xpose.msra.mxu0 0.0
        %1051 = vmatprep.subr.mxu0 0.0
        %1052 = vmatpush2.xpose.msra.mxu0 0.0
        %1053 = vmatprep.subr.mxu0 0.0
        %1054 = vmatpush2.xpose.msra.mxu0 0.0
        %1055 = vmatprep.subr.mxu0 0.0
        %1056 = vmatpush2.xpose.msra.mxu0 0.0
        %1057 = vmatprep.subr.mxu0 0.0
        %1058 = vmatpush2.xpose.msra.mxu0 0.0
        %1059 = vmatprep.subr.mxu0 0.0
        %1060 = vmatpush2.xpose.msra.mxu0 0.0
        %1061 = vmatprep.subr.mxu0 0.0
        %1062 = vmatpush2.xpose.msra.mxu0 0.0
        %1063 = vmatprep.subr.mxu0 0.0
        %1064 = vmatpush2.xpose.msra.mxu0 0.0
        %1065 = vmatprep.subr.mxu0 0.0
        %1066 = vmatpush2.xpose.msra.mxu0 0.0
        %1067 = vmatprep.subr.mxu0 0.0
        %1068 = vmatpush2.xpose.msra.mxu0 0.0
        %1069 = vmatprep.subr.mxu0 0.0
        %1070 = vmatpush2.xpose.msra.mxu0 0.0
        %1071 = vmatprep.subr.mxu0 0.0
        %1072 = vmatpush2.xpose.msra.mxu0 0.0
        %1073 = vmatprep.subr.mxu0 0.0
        %1074 = vmatpush2.xpose.msra.mxu0 0.0
        %1075 = vmatprep.subr.mxu0 0.0
        %1076 = vmatpush2.xpose.msra.mxu0 0.0
        %1077 = vmatprep.subr.mxu0 0.0
        %1078 = vmatpush2.xpose.msra.mxu0 0.0
        %1079 = vmatprep.mubr.f32.mxu0 0.0
        %1080 = vmatmul.mubr.f32.gmra.mxu0 %v1010
        %v1081 = vpop.f32.mrf.mxu0
        %v1082 = vadd.f32 0.0, %v1081
        %v1083 = vpop.f32.mrf.mxu0
        %1084 = vdwg.mxu0
        %vm1085 = vcmask 64512
        %v1086 = vsel %vm1085, %v1006, -inf
        %1087 = vmax.xlane.f32.xlu0 %v1086
        %v1088 = vpop.xlane.xlu0 %1087
        %v1089 = vsel %vm1085, %v1082, -inf
        %1090 = vmax.xlane.f32.xlu0 %v1089
        %v1091 = vpop.xlane.xlu0 %1090
        %v1092 = vsub.f32 %v1006, %v1088
        %v1093 = vsub.f32 %v1082, %v1091
        %v1094 = vmul.f32 %v1092, 1.442695
        %v1095 = vpow.pop %v1094
        %v1096 = vmul.f32 %v1093, 1.442695
        %v1097 = vpow.pop %v1096
        %v1098 = vsel %vm1085, %v1095, 0.0
        %1099 = vadd.xlane.f32.xlu0 %v1098
        %v1100 = vpop.xlane.xlu0 %1099
        %v1101 = vsel %vm1085, %v1097, 0.0
        %1102 = vadd.xlane.f32.xlu0 %v1101
        %v1103 = vpop.xlane.xlu0 %1102
        %v1104 = vrcp.pop %v1100
        %v1105 = vmul.f32 %v1095, %v1104
        %v1106 = vrcp.pop %v1103
        %v1107 = vmul.f32 %v1097, %v1106
        %v1109 = vsel %vm1085, %v1105, 0
        %1111 = vmatprep.subr.mxu0 0.0
        %1112 = vmatpush1.msra.mxu0 0.0
        %1113 = vmatprep.subr.mxu0 0.0
        %1114 = vmatpush1.msra.mxu0 0.0
        %1115 = vmatprep.subr.mxu0 0.0
        %1116 = vmatpush1.msra.mxu0 0.0
        %1117 = vmatprep.subr.mxu0 0.0
        %1118 = vmatpush1.msra.mxu0 0.0
        %1119 = vmatprep.subr.mxu0 0.0
        %1120 = vmatpush1.msra.mxu0 0.0
        %1121 = vmatprep.subr.mxu0 0.0
        %1122 = vmatpush1.msra.mxu0 0.0
        %1123 = vmatprep.subr.mxu0 0.0
        %1124 = vmatpush1.msra.mxu0 0.0
        %1125 = vmatprep.subr.mxu0 0.0
        %1126 = vmatpush1.msra.mxu0 0.0
        %1127 = vmatprep.subr.mxu0 0.0
        %1128 = vmatpush1.msra.mxu0 0.0
        %1129 = vmatprep.subr.mxu0 0.0
        %1130 = vmatpush1.msra.mxu0 0.0
        %1131 = vmatprep.subr.mxu0 0.0
        %1132 = vmatpush1.msra.mxu0 0.0
        %1133 = vmatprep.subr.mxu0 0.0
        %1134 = vmatpush1.msra.mxu0 0.0
        %1135 = vmatprep.subr.mxu0 0.0
        %1136 = vmatpush1.msra.mxu0 0.0
        %1137 = vmatprep.subr.mxu0 0.0
        %1138 = vmatpush1.msra.mxu0 0.0
        %1139 = vmatprep.subr.mxu0 0.0
        %1140 = vmatpush1.msra.mxu0 0.0
        %1141 = vmatprep.subr.mxu0 0.0
        %1142 = vmatpush1.msra.mxu0 %v924
        %1143 = vmatprep.subr.mxu0 0.0
        %1144 = vmatpush2.msra.mxu0 0.0
        %1145 = vmatprep.subr.mxu0 0.0
        %1146 = vmatpush2.msra.mxu0 0.0
        %1147 = vmatprep.subr.mxu0 0.0
        %1148 = vmatpush2.msra.mxu0 0.0
        %1149 = vmatprep.subr.mxu0 0.0
        %1150 = vmatpush2.msra.mxu0 0.0
        %1151 = vmatprep.subr.mxu0 0.0
        %1152 = vmatpush2.msra.mxu0 0.0
        %1153 = vmatprep.subr.mxu0 0.0
        %1154 = vmatpush2.msra.mxu0 0.0
        %1155 = vmatprep.subr.mxu0 0.0
        %1156 = vmatpush2.msra.mxu0 0.0
        %1157 = vmatprep.subr.mxu0 0.0
        %1158 = vmatpush2.msra.mxu0 0.0
        %1159 = vmatprep.subr.mxu0 0.0
        %1160 = vmatpush2.msra.mxu0 0.0
        %1161 = vmatprep.subr.mxu0 0.0
        %1162 = vmatpush2.msra.mxu0 0.0
        %1163 = vmatprep.subr.mxu0 0.0
        %1164 = vmatpush2.msra.mxu0 0.0
        %1165 = vmatprep.subr.mxu0 0.0
        %1166 = vmatpush2.msra.mxu0 0.0
        %1167 = vmatprep.subr.mxu0 0.0
        %1168 = vmatpush2.msra.mxu0 0.0
        %1169 = vmatprep.subr.mxu0 0.0
        %1170 = vmatpush2.msra.mxu0 0.0
        %1171 = vmatprep.subr.mxu0 0.0
        %1172 = vmatpush2.msra.mxu0 0.0
        %1173 = vmatprep.subr.mxu0 0.0
        %1174 = vmatpush2.msra.mxu0 0.0
        %1175 = vmatprep.mubr.f32.mxu0 0.0
        %1176 = vmatmul.mubr.f32.gmra.mxu0 %v1109
        %v1177 = vpop.f32.mrf.mxu0
        %v1178 = vadd.f32 0.0, %v1177
        %v1179 = vpop.f32.mrf.mxu0
        %1180 = vdwg.mxu0
        %v1182 = vsel %vm1085, %v1107, 0
        %1184 = vmatprep.subr.mxu0 0.0
        %1185 = vmatpush1.msra.mxu0 0.0
        %1186 = vmatprep.subr.mxu0 0.0
        %1187 = vmatpush1.msra.mxu0 0.0
        %1188 = vmatprep.subr.mxu0 0.0
        %1189 = vmatpush1.msra.mxu0 0.0
        %1190 = vmatprep.subr.mxu0 0.0
        %1191 = vmatpush1.msra.mxu0 0.0
        %1192 = vmatprep.subr.mxu0 0.0
        %1193 = vmatpush1.msra.mxu0 0.0
        %1194 = vmatprep.subr.mxu0 0.0
        %1195 = vmatpush1.msra.mxu0 0.0
        %1196 = vmatprep.subr.mxu0 0.0
        %1197 = vmatpush1.msra.mxu0 0.0
        %1198 = vmatprep.subr.mxu0 0.0
        %1199 = vmatpush1.msra.mxu0 0.0
        %1200 = vmatprep.subr.mxu0 0.0
        %1201 = vmatpush1.msra.mxu0 0.0
        %1202 = vmatprep.subr.mxu0 0.0
        %1203 = vmatpush1.msra.mxu0 0.0
        %1204 = vmatprep.subr.mxu0 0.0
        %1205 = vmatpush1.msra.mxu0 0.0
        %1206 = vmatprep.subr.mxu0 0.0
        %1207 = vmatpush1.msra.mxu0 0.0
        %1208 = vmatprep.subr.mxu0 0.0
        %1209 = vmatpush1.msra.mxu0 0.0
        %1210 = vmatprep.subr.mxu0 0.0
        %1211 = vmatpush1.msra.mxu0 0.0
        %1212 = vmatprep.subr.mxu0 0.0
        %1213 = vmatpush1.msra.mxu0 0.0
        %1214 = vmatprep.subr.mxu0 0.0
        %1215 = vmatpush1.msra.mxu0 %v929
        %1216 = vmatprep.subr.mxu0 0.0
        %1217 = vmatpush2.msra.mxu0 0.0
        %1218 = vmatprep.subr.mxu0 0.0
        %1219 = vmatpush2.msra.mxu0 0.0
        %1220 = vmatprep.subr.mxu0 0.0
        %1221 = vmatpush2.msra.mxu0 0.0
        %1222 = vmatprep.subr.mxu0 0.0
        %1223 = vmatpush2.msra.mxu0 0.0
        %1224 = vmatprep.subr.mxu0 0.0
        %1225 = vmatpush2.msra.mxu0 0.0
        %1226 = vmatprep.subr.mxu0 0.0
        %1227 = vmatpush2.msra.mxu0 0.0
        %1228 = vmatprep.subr.mxu0 0.0
        %1229 = vmatpush2.msra.mxu0 0.0
        %1230 = vmatprep.subr.mxu0 0.0
        %1231 = vmatpush2.msra.mxu0 0.0
        %1232 = vmatprep.subr.mxu0 0.0
        %1233 = vmatpush2.msra.mxu0 0.0
        %1234 = vmatprep.subr.mxu0 0.0
        %1235 = vmatpush2.msra.mxu0 0.0
        %1236 = vmatprep.subr.mxu0 0.0
        %1237 = vmatpush2.msra.mxu0 0.0
        %1238 = vmatprep.subr.mxu0 0.0
        %1239 = vmatpush2.msra.mxu0 0.0
        %1240 = vmatprep.subr.mxu0 0.0
        %1241 = vmatpush2.msra.mxu0 0.0
        %1242 = vmatprep.subr.mxu0 0.0
        %1243 = vmatpush2.msra.mxu0 0.0
        %1244 = vmatprep.subr.mxu0 0.0
        %1245 = vmatpush2.msra.mxu0 0.0
        %1246 = vmatprep.subr.mxu0 0.0
        %1247 = vmatpush2.msra.mxu0 0.0
        %1248 = vmatprep.mubr.f32.mxu0 0.0
        %1249 = vmatmul.mubr.f32.gmra.mxu0 %v1182
        %v1250 = vpop.f32.mrf.mxu0
        %v1251 = vadd.f32 0.0, %v1250
        %v1252 = vpop.f32.mrf.mxu0
        %1253 = vdwg.mxu0
        %1254 = vrot.lane.b32.xlu0 %v748, 124
        %v1255 = vpop.permute.xlu0 %1254
        %1256 = vrot.lane.b32.xlu0 %v836, 124
        %v1257 = vpop.permute.xlu0 %1256
        %v1258 = vsel %vm932, %v1255, 0
        %v1260 = vsel %vm932, %v1257, 0
        %1262 = vmatprep.subr.mxu0 0.0
        %1263 = vmatpush1.xpose.msra.mxu0 0.0
        %1264 = vmatprep.subr.mxu0 0.0
        %1265 = vmatpush1.xpose.msra.mxu0 0.0
        %1266 = vmatprep.subr.mxu0 0.0
        %1267 = vmatpush1.xpose.msra.mxu0 0.0
        %1268 = vmatprep.subr.mxu0 0.0
        %1269 = vmatpush1.xpose.msra.mxu0 0.0
        %1270 = vmatprep.subr.mxu0 0.0
        %1271 = vmatpush1.xpose.msra.mxu0 0.0
        %1272 = vmatprep.subr.mxu0 0.0
        %1273 = vmatpush1.xpose.msra.mxu0 0.0
        %1274 = vmatprep.subr.mxu0 0.0
        %1275 = vmatpush1.xpose.msra.mxu0 0.0
        %1276 = vmatprep.subr.mxu0 0.0
        %1277 = vmatpush1.xpose.msra.mxu0 0.0
        %1278 = vmatprep.subr.mxu0 0.0
        %1279 = vmatpush1.xpose.msra.mxu0 0.0
        %1280 = vmatprep.subr.mxu0 0.0
        %1281 = vmatpush1.xpose.msra.mxu0 0.0
        %1282 = vmatprep.subr.mxu0 0.0
        %1283 = vmatpush1.xpose.msra.mxu0 0.0
        %1284 = vmatprep.subr.mxu0 0.0
        %1285 = vmatpush1.xpose.msra.mxu0 0.0
        %1286 = vmatprep.subr.mxu0 0.0
        %1287 = vmatpush1.xpose.msra.mxu0 0.0
        %1288 = vmatprep.subr.mxu0 0.0
        %1289 = vmatpush1.xpose.msra.mxu0 0.0
        %1290 = vmatprep.subr.mxu0 0.0
        %1291 = vmatpush1.xpose.msra.mxu0 0.0
        %1292 = vmatprep.subr.mxu0 0.0
        %1293 = vmatpush1.xpose.msra.mxu0 %v1260
        %1294 = vmatprep.subr.mxu0 0.0
        %1295 = vmatpush2.xpose.msra.mxu0 0.0
        %1296 = vmatprep.subr.mxu0 0.0
        %1297 = vmatpush2.xpose.msra.mxu0 0.0
        %1298 = vmatprep.subr.mxu0 0.0
        %1299 = vmatpush2.xpose.msra.mxu0 0.0
        %1300 = vmatprep.subr.mxu0 0.0
        %1301 = vmatpush2.xpose.msra.mxu0 0.0
        %1302 = vmatprep.subr.mxu0 0.0
        %1303 = vmatpush2.xpose.msra.mxu0 0.0
        %1304 = vmatprep.subr.mxu0 0.0
        %1305 = vmatpush2.xpose.msra.mxu0 0.0
        %1306 = vmatprep.subr.mxu0 0.0
        %1307 = vmatpush2.xpose.msra.mxu0 0.0
        %1308 = vmatprep.subr.mxu0 0.0
        %1309 = vmatpush2.xpose.msra.mxu0 0.0
        %1310 = vmatprep.subr.mxu0 0.0
        %1311 = vmatpush2.xpose.msra.mxu0 0.0
        %1312 = vmatprep.subr.mxu0 0.0
        %1313 = vmatpush2.xpose.msra.mxu0 0.0
        %1314 = vmatprep.subr.mxu0 0.0
        %1315 = vmatpush2.xpose.msra.mxu0 0.0
        %1316 = vmatprep.subr.mxu0 0.0
        %1317 = vmatpush2.xpose.msra.mxu0 0.0
        %1318 = vmatprep.subr.mxu0 0.0
        %1319 = vmatpush2.xpose.msra.mxu0 0.0
        %1320 = vmatprep.subr.mxu0 0.0
        %1321 = vmatpush2.xpose.msra.mxu0 0.0
        %1322 = vmatprep.subr.mxu0 0.0
        %1323 = vmatpush2.xpose.msra.mxu0 0.0
        %1324 = vmatprep.subr.mxu0 0.0
        %1325 = vmatpush2.xpose.msra.mxu0 0.0
        %1326 = vmatprep.mubr.f32.mxu0 0.0
        %1327 = vmatmul.mubr.f32.gmra.mxu0 %v1258
        %v1328 = vpop.f32.mrf.mxu0
        %v1329 = vadd.f32 0.0, %v1328
        %v1330 = vpop.f32.mrf.mxu0
        %1331 = vdwg.mxu0
        %1332 = vrot.lane.b32.xlu0 %v753, 124
        %v1333 = vpop.permute.xlu0 %1332
        %1334 = vrot.lane.b32.xlu0 %v841, 124
        %v1335 = vpop.permute.xlu0 %1334
        %v1336 = vsel %vm932, %v1333, 0
        %v1338 = vsel %vm932, %v1335, 0
        %1340 = vmatprep.subr.mxu0 0.0
        %1341 = vmatpush1.xpose.msra.mxu0 0.0
        %1342 = vmatprep.subr.mxu0 0.0
        %1343 = vmatpush1.xpose.msra.mxu0 0.0
        %1344 = vmatprep.subr.mxu0 0.0
        %1345 = vmatpush1.xpose.msra.mxu0 0.0
        %1346 = vmatprep.subr.mxu0 0.0
        %1347 = vmatpush1.xpose.msra.mxu0 0.0
        %1348 = vmatprep.subr.mxu0 0.0
        %1349 = vmatpush1.xpose.msra.mxu0 0.0
        %1350 = vmatprep.subr.mxu0 0.0
        %1351 = vmatpush1.xpose.msra.mxu0 0.0
        %1352 = vmatprep.subr.mxu0 0.0
        %1353 = vmatpush1.xpose.msra.mxu0 0.0
        %1354 = vmatprep.subr.mxu0 0.0
        %1355 = vmatpush1.xpose.msra.mxu0 0.0
        %1356 = vmatprep.subr.mxu0 0.0
        %1357 = vmatpush1.xpose.msra.mxu0 0.0
        %1358 = vmatprep.subr.mxu0 0.0
        %1359 = vmatpush1.xpose.msra.mxu0 0.0
        %1360 = vmatprep.subr.mxu0 0.0
        %1361 = vmatpush1.xpose.msra.mxu0 0.0
        %1362 = vmatprep.subr.mxu0 0.0
        %1363 = vmatpush1.xpose.msra.mxu0 0.0
        %1364 = vmatprep.subr.mxu0 0.0
        %1365 = vmatpush1.xpose.msra.mxu0 0.0
        %1366 = vmatprep.subr.mxu0 0.0
        %1367 = vmatpush1.xpose.msra.mxu0 0.0
        %1368 = vmatprep.subr.mxu0 0.0
        %1369 = vmatpush1.xpose.msra.mxu0 0.0
        %1370 = vmatprep.subr.mxu0 0.0
        %1371 = vmatpush1.xpose.msra.mxu0 %v1338
        %1372 = vmatprep.subr.mxu0 0.0
        %1373 = vmatpush2.xpose.msra.mxu0 0.0
        %1374 = vmatprep.subr.mxu0 0.0
        %1375 = vmatpush2.xpose.msra.mxu0 0.0
        %1376 = vmatprep.subr.mxu0 0.0
        %1377 = vmatpush2.xpose.msra.mxu0 0.0
        %1378 = vmatprep.subr.mxu0 0.0
        %1379 = vmatpush2.xpose.msra.mxu0 0.0
        %1380 = vmatprep.subr.mxu0 0.0
        %1381 = vmatpush2.xpose.msra.mxu0 0.0
        %1382 = vmatprep.subr.mxu0 0.0
        %1383 = vmatpush2.xpose.msra.mxu0 0.0
        %1384 = vmatprep.subr.mxu0 0.0
        %1385 = vmatpush2.xpose.msra.mxu0 0.0
        %1386 = vmatprep.subr.mxu0 0.0
        %1387 = vmatpush2.xpose.msra.mxu0 0.0
        %1388 = vmatprep.subr.mxu0 0.0
        %1389 = vmatpush2.xpose.msra.mxu0 0.0
        %1390 = vmatprep.subr.mxu0 0.0
        %1391 = vmatpush2.xpose.msra.mxu0 0.0
        %1392 = vmatprep.subr.mxu0 0.0
        %1393 = vmatpush2.xpose.msra.mxu0 0.0
        %1394 = vmatprep.subr.mxu0 0.0
        %1395 = vmatpush2.xpose.msra.mxu0 0.0
        %1396 = vmatprep.subr.mxu0 0.0
        %1397 = vmatpush2.xpose.msra.mxu0 0.0
        %1398 = vmatprep.subr.mxu0 0.0
        %1399 = vmatpush2.xpose.msra.mxu0 0.0
        %1400 = vmatprep.subr.mxu0 0.0
        %1401 = vmatpush2.xpose.msra.mxu0 0.0
        %1402 = vmatprep.subr.mxu0 0.0
        %1403 = vmatpush2.xpose.msra.mxu0 0.0
        %1404 = vmatprep.mubr.f32.mxu0 0.0
        %1405 = vmatmul.mubr.f32.gmra.mxu0 %v1336
        %v1406 = vpop.f32.mrf.mxu0
        %v1407 = vadd.f32 0.0, %v1406
        %v1408 = vpop.f32.mrf.mxu0
        %1409 = vdwg.mxu0
        %v1410 = vsel %vm1085, %v1329, -inf
        %1411 = vmax.xlane.f32.xlu0 %v1410
        %v1412 = vpop.xlane.xlu0 %1411
        %v1413 = vsel %vm1085, %v1407, -inf
        %1414 = vmax.xlane.f32.xlu0 %v1413
        %v1415 = vpop.xlane.xlu0 %1414
        %v1416 = vsub.f32 %v1329, %v1412
        %v1417 = vsub.f32 %v1407, %v1415
        %v1418 = vmul.f32 %v1416, 1.442695
        %v1419 = vpow.pop %v1418
        %v1420 = vmul.f32 %v1417, 1.442695
        %v1421 = vpow.pop %v1420
        %v1422 = vsel %vm1085, %v1419, 0.0
        %1423 = vadd.xlane.f32.xlu0 %v1422
        %v1424 = vpop.xlane.xlu0 %1423
        %v1425 = vsel %vm1085, %v1421, 0.0
        %1426 = vadd.xlane.f32.xlu0 %v1425
        %v1427 = vpop.xlane.xlu0 %1426
        %v1428 = vrcp.pop %v1424
        %v1429 = vmul.f32 %v1419, %v1428
        %v1430 = vrcp.pop %v1427
        %v1431 = vmul.f32 %v1421, %v1430
        %1433 = vrot.lane.b32.xlu0 %v924, 124
        %v1434 = vpop.permute.xlu0 %1433
        %v1437 = vsel %vm1085, %v1429, 0
        %1439 = vmatprep.subr.mxu0 0.0
        %1440 = vmatpush1.msra.mxu0 0.0
        %1441 = vmatprep.subr.mxu0 0.0
        %1442 = vmatpush1.msra.mxu0 0.0
        %1443 = vmatprep.subr.mxu0 0.0
        %1444 = vmatpush1.msra.mxu0 0.0
        %1445 = vmatprep.subr.mxu0 0.0
        %1446 = vmatpush1.msra.mxu0 0.0
        %1447 = vmatprep.subr.mxu0 0.0
        %1448 = vmatpush1.msra.mxu0 0.0
        %1449 = vmatprep.subr.mxu0 0.0
        %1450 = vmatpush1.msra.mxu0 0.0
        %1451 = vmatprep.subr.mxu0 0.0
        %1452 = vmatpush1.msra.mxu0 0.0
        %1453 = vmatprep.subr.mxu0 0.0
        %1454 = vmatpush1.msra.mxu0 0.0
        %1455 = vmatprep.subr.mxu0 0.0
        %1456 = vmatpush1.msra.mxu0 0.0
        %1457 = vmatprep.subr.mxu0 0.0
        %1458 = vmatpush1.msra.mxu0 0.0
        %1459 = vmatprep.subr.mxu0 0.0
        %1460 = vmatpush1.msra.mxu0 0.0
        %1461 = vmatprep.subr.mxu0 0.0
        %1462 = vmatpush1.msra.mxu0 0.0
        %1463 = vmatprep.subr.mxu0 0.0
        %1464 = vmatpush1.msra.mxu0 0.0
        %1465 = vmatprep.subr.mxu0 0.0
        %1466 = vmatpush1.msra.mxu0 0.0
        %1467 = vmatprep.subr.mxu0 0.0
        %1468 = vmatpush1.msra.mxu0 0.0
        %1469 = vmatprep.subr.mxu0 0.0
        %1470 = vmatpush1.msra.mxu0 %v1434
        %1471 = vmatprep.subr.mxu0 0.0
        %1472 = vmatpush2.msra.mxu0 0.0
        %1473 = vmatprep.subr.mxu0 0.0
        %1474 = vmatpush2.msra.mxu0 0.0
        %1475 = vmatprep.subr.mxu0 0.0
        %1476 = vmatpush2.msra.mxu0 0.0
        %1477 = vmatprep.subr.mxu0 0.0
        %1478 = vmatpush2.msra.mxu0 0.0
        %1479 = vmatprep.subr.mxu0 0.0
        %1480 = vmatpush2.msra.mxu0 0.0
        %1481 = vmatprep.subr.mxu0 0.0
        %1482 = vmatpush2.msra.mxu0 0.0
        %1483 = vmatprep.subr.mxu0 0.0
        %1484 = vmatpush2.msra.mxu0 0.0
        %1485 = vmatprep.subr.mxu0 0.0
        %1486 = vmatpush2.msra.mxu0 0.0
        %1487 = vmatprep.subr.mxu0 0.0
        %1488 = vmatpush2.msra.mxu0 0.0
        %1489 = vmatprep.subr.mxu0 0.0
        %1490 = vmatpush2.msra.mxu0 0.0
        %1491 = vmatprep.subr.mxu0 0.0
        %1492 = vmatpush2.msra.mxu0 0.0
        %1493 = vmatprep.subr.mxu0 0.0
        %1494 = vmatpush2.msra.mxu0 0.0
        %1495 = vmatprep.subr.mxu0 0.0
        %1496 = vmatpush2.msra.mxu0 0.0
        %1497 = vmatprep.subr.mxu0 0.0
        %1498 = vmatpush2.msra.mxu0 0.0
        %1499 = vmatprep.subr.mxu0 0.0
        %1500 = vmatpush2.msra.mxu0 0.0
        %1501 = vmatprep.subr.mxu0 0.0
        %1502 = vmatpush2.msra.mxu0 0.0
        %1503 = vmatprep.mubr.f32.mxu0 0.0
        %1504 = vmatmul.mubr.f32.gmra.mxu0 %v1437
        %v1505 = vpop.f32.mrf.mxu0
        %v1506 = vadd.f32 0.0, %v1505
        %v1507 = vpop.f32.mrf.mxu0
        %1508 = vdwg.mxu0
        %1510 = vrot.lane.b32.xlu0 %v929, 124
        %v1511 = vpop.permute.xlu0 %1510
        %v1514 = vsel %vm1085, %v1431, 0
        %1516 = vmatprep.subr.mxu0 0.0
        %1517 = vmatpush1.msra.mxu0 0.0
        %1518 = vmatprep.subr.mxu0 0.0
        %1519 = vmatpush1.msra.mxu0 0.0
        %1520 = vmatprep.subr.mxu0 0.0
        %1521 = vmatpush1.msra.mxu0 0.0
        %1522 = vmatprep.subr.mxu0 0.0
        %1523 = vmatpush1.msra.mxu0 0.0
        %1524 = vmatprep.subr.mxu0 0.0
        %1525 = vmatpush1.msra.mxu0 0.0
        %1526 = vmatprep.subr.mxu0 0.0
        %1527 = vmatpush1.msra.mxu0 0.0
        %1528 = vmatprep.subr.mxu0 0.0
        %1529 = vmatpush1.msra.mxu0 0.0
        %1530 = vmatprep.subr.mxu0 0.0
        %1531 = vmatpush1.msra.mxu0 0.0
        %1532 = vmatprep.subr.mxu0 0.0
        %1533 = vmatpush1.msra.mxu0 0.0
        %1534 = vmatprep.subr.mxu0 0.0
        %1535 = vmatpush1.msra.mxu0 0.0
        %1536 = vmatprep.subr.mxu0 0.0
        %1537 = vmatpush1.msra.mxu0 0.0
        %1538 = vmatprep.subr.mxu0 0.0
        %1539 = vmatpush1.msra.mxu0 0.0
        %1540 = vmatprep.subr.mxu0 0.0
        %1541 = vmatpush1.msra.mxu0 0.0
        %1542 = vmatprep.subr.mxu0 0.0
        %1543 = vmatpush1.msra.mxu0 0.0
        %1544 = vmatprep.subr.mxu0 0.0
        %1545 = vmatpush1.msra.mxu0 0.0
        %1546 = vmatprep.subr.mxu0 0.0
        %1547 = vmatpush1.msra.mxu0 %v1511
        %1548 = vmatprep.subr.mxu0 0.0
        %1549 = vmatpush2.msra.mxu0 0.0
        %1550 = vmatprep.subr.mxu0 0.0
        %1551 = vmatpush2.msra.mxu0 0.0
        %1552 = vmatprep.subr.mxu0 0.0
        %1553 = vmatpush2.msra.mxu0 0.0
        %1554 = vmatprep.subr.mxu0 0.0
        %1555 = vmatpush2.msra.mxu0 0.0
        %1556 = vmatprep.subr.mxu0 0.0
        %1557 = vmatpush2.msra.mxu0 0.0
        %1558 = vmatprep.subr.mxu0 0.0
        %1559 = vmatpush2.msra.mxu0 0.0
        %1560 = vmatprep.subr.mxu0 0.0
        %1561 = vmatpush2.msra.mxu0 0.0
        %1562 = vmatprep.subr.mxu0 0.0
        %1563 = vmatpush2.msra.mxu0 0.0
        %1564 = vmatprep.subr.mxu0 0.0
        %1565 = vmatpush2.msra.mxu0 0.0
        %1566 = vmatprep.subr.mxu0 0.0
        %1567 = vmatpush2.msra.mxu0 0.0
        %1568 = vmatprep.subr.mxu0 0.0
        %1569 = vmatpush2.msra.mxu0 0.0
        %1570 = vmatprep.subr.mxu0 0.0
        %1571 = vmatpush2.msra.mxu0 0.0
        %1572 = vmatprep.subr.mxu0 0.0
        %1573 = vmatpush2.msra.mxu0 0.0
        %1574 = vmatprep.subr.mxu0 0.0
        %1575 = vmatpush2.msra.mxu0 0.0
        %1576 = vmatprep.subr.mxu0 0.0
        %1577 = vmatpush2.msra.mxu0 0.0
        %1578 = vmatprep.subr.mxu0 0.0
        %1579 = vmatpush2.msra.mxu0 0.0
        %1580 = vmatprep.mubr.f32.mxu0 0.0
        %1581 = vmatmul.mubr.f32.gmra.mxu0 %v1514
        %v1582 = vpop.f32.mrf.mxu0
        %v1583 = vadd.f32 0.0, %v1582
        %v1584 = vpop.f32.mrf.mxu0
        %1585 = vdwg.mxu0
        %1586 = vrot.lane.b32.xlu0 %v748, 120
        %v1587 = vpop.permute.xlu0 %1586
        %1588 = vrot.lane.b32.xlu0 %v836, 120
        %v1589 = vpop.permute.xlu0 %1588
        %v1590 = vsel %vm932, %v1587, 0
        %v1592 = vsel %vm932, %v1589, 0
        %1594 = vmatprep.subr.mxu0 0.0
        %1595 = vmatpush1.xpose.msra.mxu0 0.0
        %1596 = vmatprep.subr.mxu0 0.0
        %1597 = vmatpush1.xpose.msra.mxu0 0.0
        %1598 = vmatprep.subr.mxu0 0.0
        %1599 = vmatpush1.xpose.msra.mxu0 0.0
        %1600 = vmatprep.subr.mxu0 0.0
        %1601 = vmatpush1.xpose.msra.mxu0 0.0
        %1602 = vmatprep.subr.mxu0 0.0
        %1603 = vmatpush1.xpose.msra.mxu0 0.0
        %1604 = vmatprep.subr.mxu0 0.0
        %1605 = vmatpush1.xpose.msra.mxu0 0.0
        %1606 = vmatprep.subr.mxu0 0.0
        %1607 = vmatpush1.xpose.msra.mxu0 0.0
        %1608 = vmatprep.subr.mxu0 0.0
        %1609 = vmatpush1.xpose.msra.mxu0 0.0
        %1610 = vmatprep.subr.mxu0 0.0
        %1611 = vmatpush1.xpose.msra.mxu0 0.0
        %1612 = vmatprep.subr.mxu0 0.0
        %1613 = vmatpush1.xpose.msra.mxu0 0.0
        %1614 = vmatprep.subr.mxu0 0.0
        %1615 = vmatpush1.xpose.msra.mxu0 0.0
        %1616 = vmatprep.subr.mxu0 0.0
        %1617 = vmatpush1.xpose.msra.mxu0 0.0
        %1618 = vmatprep.subr.mxu0 0.0
        %1619 = vmatpush1.xpose.msra.mxu0 0.0
        %1620 = vmatprep.subr.mxu0 0.0
        %1621 = vmatpush1.xpose.msra.mxu0 0.0
        %1622 = vmatprep.subr.mxu0 0.0
        %1623 = vmatpush1.xpose.msra.mxu0 0.0
        %1624 = vmatprep.subr.mxu0 0.0
        %1625 = vmatpush1.xpose.msra.mxu0 %v1592
        %1626 = vmatprep.subr.mxu0 0.0
        %1627 = vmatpush2.xpose.msra.mxu0 0.0
        %1628 = vmatprep.subr.mxu0 0.0
        %1629 = vmatpush2.xpose.msra.mxu0 0.0
        %1630 = vmatprep.subr.mxu0 0.0
        %1631 = vmatpush2.xpose.msra.mxu0 0.0
        %1632 = vmatprep.subr.mxu0 0.0
        %1633 = vmatpush2.xpose.msra.mxu0 0.0
        %1634 = vmatprep.subr.mxu0 0.0
        %1635 = vmatpush2.xpose.msra.mxu0 0.0
        %1636 = vmatprep.subr.mxu0 0.0
        %1637 = vmatpush2.xpose.msra.mxu0 0.0
        %1638 = vmatprep.subr.mxu0 0.0
        %1639 = vmatpush2.xpose.msra.mxu0 0.0
        %1640 = vmatprep.subr.mxu0 0.0
        %1641 = vmatpush2.xpose.msra.mxu0 0.0
        %1642 = vmatprep.subr.mxu0 0.0
        %1643 = vmatpush2.xpose.msra.mxu0 0.0
        %1644 = vmatprep.subr.mxu0 0.0
        %1645 = vmatpush2.xpose.msra.mxu0 0.0
        %1646 = vmatprep.subr.mxu0 0.0
        %1647 = vmatpush2.xpose.msra.mxu0 0.0
        %1648 = vmatprep.subr.mxu0 0.0
        %1649 = vmatpush2.xpose.msra.mxu0 0.0
        %1650 = vmatprep.subr.mxu0 0.0
        %1651 = vmatpush2.xpose.msra.mxu0 0.0
        %1652 = vmatprep.subr.mxu0 0.0
        %1653 = vmatpush2.xpose.msra.mxu0 0.0
        %1654 = vmatprep.subr.mxu0 0.0
        %1655 = vmatpush2.xpose.msra.mxu0 0.0
        %1656 = vmatprep.subr.mxu0 0.0
        %1657 = vmatpush2.xpose.msra.mxu0 0.0
        %1658 = vmatprep.mubr.f32.mxu0 0.0
        %1659 = vmatmul.mubr.f32.gmra.mxu0 %v1590
        %v1660 = vpop.f32.mrf.mxu0
        %v1661 = vadd.f32 0.0, %v1660
        %v1662 = vpop.f32.mrf.mxu0
        %1663 = vdwg.mxu0
        %1664 = vrot.lane.b32.xlu0 %v753, 120
        %v1665 = vpop.permute.xlu0 %1664
        %1666 = vrot.lane.b32.xlu0 %v841, 120
        %v1667 = vpop.permute.xlu0 %1666
        %v1668 = vsel %vm932, %v1665, 0
        %v1670 = vsel %vm932, %v1667, 0
        %1672 = vmatprep.subr.mxu0 0.0
        %1673 = vmatpush1.xpose.msra.mxu0 0.0
        %1674 = vmatprep.subr.mxu0 0.0
        %1675 = vmatpush1.xpose.msra.mxu0 0.0
        %1676 = vmatprep.subr.mxu0 0.0
        %1677 = vmatpush1.xpose.msra.mxu0 0.0
        %1678 = vmatprep.subr.mxu0 0.0
        %1679 = vmatpush1.xpose.msra.mxu0 0.0
        %1680 = vmatprep.subr.mxu0 0.0
        %1681 = vmatpush1.xpose.msra.mxu0 0.0
        %1682 = vmatprep.subr.mxu0 0.0
        %1683 = vmatpush1.xpose.msra.mxu0 0.0
        %1684 = vmatprep.subr.mxu0 0.0
        %1685 = vmatpush1.xpose.msra.mxu0 0.0
        %1686 = vmatprep.subr.mxu0 0.0
        %1687 = vmatpush1.xpose.msra.mxu0 0.0
        %1688 = vmatprep.subr.mxu0 0.0
        %1689 = vmatpush1.xpose.msra.mxu0 0.0
        %1690 = vmatprep.subr.mxu0 0.0
        %1691 = vmatpush1.xpose.msra.mxu0 0.0
        %1692 = vmatprep.subr.mxu0 0.0
        %1693 = vmatpush1.xpose.msra.mxu0 0.0
        %1694 = vmatprep.subr.mxu0 0.0
        %1695 = vmatpush1.xpose.msra.mxu0 0.0
        %1696 = vmatprep.subr.mxu0 0.0
        %1697 = vmatpush1.xpose.msra.mxu0 0.0
        %1698 = vmatprep.subr.mxu0 0.0
        %1699 = vmatpush1.xpose.msra.mxu0 0.0
        %1700 = vmatprep.subr.mxu0 0.0
        %1701 = vmatpush1.xpose.msra.mxu0 0.0
        %1702 = vmatprep.subr.mxu0 0.0
        %1703 = vmatpush1.xpose.msra.mxu0 %v1670
        %1704 = vmatprep.subr.mxu0 0.0
        %1705 = vmatpush2.xpose.msra.mxu0 0.0
        %1706 = vmatprep.subr.mxu0 0.0
        %1707 = vmatpush2.xpose.msra.mxu0 0.0
        %1708 = vmatprep.subr.mxu0 0.0
        %1709 = vmatpush2.xpose.msra.mxu0 0.0
        %1710 = vmatprep.subr.mxu0 0.0
        %1711 = vmatpush2.xpose.msra.mxu0 0.0
        %1712 = vmatprep.subr.mxu0 0.0
        %1713 = vmatpush2.xpose.msra.mxu0 0.0
        %1714 = vmatprep.subr.mxu0 0.0
        %1715 = vmatpush2.xpose.msra.mxu0 0.0
        %1716 = vmatprep.subr.mxu0 0.0
        %1717 = vmatpush2.xpose.msra.mxu0 0.0
        %1718 = vmatprep.subr.mxu0 0.0
        %1719 = vmatpush2.xpose.msra.mxu0 0.0
        %1720 = vmatprep.subr.mxu0 0.0
        %1721 = vmatpush2.xpose.msra.mxu0 0.0
        %1722 = vmatprep.subr.mxu0 0.0
        %1723 = vmatpush2.xpose.msra.mxu0 0.0
        %1724 = vmatprep.subr.mxu0 0.0
        %1725 = vmatpush2.xpose.msra.mxu0 0.0
        %1726 = vmatprep.subr.mxu0 0.0
        %1727 = vmatpush2.xpose.msra.mxu0 0.0
        %1728 = vmatprep.subr.mxu0 0.0
        %1729 = vmatpush2.xpose.msra.mxu0 0.0
        %1730 = vmatprep.subr.mxu0 0.0
        %1731 = vmatpush2.xpose.msra.mxu0 0.0
        %1732 = vmatprep.subr.mxu0 0.0
        %1733 = vmatpush2.xpose.msra.mxu0 0.0
        %1734 = vmatprep.subr.mxu0 0.0
        %1735 = vmatpush2.xpose.msra.mxu0 0.0
        %1736 = vmatprep.mubr.f32.mxu0 0.0
        %1737 = vmatmul.mubr.f32.gmra.mxu0 %v1668
        %v1738 = vpop.f32.mrf.mxu0
        %v1739 = vadd.f32 0.0, %v1738
        %v1740 = vpop.f32.mrf.mxu0
        %1741 = vdwg.mxu0
        %v1742 = vsel %vm1085, %v1661, -inf
        %1743 = vmax.xlane.f32.xlu0 %v1742
        %v1744 = vpop.xlane.xlu0 %1743
        %v1745 = vsel %vm1085, %v1739, -inf
        %1746 = vmax.xlane.f32.xlu0 %v1745
        %v1747 = vpop.xlane.xlu0 %1746
        %v1748 = vsub.f32 %v1661, %v1744
        %v1749 = vsub.f32 %v1739, %v1747
        %v1750 = vmul.f32 %v1748, 1.442695
        %v1751 = vpow.pop %v1750
        %v1752 = vmul.f32 %v1749, 1.442695
        %v1753 = vpow.pop %v1752
        %v1754 = vsel %vm1085, %v1751, 0.0
        %1755 = vadd.xlane.f32.xlu0 %v1754
        %v1756 = vpop.xlane.xlu0 %1755
        %v1757 = vsel %vm1085, %v1753, 0.0
        %1758 = vadd.xlane.f32.xlu0 %v1757
        %v1759 = vpop.xlane.xlu0 %1758
        %v1760 = vrcp.pop %v1756
        %v1761 = vmul.f32 %v1751, %v1760
        %v1762 = vrcp.pop %v1759
        %v1763 = vmul.f32 %v1753, %v1762
        %1764 = vrot.lane.b32.xlu0 %v924, 120
        %v1765 = vpop.permute.xlu0 %1764
        %v1768 = vsel %vm1085, %v1761, 0
        %1770 = vmatprep.subr.mxu0 0.0
        %1771 = vmatpush1.msra.mxu0 0.0
        %1772 = vmatprep.subr.mxu0 0.0
        %1773 = vmatpush1.msra.mxu0 0.0
        %1774 = vmatprep.subr.mxu0 0.0
        %1775 = vmatpush1.msra.mxu0 0.0
        %1776 = vmatprep.subr.mxu0 0.0
        %1777 = vmatpush1.msra.mxu0 0.0
        %1778 = vmatprep.subr.mxu0 0.0
        %1779 = vmatpush1.msra.mxu0 0.0
        %1780 = vmatprep.subr.mxu0 0.0
        %1781 = vmatpush1.msra.mxu0 0.0
        %1782 = vmatprep.subr.mxu0 0.0
        %1783 = vmatpush1.msra.mxu0 0.0
        %1784 = vmatprep.subr.mxu0 0.0
        %1785 = vmatpush1.msra.mxu0 0.0
        %1786 = vmatprep.subr.mxu0 0.0
        %1787 = vmatpush1.msra.mxu0 0.0
        %1788 = vmatprep.subr.mxu0 0.0
        %1789 = vmatpush1.msra.mxu0 0.0
        %1790 = vmatprep.subr.mxu0 0.0
        %1791 = vmatpush1.msra.mxu0 0.0
        %1792 = vmatprep.subr.mxu0 0.0
        %1793 = vmatpush1.msra.mxu0 0.0
        %1794 = vmatprep.subr.mxu0 0.0
        %1795 = vmatpush1.msra.mxu0 0.0
        %1796 = vmatprep.subr.mxu0 0.0
        %1797 = vmatpush1.msra.mxu0 0.0
        %1798 = vmatprep.subr.mxu0 0.0
        %1799 = vmatpush1.msra.mxu0 0.0
        %1800 = vmatprep.subr.mxu0 0.0
        %1801 = vmatpush1.msra.mxu0 %v1765
        %1802 = vmatprep.subr.mxu0 0.0
        %1803 = vmatpush2.msra.mxu0 0.0
        %1804 = vmatprep.subr.mxu0 0.0
        %1805 = vmatpush2.msra.mxu0 0.0
        %1806 = vmatprep.subr.mxu0 0.0
        %1807 = vmatpush2.msra.mxu0 0.0
        %1808 = vmatprep.subr.mxu0 0.0
        %1809 = vmatpush2.msra.mxu0 0.0
        %1810 = vmatprep.subr.mxu0 0.0
        %1811 = vmatpush2.msra.mxu0 0.0
        %1812 = vmatprep.subr.mxu0 0.0
        %1813 = vmatpush2.msra.mxu0 0.0
        %1814 = vmatprep.subr.mxu0 0.0
        %1815 = vmatpush2.msra.mxu0 0.0
        %1816 = vmatprep.subr.mxu0 0.0
        %1817 = vmatpush2.msra.mxu0 0.0
        %1818 = vmatprep.subr.mxu0 0.0
        %1819 = vmatpush2.msra.mxu0 0.0
        %1820 = vmatprep.subr.mxu0 0.0
        %1821 = vmatpush2.msra.mxu0 0.0
        %1822 = vmatprep.subr.mxu0 0.0
        %1823 = vmatpush2.msra.mxu0 0.0
        %1824 = vmatprep.subr.mxu0 0.0
        %1825 = vmatpush2.msra.mxu0 0.0
        %1826 = vmatprep.subr.mxu0 0.0
        %1827 = vmatpush2.msra.mxu0 0.0
        %1828 = vmatprep.subr.mxu0 0.0
        %1829 = vmatpush2.msra.mxu0 0.0
        %1830 = vmatprep.subr.mxu0 0.0
        %1831 = vmatpush2.msra.mxu0 0.0
        %1832 = vmatprep.subr.mxu0 0.0
        %1833 = vmatpush2.msra.mxu0 0.0
        %1834 = vmatprep.mubr.f32.mxu0 0.0
        %1835 = vmatmul.mubr.f32.gmra.mxu0 %v1768
        %v1836 = vpop.f32.mrf.mxu0
        %v1837 = vadd.f32 0.0, %v1836
        %v1838 = vpop.f32.mrf.mxu0
        %1839 = vdwg.mxu0
        %1840 = vrot.lane.b32.xlu0 %v929, 120
        %v1841 = vpop.permute.xlu0 %1840
        %v1844 = vsel %vm1085, %v1763, 0
        %1846 = vmatprep.subr.mxu0 0.0
        %1847 = vmatpush1.msra.mxu0 0.0
        %1848 = vmatprep.subr.mxu0 0.0
        %1849 = vmatpush1.msra.mxu0 0.0
        %1850 = vmatprep.subr.mxu0 0.0
        %1851 = vmatpush1.msra.mxu0 0.0
        %1852 = vmatprep.subr.mxu0 0.0
        %1853 = vmatpush1.msra.mxu0 0.0
        %1854 = vmatprep.subr.mxu0 0.0
        %1855 = vmatpush1.msra.mxu0 0.0
        %1856 = vmatprep.subr.mxu0 0.0
        %1857 = vmatpush1.msra.mxu0 0.0
        %1858 = vmatprep.subr.mxu0 0.0
        %1859 = vmatpush1.msra.mxu0 0.0
        %1860 = vmatprep.subr.mxu0 0.0
        %1861 = vmatpush1.msra.mxu0 0.0
        %1862 = vmatprep.subr.mxu0 0.0
        %1863 = vmatpush1.msra.mxu0 0.0
        %1864 = vmatprep.subr.mxu0 0.0
        %1865 = vmatpush1.msra.mxu0 0.0
        %1866 = vmatprep.subr.mxu0 0.0
        %1867 = vmatpush1.msra.mxu0 0.0
        %1868 = vmatprep.subr.mxu0 0.0
        %1869 = vmatpush1.msra.mxu0 0.0
        %1870 = vmatprep.subr.mxu0 0.0
        %1871 = vmatpush1.msra.mxu0 0.0
        %1872 = vmatprep.subr.mxu0 0.0
        %1873 = vmatpush1.msra.mxu0 0.0
        %1874 = vmatprep.subr.mxu0 0.0
        %1875 = vmatpush1.msra.mxu0 0.0
        %1876 = vmatprep.subr.mxu0 0.0
        %1877 = vmatpush1.msra.mxu0 %v1841
        %1878 = vmatprep.subr.mxu0 0.0
        %1879 = vmatpush2.msra.mxu0 0.0
        %1880 = vmatprep.subr.mxu0 0.0
        %1881 = vmatpush2.msra.mxu0 0.0
        %1882 = vmatprep.subr.mxu0 0.0
        %1883 = vmatpush2.msra.mxu0 0.0
        %1884 = vmatprep.subr.mxu0 0.0
        %1885 = vmatpush2.msra.mxu0 0.0
        %1886 = vmatprep.subr.mxu0 0.0
        %1887 = vmatpush2.msra.mxu0 0.0
        %1888 = vmatprep.subr.mxu0 0.0
        %1889 = vmatpush2.msra.mxu0 0.0
        %1890 = vmatprep.subr.mxu0 0.0
        %1891 = vmatpush2.msra.mxu0 0.0
        %1892 = vmatprep.subr.mxu0 0.0
        %1893 = vmatpush2.msra.mxu0 0.0
        %1894 = vmatprep.subr.mxu0 0.0
        %1895 = vmatpush2.msra.mxu0 0.0
        %1896 = vmatprep.subr.mxu0 0.0
        %1897 = vmatpush2.msra.mxu0 0.0
        %1898 = vmatprep.subr.mxu0 0.0
        %1899 = vmatpush2.msra.mxu0 0.0
        %1900 = vmatprep.subr.mxu0 0.0
        %1901 = vmatpush2.msra.mxu0 0.0
        %1902 = vmatprep.subr.mxu0 0.0
        %1903 = vmatpush2.msra.mxu0 0.0
        %1904 = vmatprep.subr.mxu0 0.0
        %1905 = vmatpush2.msra.mxu0 0.0
        %1906 = vmatprep.subr.mxu0 0.0
        %1907 = vmatpush2.msra.mxu0 0.0
        %1908 = vmatprep.subr.mxu0 0.0
        %1909 = vmatpush2.msra.mxu0 0.0
        %1910 = vmatprep.mubr.f32.mxu0 0.0
        %1911 = vmatmul.mubr.f32.gmra.mxu0 %v1844
        %v1912 = vpop.f32.mrf.mxu0
        %v1913 = vadd.f32 0.0, %v1912
        %v1914 = vpop.f32.mrf.mxu0
        %1915 = vdwg.mxu0
        %1916 = vrot.lane.b32.xlu0 %v748, 116
        %v1917 = vpop.permute.xlu0 %1916
        %1918 = vrot.lane.b32.xlu0 %v836, 116
        %v1919 = vpop.permute.xlu0 %1918
        %v1920 = vsel %vm932, %v1917, 0
        %v1922 = vsel %vm932, %v1919, 0
        %1924 = vmatprep.subr.mxu0 0.0
        %1925 = vmatpush1.xpose.msra.mxu0 0.0
        %1926 = vmatprep.subr.mxu0 0.0
        %1927 = vmatpush1.xpose.msra.mxu0 0.0
        %1928 = vmatprep.subr.mxu0 0.0
        %1929 = vmatpush1.xpose.msra.mxu0 0.0
        %1930 = vmatprep.subr.mxu0 0.0
        %1931 = vmatpush1.xpose.msra.mxu0 0.0
        %1932 = vmatprep.subr.mxu0 0.0
        %1933 = vmatpush1.xpose.msra.mxu0 0.0
        %1934 = vmatprep.subr.mxu0 0.0
        %1935 = vmatpush1.xpose.msra.mxu0 0.0
        %1936 = vmatprep.subr.mxu0 0.0
        %1937 = vmatpush1.xpose.msra.mxu0 0.0
        %1938 = vmatprep.subr.mxu0 0.0
        %1939 = vmatpush1.xpose.msra.mxu0 0.0
        %1940 = vmatprep.subr.mxu0 0.0
        %1941 = vmatpush1.xpose.msra.mxu0 0.0
        %1942 = vmatprep.subr.mxu0 0.0
        %1943 = vmatpush1.xpose.msra.mxu0 0.0
        %1944 = vmatprep.subr.mxu0 0.0
        %1945 = vmatpush1.xpose.msra.mxu0 0.0
        %1946 = vmatprep.subr.mxu0 0.0
        %1947 = vmatpush1.xpose.msra.mxu0 0.0
        %1948 = vmatprep.subr.mxu0 0.0
        %1949 = vmatpush1.xpose.msra.mxu0 0.0
        %1950 = vmatprep.subr.mxu0 0.0
        %1951 = vmatpush1.xpose.msra.mxu0 0.0
        %1952 = vmatprep.subr.mxu0 0.0
        %1953 = vmatpush1.xpose.msra.mxu0 0.0
        %1954 = vmatprep.subr.mxu0 0.0
        %1955 = vmatpush1.xpose.msra.mxu0 %v1922
        %1956 = vmatprep.subr.mxu0 0.0
        %1957 = vmatpush2.xpose.msra.mxu0 0.0
        %1958 = vmatprep.subr.mxu0 0.0
        %1959 = vmatpush2.xpose.msra.mxu0 0.0
        %1960 = vmatprep.subr.mxu0 0.0
        %1961 = vmatpush2.xpose.msra.mxu0 0.0
        %1962 = vmatprep.subr.mxu0 0.0
        %1963 = vmatpush2.xpose.msra.mxu0 0.0
        %1964 = vmatprep.subr.mxu0 0.0
        %1965 = vmatpush2.xpose.msra.mxu0 0.0
        %1966 = vmatprep.subr.mxu0 0.0
        %1967 = vmatpush2.xpose.msra.mxu0 0.0
        %1968 = vmatprep.subr.mxu0 0.0
        %1969 = vmatpush2.xpose.msra.mxu0 0.0
        %1970 = vmatprep.subr.mxu0 0.0
        %1971 = vmatpush2.xpose.msra.mxu0 0.0
        %1972 = vmatprep.subr.mxu0 0.0
        %1973 = vmatpush2.xpose.msra.mxu0 0.0
        %1974 = vmatprep.subr.mxu0 0.0
        %1975 = vmatpush2.xpose.msra.mxu0 0.0
        %1976 = vmatprep.subr.mxu0 0.0
        %1977 = vmatpush2.xpose.msra.mxu0 0.0
        %1978 = vmatprep.subr.mxu0 0.0
        %1979 = vmatpush2.xpose.msra.mxu0 0.0
        %1980 = vmatprep.subr.mxu0 0.0
        %1981 = vmatpush2.xpose.msra.mxu0 0.0
        %1982 = vmatprep.subr.mxu0 0.0
        %1983 = vmatpush2.xpose.msra.mxu0 0.0
        %1984 = vmatprep.subr.mxu0 0.0
        %1985 = vmatpush2.xpose.msra.mxu0 0.0
        %1986 = vmatprep.subr.mxu0 0.0
        %1987 = vmatpush2.xpose.msra.mxu0 0.0
        %1988 = vmatprep.mubr.f32.mxu0 0.0
        %1989 = vmatmul.mubr.f32.gmra.mxu0 %v1920
        %v1990 = vpop.f32.mrf.mxu0
        %v1991 = vadd.f32 0.0, %v1990
        %v1992 = vpop.f32.mrf.mxu0
        %1993 = vdwg.mxu0
        %1994 = vrot.lane.b32.xlu0 %v753, 116
        %v1995 = vpop.permute.xlu0 %1994
        %1996 = vrot.lane.b32.xlu0 %v841, 116
        %v1997 = vpop.permute.xlu0 %1996
        %v1998 = vsel %vm932, %v1995, 0
        %v2000 = vsel %vm932, %v1997, 0
        %2002 = vmatprep.subr.mxu0 0.0
        %2003 = vmatpush1.xpose.msra.mxu0 0.0
        %2004 = vmatprep.subr.mxu0 0.0
        %2005 = vmatpush1.xpose.msra.mxu0 0.0
        %2006 = vmatprep.subr.mxu0 0.0
        %2007 = vmatpush1.xpose.msra.mxu0 0.0
        %2008 = vmatprep.subr.mxu0 0.0
        %2009 = vmatpush1.xpose.msra.mxu0 0.0
        %2010 = vmatprep.subr.mxu0 0.0
        %2011 = vmatpush1.xpose.msra.mxu0 0.0
        %2012 = vmatprep.subr.mxu0 0.0
        %2013 = vmatpush1.xpose.msra.mxu0 0.0
        %2014 = vmatprep.subr.mxu0 0.0
        %2015 = vmatpush1.xpose.msra.mxu0 0.0
        %2016 = vmatprep.subr.mxu0 0.0
        %2017 = vmatpush1.xpose.msra.mxu0 0.0
        %2018 = vmatprep.subr.mxu0 0.0
        %2019 = vmatpush1.xpose.msra.mxu0 0.0
        %2020 = vmatprep.subr.mxu0 0.0
        %2021 = vmatpush1.xpose.msra.mxu0 0.0
        %2022 = vmatprep.subr.mxu0 0.0
        %2023 = vmatpush1.xpose.msra.mxu0 0.0
        %2024 = vmatprep.subr.mxu0 0.0
        %2025 = vmatpush1.xpose.msra.mxu0 0.0
        %2026 = vmatprep.subr.mxu0 0.0
        %2027 = vmatpush1.xpose.msra.mxu0 0.0
        %2028 = vmatprep.subr.mxu0 0.0
        %2029 = vmatpush1.xpose.msra.mxu0 0.0
        %2030 = vmatprep.subr.mxu0 0.0
        %2031 = vmatpush1.xpose.msra.mxu0 0.0
        %2032 = vmatprep.subr.mxu0 0.0
        %2033 = vmatpush1.xpose.msra.mxu0 %v2000
        %2034 = vmatprep.subr.mxu0 0.0
        %2035 = vmatpush2.xpose.msra.mxu0 0.0
        %2036 = vmatprep.subr.mxu0 0.0
        %2037 = vmatpush2.xpose.msra.mxu0 0.0
        %2038 = vmatprep.subr.mxu0 0.0
        %2039 = vmatpush2.xpose.msra.mxu0 0.0
        %2040 = vmatprep.subr.mxu0 0.0
        %2041 = vmatpush2.xpose.msra.mxu0 0.0
        %2042 = vmatprep.subr.mxu0 0.0
        %2043 = vmatpush2.xpose.msra.mxu0 0.0
        %2044 = vmatprep.subr.mxu0 0.0
        %2045 = vmatpush2.xpose.msra.mxu0 0.0
        %2046 = vmatprep.subr.mxu0 0.0
        %2047 = vmatpush2.xpose.msra.mxu0 0.0
        %2048 = vmatprep.subr.mxu0 0.0
        %2049 = vmatpush2.xpose.msra.mxu0 0.0
        %2050 = vmatprep.subr.mxu0 0.0
        %2051 = vmatpush2.xpose.msra.mxu0 0.0
        %2052 = vmatprep.subr.mxu0 0.0
        %2053 = vmatpush2.xpose.msra.mxu0 0.0
        %2054 = vmatprep.subr.mxu0 0.0
        %2055 = vmatpush2.xpose.msra.mxu0 0.0
        %2056 = vmatprep.subr.mxu0 0.0
        %2057 = vmatpush2.xpose.msra.mxu0 0.0
        %2058 = vmatprep.subr.mxu0 0.0
        %2059 = vmatpush2.xpose.msra.mxu0 0.0
        %2060 = vmatprep.subr.mxu0 0.0
        %2061 = vmatpush2.xpose.msra.mxu0 0.0
        %2062 = vmatprep.subr.mxu0 0.0
        %2063 = vmatpush2.xpose.msra.mxu0 0.0
        %2064 = vmatprep.subr.mxu0 0.0
        %2065 = vmatpush2.xpose.msra.mxu0 0.0
        %2066 = vmatprep.mubr.f32.mxu0 0.0
        %2067 = vmatmul.mubr.f32.gmra.mxu0 %v1998
        %v2068 = vpop.f32.mrf.mxu0
        %v2069 = vadd.f32 0.0, %v2068
        %v2070 = vpop.f32.mrf.mxu0
        %2071 = vdwg.mxu0
        %v2072 = vsel %vm1085, %v1991, -inf
        %2073 = vmax.xlane.f32.xlu0 %v2072
        %v2074 = vpop.xlane.xlu0 %2073
        %v2075 = vsel %vm1085, %v2069, -inf
        %2076 = vmax.xlane.f32.xlu0 %v2075
        %v2077 = vpop.xlane.xlu0 %2076
        %v2078 = vsub.f32 %v1991, %v2074
        %v2079 = vsub.f32 %v2069, %v2077
        %v2080 = vmul.f32 %v2078, 1.442695
        %v2081 = vpow.pop %v2080
        %v2082 = vmul.f32 %v2079, 1.442695
        %v2083 = vpow.pop %v2082
        %v2084 = vsel %vm1085, %v2081, 0.0
        %2085 = vadd.xlane.f32.xlu0 %v2084
        %v2086 = vpop.xlane.xlu0 %2085
        %v2087 = vsel %vm1085, %v2083, 0.0
        %2088 = vadd.xlane.f32.xlu0 %v2087
        %v2089 = vpop.xlane.xlu0 %2088
        %v2090 = vrcp.pop %v2086
        %v2091 = vmul.f32 %v2081, %v2090
        %v2092 = vrcp.pop %v2089
        %v2093 = vmul.f32 %v2083, %v2092
        %2094 = vrot.lane.b32.xlu0 %v924, 116
        %v2095 = vpop.permute.xlu0 %2094
        %v2098 = vsel %vm1085, %v2091, 0
        %2100 = vmatprep.subr.mxu0 0.0
        %2101 = vmatpush1.msra.mxu0 0.0
        %2102 = vmatprep.subr.mxu0 0.0
        %2103 = vmatpush1.msra.mxu0 0.0
        %2104 = vmatprep.subr.mxu0 0.0
        %2105 = vmatpush1.msra.mxu0 0.0
        %2106 = vmatprep.subr.mxu0 0.0
        %2107 = vmatpush1.msra.mxu0 0.0
        %2108 = vmatprep.subr.mxu0 0.0
        %2109 = vmatpush1.msra.mxu0 0.0
        %2110 = vmatprep.subr.mxu0 0.0
        %2111 = vmatpush1.msra.mxu0 0.0
        %2112 = vmatprep.subr.mxu0 0.0
        %2113 = vmatpush1.msra.mxu0 0.0
        %2114 = vmatprep.subr.mxu0 0.0
        %2115 = vmatpush1.msra.mxu0 0.0
        %2116 = vmatprep.subr.mxu0 0.0
        %2117 = vmatpush1.msra.mxu0 0.0
        %2118 = vmatprep.subr.mxu0 0.0
        %2119 = vmatpush1.msra.mxu0 0.0
        %2120 = vmatprep.subr.mxu0 0.0
        %2121 = vmatpush1.msra.mxu0 0.0
        %2122 = vmatprep.subr.mxu0 0.0
        %2123 = vmatpush1.msra.mxu0 0.0
        %2124 = vmatprep.subr.mxu0 0.0
        %2125 = vmatpush1.msra.mxu0 0.0
        %2126 = vmatprep.subr.mxu0 0.0
        %2127 = vmatpush1.msra.mxu0 0.0
        %2128 = vmatprep.subr.mxu0 0.0
        %2129 = vmatpush1.msra.mxu0 0.0
        %2130 = vmatprep.subr.mxu0 0.0
        %2131 = vmatpush1.msra.mxu0 %v2095
        %2132 = vmatprep.subr.mxu0 0.0
        %2133 = vmatpush2.msra.mxu0 0.0
        %2134 = vmatprep.subr.mxu0 0.0
        %2135 = vmatpush2.msra.mxu0 0.0
        %2136 = vmatprep.subr.mxu0 0.0
        %2137 = vmatpush2.msra.mxu0 0.0
        %2138 = vmatprep.subr.mxu0 0.0
        %2139 = vmatpush2.msra.mxu0 0.0
        %2140 = vmatprep.subr.mxu0 0.0
        %2141 = vmatpush2.msra.mxu0 0.0
        %2142 = vmatprep.subr.mxu0 0.0
        %2143 = vmatpush2.msra.mxu0 0.0
        %2144 = vmatprep.subr.mxu0 0.0
        %2145 = vmatpush2.msra.mxu0 0.0
        %2146 = vmatprep.subr.mxu0 0.0
        %2147 = vmatpush2.msra.mxu0 0.0
        %2148 = vmatprep.subr.mxu0 0.0
        %2149 = vmatpush2.msra.mxu0 0.0
        %2150 = vmatprep.subr.mxu0 0.0
        %2151 = vmatpush2.msra.mxu0 0.0
        %2152 = vmatprep.subr.mxu0 0.0
        %2153 = vmatpush2.msra.mxu0 0.0
        %2154 = vmatprep.subr.mxu0 0.0
        %2155 = vmatpush2.msra.mxu0 0.0
        %2156 = vmatprep.subr.mxu0 0.0
        %2157 = vmatpush2.msra.mxu0 0.0
        %2158 = vmatprep.subr.mxu0 0.0
        %2159 = vmatpush2.msra.mxu0 0.0
        %2160 = vmatprep.subr.mxu0 0.0
        %2161 = vmatpush2.msra.mxu0 0.0
        %2162 = vmatprep.subr.mxu0 0.0
        %2163 = vmatpush2.msra.mxu0 0.0
        %2164 = vmatprep.mubr.f32.mxu0 0.0
        %2165 = vmatmul.mubr.f32.gmra.mxu0 %v2098
        %v2166 = vpop.f32.mrf.mxu0
        %v2167 = vadd.f32 0.0, %v2166
        %v2168 = vpop.f32.mrf.mxu0
        %2169 = vdwg.mxu0
        %2170 = vrot.lane.b32.xlu0 %v929, 116
        %v2171 = vpop.permute.xlu0 %2170
        %v2174 = vsel %vm1085, %v2093, 0
        %2176 = vmatprep.subr.mxu0 0.0
        %2177 = vmatpush1.msra.mxu0 0.0
        %2178 = vmatprep.subr.mxu0 0.0
        %2179 = vmatpush1.msra.mxu0 0.0
        %2180 = vmatprep.subr.mxu0 0.0
        %2181 = vmatpush1.msra.mxu0 0.0
        %2182 = vmatprep.subr.mxu0 0.0
        %2183 = vmatpush1.msra.mxu0 0.0
        %2184 = vmatprep.subr.mxu0 0.0
        %2185 = vmatpush1.msra.mxu0 0.0
        %2186 = vmatprep.subr.mxu0 0.0
        %2187 = vmatpush1.msra.mxu0 0.0
        %2188 = vmatprep.subr.mxu0 0.0
        %2189 = vmatpush1.msra.mxu0 0.0
        %2190 = vmatprep.subr.mxu0 0.0
        %2191 = vmatpush1.msra.mxu0 0.0
        %2192 = vmatprep.subr.mxu0 0.0
        %2193 = vmatpush1.msra.mxu0 0.0
        %2194 = vmatprep.subr.mxu0 0.0
        %2195 = vmatpush1.msra.mxu0 0.0
        %2196 = vmatprep.subr.mxu0 0.0
        %2197 = vmatpush1.msra.mxu0 0.0
        %2198 = vmatprep.subr.mxu0 0.0
        %2199 = vmatpush1.msra.mxu0 0.0
        %2200 = vmatprep.subr.mxu0 0.0
        %2201 = vmatpush1.msra.mxu0 0.0
        %2202 = vmatprep.subr.mxu0 0.0
        %2203 = vmatpush1.msra.mxu0 0.0
        %2204 = vmatprep.subr.mxu0 0.0
        %2205 = vmatpush1.msra.mxu0 0.0
        %2206 = vmatprep.subr.mxu0 0.0
        %2207 = vmatpush1.msra.mxu0 %v2171
        %2208 = vmatprep.subr.mxu0 0.0
        %2209 = vmatpush2.msra.mxu0 0.0
        %2210 = vmatprep.subr.mxu0 0.0
        %2211 = vmatpush2.msra.mxu0 0.0
        %2212 = vmatprep.subr.mxu0 0.0
        %2213 = vmatpush2.msra.mxu0 0.0
        %2214 = vmatprep.subr.mxu0 0.0
        %2215 = vmatpush2.msra.mxu0 0.0
        %2216 = vmatprep.subr.mxu0 0.0
        %2217 = vmatpush2.msra.mxu0 0.0
        %2218 = vmatprep.subr.mxu0 0.0
        %2219 = vmatpush2.msra.mxu0 0.0
        %2220 = vmatprep.subr.mxu0 0.0
        %2221 = vmatpush2.msra.mxu0 0.0
        %2222 = vmatprep.subr.mxu0 0.0
        %2223 = vmatpush2.msra.mxu0 0.0
        %2224 = vmatprep.subr.mxu0 0.0
        %2225 = vmatpush2.msra.mxu0 0.0
        %2226 = vmatprep.subr.mxu0 0.0
        %2227 = vmatpush2.msra.mxu0 0.0
        %2228 = vmatprep.subr.mxu0 0.0
        %2229 = vmatpush2.msra.mxu0 0.0
        %2230 = vmatprep.subr.mxu0 0.0
        %2231 = vmatpush2.msra.mxu0 0.0
        %2232 = vmatprep.subr.mxu0 0.0
        %2233 = vmatpush2.msra.mxu0 0.0
        %2234 = vmatprep.subr.mxu0 0.0
        %2235 = vmatpush2.msra.mxu0 0.0
        %2236 = vmatprep.subr.mxu0 0.0
        %2237 = vmatpush2.msra.mxu0 0.0
        %2238 = vmatprep.subr.mxu0 0.0
        %2239 = vmatpush2.msra.mxu0 0.0
        %2240 = vmatprep.mubr.f32.mxu0 0.0
        %2241 = vmatmul.mubr.f32.gmra.mxu0 %v2174
        %v2242 = vpop.f32.mrf.mxu0
        %v2243 = vadd.f32 0.0, %v2242
        %v2244 = vpop.f32.mrf.mxu0
        %2245 = vdwg.mxu0
        %2246 = vrot.lane.b32.xlu0 %v748, 112
        %v2247 = vpop.permute.xlu0 %2246
        %2248 = vrot.lane.b32.xlu0 %v836, 112
        %v2249 = vpop.permute.xlu0 %2248
        %v2250 = vsel %vm932, %v2247, 0
        %v2252 = vsel %vm932, %v2249, 0
        %2254 = vmatprep.subr.mxu0 0.0
        %2255 = vmatpush1.xpose.msra.mxu0 0.0
        %2256 = vmatprep.subr.mxu0 0.0
        %2257 = vmatpush1.xpose.msra.mxu0 0.0
        %2258 = vmatprep.subr.mxu0 0.0
        %2259 = vmatpush1.xpose.msra.mxu0 0.0
        %2260 = vmatprep.subr.mxu0 0.0
        %2261 = vmatpush1.xpose.msra.mxu0 0.0
        %2262 = vmatprep.subr.mxu0 0.0
        %2263 = vmatpush1.xpose.msra.mxu0 0.0
        %2264 = vmatprep.subr.mxu0 0.0
        %2265 = vmatpush1.xpose.msra.mxu0 0.0
        %2266 = vmatprep.subr.mxu0 0.0
        %2267 = vmatpush1.xpose.msra.mxu0 0.0
        %2268 = vmatprep.subr.mxu0 0.0
        %2269 = vmatpush1.xpose.msra.mxu0 0.0
        %2270 = vmatprep.subr.mxu0 0.0
        %2271 = vmatpush1.xpose.msra.mxu0 0.0
        %2272 = vmatprep.subr.mxu0 0.0
        %2273 = vmatpush1.xpose.msra.mxu0 0.0
        %2274 = vmatprep.subr.mxu0 0.0
        %2275 = vmatpush1.xpose.msra.mxu0 0.0
        %2276 = vmatprep.subr.mxu0 0.0
        %2277 = vmatpush1.xpose.msra.mxu0 0.0
        %2278 = vmatprep.subr.mxu0 0.0
        %2279 = vmatpush1.xpose.msra.mxu0 0.0
        %2280 = vmatprep.subr.mxu0 0.0
        %2281 = vmatpush1.xpose.msra.mxu0 0.0
        %2282 = vmatprep.subr.mxu0 0.0
        %2283 = vmatpush1.xpose.msra.mxu0 0.0
        %2284 = vmatprep.subr.mxu0 0.0
        %2285 = vmatpush1.xpose.msra.mxu0 %v2252
        %2286 = vmatprep.subr.mxu0 0.0
        %2287 = vmatpush2.xpose.msra.mxu0 0.0
        %2288 = vmatprep.subr.mxu0 0.0
        %2289 = vmatpush2.xpose.msra.mxu0 0.0
        %2290 = vmatprep.subr.mxu0 0.0
        %2291 = vmatpush2.xpose.msra.mxu0 0.0
        %2292 = vmatprep.subr.mxu0 0.0
        %2293 = vmatpush2.xpose.msra.mxu0 0.0
        %2294 = vmatprep.subr.mxu0 0.0
        %2295 = vmatpush2.xpose.msra.mxu0 0.0
        %2296 = vmatprep.subr.mxu0 0.0
        %2297 = vmatpush2.xpose.msra.mxu0 0.0
        %2298 = vmatprep.subr.mxu0 0.0
        %2299 = vmatpush2.xpose.msra.mxu0 0.0
        %2300 = vmatprep.subr.mxu0 0.0
        %2301 = vmatpush2.xpose.msra.mxu0 0.0
        %2302 = vmatprep.subr.mxu0 0.0
        %2303 = vmatpush2.xpose.msra.mxu0 0.0
        %2304 = vmatprep.subr.mxu0 0.0
        %2305 = vmatpush2.xpose.msra.mxu0 0.0
        %2306 = vmatprep.subr.mxu0 0.0
        %2307 = vmatpush2.xpose.msra.mxu0 0.0
        %2308 = vmatprep.subr.mxu0 0.0
        %2309 = vmatpush2.xpose.msra.mxu0 0.0
        %2310 = vmatprep.subr.mxu0 0.0
        %2311 = vmatpush2.xpose.msra.mxu0 0.0
        %2312 = vmatprep.subr.mxu0 0.0
        %2313 = vmatpush2.xpose.msra.mxu0 0.0
        %2314 = vmatprep.subr.mxu0 0.0
        %2315 = vmatpush2.xpose.msra.mxu0 0.0
        %2316 = vmatprep.subr.mxu0 0.0
        %2317 = vmatpush2.xpose.msra.mxu0 0.0
        %2318 = vmatprep.mubr.f32.mxu0 0.0
        %2319 = vmatmul.mubr.f32.gmra.mxu0 %v2250
        %v2320 = vpop.f32.mrf.mxu0
        %v2321 = vadd.f32 0.0, %v2320
        %v2322 = vpop.f32.mrf.mxu0
        %2323 = vdwg.mxu0
        %2324 = vrot.lane.b32.xlu0 %v753, 112
        %v2325 = vpop.permute.xlu0 %2324
        %2326 = vrot.lane.b32.xlu0 %v841, 112
        %v2327 = vpop.permute.xlu0 %2326
        %v2328 = vsel %vm932, %v2325, 0
        %v2330 = vsel %vm932, %v2327, 0
        %2332 = vmatprep.subr.mxu0 0.0
        %2333 = vmatpush1.xpose.msra.mxu0 0.0
        %2334 = vmatprep.subr.mxu0 0.0
        %2335 = vmatpush1.xpose.msra.mxu0 0.0
        %2336 = vmatprep.subr.mxu0 0.0
        %2337 = vmatpush1.xpose.msra.mxu0 0.0
        %2338 = vmatprep.subr.mxu0 0.0
        %2339 = vmatpush1.xpose.msra.mxu0 0.0
        %2340 = vmatprep.subr.mxu0 0.0
        %2341 = vmatpush1.xpose.msra.mxu0 0.0
        %2342 = vmatprep.subr.mxu0 0.0
        %2343 = vmatpush1.xpose.msra.mxu0 0.0
        %2344 = vmatprep.subr.mxu0 0.0
        %2345 = vmatpush1.xpose.msra.mxu0 0.0
        %2346 = vmatprep.subr.mxu0 0.0
        %2347 = vmatpush1.xpose.msra.mxu0 0.0
        %2348 = vmatprep.subr.mxu0 0.0
        %2349 = vmatpush1.xpose.msra.mxu0 0.0
        %2350 = vmatprep.subr.mxu0 0.0
        %2351 = vmatpush1.xpose.msra.mxu0 0.0
        %2352 = vmatprep.subr.mxu0 0.0
        %2353 = vmatpush1.xpose.msra.mxu0 0.0
        %2354 = vmatprep.subr.mxu0 0.0
        %2355 = vmatpush1.xpose.msra.mxu0 0.0
        %2356 = vmatprep.subr.mxu0 0.0
        %2357 = vmatpush1.xpose.msra.mxu0 0.0
        %2358 = vmatprep.subr.mxu0 0.0
        %2359 = vmatpush1.xpose.msra.mxu0 0.0
        %2360 = vmatprep.subr.mxu0 0.0
        %2361 = vmatpush1.xpose.msra.mxu0 0.0
        %2362 = vmatprep.subr.mxu0 0.0
        %2363 = vmatpush1.xpose.msra.mxu0 %v2330
        %2364 = vmatprep.subr.mxu0 0.0
        %2365 = vmatpush2.xpose.msra.mxu0 0.0
        %2366 = vmatprep.subr.mxu0 0.0
        %2367 = vmatpush2.xpose.msra.mxu0 0.0
        %2368 = vmatprep.subr.mxu0 0.0
        %2369 = vmatpush2.xpose.msra.mxu0 0.0
        %2370 = vmatprep.subr.mxu0 0.0
        %2371 = vmatpush2.xpose.msra.mxu0 0.0
        %2372 = vmatprep.subr.mxu0 0.0
        %2373 = vmatpush2.xpose.msra.mxu0 0.0
        %2374 = vmatprep.subr.mxu0 0.0
        %2375 = vmatpush2.xpose.msra.mxu0 0.0
        %2376 = vmatprep.subr.mxu0 0.0
        %2377 = vmatpush2.xpose.msra.mxu0 0.0
        %2378 = vmatprep.subr.mxu0 0.0
        %2379 = vmatpush2.xpose.msra.mxu0 0.0
        %2380 = vmatprep.subr.mxu0 0.0
        %2381 = vmatpush2.xpose.msra.mxu0 0.0
        %2382 = vmatprep.subr.mxu0 0.0
        %2383 = vmatpush2.xpose.msra.mxu0 0.0
        %2384 = vmatprep.subr.mxu0 0.0
        %2385 = vmatpush2.xpose.msra.mxu0 0.0
        %2386 = vmatprep.subr.mxu0 0.0
        %2387 = vmatpush2.xpose.msra.mxu0 0.0
        %2388 = vmatprep.subr.mxu0 0.0
        %2389 = vmatpush2.xpose.msra.mxu0 0.0
        %2390 = vmatprep.subr.mxu0 0.0
        %2391 = vmatpush2.xpose.msra.mxu0 0.0
        %2392 = vmatprep.subr.mxu0 0.0
        %2393 = vmatpush2.xpose.msra.mxu0 0.0
        %2394 = vmatprep.subr.mxu0 0.0
        %2395 = vmatpush2.xpose.msra.mxu0 0.0
        %2396 = vmatprep.mubr.f32.mxu0 0.0
        %2397 = vmatmul.mubr.f32.gmra.mxu0 %v2328
        %v2398 = vpop.f32.mrf.mxu0
        %v2399 = vadd.f32 0.0, %v2398
        %v2400 = vpop.f32.mrf.mxu0
        %2401 = vdwg.mxu0
        %v2402 = vsel %vm1085, %v2321, -inf
        %2403 = vmax.xlane.f32.xlu0 %v2402
        %v2404 = vpop.xlane.xlu0 %2403
        %v2405 = vsel %vm1085, %v2399, -inf
        %2406 = vmax.xlane.f32.xlu0 %v2405
        %v2407 = vpop.xlane.xlu0 %2406
        %v2408 = vsub.f32 %v2321, %v2404
        %v2409 = vsub.f32 %v2399, %v2407
        %v2410 = vmul.f32 %v2408, 1.442695
        %v2411 = vpow.pop %v2410
        %v2412 = vmul.f32 %v2409, 1.442695
        %v2413 = vpow.pop %v2412
        %v2414 = vsel %vm1085, %v2411, 0.0
        %2415 = vadd.xlane.f32.xlu0 %v2414
        %v2416 = vpop.xlane.xlu0 %2415
        %v2417 = vsel %vm1085, %v2413, 0.0
        %2418 = vadd.xlane.f32.xlu0 %v2417
        %v2419 = vpop.xlane.xlu0 %2418
        %v2420 = vrcp.pop %v2416
        %v2421 = vmul.f32 %v2411, %v2420
        %v2422 = vrcp.pop %v2419
        %v2423 = vmul.f32 %v2413, %v2422
        %2424 = vrot.lane.b32.xlu0 %v924, 112
        %v2425 = vpop.permute.xlu0 %2424
        %v2428 = vsel %vm1085, %v2421, 0
        %2430 = vmatprep.subr.mxu0 0.0
        %2431 = vmatpush1.msra.mxu0 0.0
        %2432 = vmatprep.subr.mxu0 0.0
        %2433 = vmatpush1.msra.mxu0 0.0
        %2434 = vmatprep.subr.mxu0 0.0
        %2435 = vmatpush1.msra.mxu0 0.0
        %2436 = vmatprep.subr.mxu0 0.0
        %2437 = vmatpush1.msra.mxu0 0.0
        %2438 = vmatprep.subr.mxu0 0.0
        %2439 = vmatpush1.msra.mxu0 0.0
        %2440 = vmatprep.subr.mxu0 0.0
        %2441 = vmatpush1.msra.mxu0 0.0
        %2442 = vmatprep.subr.mxu0 0.0
        %2443 = vmatpush1.msra.mxu0 0.0
        %2444 = vmatprep.subr.mxu0 0.0
        %2445 = vmatpush1.msra.mxu0 0.0
        %2446 = vmatprep.subr.mxu0 0.0
        %2447 = vmatpush1.msra.mxu0 0.0
        %2448 = vmatprep.subr.mxu0 0.0
        %2449 = vmatpush1.msra.mxu0 0.0
        %2450 = vmatprep.subr.mxu0 0.0
        %2451 = vmatpush1.msra.mxu0 0.0
        %2452 = vmatprep.subr.mxu0 0.0
        %2453 = vmatpush1.msra.mxu0 0.0
        %2454 = vmatprep.subr.mxu0 0.0
        %2455 = vmatpush1.msra.mxu0 0.0
        %2456 = vmatprep.subr.mxu0 0.0
        %2457 = vmatpush1.msra.mxu0 0.0
        %2458 = vmatprep.subr.mxu0 0.0
        %2459 = vmatpush1.msra.mxu0 0.0
        %2460 = vmatprep.subr.mxu0 0.0
        %2461 = vmatpush1.msra.mxu0 %v2425
        %2462 = vmatprep.subr.mxu0 0.0
        %2463 = vmatpush2.msra.mxu0 0.0
        %2464 = vmatprep.subr.mxu0 0.0
        %2465 = vmatpush2.msra.mxu0 0.0
        %2466 = vmatprep.subr.mxu0 0.0
        %2467 = vmatpush2.msra.mxu0 0.0
        %2468 = vmatprep.subr.mxu0 0.0
        %2469 = vmatpush2.msra.mxu0 0.0
        %2470 = vmatprep.subr.mxu0 0.0
        %2471 = vmatpush2.msra.mxu0 0.0
        %2472 = vmatprep.subr.mxu0 0.0
        %2473 = vmatpush2.msra.mxu0 0.0
        %2474 = vmatprep.subr.mxu0 0.0
        %2475 = vmatpush2.msra.mxu0 0.0
        %2476 = vmatprep.subr.mxu0 0.0
        %2477 = vmatpush2.msra.mxu0 0.0
        %2478 = vmatprep.subr.mxu0 0.0
        %2479 = vmatpush2.msra.mxu0 0.0
        %2480 = vmatprep.subr.mxu0 0.0
        %2481 = vmatpush2.msra.mxu0 0.0
        %2482 = vmatprep.subr.mxu0 0.0
        %2483 = vmatpush2.msra.mxu0 0.0
        %2484 = vmatprep.subr.mxu0 0.0
        %2485 = vmatpush2.msra.mxu0 0.0
        %2486 = vmatprep.subr.mxu0 0.0
        %2487 = vmatpush2.msra.mxu0 0.0
        %2488 = vmatprep.subr.mxu0 0.0
        %2489 = vmatpush2.msra.mxu0 0.0
        %2490 = vmatprep.subr.mxu0 0.0
        %2491 = vmatpush2.msra.mxu0 0.0
        %2492 = vmatprep.subr.mxu0 0.0
        %2493 = vmatpush2.msra.mxu0 0.0
        %2494 = vmatprep.mubr.f32.mxu0 0.0
        %2495 = vmatmul.mubr.f32.gmra.mxu0 %v2428
        %v2496 = vpop.f32.mrf.mxu0
        %v2497 = vadd.f32 0.0, %v2496
        %v2498 = vpop.f32.mrf.mxu0
        %2499 = vdwg.mxu0
        %2500 = vrot.lane.b32.xlu0 %v929, 112
        %v2501 = vpop.permute.xlu0 %2500
        %v2504 = vsel %vm1085, %v2423, 0
        %2506 = vmatprep.subr.mxu0 0.0
        %2507 = vmatpush1.msra.mxu0 0.0
        %2508 = vmatprep.subr.mxu0 0.0
        %2509 = vmatpush1.msra.mxu0 0.0
        %2510 = vmatprep.subr.mxu0 0.0
        %2511 = vmatpush1.msra.mxu0 0.0
        %2512 = vmatprep.subr.mxu0 0.0
        %2513 = vmatpush1.msra.mxu0 0.0
        %2514 = vmatprep.subr.mxu0 0.0
        %2515 = vmatpush1.msra.mxu0 0.0
        %2516 = vmatprep.subr.mxu0 0.0
        %2517 = vmatpush1.msra.mxu0 0.0
        %2518 = vmatprep.subr.mxu0 0.0
        %2519 = vmatpush1.msra.mxu0 0.0
        %2520 = vmatprep.subr.mxu0 0.0
        %2521 = vmatpush1.msra.mxu0 0.0
        %2522 = vmatprep.subr.mxu0 0.0
        %2523 = vmatpush1.msra.mxu0 0.0
        %2524 = vmatprep.subr.mxu0 0.0
        %2525 = vmatpush1.msra.mxu0 0.0
        %2526 = vmatprep.subr.mxu0 0.0
        %2527 = vmatpush1.msra.mxu0 0.0
        %2528 = vmatprep.subr.mxu0 0.0
        %2529 = vmatpush1.msra.mxu0 0.0
        %2530 = vmatprep.subr.mxu0 0.0
        %2531 = vmatpush1.msra.mxu0 0.0
        %2532 = vmatprep.subr.mxu0 0.0
        %2533 = vmatpush1.msra.mxu0 0.0
        %2534 = vmatprep.subr.mxu0 0.0
        %2535 = vmatpush1.msra.mxu0 0.0
        %2536 = vmatprep.subr.mxu0 0.0
        %2537 = vmatpush1.msra.mxu0 %v2501
        %2538 = vmatprep.subr.mxu0 0.0
        %2539 = vmatpush2.msra.mxu0 0.0
        %2540 = vmatprep.subr.mxu0 0.0
        %2541 = vmatpush2.msra.mxu0 0.0
        %2542 = vmatprep.subr.mxu0 0.0
        %2543 = vmatpush2.msra.mxu0 0.0
        %2544 = vmatprep.subr.mxu0 0.0
        %2545 = vmatpush2.msra.mxu0 0.0
        %2546 = vmatprep.subr.mxu0 0.0
        %2547 = vmatpush2.msra.mxu0 0.0
        %2548 = vmatprep.subr.mxu0 0.0
        %2549 = vmatpush2.msra.mxu0 0.0
        %2550 = vmatprep.subr.mxu0 0.0
        %2551 = vmatpush2.msra.mxu0 0.0
        %2552 = vmatprep.subr.mxu0 0.0
        %2553 = vmatpush2.msra.mxu0 0.0
        %2554 = vmatprep.subr.mxu0 0.0
        %2555 = vmatpush2.msra.mxu0 0.0
        %2556 = vmatprep.subr.mxu0 0.0
        %2557 = vmatpush2.msra.mxu0 0.0
        %2558 = vmatprep.subr.mxu0 0.0
        %2559 = vmatpush2.msra.mxu0 0.0
        %2560 = vmatprep.subr.mxu0 0.0
        %2561 = vmatpush2.msra.mxu0 0.0
        %2562 = vmatprep.subr.mxu0 0.0
        %2563 = vmatpush2.msra.mxu0 0.0
        %2564 = vmatprep.subr.mxu0 0.0
        %2565 = vmatpush2.msra.mxu0 0.0
        %2566 = vmatprep.subr.mxu0 0.0
        %2567 = vmatpush2.msra.mxu0 0.0
        %2568 = vmatprep.subr.mxu0 0.0
        %2569 = vmatpush2.msra.mxu0 0.0
        %2570 = vmatprep.mubr.f32.mxu0 0.0
        %2571 = vmatmul.mubr.f32.gmra.mxu0 %v2504
        %v2572 = vpop.f32.mrf.mxu0
        %v2573 = vadd.f32 0.0, %v2572
        %v2574 = vpop.f32.mrf.mxu0
        %2575 = vdwg.mxu0
        %2576 = vrot.lane.b32.xlu0 %v748, 108
        %v2577 = vpop.permute.xlu0 %2576
        %2578 = vrot.lane.b32.xlu0 %v836, 108
        %v2579 = vpop.permute.xlu0 %2578
        %v2580 = vsel %vm932, %v2577, 0
        %v2582 = vsel %vm932, %v2579, 0
        %2584 = vmatprep.subr.mxu0 0.0
        %2585 = vmatpush1.xpose.msra.mxu0 0.0
        %2586 = vmatprep.subr.mxu0 0.0
        %2587 = vmatpush1.xpose.msra.mxu0 0.0
        %2588 = vmatprep.subr.mxu0 0.0
        %2589 = vmatpush1.xpose.msra.mxu0 0.0
        %2590 = vmatprep.subr.mxu0 0.0
        %2591 = vmatpush1.xpose.msra.mxu0 0.0
        %2592 = vmatprep.subr.mxu0 0.0
        %2593 = vmatpush1.xpose.msra.mxu0 0.0
        %2594 = vmatprep.subr.mxu0 0.0
        %2595 = vmatpush1.xpose.msra.mxu0 0.0
        %2596 = vmatprep.subr.mxu0 0.0
        %2597 = vmatpush1.xpose.msra.mxu0 0.0
        %2598 = vmatprep.subr.mxu0 0.0
        %2599 = vmatpush1.xpose.msra.mxu0 0.0
        %2600 = vmatprep.subr.mxu0 0.0
        %2601 = vmatpush1.xpose.msra.mxu0 0.0
        %2602 = vmatprep.subr.mxu0 0.0
        %2603 = vmatpush1.xpose.msra.mxu0 0.0
        %2604 = vmatprep.subr.mxu0 0.0
        %2605 = vmatpush1.xpose.msra.mxu0 0.0
        %2606 = vmatprep.subr.mxu0 0.0
        %2607 = vmatpush1.xpose.msra.mxu0 0.0
        %2608 = vmatprep.subr.mxu0 0.0
        %2609 = vmatpush1.xpose.msra.mxu0 0.0
        %2610 = vmatprep.subr.mxu0 0.0
        %2611 = vmatpush1.xpose.msra.mxu0 0.0
        %2612 = vmatprep.subr.mxu0 0.0
        %2613 = vmatpush1.xpose.msra.mxu0 0.0
        %2614 = vmatprep.subr.mxu0 0.0
        %2615 = vmatpush1.xpose.msra.mxu0 %v2582
        %2616 = vmatprep.subr.mxu0 0.0
        %2617 = vmatpush2.xpose.msra.mxu0 0.0
        %2618 = vmatprep.subr.mxu0 0.0
        %2619 = vmatpush2.xpose.msra.mxu0 0.0
        %2620 = vmatprep.subr.mxu0 0.0
        %2621 = vmatpush2.xpose.msra.mxu0 0.0
        %2622 = vmatprep.subr.mxu0 0.0
        %2623 = vmatpush2.xpose.msra.mxu0 0.0
        %2624 = vmatprep.subr.mxu0 0.0
        %2625 = vmatpush2.xpose.msra.mxu0 0.0
        %2626 = vmatprep.subr.mxu0 0.0
        %2627 = vmatpush2.xpose.msra.mxu0 0.0
        %2628 = vmatprep.subr.mxu0 0.0
        %2629 = vmatpush2.xpose.msra.mxu0 0.0
        %2630 = vmatprep.subr.mxu0 0.0
        %2631 = vmatpush2.xpose.msra.mxu0 0.0
        %2632 = vmatprep.subr.mxu0 0.0
        %2633 = vmatpush2.xpose.msra.mxu0 0.0
        %2634 = vmatprep.subr.mxu0 0.0
        %2635 = vmatpush2.xpose.msra.mxu0 0.0
        %2636 = vmatprep.subr.mxu0 0.0
        %2637 = vmatpush2.xpose.msra.mxu0 0.0
        %2638 = vmatprep.subr.mxu0 0.0
        %2639 = vmatpush2.xpose.msra.mxu0 0.0
        %2640 = vmatprep.subr.mxu0 0.0
        %2641 = vmatpush2.xpose.msra.mxu0 0.0
        %2642 = vmatprep.subr.mxu0 0.0
        %2643 = vmatpush2.xpose.msra.mxu0 0.0
        %2644 = vmatprep.subr.mxu0 0.0
        %2645 = vmatpush2.xpose.msra.mxu0 0.0
        %2646 = vmatprep.subr.mxu0 0.0
        %2647 = vmatpush2.xpose.msra.mxu0 0.0
        %2648 = vmatprep.mubr.f32.mxu0 0.0
        %2649 = vmatmul.mubr.f32.gmra.mxu0 %v2580
        %v2650 = vpop.f32.mrf.mxu0
        %v2651 = vadd.f32 0.0, %v2650
        %v2652 = vpop.f32.mrf.mxu0
        %2653 = vdwg.mxu0
        %2654 = vrot.lane.b32.xlu0 %v753, 108
        %v2655 = vpop.permute.xlu0 %2654
        %2656 = vrot.lane.b32.xlu0 %v841, 108
        %v2657 = vpop.permute.xlu0 %2656
        %v2658 = vsel %vm932, %v2655, 0
        %v2660 = vsel %vm932, %v2657, 0
        %2662 = vmatprep.subr.mxu0 0.0
        %2663 = vmatpush1.xpose.msra.mxu0 0.0
        %2664 = vmatprep.subr.mxu0 0.0
        %2665 = vmatpush1.xpose.msra.mxu0 0.0
        %2666 = vmatprep.subr.mxu0 0.0
        %2667 = vmatpush1.xpose.msra.mxu0 0.0
        %2668 = vmatprep.subr.mxu0 0.0
        %2669 = vmatpush1.xpose.msra.mxu0 0.0
        %2670 = vmatprep.subr.mxu0 0.0
        %2671 = vmatpush1.xpose.msra.mxu0 0.0
        %2672 = vmatprep.subr.mxu0 0.0
        %2673 = vmatpush1.xpose.msra.mxu0 0.0
        %2674 = vmatprep.subr.mxu0 0.0
        %2675 = vmatpush1.xpose.msra.mxu0 0.0
        %2676 = vmatprep.subr.mxu0 0.0
        %2677 = vmatpush1.xpose.msra.mxu0 0.0
        %2678 = vmatprep.subr.mxu0 0.0
        %2679 = vmatpush1.xpose.msra.mxu0 0.0
        %2680 = vmatprep.subr.mxu0 0.0
        %2681 = vmatpush1.xpose.msra.mxu0 0.0
        %2682 = vmatprep.subr.mxu0 0.0
        %2683 = vmatpush1.xpose.msra.mxu0 0.0
        %2684 = vmatprep.subr.mxu0 0.0
        %2685 = vmatpush1.xpose.msra.mxu0 0.0
        %2686 = vmatprep.subr.mxu0 0.0
        %2687 = vmatpush1.xpose.msra.mxu0 0.0
        %2688 = vmatprep.subr.mxu0 0.0
        %2689 = vmatpush1.xpose.msra.mxu0 0.0
        %2690 = vmatprep.subr.mxu0 0.0
        %2691 = vmatpush1.xpose.msra.mxu0 0.0
        %2692 = vmatprep.subr.mxu0 0.0
        %2693 = vmatpush1.xpose.msra.mxu0 %v2660
        %2694 = vmatprep.subr.mxu0 0.0
        %2695 = vmatpush2.xpose.msra.mxu0 0.0
        %2696 = vmatprep.subr.mxu0 0.0
        %2697 = vmatpush2.xpose.msra.mxu0 0.0
        %2698 = vmatprep.subr.mxu0 0.0
        %2699 = vmatpush2.xpose.msra.mxu0 0.0
        %2700 = vmatprep.subr.mxu0 0.0
        %2701 = vmatpush2.xpose.msra.mxu0 0.0
        %2702 = vmatprep.subr.mxu0 0.0
        %2703 = vmatpush2.xpose.msra.mxu0 0.0
        %2704 = vmatprep.subr.mxu0 0.0
        %2705 = vmatpush2.xpose.msra.mxu0 0.0
        %2706 = vmatprep.subr.mxu0 0.0
        %2707 = vmatpush2.xpose.msra.mxu0 0.0
        %2708 = vmatprep.subr.mxu0 0.0
        %2709 = vmatpush2.xpose.msra.mxu0 0.0
        %2710 = vmatprep.subr.mxu0 0.0
        %2711 = vmatpush2.xpose.msra.mxu0 0.0
        %2712 = vmatprep.subr.mxu0 0.0
        %2713 = vmatpush2.xpose.msra.mxu0 0.0
        %2714 = vmatprep.subr.mxu0 0.0
        %2715 = vmatpush2.xpose.msra.mxu0 0.0
        %2716 = vmatprep.subr.mxu0 0.0
        %2717 = vmatpush2.xpose.msra.mxu0 0.0
        %2718 = vmatprep.subr.mxu0 0.0
        %2719 = vmatpush2.xpose.msra.mxu0 0.0
        %2720 = vmatprep.subr.mxu0 0.0
        %2721 = vmatpush2.xpose.msra.mxu0 0.0
        %2722 = vmatprep.subr.mxu0 0.0
        %2723 = vmatpush2.xpose.msra.mxu0 0.0
        %2724 = vmatprep.subr.mxu0 0.0
        %2725 = vmatpush2.xpose.msra.mxu0 0.0
        %2726 = vmatprep.mubr.f32.mxu0 0.0
        %2727 = vmatmul.mubr.f32.gmra.mxu0 %v2658
        %v2728 = vpop.f32.mrf.mxu0
        %v2729 = vadd.f32 0.0, %v2728
        %v2730 = vpop.f32.mrf.mxu0
        %2731 = vdwg.mxu0
        %v2732 = vsel %vm1085, %v2651, -inf
        %2733 = vmax.xlane.f32.xlu0 %v2732
        %v2734 = vpop.xlane.xlu0 %2733
        %v2735 = vsel %vm1085, %v2729, -inf
        %2736 = vmax.xlane.f32.xlu0 %v2735
        %v2737 = vpop.xlane.xlu0 %2736
        %v2738 = vsub.f32 %v2651, %v2734
        %v2739 = vsub.f32 %v2729, %v2737
        %v2740 = vmul.f32 %v2738, 1.442695
        %v2741 = vpow.pop %v2740
        %v2742 = vmul.f32 %v2739, 1.442695
        %v2743 = vpow.pop %v2742
        %v2744 = vsel %vm1085, %v2741, 0.0
        %2745 = vadd.xlane.f32.xlu0 %v2744
        %v2746 = vpop.xlane.xlu0 %2745
        %v2747 = vsel %vm1085, %v2743, 0.0
        %2748 = vadd.xlane.f32.xlu0 %v2747
        %v2749 = vpop.xlane.xlu0 %2748
        %v2750 = vrcp.pop %v2746
        %v2751 = vmul.f32 %v2741, %v2750
        %v2752 = vrcp.pop %v2749
        %v2753 = vmul.f32 %v2743, %v2752
        %2754 = vrot.lane.b32.xlu0 %v924, 108
        %v2755 = vpop.permute.xlu0 %2754
        %v2758 = vsel %vm1085, %v2751, 0
        %2760 = vmatprep.subr.mxu0 0.0
        %2761 = vmatpush1.msra.mxu0 0.0
        %2762 = vmatprep.subr.mxu0 0.0
        %2763 = vmatpush1.msra.mxu0 0.0
        %2764 = vmatprep.subr.mxu0 0.0
        %2765 = vmatpush1.msra.mxu0 0.0
        %2766 = vmatprep.subr.mxu0 0.0
        %2767 = vmatpush1.msra.mxu0 0.0
        %2768 = vmatprep.subr.mxu0 0.0
        %2769 = vmatpush1.msra.mxu0 0.0
        %2770 = vmatprep.subr.mxu0 0.0
        %2771 = vmatpush1.msra.mxu0 0.0
        %2772 = vmatprep.subr.mxu0 0.0
        %2773 = vmatpush1.msra.mxu0 0.0
        %2774 = vmatprep.subr.mxu0 0.0
        %2775 = vmatpush1.msra.mxu0 0.0
        %2776 = vmatprep.subr.mxu0 0.0
        %2777 = vmatpush1.msra.mxu0 0.0
        %2778 = vmatprep.subr.mxu0 0.0
        %2779 = vmatpush1.msra.mxu0 0.0
        %2780 = vmatprep.subr.mxu0 0.0
        %2781 = vmatpush1.msra.mxu0 0.0
        %2782 = vmatprep.subr.mxu0 0.0
        %2783 = vmatpush1.msra.mxu0 0.0
        %2784 = vmatprep.subr.mxu0 0.0
        %2785 = vmatpush1.msra.mxu0 0.0
        %2786 = vmatprep.subr.mxu0 0.0
        %2787 = vmatpush1.msra.mxu0 0.0
        %2788 = vmatprep.subr.mxu0 0.0
        %2789 = vmatpush1.msra.mxu0 0.0
        %2790 = vmatprep.subr.mxu0 0.0
        %2791 = vmatpush1.msra.mxu0 %v2755
        %2792 = vmatprep.subr.mxu0 0.0
        %2793 = vmatpush2.msra.mxu0 0.0
        %2794 = vmatprep.subr.mxu0 0.0
        %2795 = vmatpush2.msra.mxu0 0.0
        %2796 = vmatprep.subr.mxu0 0.0
        %2797 = vmatpush2.msra.mxu0 0.0
        %2798 = vmatprep.subr.mxu0 0.0
        %2799 = vmatpush2.msra.mxu0 0.0
        %2800 = vmatprep.subr.mxu0 0.0
        %2801 = vmatpush2.msra.mxu0 0.0
        %2802 = vmatprep.subr.mxu0 0.0
        %2803 = vmatpush2.msra.mxu0 0.0
        %2804 = vmatprep.subr.mxu0 0.0
        %2805 = vmatpush2.msra.mxu0 0.0
        %2806 = vmatprep.subr.mxu0 0.0
        %2807 = vmatpush2.msra.mxu0 0.0
        %2808 = vmatprep.subr.mxu0 0.0
        %2809 = vmatpush2.msra.mxu0 0.0
        %2810 = vmatprep.subr.mxu0 0.0
        %2811 = vmatpush2.msra.mxu0 0.0
        %2812 = vmatprep.subr.mxu0 0.0
        %2813 = vmatpush2.msra.mxu0 0.0
        %2814 = vmatprep.subr.mxu0 0.0
        %2815 = vmatpush2.msra.mxu0 0.0
        %2816 = vmatprep.subr.mxu0 0.0
        %2817 = vmatpush2.msra.mxu0 0.0
        %2818 = vmatprep.subr.mxu0 0.0
        %2819 = vmatpush2.msra.mxu0 0.0
        %2820 = vmatprep.subr.mxu0 0.0
        %2821 = vmatpush2.msra.mxu0 0.0
        %2822 = vmatprep.subr.mxu0 0.0
        %2823 = vmatpush2.msra.mxu0 0.0
        %2824 = vmatprep.mubr.f32.mxu0 0.0
        %2825 = vmatmul.mubr.f32.gmra.mxu0 %v2758
        %v2826 = vpop.f32.mrf.mxu0
        %v2827 = vadd.f32 0.0, %v2826
        %v2828 = vpop.f32.mrf.mxu0
        %2829 = vdwg.mxu0
        %2830 = vrot.lane.b32.xlu0 %v929, 108
        %v2831 = vpop.permute.xlu0 %2830
        %v2834 = vsel %vm1085, %v2753, 0
        %2836 = vmatprep.subr.mxu0 0.0
        %2837 = vmatpush1.msra.mxu0 0.0
        %2838 = vmatprep.subr.mxu0 0.0
        %2839 = vmatpush1.msra.mxu0 0.0
        %2840 = vmatprep.subr.mxu0 0.0
        %2841 = vmatpush1.msra.mxu0 0.0
        %2842 = vmatprep.subr.mxu0 0.0
        %2843 = vmatpush1.msra.mxu0 0.0
        %2844 = vmatprep.subr.mxu0 0.0
        %2845 = vmatpush1.msra.mxu0 0.0
        %2846 = vmatprep.subr.mxu0 0.0
        %2847 = vmatpush1.msra.mxu0 0.0
        %2848 = vmatprep.subr.mxu0 0.0
        %2849 = vmatpush1.msra.mxu0 0.0
        %2850 = vmatprep.subr.mxu0 0.0
        %2851 = vmatpush1.msra.mxu0 0.0
        %2852 = vmatprep.subr.mxu0 0.0
        %2853 = vmatpush1.msra.mxu0 0.0
        %2854 = vmatprep.subr.mxu0 0.0
        %2855 = vmatpush1.msra.mxu0 0.0
        %2856 = vmatprep.subr.mxu0 0.0
        %2857 = vmatpush1.msra.mxu0 0.0
        %2858 = vmatprep.subr.mxu0 0.0
        %2859 = vmatpush1.msra.mxu0 0.0
        %2860 = vmatprep.subr.mxu0 0.0
        %2861 = vmatpush1.msra.mxu0 0.0
        %2862 = vmatprep.subr.mxu0 0.0
        %2863 = vmatpush1.msra.mxu0 0.0
        %2864 = vmatprep.subr.mxu0 0.0
        %2865 = vmatpush1.msra.mxu0 0.0
        %2866 = vmatprep.subr.mxu0 0.0
        %2867 = vmatpush1.msra.mxu0 %v2831
        %2868 = vmatprep.subr.mxu0 0.0
        %2869 = vmatpush2.msra.mxu0 0.0
        %2870 = vmatprep.subr.mxu0 0.0
        %2871 = vmatpush2.msra.mxu0 0.0
        %2872 = vmatprep.subr.mxu0 0.0
        %2873 = vmatpush2.msra.mxu0 0.0
        %2874 = vmatprep.subr.mxu0 0.0
        %2875 = vmatpush2.msra.mxu0 0.0
        %2876 = vmatprep.subr.mxu0 0.0
        %2877 = vmatpush2.msra.mxu0 0.0
        %2878 = vmatprep.subr.mxu0 0.0
        %2879 = vmatpush2.msra.mxu0 0.0
        %2880 = vmatprep.subr.mxu0 0.0
        %2881 = vmatpush2.msra.mxu0 0.0
        %2882 = vmatprep.subr.mxu0 0.0
        %2883 = vmatpush2.msra.mxu0 0.0
        %2884 = vmatprep.subr.mxu0 0.0
        %2885 = vmatpush2.msra.mxu0 0.0
        %2886 = vmatprep.subr.mxu0 0.0
        %2887 = vmatpush2.msra.mxu0 0.0
        %2888 = vmatprep.subr.mxu0 0.0
        %2889 = vmatpush2.msra.mxu0 0.0
        %2890 = vmatprep.subr.mxu0 0.0
        %2891 = vmatpush2.msra.mxu0 0.0
        %2892 = vmatprep.subr.mxu0 0.0
        %2893 = vmatpush2.msra.mxu0 0.0
        %2894 = vmatprep.subr.mxu0 0.0
        %2895 = vmatpush2.msra.mxu0 0.0
        %2896 = vmatprep.subr.mxu0 0.0
        %2897 = vmatpush2.msra.mxu0 0.0
        %2898 = vmatprep.subr.mxu0 0.0
        %2899 = vmatpush2.msra.mxu0 0.0
        %2900 = vmatprep.mubr.f32.mxu0 0.0
        %2901 = vmatmul.mubr.f32.gmra.mxu0 %v2834
        %v2902 = vpop.f32.mrf.mxu0
        %v2903 = vadd.f32 0.0, %v2902
        %v2904 = vpop.f32.mrf.mxu0
        %2905 = vdwg.mxu0
        %2906 = vrot.lane.b32.xlu0 %v748, 104
        %v2907 = vpop.permute.xlu0 %2906
        %2908 = vrot.lane.b32.xlu0 %v836, 104
        %v2909 = vpop.permute.xlu0 %2908
        %v2910 = vsel %vm932, %v2907, 0
        %v2912 = vsel %vm932, %v2909, 0
        %2914 = vmatprep.subr.mxu0 0.0
        %2915 = vmatpush1.xpose.msra.mxu0 0.0
        %2916 = vmatprep.subr.mxu0 0.0
        %2917 = vmatpush1.xpose.msra.mxu0 0.0
        %2918 = vmatprep.subr.mxu0 0.0
        %2919 = vmatpush1.xpose.msra.mxu0 0.0
        %2920 = vmatprep.subr.mxu0 0.0
        %2921 = vmatpush1.xpose.msra.mxu0 0.0
        %2922 = vmatprep.subr.mxu0 0.0
        %2923 = vmatpush1.xpose.msra.mxu0 0.0
        %2924 = vmatprep.subr.mxu0 0.0
        %2925 = vmatpush1.xpose.msra.mxu0 0.0
        %2926 = vmatprep.subr.mxu0 0.0
        %2927 = vmatpush1.xpose.msra.mxu0 0.0
        %2928 = vmatprep.subr.mxu0 0.0
        %2929 = vmatpush1.xpose.msra.mxu0 0.0
        %2930 = vmatprep.subr.mxu0 0.0
        %2931 = vmatpush1.xpose.msra.mxu0 0.0
        %2932 = vmatprep.subr.mxu0 0.0
        %2933 = vmatpush1.xpose.msra.mxu0 0.0
        %2934 = vmatprep.subr.mxu0 0.0
        %2935 = vmatpush1.xpose.msra.mxu0 0.0
        %2936 = vmatprep.subr.mxu0 0.0
        %2937 = vmatpush1.xpose.msra.mxu0 0.0
        %2938 = vmatprep.subr.mxu0 0.0
        %2939 = vmatpush1.xpose.msra.mxu0 0.0
        %2940 = vmatprep.subr.mxu0 0.0
        %2941 = vmatpush1.xpose.msra.mxu0 0.0
        %2942 = vmatprep.subr.mxu0 0.0
        %2943 = vmatpush1.xpose.msra.mxu0 0.0
        %2944 = vmatprep.subr.mxu0 0.0
        %2945 = vmatpush1.xpose.msra.mxu0 %v2912
        %2946 = vmatprep.subr.mxu0 0.0
        %2947 = vmatpush2.xpose.msra.mxu0 0.0
        %2948 = vmatprep.subr.mxu0 0.0
        %2949 = vmatpush2.xpose.msra.mxu0 0.0
        %2950 = vmatprep.subr.mxu0 0.0
        %2951 = vmatpush2.xpose.msra.mxu0 0.0
        %2952 = vmatprep.subr.mxu0 0.0
        %2953 = vmatpush2.xpose.msra.mxu0 0.0
        %2954 = vmatprep.subr.mxu0 0.0
        %2955 = vmatpush2.xpose.msra.mxu0 0.0
        %2956 = vmatprep.subr.mxu0 0.0
        %2957 = vmatpush2.xpose.msra.mxu0 0.0
        %2958 = vmatprep.subr.mxu0 0.0
        %2959 = vmatpush2.xpose.msra.mxu0 0.0
        %2960 = vmatprep.subr.mxu0 0.0
        %2961 = vmatpush2.xpose.msra.mxu0 0.0
        %2962 = vmatprep.subr.mxu0 0.0
        %2963 = vmatpush2.xpose.msra.mxu0 0.0
        %2964 = vmatprep.subr.mxu0 0.0
        %2965 = vmatpush2.xpose.msra.mxu0 0.0
        %2966 = vmatprep.subr.mxu0 0.0
        %2967 = vmatpush2.xpose.msra.mxu0 0.0
        %2968 = vmatprep.subr.mxu0 0.0
        %2969 = vmatpush2.xpose.msra.mxu0 0.0
        %2970 = vmatprep.subr.mxu0 0.0
        %2971 = vmatpush2.xpose.msra.mxu0 0.0
        %2972 = vmatprep.subr.mxu0 0.0
        %2973 = vmatpush2.xpose.msra.mxu0 0.0
        %2974 = vmatprep.subr.mxu0 0.0
        %2975 = vmatpush2.xpose.msra.mxu0 0.0
        %2976 = vmatprep.subr.mxu0 0.0
        %2977 = vmatpush2.xpose.msra.mxu0 0.0
        %2978 = vmatprep.mubr.f32.mxu0 0.0
        %2979 = vmatmul.mubr.f32.gmra.mxu0 %v2910
        %v2980 = vpop.f32.mrf.mxu0
        %v2981 = vadd.f32 0.0, %v2980
        %v2982 = vpop.f32.mrf.mxu0
        %2983 = vdwg.mxu0
        %2984 = vrot.lane.b32.xlu0 %v753, 104
        %v2985 = vpop.permute.xlu0 %2984
        %2986 = vrot.lane.b32.xlu0 %v841, 104
        %v2987 = vpop.permute.xlu0 %2986
        %v2988 = vsel %vm932, %v2985, 0
        %v2990 = vsel %vm932, %v2987, 0
        %2992 = vmatprep.subr.mxu0 0.0
        %2993 = vmatpush1.xpose.msra.mxu0 0.0
        %2994 = vmatprep.subr.mxu0 0.0
        %2995 = vmatpush1.xpose.msra.mxu0 0.0
        %2996 = vmatprep.subr.mxu0 0.0
        %2997 = vmatpush1.xpose.msra.mxu0 0.0
        %2998 = vmatprep.subr.mxu0 0.0
        %2999 = vmatpush1.xpose.msra.mxu0 0.0
        %3000 = vmatprep.subr.mxu0 0.0
        %3001 = vmatpush1.xpose.msra.mxu0 0.0
        %3002 = vmatprep.subr.mxu0 0.0
        %3003 = vmatpush1.xpose.msra.mxu0 0.0
        %3004 = vmatprep.subr.mxu0 0.0
        %3005 = vmatpush1.xpose.msra.mxu0 0.0
        %3006 = vmatprep.subr.mxu0 0.0
        %3007 = vmatpush1.xpose.msra.mxu0 0.0
        %3008 = vmatprep.subr.mxu0 0.0
        %3009 = vmatpush1.xpose.msra.mxu0 0.0
        %3010 = vmatprep.subr.mxu0 0.0
        %3011 = vmatpush1.xpose.msra.mxu0 0.0
        %3012 = vmatprep.subr.mxu0 0.0
        %3013 = vmatpush1.xpose.msra.mxu0 0.0
        %3014 = vmatprep.subr.mxu0 0.0
        %3015 = vmatpush1.xpose.msra.mxu0 0.0
        %3016 = vmatprep.subr.mxu0 0.0
        %3017 = vmatpush1.xpose.msra.mxu0 0.0
        %3018 = vmatprep.subr.mxu0 0.0
        %3019 = vmatpush1.xpose.msra.mxu0 0.0
        %3020 = vmatprep.subr.mxu0 0.0
        %3021 = vmatpush1.xpose.msra.mxu0 0.0
        %3022 = vmatprep.subr.mxu0 0.0
        %3023 = vmatpush1.xpose.msra.mxu0 %v2990
        %3024 = vmatprep.subr.mxu0 0.0
        %3025 = vmatpush2.xpose.msra.mxu0 0.0
        %3026 = vmatprep.subr.mxu0 0.0
        %3027 = vmatpush2.xpose.msra.mxu0 0.0
        %3028 = vmatprep.subr.mxu0 0.0
        %3029 = vmatpush2.xpose.msra.mxu0 0.0
        %3030 = vmatprep.subr.mxu0 0.0
        %3031 = vmatpush2.xpose.msra.mxu0 0.0
        %3032 = vmatprep.subr.mxu0 0.0
        %3033 = vmatpush2.xpose.msra.mxu0 0.0
        %3034 = vmatprep.subr.mxu0 0.0
        %3035 = vmatpush2.xpose.msra.mxu0 0.0
        %3036 = vmatprep.subr.mxu0 0.0
        %3037 = vmatpush2.xpose.msra.mxu0 0.0
        %3038 = vmatprep.subr.mxu0 0.0
        %3039 = vmatpush2.xpose.msra.mxu0 0.0
        %3040 = vmatprep.subr.mxu0 0.0
        %3041 = vmatpush2.xpose.msra.mxu0 0.0
        %3042 = vmatprep.subr.mxu0 0.0
        %3043 = vmatpush2.xpose.msra.mxu0 0.0
        %3044 = vmatprep.subr.mxu0 0.0
        %3045 = vmatpush2.xpose.msra.mxu0 0.0
        %3046 = vmatprep.subr.mxu0 0.0
        %3047 = vmatpush2.xpose.msra.mxu0 0.0
        %3048 = vmatprep.subr.mxu0 0.0
        %3049 = vmatpush2.xpose.msra.mxu0 0.0
        %3050 = vmatprep.subr.mxu0 0.0
        %3051 = vmatpush2.xpose.msra.mxu0 0.0
        %3052 = vmatprep.subr.mxu0 0.0
        %3053 = vmatpush2.xpose.msra.mxu0 0.0
        %3054 = vmatprep.subr.mxu0 0.0
        %3055 = vmatpush2.xpose.msra.mxu0 0.0
        %3056 = vmatprep.mubr.f32.mxu0 0.0
        %3057 = vmatmul.mubr.f32.gmra.mxu0 %v2988
        %v3058 = vpop.f32.mrf.mxu0
        %v3059 = vadd.f32 0.0, %v3058
        %v3060 = vpop.f32.mrf.mxu0
        %3061 = vdwg.mxu0
        %v3062 = vsel %vm1085, %v2981, -inf
        %3063 = vmax.xlane.f32.xlu0 %v3062
        %v3064 = vpop.xlane.xlu0 %3063
        %v3065 = vsel %vm1085, %v3059, -inf
        %3066 = vmax.xlane.f32.xlu0 %v3065
        %v3067 = vpop.xlane.xlu0 %3066
        %v3068 = vsub.f32 %v2981, %v3064
        %v3069 = vsub.f32 %v3059, %v3067
        %v3070 = vmul.f32 %v3068, 1.442695
        %v3071 = vpow.pop %v3070
        %v3072 = vmul.f32 %v3069, 1.442695
        %v3073 = vpow.pop %v3072
        %v3074 = vsel %vm1085, %v3071, 0.0
        %3075 = vadd.xlane.f32.xlu0 %v3074
        %v3076 = vpop.xlane.xlu0 %3075
        %v3077 = vsel %vm1085, %v3073, 0.0
        %3078 = vadd.xlane.f32.xlu0 %v3077
        %v3079 = vpop.xlane.xlu0 %3078
        %v3080 = vrcp.pop %v3076
        %v3081 = vmul.f32 %v3071, %v3080
        %v3082 = vrcp.pop %v3079
        %v3083 = vmul.f32 %v3073, %v3082
        %3084 = vrot.lane.b32.xlu0 %v924, 104
        %v3085 = vpop.permute.xlu0 %3084
        %v3088 = vsel %vm1085, %v3081, 0
        %3090 = vmatprep.subr.mxu0 0.0
        %3091 = vmatpush1.msra.mxu0 0.0
        %3092 = vmatprep.subr.mxu0 0.0
        %3093 = vmatpush1.msra.mxu0 0.0
        %3094 = vmatprep.subr.mxu0 0.0
        %3095 = vmatpush1.msra.mxu0 0.0
        %3096 = vmatprep.subr.mxu0 0.0
        %3097 = vmatpush1.msra.mxu0 0.0
        %3098 = vmatprep.subr.mxu0 0.0
        %3099 = vmatpush1.msra.mxu0 0.0
        %3100 = vmatprep.subr.mxu0 0.0
        %3101 = vmatpush1.msra.mxu0 0.0
        %3102 = vmatprep.subr.mxu0 0.0
        %3103 = vmatpush1.msra.mxu0 0.0
        %3104 = vmatprep.subr.mxu0 0.0
        %3105 = vmatpush1.msra.mxu0 0.0
        %3106 = vmatprep.subr.mxu0 0.0
        %3107 = vmatpush1.msra.mxu0 0.0
        %3108 = vmatprep.subr.mxu0 0.0
        %3109 = vmatpush1.msra.mxu0 0.0
        %3110 = vmatprep.subr.mxu0 0.0
        %3111 = vmatpush1.msra.mxu0 0.0
        %3112 = vmatprep.subr.mxu0 0.0
        %3113 = vmatpush1.msra.mxu0 0.0
        %3114 = vmatprep.subr.mxu0 0.0
        %3115 = vmatpush1.msra.mxu0 0.0
        %3116 = vmatprep.subr.mxu0 0.0
        %3117 = vmatpush1.msra.mxu0 0.0
        %3118 = vmatprep.subr.mxu0 0.0
        %3119 = vmatpush1.msra.mxu0 0.0
        %3120 = vmatprep.subr.mxu0 0.0
        %3121 = vmatpush1.msra.mxu0 %v3085
        %3122 = vmatprep.subr.mxu0 0.0
        %3123 = vmatpush2.msra.mxu0 0.0
        %3124 = vmatprep.subr.mxu0 0.0
        %3125 = vmatpush2.msra.mxu0 0.0
        %3126 = vmatprep.subr.mxu0 0.0
        %3127 = vmatpush2.msra.mxu0 0.0
        %3128 = vmatprep.subr.mxu0 0.0
        %3129 = vmatpush2.msra.mxu0 0.0
        %3130 = vmatprep.subr.mxu0 0.0
        %3131 = vmatpush2.msra.mxu0 0.0
        %3132 = vmatprep.subr.mxu0 0.0
        %3133 = vmatpush2.msra.mxu0 0.0
        %3134 = vmatprep.subr.mxu0 0.0
        %3135 = vmatpush2.msra.mxu0 0.0
        %3136 = vmatprep.subr.mxu0 0.0
        %3137 = vmatpush2.msra.mxu0 0.0
        %3138 = vmatprep.subr.mxu0 0.0
        %3139 = vmatpush2.msra.mxu0 0.0
        %3140 = vmatprep.subr.mxu0 0.0
        %3141 = vmatpush2.msra.mxu0 0.0
        %3142 = vmatprep.subr.mxu0 0.0
        %3143 = vmatpush2.msra.mxu0 0.0
        %3144 = vmatprep.subr.mxu0 0.0
        %3145 = vmatpush2.msra.mxu0 0.0
        %3146 = vmatprep.subr.mxu0 0.0
        %3147 = vmatpush2.msra.mxu0 0.0
        %3148 = vmatprep.subr.mxu0 0.0
        %3149 = vmatpush2.msra.mxu0 0.0
        %3150 = vmatprep.subr.mxu0 0.0
        %3151 = vmatpush2.msra.mxu0 0.0
        %3152 = vmatprep.subr.mxu0 0.0
        %3153 = vmatpush2.msra.mxu0 0.0
        %3154 = vmatprep.mubr.f32.mxu0 0.0
        %3155 = vmatmul.mubr.f32.gmra.mxu0 %v3088
        %v3156 = vpop.f32.mrf.mxu0
        %v3157 = vadd.f32 0.0, %v3156
        %v3158 = vpop.f32.mrf.mxu0
        %3159 = vdwg.mxu0
        %3160 = vrot.lane.b32.xlu0 %v929, 104
        %v3161 = vpop.permute.xlu0 %3160
        %v3164 = vsel %vm1085, %v3083, 0
        %3166 = vmatprep.subr.mxu0 0.0
        %3167 = vmatpush1.msra.mxu0 0.0
        %3168 = vmatprep.subr.mxu0 0.0
        %3169 = vmatpush1.msra.mxu0 0.0
        %3170 = vmatprep.subr.mxu0 0.0
        %3171 = vmatpush1.msra.mxu0 0.0
        %3172 = vmatprep.subr.mxu0 0.0
        %3173 = vmatpush1.msra.mxu0 0.0
        %3174 = vmatprep.subr.mxu0 0.0
        %3175 = vmatpush1.msra.mxu0 0.0
        %3176 = vmatprep.subr.mxu0 0.0
        %3177 = vmatpush1.msra.mxu0 0.0
        %3178 = vmatprep.subr.mxu0 0.0
        %3179 = vmatpush1.msra.mxu0 0.0
        %3180 = vmatprep.subr.mxu0 0.0
        %3181 = vmatpush1.msra.mxu0 0.0
        %3182 = vmatprep.subr.mxu0 0.0
        %3183 = vmatpush1.msra.mxu0 0.0
        %3184 = vmatprep.subr.mxu0 0.0
        %3185 = vmatpush1.msra.mxu0 0.0
        %3186 = vmatprep.subr.mxu0 0.0
        %3187 = vmatpush1.msra.mxu0 0.0
        %3188 = vmatprep.subr.mxu0 0.0
        %3189 = vmatpush1.msra.mxu0 0.0
        %3190 = vmatprep.subr.mxu0 0.0
        %3191 = vmatpush1.msra.mxu0 0.0
        %3192 = vmatprep.subr.mxu0 0.0
        %3193 = vmatpush1.msra.mxu0 0.0
        %3194 = vmatprep.subr.mxu0 0.0
        %3195 = vmatpush1.msra.mxu0 0.0
        %3196 = vmatprep.subr.mxu0 0.0
        %3197 = vmatpush1.msra.mxu0 %v3161
        %3198 = vmatprep.subr.mxu0 0.0
        %3199 = vmatpush2.msra.mxu0 0.0
        %3200 = vmatprep.subr.mxu0 0.0
        %3201 = vmatpush2.msra.mxu0 0.0
        %3202 = vmatprep.subr.mxu0 0.0
        %3203 = vmatpush2.msra.mxu0 0.0
        %3204 = vmatprep.subr.mxu0 0.0
        %3205 = vmatpush2.msra.mxu0 0.0
        %3206 = vmatprep.subr.mxu0 0.0
        %3207 = vmatpush2.msra.mxu0 0.0
        %3208 = vmatprep.subr.mxu0 0.0
        %3209 = vmatpush2.msra.mxu0 0.0
        %3210 = vmatprep.subr.mxu0 0.0
        %3211 = vmatpush2.msra.mxu0 0.0
        %3212 = vmatprep.subr.mxu0 0.0
        %3213 = vmatpush2.msra.mxu0 0.0
        %3214 = vmatprep.subr.mxu0 0.0
        %3215 = vmatpush2.msra.mxu0 0.0
        %3216 = vmatprep.subr.mxu0 0.0
        %3217 = vmatpush2.msra.mxu0 0.0
        %3218 = vmatprep.subr.mxu0 0.0
        %3219 = vmatpush2.msra.mxu0 0.0
        %3220 = vmatprep.subr.mxu0 0.0
        %3221 = vmatpush2.msra.mxu0 0.0
        %3222 = vmatprep.subr.mxu0 0.0
        %3223 = vmatpush2.msra.mxu0 0.0
        %3224 = vmatprep.subr.mxu0 0.0
        %3225 = vmatpush2.msra.mxu0 0.0
        %3226 = vmatprep.subr.mxu0 0.0
        %3227 = vmatpush2.msra.mxu0 0.0
        %3228 = vmatprep.subr.mxu0 0.0
        %3229 = vmatpush2.msra.mxu0 0.0
        %3230 = vmatprep.mubr.f32.mxu0 0.0
        %3231 = vmatmul.mubr.f32.gmra.mxu0 %v3164
        %v3232 = vpop.f32.mrf.mxu0
        %v3233 = vadd.f32 0.0, %v3232
        %v3234 = vpop.f32.mrf.mxu0
        %3235 = vdwg.mxu0
        %3236 = vrot.lane.b32.xlu0 %v748, 100
        %v3237 = vpop.permute.xlu0 %3236
        %3238 = vrot.lane.b32.xlu0 %v836, 100
        %v3239 = vpop.permute.xlu0 %3238
        %v3240 = vsel %vm932, %v3237, 0
        %v3242 = vsel %vm932, %v3239, 0
        %3244 = vmatprep.subr.mxu0 0.0
        %3245 = vmatpush1.xpose.msra.mxu0 0.0
        %3246 = vmatprep.subr.mxu0 0.0
        %3247 = vmatpush1.xpose.msra.mxu0 0.0
        %3248 = vmatprep.subr.mxu0 0.0
        %3249 = vmatpush1.xpose.msra.mxu0 0.0
        %3250 = vmatprep.subr.mxu0 0.0
        %3251 = vmatpush1.xpose.msra.mxu0 0.0
        %3252 = vmatprep.subr.mxu0 0.0
        %3253 = vmatpush1.xpose.msra.mxu0 0.0
        %3254 = vmatprep.subr.mxu0 0.0
        %3255 = vmatpush1.xpose.msra.mxu0 0.0
        %3256 = vmatprep.subr.mxu0 0.0
        %3257 = vmatpush1.xpose.msra.mxu0 0.0
        %3258 = vmatprep.subr.mxu0 0.0
        %3259 = vmatpush1.xpose.msra.mxu0 0.0
        %3260 = vmatprep.subr.mxu0 0.0
        %3261 = vmatpush1.xpose.msra.mxu0 0.0
        %3262 = vmatprep.subr.mxu0 0.0
        %3263 = vmatpush1.xpose.msra.mxu0 0.0
        %3264 = vmatprep.subr.mxu0 0.0
        %3265 = vmatpush1.xpose.msra.mxu0 0.0
        %3266 = vmatprep.subr.mxu0 0.0
        %3267 = vmatpush1.xpose.msra.mxu0 0.0
        %3268 = vmatprep.subr.mxu0 0.0
        %3269 = vmatpush1.xpose.msra.mxu0 0.0
        %3270 = vmatprep.subr.mxu0 0.0
        %3271 = vmatpush1.xpose.msra.mxu0 0.0
        %3272 = vmatprep.subr.mxu0 0.0
        %3273 = vmatpush1.xpose.msra.mxu0 0.0
        %3274 = vmatprep.subr.mxu0 0.0
        %3275 = vmatpush1.xpose.msra.mxu0 %v3242
        %3276 = vmatprep.subr.mxu0 0.0
        %3277 = vmatpush2.xpose.msra.mxu0 0.0
        %3278 = vmatprep.subr.mxu0 0.0
        %3279 = vmatpush2.xpose.msra.mxu0 0.0
        %3280 = vmatprep.subr.mxu0 0.0
        %3281 = vmatpush2.xpose.msra.mxu0 0.0
        %3282 = vmatprep.subr.mxu0 0.0
        %3283 = vmatpush2.xpose.msra.mxu0 0.0
        %3284 = vmatprep.subr.mxu0 0.0
        %3285 = vmatpush2.xpose.msra.mxu0 0.0
        %3286 = vmatprep.subr.mxu0 0.0
        %3287 = vmatpush2.xpose.msra.mxu0 0.0
        %3288 = vmatprep.subr.mxu0 0.0
        %3289 = vmatpush2.xpose.msra.mxu0 0.0
        %3290 = vmatprep.subr.mxu0 0.0
        %3291 = vmatpush2.xpose.msra.mxu0 0.0
        %3292 = vmatprep.subr.mxu0 0.0
        %3293 = vmatpush2.xpose.msra.mxu0 0.0
        %3294 = vmatprep.subr.mxu0 0.0
        %3295 = vmatpush2.xpose.msra.mxu0 0.0
        %3296 = vmatprep.subr.mxu0 0.0
        %3297 = vmatpush2.xpose.msra.mxu0 0.0
        %3298 = vmatprep.subr.mxu0 0.0
        %3299 = vmatpush2.xpose.msra.mxu0 0.0
        %3300 = vmatprep.subr.mxu0 0.0
        %3301 = vmatpush2.xpose.msra.mxu0 0.0
        %3302 = vmatprep.subr.mxu0 0.0
        %3303 = vmatpush2.xpose.msra.mxu0 0.0
        %3304 = vmatprep.subr.mxu0 0.0
        %3305 = vmatpush2.xpose.msra.mxu0 0.0
        %3306 = vmatprep.subr.mxu0 0.0
        %3307 = vmatpush2.xpose.msra.mxu0 0.0
        %3308 = vmatprep.mubr.f32.mxu0 0.0
        %3309 = vmatmul.mubr.f32.gmra.mxu0 %v3240
        %v3310 = vpop.f32.mrf.mxu0
        %v3311 = vadd.f32 0.0, %v3310
        %v3312 = vpop.f32.mrf.mxu0
        %3313 = vdwg.mxu0
        %3314 = vrot.lane.b32.xlu0 %v753, 100
        %v3315 = vpop.permute.xlu0 %3314
        %3316 = vrot.lane.b32.xlu0 %v841, 100
        %v3317 = vpop.permute.xlu0 %3316
        %v3318 = vsel %vm932, %v3315, 0
        %v3320 = vsel %vm932, %v3317, 0
        %3322 = vmatprep.subr.mxu0 0.0
        %3323 = vmatpush1.xpose.msra.mxu0 0.0
        %3324 = vmatprep.subr.mxu0 0.0
        %3325 = vmatpush1.xpose.msra.mxu0 0.0
        %3326 = vmatprep.subr.mxu0 0.0
        %3327 = vmatpush1.xpose.msra.mxu0 0.0
        %3328 = vmatprep.subr.mxu0 0.0
        %3329 = vmatpush1.xpose.msra.mxu0 0.0
        %3330 = vmatprep.subr.mxu0 0.0
        %3331 = vmatpush1.xpose.msra.mxu0 0.0
        %3332 = vmatprep.subr.mxu0 0.0
        %3333 = vmatpush1.xpose.msra.mxu0 0.0
        %3334 = vmatprep.subr.mxu0 0.0
        %3335 = vmatpush1.xpose.msra.mxu0 0.0
        %3336 = vmatprep.subr.mxu0 0.0
        %3337 = vmatpush1.xpose.msra.mxu0 0.0
        %3338 = vmatprep.subr.mxu0 0.0
        %3339 = vmatpush1.xpose.msra.mxu0 0.0
        %3340 = vmatprep.subr.mxu0 0.0
        %3341 = vmatpush1.xpose.msra.mxu0 0.0
        %3342 = vmatprep.subr.mxu0 0.0
        %3343 = vmatpush1.xpose.msra.mxu0 0.0
        %3344 = vmatprep.subr.mxu0 0.0
        %3345 = vmatpush1.xpose.msra.mxu0 0.0
        %3346 = vmatprep.subr.mxu0 0.0
        %3347 = vmatpush1.xpose.msra.mxu0 0.0
        %3348 = vmatprep.subr.mxu0 0.0
        %3349 = vmatpush1.xpose.msra.mxu0 0.0
        %3350 = vmatprep.subr.mxu0 0.0
        %3351 = vmatpush1.xpose.msra.mxu0 0.0
        %3352 = vmatprep.subr.mxu0 0.0
        %3353 = vmatpush1.xpose.msra.mxu0 %v3320
        %3354 = vmatprep.subr.mxu0 0.0
        %3355 = vmatpush2.xpose.msra.mxu0 0.0
        %3356 = vmatprep.subr.mxu0 0.0
        %3357 = vmatpush2.xpose.msra.mxu0 0.0
        %3358 = vmatprep.subr.mxu0 0.0
        %3359 = vmatpush2.xpose.msra.mxu0 0.0
        %3360 = vmatprep.subr.mxu0 0.0
        %3361 = vmatpush2.xpose.msra.mxu0 0.0
        %3362 = vmatprep.subr.mxu0 0.0
        %3363 = vmatpush2.xpose.msra.mxu0 0.0
        %3364 = vmatprep.subr.mxu0 0.0
        %3365 = vmatpush2.xpose.msra.mxu0 0.0
        %3366 = vmatprep.subr.mxu0 0.0
        %3367 = vmatpush2.xpose.msra.mxu0 0.0
        %3368 = vmatprep.subr.mxu0 0.0
        %3369 = vmatpush2.xpose.msra.mxu0 0.0
        %3370 = vmatprep.subr.mxu0 0.0
        %3371 = vmatpush2.xpose.msra.mxu0 0.0
        %3372 = vmatprep.subr.mxu0 0.0
        %3373 = vmatpush2.xpose.msra.mxu0 0.0
        %3374 = vmatprep.subr.mxu0 0.0
        %3375 = vmatpush2.xpose.msra.mxu0 0.0
        %3376 = vmatprep.subr.mxu0 0.0
        %3377 = vmatpush2.xpose.msra.mxu0 0.0
        %3378 = vmatprep.subr.mxu0 0.0
        %3379 = vmatpush2.xpose.msra.mxu0 0.0
        %3380 = vmatprep.subr.mxu0 0.0
        %3381 = vmatpush2.xpose.msra.mxu0 0.0
        %3382 = vmatprep.subr.mxu0 0.0
        %3383 = vmatpush2.xpose.msra.mxu0 0.0
        %3384 = vmatprep.subr.mxu0 0.0
        %3385 = vmatpush2.xpose.msra.mxu0 0.0
        %3386 = vmatprep.mubr.f32.mxu0 0.0
        %3387 = vmatmul.mubr.f32.gmra.mxu0 %v3318
        %v3388 = vpop.f32.mrf.mxu0
        %v3389 = vadd.f32 0.0, %v3388
        %v3390 = vpop.f32.mrf.mxu0
        %3391 = vdwg.mxu0
        %v3392 = vsel %vm1085, %v3311, -inf
        %3393 = vmax.xlane.f32.xlu0 %v3392
        %v3394 = vpop.xlane.xlu0 %3393
        %v3395 = vsel %vm1085, %v3389, -inf
        %3396 = vmax.xlane.f32.xlu0 %v3395
        %v3397 = vpop.xlane.xlu0 %3396
        %v3398 = vsub.f32 %v3311, %v3394
        %v3399 = vsub.f32 %v3389, %v3397
        %v3400 = vmul.f32 %v3398, 1.442695
        %v3401 = vpow.pop %v3400
        %v3402 = vmul.f32 %v3399, 1.442695
        %v3403 = vpow.pop %v3402
        %v3404 = vsel %vm1085, %v3401, 0.0
        %3405 = vadd.xlane.f32.xlu0 %v3404
        %v3406 = vpop.xlane.xlu0 %3405
        %v3407 = vsel %vm1085, %v3403, 0.0
        %3408 = vadd.xlane.f32.xlu0 %v3407
        %v3409 = vpop.xlane.xlu0 %3408
        %v3410 = vrcp.pop %v3406
        %v3411 = vmul.f32 %v3401, %v3410
        %v3412 = vrcp.pop %v3409
        %v3413 = vmul.f32 %v3403, %v3412
        %3414 = vrot.lane.b32.xlu0 %v924, 100
        %v3415 = vpop.permute.xlu0 %3414
        %v3418 = vsel %vm1085, %v3411, 0
        %3420 = vmatprep.subr.mxu0 0.0
        %3421 = vmatpush1.msra.mxu0 0.0
        %3422 = vmatprep.subr.mxu0 0.0
        %3423 = vmatpush1.msra.mxu0 0.0
        %3424 = vmatprep.subr.mxu0 0.0
        %3425 = vmatpush1.msra.mxu0 0.0
        %3426 = vmatprep.subr.mxu0 0.0
        %3427 = vmatpush1.msra.mxu0 0.0
        %3428 = vmatprep.subr.mxu0 0.0
        %3429 = vmatpush1.msra.mxu0 0.0
        %3430 = vmatprep.subr.mxu0 0.0
        %3431 = vmatpush1.msra.mxu0 0.0
        %3432 = vmatprep.subr.mxu0 0.0
        %3433 = vmatpush1.msra.mxu0 0.0
        %3434 = vmatprep.subr.mxu0 0.0
        %3435 = vmatpush1.msra.mxu0 0.0
        %3436 = vmatprep.subr.mxu0 0.0
        %3437 = vmatpush1.msra.mxu0 0.0
        %3438 = vmatprep.subr.mxu0 0.0
        %3439 = vmatpush1.msra.mxu0 0.0
        %3440 = vmatprep.subr.mxu0 0.0
        %3441 = vmatpush1.msra.mxu0 0.0
        %3442 = vmatprep.subr.mxu0 0.0
        %3443 = vmatpush1.msra.mxu0 0.0
        %3444 = vmatprep.subr.mxu0 0.0
        %3445 = vmatpush1.msra.mxu0 0.0
        %3446 = vmatprep.subr.mxu0 0.0
        %3447 = vmatpush1.msra.mxu0 0.0
        %3448 = vmatprep.subr.mxu0 0.0
        %3449 = vmatpush1.msra.mxu0 0.0
        %3450 = vmatprep.subr.mxu0 0.0
        %3451 = vmatpush1.msra.mxu0 %v3415
        %3452 = vmatprep.subr.mxu0 0.0
        %3453 = vmatpush2.msra.mxu0 0.0
        %3454 = vmatprep.subr.mxu0 0.0
        %3455 = vmatpush2.msra.mxu0 0.0
        %3456 = vmatprep.subr.mxu0 0.0
        %3457 = vmatpush2.msra.mxu0 0.0
        %3458 = vmatprep.subr.mxu0 0.0
        %3459 = vmatpush2.msra.mxu0 0.0
        %3460 = vmatprep.subr.mxu0 0.0
        %3461 = vmatpush2.msra.mxu0 0.0
        %3462 = vmatprep.subr.mxu0 0.0
        %3463 = vmatpush2.msra.mxu0 0.0
        %3464 = vmatprep.subr.mxu0 0.0
        %3465 = vmatpush2.msra.mxu0 0.0
        %3466 = vmatprep.subr.mxu0 0.0
        %3467 = vmatpush2.msra.mxu0 0.0
        %3468 = vmatprep.subr.mxu0 0.0
        %3469 = vmatpush2.msra.mxu0 0.0
        %3470 = vmatprep.subr.mxu0 0.0
        %3471 = vmatpush2.msra.mxu0 0.0
        %3472 = vmatprep.subr.mxu0 0.0
        %3473 = vmatpush2.msra.mxu0 0.0
        %3474 = vmatprep.subr.mxu0 0.0
        %3475 = vmatpush2.msra.mxu0 0.0
        %3476 = vmatprep.subr.mxu0 0.0
        %3477 = vmatpush2.msra.mxu0 0.0
        %3478 = vmatprep.subr.mxu0 0.0
        %3479 = vmatpush2.msra.mxu0 0.0
        %3480 = vmatprep.subr.mxu0 0.0
        %3481 = vmatpush2.msra.mxu0 0.0
        %3482 = vmatprep.subr.mxu0 0.0
        %3483 = vmatpush2.msra.mxu0 0.0
        %3484 = vmatprep.mubr.f32.mxu0 0.0
        %3485 = vmatmul.mubr.f32.gmra.mxu0 %v3418
        %v3486 = vpop.f32.mrf.mxu0
        %v3487 = vadd.f32 0.0, %v3486
        %v3488 = vpop.f32.mrf.mxu0
        %3489 = vdwg.mxu0
        %3490 = vrot.lane.b32.xlu0 %v929, 100
        %v3491 = vpop.permute.xlu0 %3490
        %v3494 = vsel %vm1085, %v3413, 0
        %3496 = vmatprep.subr.mxu0 0.0
        %3497 = vmatpush1.msra.mxu0 0.0
        %3498 = vmatprep.subr.mxu0 0.0
        %3499 = vmatpush1.msra.mxu0 0.0
        %3500 = vmatprep.subr.mxu0 0.0
        %3501 = vmatpush1.msra.mxu0 0.0
        %3502 = vmatprep.subr.mxu0 0.0
        %3503 = vmatpush1.msra.mxu0 0.0
        %3504 = vmatprep.subr.mxu0 0.0
        %3505 = vmatpush1.msra.mxu0 0.0
        %3506 = vmatprep.subr.mxu0 0.0
        %3507 = vmatpush1.msra.mxu0 0.0
        %3508 = vmatprep.subr.mxu0 0.0
        %3509 = vmatpush1.msra.mxu0 0.0
        %3510 = vmatprep.subr.mxu0 0.0
        %3511 = vmatpush1.msra.mxu0 0.0
        %3512 = vmatprep.subr.mxu0 0.0
        %3513 = vmatpush1.msra.mxu0 0.0
        %3514 = vmatprep.subr.mxu0 0.0
        %3515 = vmatpush1.msra.mxu0 0.0
        %3516 = vmatprep.subr.mxu0 0.0
        %3517 = vmatpush1.msra.mxu0 0.0
        %3518 = vmatprep.subr.mxu0 0.0
        %3519 = vmatpush1.msra.mxu0 0.0
        %3520 = vmatprep.subr.mxu0 0.0
        %3521 = vmatpush1.msra.mxu0 0.0
        %3522 = vmatprep.subr.mxu0 0.0
        %3523 = vmatpush1.msra.mxu0 0.0
        %3524 = vmatprep.subr.mxu0 0.0
        %3525 = vmatpush1.msra.mxu0 0.0
        %3526 = vmatprep.subr.mxu0 0.0
        %3527 = vmatpush1.msra.mxu0 %v3491
        %3528 = vmatprep.subr.mxu0 0.0
        %3529 = vmatpush2.msra.mxu0 0.0
        %3530 = vmatprep.subr.mxu0 0.0
        %3531 = vmatpush2.msra.mxu0 0.0
        %3532 = vmatprep.subr.mxu0 0.0
        %3533 = vmatpush2.msra.mxu0 0.0
        %3534 = vmatprep.subr.mxu0 0.0
        %3535 = vmatpush2.msra.mxu0 0.0
        %3536 = vmatprep.subr.mxu0 0.0
        %3537 = vmatpush2.msra.mxu0 0.0
        %3538 = vmatprep.subr.mxu0 0.0
        %3539 = vmatpush2.msra.mxu0 0.0
        %3540 = vmatprep.subr.mxu0 0.0
        %3541 = vmatpush2.msra.mxu0 0.0
        %3542 = vmatprep.subr.mxu0 0.0
        %3543 = vmatpush2.msra.mxu0 0.0
        %3544 = vmatprep.subr.mxu0 0.0
        %3545 = vmatpush2.msra.mxu0 0.0
        %3546 = vmatprep.subr.mxu0 0.0
        %3547 = vmatpush2.msra.mxu0 0.0
        %3548 = vmatprep.subr.mxu0 0.0
        %3549 = vmatpush2.msra.mxu0 0.0
        %3550 = vmatprep.subr.mxu0 0.0
        %3551 = vmatpush2.msra.mxu0 0.0
        %3552 = vmatprep.subr.mxu0 0.0
        %3553 = vmatpush2.msra.mxu0 0.0
        %3554 = vmatprep.subr.mxu0 0.0
        %3555 = vmatpush2.msra.mxu0 0.0
        %3556 = vmatprep.subr.mxu0 0.0
        %3557 = vmatpush2.msra.mxu0 0.0
        %3558 = vmatprep.subr.mxu0 0.0
        %3559 = vmatpush2.msra.mxu0 0.0
        %3560 = vmatprep.mubr.f32.mxu0 0.0
        %3561 = vmatmul.mubr.f32.gmra.mxu0 %v3494
        %v3562 = vpop.f32.mrf.mxu0
        %v3563 = vadd.f32 0.0, %v3562
        %v3564 = vpop.f32.mrf.mxu0
        %3565 = vdwg.mxu0
        %3568 = vrot.lane.b32.xlu0 %v1506, 4
        %v3569 = vpop.permute.xlu0 %3568
        %3570 = vrot.lane.b32.xlu0 %v1583, 4
        %v3571 = vpop.permute.xlu0 %3570
        %3576 = vrot.lane.b32.xlu0 %v1837, 8
        %v3577 = vpop.permute.xlu0 %3576
        %3578 = vrot.lane.b32.xlu0 %v1913, 8
        %v3579 = vpop.permute.xlu0 %3578
        %3584 = vrot.lane.b32.xlu0 %v2167, 12
        %v3585 = vpop.permute.xlu0 %3584
        %3586 = vrot.lane.b32.xlu0 %v2243, 12
        %v3587 = vpop.permute.xlu0 %3586
        %3592 = vrot.lane.b32.xlu0 %v2497, 16
        %v3593 = vpop.permute.xlu0 %3592
        %3594 = vrot.lane.b32.xlu0 %v2573, 16
        %v3595 = vpop.permute.xlu0 %3594
        %3600 = vrot.lane.b32.xlu0 %v2827, 20
        %v3601 = vpop.permute.xlu0 %3600
        %3602 = vrot.lane.b32.xlu0 %v2903, 20
        %v3603 = vpop.permute.xlu0 %3602
        %3608 = vrot.lane.b32.xlu0 %v3157, 24
        %v3609 = vpop.permute.xlu0 %3608
        %3610 = vrot.lane.b32.xlu0 %v3233, 24
        %v3611 = vpop.permute.xlu0 %3610
        %3616 = vrot.lane.b32.xlu0 %v3487, 28
        %v3617 = vpop.permute.xlu0 %3616
        %3618 = vrot.lane.b32.xlu0 %v3563, 28
        %v3619 = vpop.permute.xlu0 %3618
        %v3622 = vsel %vm932, %v1178, %v3569
        %v3623 = vsel %vm932, %v1251, %v3571
        %v3624 = vsel %vm1085, %v3622, %v3577
        %v3625 = vsel %vm1085, %v3623, %v3579
        %vm3626 = vcmask 97280
        %v3627 = vsel %vm3626, %v3624, %v3585
        %v3628 = vsel %vm3626, %v3625, %v3587
        %vm3629 = vcmask 130048
        %v3630 = vsel %vm3629, %v3627, %v3593
        %v3631 = vsel %vm3629, %v3628, %v3595
        %vm3632 = vcmask 162816
        %v3633 = vsel %vm3632, %v3630, %v3601
        %v3634 = vsel %vm3632, %v3631, %v3603
        %vm3635 = vcmask 195584
        %v3636 = vsel %vm3635, %v3633, %v3609
        %v3637 = vsel %vm3635, %v3634, %v3611
        %vm3638 = vcmask 228352
        %v3639 = vsel %vm3638, %v3636, %v3617
        %v3640 = vsel %vm3638, %v3637, %v3619
        %s3641 = scalar_lea.vmem %s610, 96
        %v3642 = vld [vmem:[%s3641] sm:$0xff]
        %v3643 = vld [vmem:[%s3641 + $0x8] sm:$0xff]
        %v3644 = vld [vmem:[%s3641 + $0x10] sm:$0xff]
        %v3645 = vld [vmem:[%s3641 + $0x18] sm:$0xff]
        %s3646 = scalar_lea.vmem %s614, 3
        %v3647 = vld [vmem:[%s3646] sm:$0x1]
        %v3649 = vlaneseq
        %v3650 = vshrl.u32 %v3649, 7
        %v3651 = vsub.s32 0, %v3650
        %v3652 = vrot.slane %v3647, %v3651
        %v3655 = vsel %vm674, %v3639, 0
        %v3658 = vsel %vm674, %v3640, 0
        %3660 = vmatprep.subr.mxu0 0.0
        %3661 = vmatpush1.msra.mxu0 0.0
        %3662 = vmatprep.subr.mxu0 0.0
        %3663 = vmatpush1.msra.mxu0 0.0
        %3664 = vmatprep.subr.mxu0 0.0
        %3665 = vmatpush1.msra.mxu0 0.0
        %3666 = vmatprep.subr.mxu0 0.0
        %3667 = vmatpush1.msra.mxu0 0.0
        %3668 = vmatprep.subr.mxu0 0.0
        %3669 = vmatpush1.msra.mxu0 0.0
        %3670 = vmatprep.subr.mxu0 0.0
        %3671 = vmatpush1.msra.mxu0 0.0
        %3672 = vmatprep.subr.mxu0 0.0
        %3673 = vmatpush1.msra.mxu0 0.0
        %3674 = vmatprep.subr.mxu0 0.0
        %3675 = vmatpush1.msra.mxu0 0.0
        %3676 = vmatprep.subr.mxu0 0.0
        %3677 = vmatpush1.msra.mxu0 0.0
        %3678 = vmatprep.subr.mxu0 0.0
        %3679 = vmatpush1.msra.mxu0 0.0
        %3680 = vmatprep.subr.mxu0 0.0
        %3681 = vmatpush1.msra.mxu0 0.0
        %3682 = vmatprep.subr.mxu0 0.0
        %3683 = vmatpush1.msra.mxu0 0.0
        %3684 = vmatprep.subr.mxu0 0.0
        %3685 = vmatpush1.msra.mxu0 %v3645
        %3686 = vmatprep.subr.mxu0 0.0
        %3687 = vmatpush1.msra.mxu0 %v3644
        %3688 = vmatprep.subr.mxu0 0.0
        %3689 = vmatpush1.msra.mxu0 %v3643
        %3690 = vmatprep.subr.mxu0 0.0
        %3691 = vmatpush1.msra.mxu0 %v3642
        %3692 = vmatprep.subr.mxu0 0.0
        %3693 = vmatpush2.msra.mxu0 0.0
        %3694 = vmatprep.subr.mxu0 0.0
        %3695 = vmatpush2.msra.mxu0 0.0
        %3696 = vmatprep.subr.mxu0 0.0
        %3697 = vmatpush2.msra.mxu0 0.0
        %3698 = vmatprep.subr.mxu0 0.0
        %3699 = vmatpush2.msra.mxu0 0.0
        %3700 = vmatprep.subr.mxu0 0.0
        %3701 = vmatpush2.msra.mxu0 0.0
        %3702 = vmatprep.subr.mxu0 0.0
        %3703 = vmatpush2.msra.mxu0 0.0
        %3704 = vmatprep.subr.mxu0 0.0
        %3705 = vmatpush2.msra.mxu0 0.0
        %3706 = vmatprep.subr.mxu0 0.0
        %3707 = vmatpush2.msra.mxu0 0.0
        %3708 = vmatprep.subr.mxu0 0.0
        %3709 = vmatpush2.msra.mxu0 0.0
        %3710 = vmatprep.subr.mxu0 0.0
        %3711 = vmatpush2.msra.mxu0 0.0
        %3712 = vmatprep.subr.mxu0 0.0
        %3713 = vmatpush2.msra.mxu0 0.0
        %3714 = vmatprep.subr.mxu0 0.0
        %3715 = vmatpush2.msra.mxu0 0.0
        %3716 = vmatprep.subr.mxu0 0.0
        %3717 = vmatpush2.msra.mxu0 0.0
        %3718 = vmatprep.subr.mxu0 0.0
        %3719 = vmatpush2.msra.mxu0 0.0
        %3720 = vmatprep.subr.mxu0 0.0
        %3721 = vmatpush2.msra.mxu0 0.0
        %3722 = vmatprep.subr.mxu0 0.0
        %3723 = vmatpush2.msra.mxu0 0.0
        %3724 = vmatprep.mubr.f32.mxu0 0.0
        %3725 = vmatmul.mubr.f32.gmra.mxu0 %v3655
        %v3726 = vpop.f32.mrf.mxu0
        %v3727 = vadd.f32 %v3652, %v3726
        %v3728 = vpop.f32.mrf.mxu0
        %3729 = vmatprep.mubr.f32.mxu0 0.0
        %3730 = vmatmul.mubr.f32.gmra.mxu0 %v3658
        %v3731 = vpop.f32.mrf.mxu0
        %v3732 = vadd.f32 %v3652, %v3731
        %v3733 = vpop.f32.mrf.mxu0
        %3734 = vdwg.mxu0
        %v3735 = vadd.f32 %v659, %v3727
        %v3736 = vadd.f32 %v660, %v3732
        %v3737 = vsel %vm674, %v3735, 0.0
        %3738 = vadd.xlane.f32.xlu0 %v3737
        %v3739 = vpop.xlane.xlu0 %3738
        %v3740 = vsel %vm674, %v3736, 0.0
        %3741 = vadd.xlane.f32.xlu0 %v3740
        %v3742 = vpop.xlane.xlu0 %3741
        %v3743 = vrcp.pop 32.0
        %v3744 = vmul.f32 %v3739, %v3743
        %v3745 = vmul.f32 %v3742, %v3743
        %v3746 = vsub.f32 %v3735, %v3744
        %v3747 = vsub.f32 %v3736, %v3745
        %v3748 = vmul.f32 %v3746, %v3746
        %v3749 = vmul.f32 %v3747, %v3747
        %v3750 = vsel %vm674, %v3748, 0.0
        %3751 = vadd.xlane.f32.xlu0 %v3750
        %v3752 = vpop.xlane.xlu0 %3751
        %v3753 = vsel %vm674, %v3749, 0.0
        %3754 = vadd.xlane.f32.xlu0 %v3753
        %v3755 = vpop.xlane.xlu0 %3754
        %v3756 = vmul.f32 %v3752, %v3743
        %v3757 = vmul.f32 %v3755, %v3743
        %v3758 = vadd.f32 %v3756, 1e-05
        %v3759 = vadd.f32 %v3757, 1e-05
        %v3760 = vrsqrt.pop %v3758
        %v3761 = vrsqrt.pop %v3759
        %v3762 = vmul.f32 %v3746, %v3760
        %v3763 = vmul.f32 %v3747, %v3761
        %v3764 = vld [vmem:[%s626] sm:$0x1]
        %v3766 = vlaneseq
        %v3767 = vshrl.u32 %v3766, 7
        %v3768 = vsub.s32 0, %v3767
        %v3769 = vrot.slane %v3764, %v3768
        %v3771 = vmul.f32 %v3762, %v3769
        %v3772 = vmul.f32 %v3763, %v3769
        %v3773 = vld [vmem:[%s630] sm:$0x1]
        %v3775 = vlaneseq
        %v3776 = vshrl.u32 %v3775, 7
        %v3777 = vsub.s32 0, %v3776
        %v3778 = vrot.slane %v3773, %v3777
        %v3780 = vadd.f32 %v3771, %v3778
        %v3781 = vadd.f32 %v3772, %v3778
        %s3782 = scalar_lea.vmem %s610, 128
        %v3783 = vld [vmem:[%s3782] sm:$0xff]
        %v3784 = vld [vmem:[%s3782 + $0x8] sm:$0xff]
        %v3785 = vld [vmem:[%s3782 + $0x10] sm:$0xff]
        %v3786 = vld [vmem:[%s3782 + $0x18] sm:$0xff]
        %s3787 = scalar_lea.vmem %s614, 4
        %v3788 = vld [vmem:[%s3787] sm:$0x1]
        %v3790 = vlaneseq
        %v3791 = vshrl.u32 %v3790, 7
        %v3792 = vsub.s32 0, %v3791
        %v3793 = vrot.slane %v3788, %v3792
        %v3796 = vsel %vm674, %v3780, 0
        %v3799 = vsel %vm674, %v3781, 0
        %3801 = vmatprep.subr.mxu0 0.0
        %3802 = vmatpush1.msra.mxu0 0.0
        %3803 = vmatprep.subr.mxu0 0.0
        %3804 = vmatpush1.msra.mxu0 0.0
        %3805 = vmatprep.subr.mxu0 0.0
        %3806 = vmatpush1.msra.mxu0 0.0
        %3807 = vmatprep.subr.mxu0 0.0
        %3808 = vmatpush1.msra.mxu0 0.0
        %3809 = vmatprep.subr.mxu0 0.0
        %3810 = vmatpush1.msra.mxu0 0.0
        %3811 = vmatprep.subr.mxu0 0.0
        %3812 = vmatpush1.msra.mxu0 0.0
        %3813 = vmatprep.subr.mxu0 0.0
        %3814 = vmatpush1.msra.mxu0 0.0
        %3815 = vmatprep.subr.mxu0 0.0
        %3816 = vmatpush1.msra.mxu0 0.0
        %3817 = vmatprep.subr.mxu0 0.0
        %3818 = vmatpush1.msra.mxu0 0.0
        %3819 = vmatprep.subr.mxu0 0.0
        %3820 = vmatpush1.msra.mxu0 0.0
        %3821 = vmatprep.subr.mxu0 0.0
        %3822 = vmatpush1.msra.mxu0 0.0
        %3823 = vmatprep.subr.mxu0 0.0
        %3824 = vmatpush1.msra.mxu0 0.0
        %3825 = vmatprep.subr.mxu0 0.0
        %3826 = vmatpush1.msra.mxu0 %v3786
        %3827 = vmatprep.subr.mxu0 0.0
        %3828 = vmatpush1.msra.mxu0 %v3785
        %3829 = vmatprep.subr.mxu0 0.0
        %3830 = vmatpush1.msra.mxu0 %v3784
        %3831 = vmatprep.subr.mxu0 0.0
        %3832 = vmatpush1.msra.mxu0 %v3783
        %3833 = vmatprep.subr.mxu0 0.0
        %3834 = vmatpush2.msra.mxu0 0.0
        %3835 = vmatprep.subr.mxu0 0.0
        %3836 = vmatpush2.msra.mxu0 0.0
        %3837 = vmatprep.subr.mxu0 0.0
        %3838 = vmatpush2.msra.mxu0 0.0
        %3839 = vmatprep.subr.mxu0 0.0
        %3840 = vmatpush2.msra.mxu0 0.0
        %3841 = vmatprep.subr.mxu0 0.0
        %3842 = vmatpush2.msra.mxu0 0.0
        %3843 = vmatprep.subr.mxu0 0.0
        %3844 = vmatpush2.msra.mxu0 0.0
        %3845 = vmatprep.subr.mxu0 0.0
        %3846 = vmatpush2.msra.mxu0 0.0
        %3847 = vmatprep.subr.mxu0 0.0
        %3848 = vmatpush2.msra.mxu0 0.0
        %3849 = vmatprep.subr.mxu0 0.0
        %3850 = vmatpush2.msra.mxu0 0.0
        %3851 = vmatprep.subr.mxu0 0.0
        %3852 = vmatpush2.msra.mxu0 0.0
        %3853 = vmatprep.subr.mxu0 0.0
        %3854 = vmatpush2.msra.mxu0 0.0
        %3855 = vmatprep.subr.mxu0 0.0
        %3856 = vmatpush2.msra.mxu0 0.0
        %3857 = vmatprep.subr.mxu0 0.0
        %3858 = vmatpush2.msra.mxu0 0.0
        %3859 = vmatprep.subr.mxu0 0.0
        %3860 = vmatpush2.msra.mxu0 0.0
        %3861 = vmatprep.subr.mxu0 0.0
        %3862 = vmatpush2.msra.mxu0 0.0
        %3863 = vmatprep.subr.mxu0 0.0
        %3864 = vmatpush2.msra.mxu0 0.0
        %3865 = vmatprep.mubr.f32.mxu0 0.0
        %3866 = vmatmul.mubr.f32.gmra.mxu0 %v3796
        %v3867 = vpop.f32.mrf.mxu0
        %v3868 = vadd.f32 %v3793, %v3867
        %v3869 = vpop.f32.mrf.mxu0
        %3870 = vmatprep.mubr.f32.mxu0 0.0
        %3871 = vmatmul.mubr.f32.gmra.mxu0 %v3799
        %v3872 = vpop.f32.mrf.mxu0
        %v3873 = vadd.f32 %v3793, %v3872
        %v3874 = vpop.f32.mrf.mxu0
        %3875 = vdwg.mxu0
        %s3876 = scalar_lea.vmem %s610, 160
        %v3877 = vld [vmem:[%s3876] sm:$0xff]
        %v3878 = vld [vmem:[%s3876 + $0x8] sm:$0xff]
        %v3879 = vld [vmem:[%s3876 + $0x10] sm:$0xff]
        %v3880 = vld [vmem:[%s3876 + $0x18] sm:$0xff]
        %s3881 = scalar_lea.vmem %s614, 5
        %v3882 = vld [vmem:[%s3881] sm:$0x1]
        %v3884 = vlaneseq
        %v3885 = vshrl.u32 %v3884, 7
        %v3886 = vsub.s32 0, %v3885
        %v3887 = vrot.slane %v3882, %v3886
        %v3890 = vsel %vm674, %v661, 0
        %v3893 = vsel %vm674, %v662, 0
        %3895 = vmatprep.subr.mxu0 0.0
        %3896 = vmatpush1.msra.mxu0 0.0
        %3897 = vmatprep.subr.mxu0 0.0
        %3898 = vmatpush1.msra.mxu0 0.0
        %3899 = vmatprep.subr.mxu0 0.0
        %3900 = vmatpush1.msra.mxu0 0.0
        %3901 = vmatprep.subr.mxu0 0.0
        %3902 = vmatpush1.msra.mxu0 0.0
        %3903 = vmatprep.subr.mxu0 0.0
        %3904 = vmatpush1.msra.mxu0 0.0
        %3905 = vmatprep.subr.mxu0 0.0
        %3906 = vmatpush1.msra.mxu0 0.0
        %3907 = vmatprep.subr.mxu0 0.0
        %3908 = vmatpush1.msra.mxu0 0.0
        %3909 = vmatprep.subr.mxu0 0.0
        %3910 = vmatpush1.msra.mxu0 0.0
        %3911 = vmatprep.subr.mxu0 0.0
        %3912 = vmatpush1.msra.mxu0 0.0
        %3913 = vmatprep.subr.mxu0 0.0
        %3914 = vmatpush1.msra.mxu0 0.0
        %3915 = vmatprep.subr.mxu0 0.0
        %3916 = vmatpush1.msra.mxu0 0.0
        %3917 = vmatprep.subr.mxu0 0.0
        %3918 = vmatpush1.msra.mxu0 0.0
        %3919 = vmatprep.subr.mxu0 0.0
        %3920 = vmatpush1.msra.mxu0 %v3880
        %3921 = vmatprep.subr.mxu0 0.0
        %3922 = vmatpush1.msra.mxu0 %v3879
        %3923 = vmatprep.subr.mxu0 0.0
        %3924 = vmatpush1.msra.mxu0 %v3878
        %3925 = vmatprep.subr.mxu0 0.0
        %3926 = vmatpush1.msra.mxu0 %v3877
        %3927 = vmatprep.subr.mxu0 0.0
        %3928 = vmatpush2.msra.mxu0 0.0
        %3929 = vmatprep.subr.mxu0 0.0
        %3930 = vmatpush2.msra.mxu0 0.0
        %3931 = vmatprep.subr.mxu0 0.0
        %3932 = vmatpush2.msra.mxu0 0.0
        %3933 = vmatprep.subr.mxu0 0.0
        %3934 = vmatpush2.msra.mxu0 0.0
        %3935 = vmatprep.subr.mxu0 0.0
        %3936 = vmatpush2.msra.mxu0 0.0
        %3937 = vmatprep.subr.mxu0 0.0
        %3938 = vmatpush2.msra.mxu0 0.0
        %3939 = vmatprep.subr.mxu0 0.0
        %3940 = vmatpush2.msra.mxu0 0.0
        %3941 = vmatprep.subr.mxu0 0.0
        %3942 = vmatpush2.msra.mxu0 0.0
        %3943 = vmatprep.subr.mxu0 0.0
        %3944 = vmatpush2.msra.mxu0 0.0
        %3945 = vmatprep.subr.mxu0 0.0
        %3946 = vmatpush2.msra.mxu0 0.0
        %3947 = vmatprep.subr.mxu0 0.0
        %3948 = vmatpush2.msra.mxu0 0.0
        %3949 = vmatprep.subr.mxu0 0.0
        %3950 = vmatpush2.msra.mxu0 0.0
        %3951 = vmatprep.subr.mxu0 0.0
        %3952 = vmatpush2.msra.mxu0 0.0
        %3953 = vmatprep.subr.mxu0 0.0
        %3954 = vmatpush2.msra.mxu0 0.0
        %3955 = vmatprep.subr.mxu0 0.0
        %3956 = vmatpush2.msra.mxu0 0.0
        %3957 = vmatprep.subr.mxu0 0.0
        %3958 = vmatpush2.msra.mxu0 0.0
        %3959 = vmatprep.mubr.f32.mxu0 0.0
        %3960 = vmatmul.mubr.f32.gmra.mxu0 %v3890
        %v3961 = vpop.f32.mrf.mxu0
        %v3962 = vadd.f32 %v3887, %v3961
        %v3963 = vpop.f32.mrf.mxu0
        %3964 = vmatprep.mubr.f32.mxu0 0.0
        %3965 = vmatmul.mubr.f32.gmra.mxu0 %v3893
        %v3966 = vpop.f32.mrf.mxu0
        %v3967 = vadd.f32 %v3887, %v3966
        %v3968 = vpop.f32.mrf.mxu0
        %3969 = vdwg.mxu0
        %s3970 = scalar_lea.vmem %s610, 192
        %v3971 = vld [vmem:[%s3970] sm:$0xff]
        %v3972 = vld [vmem:[%s3970 + $0x8] sm:$0xff]
        %v3973 = vld [vmem:[%s3970 + $0x10] sm:$0xff]
        %v3974 = vld [vmem:[%s3970 + $0x18] sm:$0xff]
        %s3975 = scalar_lea.vmem %s614, 6
        %v3976 = vld [vmem:[%s3975] sm:$0x1]
        %v3978 = vlaneseq
        %v3979 = vshrl.u32 %v3978, 7
        %v3980 = vsub.s32 0, %v3979
        %v3981 = vrot.slane %v3976, %v3980
        %3983 = vmatprep.subr.mxu0 0.0
        %3984 = vmatpush1.msra.mxu0 0.0
        %3985 = vmatprep.subr.mxu0 0.0
        %3986 = vmatpush1.msra.mxu0 0.0
        %3987 = vmatprep.subr.mxu0 0.0
        %3988 = vmatpush1.msra.mxu0 0.0
        %3989 = vmatprep.subr.mxu0 0.0
        %3990 = vmatpush1.msra.mxu0 0.0
        %3991 = vmatprep.subr.mxu0 0.0
        %3992 = vmatpush1.msra.mxu0 0.0
        %3993 = vmatprep.subr.mxu0 0.0
        %3994 = vmatpush1.msra.mxu0 0.0
        %3995 = vmatprep.subr.mxu0 0.0
        %3996 = vmatpush1.msra.mxu0 0.0
        %3997 = vmatprep.subr.mxu0 0.0
        %3998 = vmatpush1.msra.mxu0 0.0
        %3999 = vmatprep.subr.mxu0 0.0
        %4000 = vmatpush1.msra.mxu0 0.0
        %4001 = vmatprep.subr.mxu0 0.0
        %4002 = vmatpush1.msra.mxu0 0.0
        %4003 = vmatprep.subr.mxu0 0.0
        %4004 = vmatpush1.msra.mxu0 0.0
        %4005 = vmatprep.subr.mxu0 0.0
        %4006 = vmatpush1.msra.mxu0 0.0
        %4007 = vmatprep.subr.mxu0 0.0
        %4008 = vmatpush1.msra.mxu0 %v3974
        %4009 = vmatprep.subr.mxu0 0.0
        %4010 = vmatpush1.msra.mxu0 %v3973
        %4011 = vmatprep.subr.mxu0 0.0
        %4012 = vmatpush1.msra.mxu0 %v3972
        %4013 = vmatprep.subr.mxu0 0.0
        %4014 = vmatpush1.msra.mxu0 %v3971
        %4015 = vmatprep.subr.mxu0 0.0
        %4016 = vmatpush2.msra.mxu0 0.0
        %4017 = vmatprep.subr.mxu0 0.0
        %4018 = vmatpush2.msra.mxu0 0.0
        %4019 = vmatprep.subr.mxu0 0.0
        %4020 = vmatpush2.msra.mxu0 0.0
        %4021 = vmatprep.subr.mxu0 0.0
        %4022 = vmatpush2.msra.mxu0 0.0
        %4023 = vmatprep.subr.mxu0 0.0
        %4024 = vmatpush2.msra.mxu0 0.0
        %4025 = vmatprep.subr.mxu0 0.0
        %4026 = vmatpush2.msra.mxu0 0.0
        %4027 = vmatprep.subr.mxu0 0.0
        %4028 = vmatpush2.msra.mxu0 0.0
        %4029 = vmatprep.subr.mxu0 0.0
        %4030 = vmatpush2.msra.mxu0 0.0
        %4031 = vmatprep.subr.mxu0 0.0
        %4032 = vmatpush2.msra.mxu0 0.0
        %4033 = vmatprep.subr.mxu0 0.0
        %4034 = vmatpush2.msra.mxu0 0.0
        %4035 = vmatprep.subr.mxu0 0.0
        %4036 = vmatpush2.msra.mxu0 0.0
        %4037 = vmatprep.subr.mxu0 0.0
        %4038 = vmatpush2.msra.mxu0 0.0
        %4039 = vmatprep.subr.mxu0 0.0
        %4040 = vmatpush2.msra.mxu0 0.0
        %4041 = vmatprep.subr.mxu0 0.0
        %4042 = vmatpush2.msra.mxu0 0.0
        %4043 = vmatprep.subr.mxu0 0.0
        %4044 = vmatpush2.msra.mxu0 0.0
        %4045 = vmatprep.subr.mxu0 0.0
        %4046 = vmatpush2.msra.mxu0 0.0
        %4047 = vmatprep.mubr.f32.mxu0 0.0
        %4048 = vmatmul.mubr.f32.gmra.mxu0 %v3890
        %v4049 = vpop.f32.mrf.mxu0
        %v4050 = vadd.f32 %v3981, %v4049
        %v4051 = vpop.f32.mrf.mxu0
        %4052 = vmatprep.mubr.f32.mxu0 0.0
        %4053 = vmatmul.mubr.f32.gmra.mxu0 %v3893
        %v4054 = vpop.f32.mrf.mxu0
        %v4055 = vadd.f32 %v3981, %v4054
        %v4056 = vpop.f32.mrf.mxu0
        %4057 = vdwg.mxu0
        %v4059 = vsel %vm932, %v3868, 0
        %v4062 = vsel %vm932, %v3962, 0
        %4064 = vmatprep.subr.mxu0 0.0
        %4065 = vmatpush1.xpose.msra.mxu0 0.0
        %4066 = vmatprep.subr.mxu0 0.0
        %4067 = vmatpush1.xpose.msra.mxu0 0.0
        %4068 = vmatprep.subr.mxu0 0.0
        %4069 = vmatpush1.xpose.msra.mxu0 0.0
        %4070 = vmatprep.subr.mxu0 0.0
        %4071 = vmatpush1.xpose.msra.mxu0 0.0
        %4072 = vmatprep.subr.mxu0 0.0
        %4073 = vmatpush1.xpose.msra.mxu0 0.0
        %4074 = vmatprep.subr.mxu0 0.0
        %4075 = vmatpush1.xpose.msra.mxu0 0.0
        %4076 = vmatprep.subr.mxu0 0.0
        %4077 = vmatpush1.xpose.msra.mxu0 0.0
        %4078 = vmatprep.subr.mxu0 0.0
        %4079 = vmatpush1.xpose.msra.mxu0 0.0
        %4080 = vmatprep.subr.mxu0 0.0
        %4081 = vmatpush1.xpose.msra.mxu0 0.0
        %4082 = vmatprep.subr.mxu0 0.0
        %4083 = vmatpush1.xpose.msra.mxu0 0.0
        %4084 = vmatprep.subr.mxu0 0.0
        %4085 = vmatpush1.xpose.msra.mxu0 0.0
        %4086 = vmatprep.subr.mxu0 0.0
        %4087 = vmatpush1.xpose.msra.mxu0 0.0
        %4088 = vmatprep.subr.mxu0 0.0
        %4089 = vmatpush1.xpose.msra.mxu0 0.0
        %4090 = vmatprep.subr.mxu0 0.0
        %4091 = vmatpush1.xpose.msra.mxu0 0.0
        %4092 = vmatprep.subr.mxu0 0.0
        %4093 = vmatpush1.xpose.msra.mxu0 0.0
        %4094 = vmatprep.subr.mxu0 0.0
        %4095 = vmatpush1.xpose.msra.mxu0 %v4062
        %4096 = vmatprep.subr.mxu0 0.0
        %4097 = vmatpush2.xpose.msra.mxu0 0.0
        %4098 = vmatprep.subr.mxu0 0.0
        %4099 = vmatpush2.xpose.msra.mxu0 0.0
        %4100 = vmatprep.subr.mxu0 0.0
        %4101 = vmatpush2.xpose.msra.mxu0 0.0
        %4102 = vmatprep.subr.mxu0 0.0
        %4103 = vmatpush2.xpose.msra.mxu0 0.0
        %4104 = vmatprep.subr.mxu0 0.0
        %4105 = vmatpush2.xpose.msra.mxu0 0.0
        %4106 = vmatprep.subr.mxu0 0.0
        %4107 = vmatpush2.xpose.msra.mxu0 0.0
        %4108 = vmatprep.subr.mxu0 0.0
        %4109 = vmatpush2.xpose.msra.mxu0 0.0
        %4110 = vmatprep.subr.mxu0 0.0
        %4111 = vmatpush2.xpose.msra.mxu0 0.0
        %4112 = vmatprep.subr.mxu0 0.0
        %4113 = vmatpush2.xpose.msra.mxu0 0.0
        %4114 = vmatprep.subr.mxu0 0.0
        %4115 = vmatpush2.xpose.msra.mxu0 0.0
        %4116 = vmatprep.subr.mxu0 0.0
        %4117 = vmatpush2.xpose.msra.mxu0 0.0
        %4118 = vmatprep.subr.mxu0 0.0
        %4119 = vmatpush2.xpose.msra.mxu0 0.0
        %4120 = vmatprep.subr.mxu0 0.0
        %4121 = vmatpush2.xpose.msra.mxu0 0.0
        %4122 = vmatprep.subr.mxu0 0.0
        %4123 = vmatpush2.xpose.msra.mxu0 0.0
        %4124 = vmatprep.subr.mxu0 0.0
        %4125 = vmatpush2.xpose.msra.mxu0 0.0
        %4126 = vmatprep.subr.mxu0 0.0
        %4127 = vmatpush2.xpose.msra.mxu0 0.0
        %4128 = vmatprep.mubr.f32.mxu0 0.0
        %4129 = vmatmul.mubr.f32.gmra.mxu0 %v4059
        %v4130 = vpop.f32.mrf.mxu0
        %v4131 = vadd.f32 0.0, %v4130
        %v4132 = vpop.f32.mrf.mxu0
        %4133 = vdwg.mxu0
        %v4135 = vsel %vm932, %v3873, 0
        %v4138 = vsel %vm932, %v3967, 0
        %4140 = vmatprep.subr.mxu0 0.0
        %4141 = vmatpush1.xpose.msra.mxu0 0.0
        %4142 = vmatprep.subr.mxu0 0.0
        %4143 = vmatpush1.xpose.msra.mxu0 0.0
        %4144 = vmatprep.subr.mxu0 0.0
        %4145 = vmatpush1.xpose.msra.mxu0 0.0
        %4146 = vmatprep.subr.mxu0 0.0
        %4147 = vmatpush1.xpose.msra.mxu0 0.0
        %4148 = vmatprep.subr.mxu0 0.0
        %4149 = vmatpush1.xpose.msra.mxu0 0.0
        %4150 = vmatprep.subr.mxu0 0.0
        %4151 = vmatpush1.xpose.msra.mxu0 0.0
        %4152 = vmatprep.subr.mxu0 0.0
        %4153 = vmatpush1.xpose.msra.mxu0 0.0
        %4154 = vmatprep.subr.mxu0 0.0
        %4155 = vmatpush1.xpose.msra.mxu0 0.0
        %4156 = vmatprep.subr.mxu0 0.0
        %4157 = vmatpush1.xpose.msra.mxu0 0.0
        %4158 = vmatprep.subr.mxu0 0.0
        %4159 = vmatpush1.xpose.msra.mxu0 0.0
        %4160 = vmatprep.subr.mxu0 0.0
        %4161 = vmatpush1.xpose.msra.mxu0 0.0
        %4162 = vmatprep.subr.mxu0 0.0
        %4163 = vmatpush1.xpose.msra.mxu0 0.0
        %4164 = vmatprep.subr.mxu0 0.0
        %4165 = vmatpush1.xpose.msra.mxu0 0.0
        %4166 = vmatprep.subr.mxu0 0.0
        %4167 = vmatpush1.xpose.msra.mxu0 0.0
        %4168 = vmatprep.subr.mxu0 0.0
        %4169 = vmatpush1.xpose.msra.mxu0 0.0
        %4170 = vmatprep.subr.mxu0 0.0
        %4171 = vmatpush1.xpose.msra.mxu0 %v4138
        %4172 = vmatprep.subr.mxu0 0.0
        %4173 = vmatpush2.xpose.msra.mxu0 0.0
        %4174 = vmatprep.subr.mxu0 0.0
        %4175 = vmatpush2.xpose.msra.mxu0 0.0
        %4176 = vmatprep.subr.mxu0 0.0
        %4177 = vmatpush2.xpose.msra.mxu0 0.0
        %4178 = vmatprep.subr.mxu0 0.0
        %4179 = vmatpush2.xpose.msra.mxu0 0.0
        %4180 = vmatprep.subr.mxu0 0.0
        %4181 = vmatpush2.xpose.msra.mxu0 0.0
        %4182 = vmatprep.subr.mxu0 0.0
        %4183 = vmatpush2.xpose.msra.mxu0 0.0
        %4184 = vmatprep.subr.mxu0 0.0
        %4185 = vmatpush2.xpose.msra.mxu0 0.0
        %4186 = vmatprep.subr.mxu0 0.0
        %4187 = vmatpush2.xpose.msra.mxu0 0.0
        %4188 = vmatprep.subr.mxu0 0.0
        %4189 = vmatpush2.xpose.msra.mxu0 0.0
        %4190 = vmatprep.subr.mxu0 0.0
        %4191 = vmatpush2.xpose.msra.mxu0 0.0
        %4192 = vmatprep.subr.mxu0 0.0
        %4193 = vmatpush2.xpose.msra.mxu0 0.0
        %4194 = vmatprep.subr.mxu0 0.0
        %4195 = vmatpush2.xpose.msra.mxu0 0.0
        %4196 = vmatprep.subr.mxu0 0.0
        %4197 = vmatpush2.xpose.msra.mxu0 0.0
        %4198 = vmatprep.subr.mxu0 0.0
        %4199 = vmatpush2.xpose.msra.mxu0 0.0
        %4200 = vmatprep.subr.mxu0 0.0
        %4201 = vmatpush2.xpose.msra.mxu0 0.0
        %4202 = vmatprep.subr.mxu0 0.0
        %4203 = vmatpush2.xpose.msra.mxu0 0.0
        %4204 = vmatprep.mubr.f32.mxu0 0.0
        %4205 = vmatmul.mubr.f32.gmra.mxu0 %v4135
        %v4206 = vpop.f32.mrf.mxu0
        %v4207 = vadd.f32 0.0, %v4206
        %v4208 = vpop.f32.mrf.mxu0
        %4209 = vdwg.mxu0
        %v4210 = vsel %vm1085, %v4131, -inf
        %4211 = vmax.xlane.f32.xlu0 %v4210
        %v4212 = vpop.xlane.xlu0 %4211
        %v4213 = vsel %vm1085, %v4207, -inf
        %4214 = vmax.xlane.f32.xlu0 %v4213
        %v4215 = vpop.xlane.xlu0 %4214
        %v4216 = vsub.f32 %v4131, %v4212
        %v4217 = vsub.f32 %v4207, %v4215
        %v4218 = vmul.f32 %v4216, 1.442695
        %v4219 = vpow.pop %v4218
        %v4220 = vmul.f32 %v4217, 1.442695
        %v4221 = vpow.pop %v4220
        %v4222 = vsel %vm1085, %v4219, 0.0
        %4223 = vadd.xlane.f32.xlu0 %v4222
        %v4224 = vpop.xlane.xlu0 %4223
        %v4225 = vsel %vm1085, %v4221, 0.0
        %4226 = vadd.xlane.f32.xlu0 %v4225
        %v4227 = vpop.xlane.xlu0 %4226
        %v4228 = vrcp.pop %v4224
        %v4229 = vmul.f32 %v4219, %v4228
        %v4230 = vrcp.pop %v4227
        %v4231 = vmul.f32 %v4221, %v4230
        %v4233 = vsel %vm1085, %v4229, 0
        %4235 = vmatprep.subr.mxu0 0.0
        %4236 = vmatpush1.msra.mxu0 0.0
        %4237 = vmatprep.subr.mxu0 0.0
        %4238 = vmatpush1.msra.mxu0 0.0
        %4239 = vmatprep.subr.mxu0 0.0
        %4240 = vmatpush1.msra.mxu0 0.0
        %4241 = vmatprep.subr.mxu0 0.0
        %4242 = vmatpush1.msra.mxu0 0.0
        %4243 = vmatprep.subr.mxu0 0.0
        %4244 = vmatpush1.msra.mxu0 0.0
        %4245 = vmatprep.subr.mxu0 0.0
        %4246 = vmatpush1.msra.mxu0 0.0
        %4247 = vmatprep.subr.mxu0 0.0
        %4248 = vmatpush1.msra.mxu0 0.0
        %4249 = vmatprep.subr.mxu0 0.0
        %4250 = vmatpush1.msra.mxu0 0.0
        %4251 = vmatprep.subr.mxu0 0.0
        %4252 = vmatpush1.msra.mxu0 0.0
        %4253 = vmatprep.subr.mxu0 0.0
        %4254 = vmatpush1.msra.mxu0 0.0
        %4255 = vmatprep.subr.mxu0 0.0
        %4256 = vmatpush1.msra.mxu0 0.0
        %4257 = vmatprep.subr.mxu0 0.0
        %4258 = vmatpush1.msra.mxu0 0.0
        %4259 = vmatprep.subr.mxu0 0.0
        %4260 = vmatpush1.msra.mxu0 0.0
        %4261 = vmatprep.subr.mxu0 0.0
        %4262 = vmatpush1.msra.mxu0 0.0
        %4263 = vmatprep.subr.mxu0 0.0
        %4264 = vmatpush1.msra.mxu0 0.0
        %4265 = vmatprep.subr.mxu0 0.0
        %4266 = vmatpush1.msra.mxu0 %v4050
        %4267 = vmatprep.subr.mxu0 0.0
        %4268 = vmatpush2.msra.mxu0 0.0
        %4269 = vmatprep.subr.mxu0 0.0
        %4270 = vmatpush2.msra.mxu0 0.0
        %4271 = vmatprep.subr.mxu0 0.0
        %4272 = vmatpush2.msra.mxu0 0.0
        %4273 = vmatprep.subr.mxu0 0.0
        %4274 = vmatpush2.msra.mxu0 0.0
        %4275 = vmatprep.subr.mxu0 0.0
        %4276 = vmatpush2.msra.mxu0 0.0
        %4277 = vmatprep.subr.mxu0 0.0
        %4278 = vmatpush2.msra.mxu0 0.0
        %4279 = vmatprep.subr.mxu0 0.0
        %4280 = vmatpush2.msra.mxu0 0.0
        %4281 = vmatprep.subr.mxu0 0.0
        %4282 = vmatpush2.msra.mxu0 0.0
        %4283 = vmatprep.subr.mxu0 0.0
        %4284 = vmatpush2.msra.mxu0 0.0
        %4285 = vmatprep.subr.mxu0 0.0
        %4286 = vmatpush2.msra.mxu0 0.0
        %4287 = vmatprep.subr.mxu0 0.0
        %4288 = vmatpush2.msra.mxu0 0.0
        %4289 = vmatprep.subr.mxu0 0.0
        %4290 = vmatpush2.msra.mxu0 0.0
        %4291 = vmatprep.subr.mxu0 0.0
        %4292 = vmatpush2.msra.mxu0 0.0
        %4293 = vmatprep.subr.mxu0 0.0
        %4294 = vmatpush2.msra.mxu0 0.0
        %4295 = vmatprep.subr.mxu0 0.0
        %4296 = vmatpush2.msra.mxu0 0.0
        %4297 = vmatprep.subr.mxu0 0.0
        %4298 = vmatpush2.msra.mxu0 0.0
        %4299 = vmatprep.mubr.f32.mxu0 0.0
        %4300 = vmatmul.mubr.f32.gmra.mxu0 %v4233
        %v4301 = vpop.f32.mrf.mxu0
        %v4302 = vadd.f32 0.0, %v4301
        %v4303 = vpop.f32.mrf.mxu0
        %4304 = vdwg.mxu0
        %v4306 = vsel %vm1085, %v4231, 0
        %4308 = vmatprep.subr.mxu0 0.0
        %4309 = vmatpush1.msra.mxu0 0.0
        %4310 = vmatprep.subr.mxu0 0.0
        %4311 = vmatpush1.msra.mxu0 0.0
        %4312 = vmatprep.subr.mxu0 0.0
        %4313 = vmatpush1.msra.mxu0 0.0
        %4314 = vmatprep.subr.mxu0 0.0
        %4315 = vmatpush1.msra.mxu0 0.0
        %4316 = vmatprep.subr.mxu0 0.0
        %4317 = vmatpush1.msra.mxu0 0.0
        %4318 = vmatprep.subr.mxu0 0.0
        %4319 = vmatpush1.msra.mxu0 0.0
        %4320 = vmatprep.subr.mxu0 0.0
        %4321 = vmatpush1.msra.mxu0 0.0
        %4322 = vmatprep.subr.mxu0 0.0
        %4323 = vmatpush1.msra.mxu0 0.0
        %4324 = vmatprep.subr.mxu0 0.0
        %4325 = vmatpush1.msra.mxu0 0.0
        %4326 = vmatprep.subr.mxu0 0.0
        %4327 = vmatpush1.msra.mxu0 0.0
        %4328 = vmatprep.subr.mxu0 0.0
        %4329 = vmatpush1.msra.mxu0 0.0
        %4330 = vmatprep.subr.mxu0 0.0
        %4331 = vmatpush1.msra.mxu0 0.0
        %4332 = vmatprep.subr.mxu0 0.0
        %4333 = vmatpush1.msra.mxu0 0.0
        %4334 = vmatprep.subr.mxu0 0.0
        %4335 = vmatpush1.msra.mxu0 0.0
        %4336 = vmatprep.subr.mxu0 0.0
        %4337 = vmatpush1.msra.mxu0 0.0
        %4338 = vmatprep.subr.mxu0 0.0
        %4339 = vmatpush1.msra.mxu0 %v4055
        %4340 = vmatprep.subr.mxu0 0.0
        %4341 = vmatpush2.msra.mxu0 0.0
        %4342 = vmatprep.subr.mxu0 0.0
        %4343 = vmatpush2.msra.mxu0 0.0
        %4344 = vmatprep.subr.mxu0 0.0
        %4345 = vmatpush2.msra.mxu0 0.0
        %4346 = vmatprep.subr.mxu0 0.0
        %4347 = vmatpush2.msra.mxu0 0.0
        %4348 = vmatprep.subr.mxu0 0.0
        %4349 = vmatpush2.msra.mxu0 0.0
        %4350 = vmatprep.subr.mxu0 0.0
        %4351 = vmatpush2.msra.mxu0 0.0
        %4352 = vmatprep.subr.mxu0 0.0
        %4353 = vmatpush2.msra.mxu0 0.0
        %4354 = vmatprep.subr.mxu0 0.0
        %4355 = vmatpush2.msra.mxu0 0.0
        %4356 = vmatprep.subr.mxu0 0.0
        %4357 = vmatpush2.msra.mxu0 0.0
        %4358 = vmatprep.subr.mxu0 0.0
        %4359 = vmatpush2.msra.mxu0 0.0
        %4360 = vmatprep.subr.mxu0 0.0
        %4361 = vmatpush2.msra.mxu0 0.0
        %4362 = vmatprep.subr.mxu0 0.0
        %4363 = vmatpush2.msra.mxu0 0.0
        %4364 = vmatprep.subr.mxu0 0.0
        %4365 = vmatpush2.msra.mxu0 0.0
        %4366 = vmatprep.subr.mxu0 0.0
        %4367 = vmatpush2.msra.mxu0 0.0
        %4368 = vmatprep.subr.mxu0 0.0
        %4369 = vmatpush2.msra.mxu0 0.0
        %4370 = vmatprep.subr.mxu0 0.0
        %4371 = vmatpush2.msra.mxu0 0.0
        %4372 = vmatprep.mubr.f32.mxu0 0.0
        %4373 = vmatmul.mubr.f32.gmra.mxu0 %v4306
        %v4374 = vpop.f32.mrf.mxu0
        %v4375 = vadd.f32 0.0, %v4374
        %v4376 = vpop.f32.mrf.mxu0
        %4377 = vdwg.mxu0
        %4378 = vrot.lane.b32.xlu0 %v3868, 124
        %v4379 = vpop.permute.xlu0 %4378
        %4380 = vrot.lane.b32.xlu0 %v3962, 124
        %v4381 = vpop.permute.xlu0 %4380
        %v4382 = vsel %vm932, %v4379, 0
        %v4384 = vsel %vm932, %v4381, 0
        %4386 = vmatprep.subr.mxu0 0.0
        %4387 = vmatpush1.xpose.msra.mxu0 0.0
        %4388 = vmatprep.subr.mxu0 0.0
        %4389 = vmatpush1.xpose.msra.mxu0 0.0
        %4390 = vmatprep.subr.mxu0 0.0
        %4391 = vmatpush1.xpose.msra.mxu0 0.0
        %4392 = vmatprep.subr.mxu0 0.0
        %4393 = vmatpush1.xpose.msra.mxu0 0.0
        %4394 = vmatprep.subr.mxu0 0.0
        %4395 = vmatpush1.xpose.msra.mxu0 0.0
        %4396 = vmatprep.subr.mxu0 0.0
        %4397 = vmatpush1.xpose.msra.mxu0 0.0
        %4398 = vmatprep.subr.mxu0 0.0
        %4399 = vmatpush1.xpose.msra.mxu0 0.0
        %4400 = vmatprep.subr.mxu0 0.0
        %4401 = vmatpush1.xpose.msra.mxu0 0.0
        %4402 = vmatprep.subr.mxu0 0.0
        %4403 = vmatpush1.xpose.msra.mxu0 0.0
        %4404 = vmatprep.subr.mxu0 0.0
        %4405 = vmatpush1.xpose.msra.mxu0 0.0
        %4406 = vmatprep.subr.mxu0 0.0
        %4407 = vmatpush1.xpose.msra.mxu0 0.0
        %4408 = vmatprep.subr.mxu0 0.0
        %4409 = vmatpush1.xpose.msra.mxu0 0.0
        %4410 = vmatprep.subr.mxu0 0.0
        %4411 = vmatpush1.xpose.msra.mxu0 0.0
        %4412 = vmatprep.subr.mxu0 0.0
        %4413 = vmatpush1.xpose.msra.mxu0 0.0
        %4414 = vmatprep.subr.mxu0 0.0
        %4415 = vmatpush1.xpose.msra.mxu0 0.0
        %4416 = vmatprep.subr.mxu0 0.0
        %4417 = vmatpush1.xpose.msra.mxu0 %v4384
        %4418 = vmatprep.subr.mxu0 0.0
        %4419 = vmatpush2.xpose.msra.mxu0 0.0
        %4420 = vmatprep.subr.mxu0 0.0
        %4421 = vmatpush2.xpose.msra.mxu0 0.0
        %4422 = vmatprep.subr.mxu0 0.0
        %4423 = vmatpush2.xpose.msra.mxu0 0.0
        %4424 = vmatprep.subr.mxu0 0.0
        %4425 = vmatpush2.xpose.msra.mxu0 0.0
        %4426 = vmatprep.subr.mxu0 0.0
        %4427 = vmatpush2.xpose.msra.mxu0 0.0
        %4428 = vmatprep.subr.mxu0 0.0
        %4429 = vmatpush2.xpose.msra.mxu0 0.0
        %4430 = vmatprep.subr.mxu0 0.0
        %4431 = vmatpush2.xpose.msra.mxu0 0.0
        %4432 = vmatprep.subr.mxu0 0.0
        %4433 = vmatpush2.xpose.msra.mxu0 0.0
        %4434 = vmatprep.subr.mxu0 0.0
        %4435 = vmatpush2.xpose.msra.mxu0 0.0
        %4436 = vmatprep.subr.mxu0 0.0
        %4437 = vmatpush2.xpose.msra.mxu0 0.0
        %4438 = vmatprep.subr.mxu0 0.0
        %4439 = vmatpush2.xpose.msra.mxu0 0.0
        %4440 = vmatprep.subr.mxu0 0.0
        %4441 = vmatpush2.xpose.msra.mxu0 0.0
        %4442 = vmatprep.subr.mxu0 0.0
        %4443 = vmatpush2.xpose.msra.mxu0 0.0
        %4444 = vmatprep.subr.mxu0 0.0
        %4445 = vmatpush2.xpose.msra.mxu0 0.0
        %4446 = vmatprep.subr.mxu0 0.0
        %4447 = vmatpush2.xpose.msra.mxu0 0.0
        %4448 = vmatprep.subr.mxu0 0.0
        %4449 = vmatpush2.xpose.msra.mxu0 0.0
        %4450 = vmatprep.mubr.f32.mxu0 0.0
        %4451 = vmatmul.mubr.f32.gmra.mxu0 %v4382
        %v4452 = vpop.f32.mrf.mxu0
        %v4453 = vadd.f32 0.0, %v4452
        %v4454 = vpop.f32.mrf.mxu0
        %4455 = vdwg.mxu0
        %4456 = vrot.lane.b32.xlu0 %v3873, 124
        %v4457 = vpop.permute.xlu0 %4456
        %4458 = vrot.lane.b32.xlu0 %v3967, 124
        %v4459 = vpop.permute.xlu0 %4458
        %v4460 = vsel %vm932, %v4457, 0
        %v4462 = vsel %vm932, %v4459, 0
        %4464 = vmatprep.subr.mxu0 0.0
        %4465 = vmatpush1.xpose.msra.mxu0 0.0
        %4466 = vmatprep.subr.mxu0 0.0
        %4467 = vmatpush1.xpose.msra.mxu0 0.0
        %4468 = vmatprep.subr.mxu0 0.0
        %4469 = vmatpush1.xpose.msra.mxu0 0.0
        %4470 = vmatprep.subr.mxu0 0.0
        %4471 = vmatpush1.xpose.msra.mxu0 0.0
        %4472 = vmatprep.subr.mxu0 0.0
        %4473 = vmatpush1.xpose.msra.mxu0 0.0
        %4474 = vmatprep.subr.mxu0 0.0
        %4475 = vmatpush1.xpose.msra.mxu0 0.0
        %4476 = vmatprep.subr.mxu0 0.0
        %4477 = vmatpush1.xpose.msra.mxu0 0.0
        %4478 = vmatprep.subr.mxu0 0.0
        %4479 = vmatpush1.xpose.msra.mxu0 0.0
        %4480 = vmatprep.subr.mxu0 0.0
        %4481 = vmatpush1.xpose.msra.mxu0 0.0
        %4482 = vmatprep.subr.mxu0 0.0
        %4483 = vmatpush1.xpose.msra.mxu0 0.0
        %4484 = vmatprep.subr.mxu0 0.0
        %4485 = vmatpush1.xpose.msra.mxu0 0.0
        %4486 = vmatprep.subr.mxu0 0.0
        %4487 = vmatpush1.xpose.msra.mxu0 0.0
        %4488 = vmatprep.subr.mxu0 0.0
        %4489 = vmatpush1.xpose.msra.mxu0 0.0
        %4490 = vmatprep.subr.mxu0 0.0
        %4491 = vmatpush1.xpose.msra.mxu0 0.0
        %4492 = vmatprep.subr.mxu0 0.0
        %4493 = vmatpush1.xpose.msra.mxu0 0.0
        %4494 = vmatprep.subr.mxu0 0.0
        %4495 = vmatpush1.xpose.msra.mxu0 %v4462
        %4496 = vmatprep.subr.mxu0 0.0
        %4497 = vmatpush2.xpose.msra.mxu0 0.0
        %4498 = vmatprep.subr.mxu0 0.0
        %4499 = vmatpush2.xpose.msra.mxu0 0.0
        %4500 = vmatprep.subr.mxu0 0.0
        %4501 = vmatpush2.xpose.msra.mxu0 0.0
        %4502 = vmatprep.subr.mxu0 0.0
        %4503 = vmatpush2.xpose.msra.mxu0 0.0
        %4504 = vmatprep.subr.mxu0 0.0
        %4505 = vmatpush2.xpose.msra.mxu0 0.0
        %4506 = vmatprep.subr.mxu0 0.0
        %4507 = vmatpush2.xpose.msra.mxu0 0.0
        %4508 = vmatprep.subr.mxu0 0.0
        %4509 = vmatpush2.xpose.msra.mxu0 0.0
        %4510 = vmatprep.subr.mxu0 0.0
        %4511 = vmatpush2.xpose.msra.mxu0 0.0
        %4512 = vmatprep.subr.mxu0 0.0
        %4513 = vmatpush2.xpose.msra.mxu0 0.0
        %4514 = vmatprep.subr.mxu0 0.0
        %4515 = vmatpush2.xpose.msra.mxu0 0.0
        %4516 = vmatprep.subr.mxu0 0.0
        %4517 = vmatpush2.xpose.msra.mxu0 0.0
        %4518 = vmatprep.subr.mxu0 0.0
        %4519 = vmatpush2.xpose.msra.mxu0 0.0
        %4520 = vmatprep.subr.mxu0 0.0
        %4521 = vmatpush2.xpose.msra.mxu0 0.0
        %4522 = vmatprep.subr.mxu0 0.0
        %4523 = vmatpush2.xpose.msra.mxu0 0.0
        %4524 = vmatprep.subr.mxu0 0.0
        %4525 = vmatpush2.xpose.msra.mxu0 0.0
        %4526 = vmatprep.subr.mxu0 0.0
        %4527 = vmatpush2.xpose.msra.mxu0 0.0
        %4528 = vmatprep.mubr.f32.mxu0 0.0
        %4529 = vmatmul.mubr.f32.gmra.mxu0 %v4460
        %v4530 = vpop.f32.mrf.mxu0
        %v4531 = vadd.f32 0.0, %v4530
        %v4532 = vpop.f32.mrf.mxu0
        %4533 = vdwg.mxu0
        %v4534 = vsel %vm1085, %v4453, -inf
        %4535 = vmax.xlane.f32.xlu0 %v4534
        %v4536 = vpop.xlane.xlu0 %4535
        %v4537 = vsel %vm1085, %v4531, -inf
        %4538 = vmax.xlane.f32.xlu0 %v4537
        %v4539 = vpop.xlane.xlu0 %4538
        %v4540 = vsub.f32 %v4453, %v4536
        %v4541 = vsub.f32 %v4531, %v4539
        %v4542 = vmul.f32 %v4540, 1.442695
        %v4543 = vpow.pop %v4542
        %v4544 = vmul.f32 %v4541, 1.442695
        %v4545 = vpow.pop %v4544
        %v4546 = vsel %vm1085, %v4543, 0.0
        %4547 = vadd.xlane.f32.xlu0 %v4546
        %v4548 = vpop.xlane.xlu0 %4547
        %v4549 = vsel %vm1085, %v4545, 0.0
        %4550 = vadd.xlane.f32.xlu0 %v4549
        %v4551 = vpop.xlane.xlu0 %4550
        %v4552 = vrcp.pop %v4548
        %v4553 = vmul.f32 %v4543, %v4552
        %v4554 = vrcp.pop %v4551
        %v4555 = vmul.f32 %v4545, %v4554
        %4557 = vrot.lane.b32.xlu0 %v4050, 124
        %v4558 = vpop.permute.xlu0 %4557
        %v4561 = vsel %vm1085, %v4553, 0
        %4563 = vmatprep.subr.mxu0 0.0
        %4564 = vmatpush1.msra.mxu0 0.0
        %4565 = vmatprep.subr.mxu0 0.0
        %4566 = vmatpush1.msra.mxu0 0.0
        %4567 = vmatprep.subr.mxu0 0.0
        %4568 = vmatpush1.msra.mxu0 0.0
        %4569 = vmatprep.subr.mxu0 0.0
        %4570 = vmatpush1.msra.mxu0 0.0
        %4571 = vmatprep.subr.mxu0 0.0
        %4572 = vmatpush1.msra.mxu0 0.0
        %4573 = vmatprep.subr.mxu0 0.0
        %4574 = vmatpush1.msra.mxu0 0.0
        %4575 = vmatprep.subr.mxu0 0.0
        %4576 = vmatpush1.msra.mxu0 0.0
        %4577 = vmatprep.subr.mxu0 0.0
        %4578 = vmatpush1.msra.mxu0 0.0
        %4579 = vmatprep.subr.mxu0 0.0
        %4580 = vmatpush1.msra.mxu0 0.0
        %4581 = vmatprep.subr.mxu0 0.0
        %4582 = vmatpush1.msra.mxu0 0.0
        %4583 = vmatprep.subr.mxu0 0.0
        %4584 = vmatpush1.msra.mxu0 0.0
        %4585 = vmatprep.subr.mxu0 0.0
        %4586 = vmatpush1.msra.mxu0 0.0
        %4587 = vmatprep.subr.mxu0 0.0
        %4588 = vmatpush1.msra.mxu0 0.0
        %4589 = vmatprep.subr.mxu0 0.0
        %4590 = vmatpush1.msra.mxu0 0.0
        %4591 = vmatprep.subr.mxu0 0.0
        %4592 = vmatpush1.msra.mxu0 0.0
        %4593 = vmatprep.subr.mxu0 0.0
        %4594 = vmatpush1.msra.mxu0 %v4558
        %4595 = vmatprep.subr.mxu0 0.0
        %4596 = vmatpush2.msra.mxu0 0.0
        %4597 = vmatprep.subr.mxu0 0.0
        %4598 = vmatpush2.msra.mxu0 0.0
        %4599 = vmatprep.subr.mxu0 0.0
        %4600 = vmatpush2.msra.mxu0 0.0
        %4601 = vmatprep.subr.mxu0 0.0
        %4602 = vmatpush2.msra.mxu0 0.0
        %4603 = vmatprep.subr.mxu0 0.0
        %4604 = vmatpush2.msra.mxu0 0.0
        %4605 = vmatprep.subr.mxu0 0.0
        %4606 = vmatpush2.msra.mxu0 0.0
        %4607 = vmatprep.subr.mxu0 0.0
        %4608 = vmatpush2.msra.mxu0 0.0
        %4609 = vmatprep.subr.mxu0 0.0
        %4610 = vmatpush2.msra.mxu0 0.0
        %4611 = vmatprep.subr.mxu0 0.0
        %4612 = vmatpush2.msra.mxu0 0.0
        %4613 = vmatprep.subr.mxu0 0.0
        %4614 = vmatpush2.msra.mxu0 0.0
        %4615 = vmatprep.subr.mxu0 0.0
        %4616 = vmatpush2.msra.mxu0 0.0
        %4617 = vmatprep.subr.mxu0 0.0
        %4618 = vmatpush2.msra.mxu0 0.0
        %4619 = vmatprep.subr.mxu0 0.0
        %4620 = vmatpush2.msra.mxu0 0.0
        %4621 = vmatprep.subr.mxu0 0.0
        %4622 = vmatpush2.msra.mxu0 0.0
        %4623 = vmatprep.subr.mxu0 0.0
        %4624 = vmatpush2.msra.mxu0 0.0
        %4625 = vmatprep.subr.mxu0 0.0
        %4626 = vmatpush2.msra.mxu0 0.0
        %4627 = vmatprep.mubr.f32.mxu0 0.0
        %4628 = vmatmul.mubr.f32.gmra.mxu0 %v4561
        %v4629 = vpop.f32.mrf.mxu0
        %v4630 = vadd.f32 0.0, %v4629
        %v4631 = vpop.f32.mrf.mxu0
        %4632 = vdwg.mxu0
        %4634 = vrot.lane.b32.xlu0 %v4055, 124
        %v4635 = vpop.permute.xlu0 %4634
        %v4638 = vsel %vm1085, %v4555, 0
        %4640 = vmatprep.subr.mxu0 0.0
        %4641 = vmatpush1.msra.mxu0 0.0
        %4642 = vmatprep.subr.mxu0 0.0
        %4643 = vmatpush1.msra.mxu0 0.0
        %4644 = vmatprep.subr.mxu0 0.0
        %4645 = vmatpush1.msra.mxu0 0.0
        %4646 = vmatprep.subr.mxu0 0.0
        %4647 = vmatpush1.msra.mxu0 0.0
        %4648 = vmatprep.subr.mxu0 0.0
        %4649 = vmatpush1.msra.mxu0 0.0
        %4650 = vmatprep.subr.mxu0 0.0
        %4651 = vmatpush1.msra.mxu0 0.0
        %4652 = vmatprep.subr.mxu0 0.0
        %4653 = vmatpush1.msra.mxu0 0.0
        %4654 = vmatprep.subr.mxu0 0.0
        %4655 = vmatpush1.msra.mxu0 0.0
        %4656 = vmatprep.subr.mxu0 0.0
        %4657 = vmatpush1.msra.mxu0 0.0
        %4658 = vmatprep.subr.mxu0 0.0
        %4659 = vmatpush1.msra.mxu0 0.0
        %4660 = vmatprep.subr.mxu0 0.0
        %4661 = vmatpush1.msra.mxu0 0.0
        %4662 = vmatprep.subr.mxu0 0.0
        %4663 = vmatpush1.msra.mxu0 0.0
        %4664 = vmatprep.subr.mxu0 0.0
        %4665 = vmatpush1.msra.mxu0 0.0
        %4666 = vmatprep.subr.mxu0 0.0
        %4667 = vmatpush1.msra.mxu0 0.0
        %4668 = vmatprep.subr.mxu0 0.0
        %4669 = vmatpush1.msra.mxu0 0.0
        %4670 = vmatprep.subr.mxu0 0.0
        %4671 = vmatpush1.msra.mxu0 %v4635
        %4672 = vmatprep.subr.mxu0 0.0
        %4673 = vmatpush2.msra.mxu0 0.0
        %4674 = vmatprep.subr.mxu0 0.0
        %4675 = vmatpush2.msra.mxu0 0.0
        %4676 = vmatprep.subr.mxu0 0.0
        %4677 = vmatpush2.msra.mxu0 0.0
        %4678 = vmatprep.subr.mxu0 0.0
        %4679 = vmatpush2.msra.mxu0 0.0
        %4680 = vmatprep.subr.mxu0 0.0
        %4681 = vmatpush2.msra.mxu0 0.0
        %4682 = vmatprep.subr.mxu0 0.0
        %4683 = vmatpush2.msra.mxu0 0.0
        %4684 = vmatprep.subr.mxu0 0.0
        %4685 = vmatpush2.msra.mxu0 0.0
        %4686 = vmatprep.subr.mxu0 0.0
        %4687 = vmatpush2.msra.mxu0 0.0
        %4688 = vmatprep.subr.mxu0 0.0
        %4689 = vmatpush2.msra.mxu0 0.0
        %4690 = vmatprep.subr.mxu0 0.0
        %4691 = vmatpush2.msra.mxu0 0.0
        %4692 = vmatprep.subr.mxu0 0.0
        %4693 = vmatpush2.msra.mxu0 0.0
        %4694 = vmatprep.subr.mxu0 0.0
        %4695 = vmatpush2.msra.mxu0 0.0
        %4696 = vmatprep.subr.mxu0 0.0
        %4697 = vmatpush2.msra.mxu0 0.0
        %4698 = vmatprep.subr.mxu0 0.0
        %4699 = vmatpush2.msra.mxu0 0.0
        %4700 = vmatprep.subr.mxu0 0.0
        %4701 = vmatpush2.msra.mxu0 0.0
        %4702 = vmatprep.subr.mxu0 0.0
        %4703 = vmatpush2.msra.mxu0 0.0
        %4704 = vmatprep.mubr.f32.mxu0 0.0
        %4705 = vmatmul.mubr.f32.gmra.mxu0 %v4638
        %v4706 = vpop.f32.mrf.mxu0
        %v4707 = vadd.f32 0.0, %v4706
        %v4708 = vpop.f32.mrf.mxu0
        %4709 = vdwg.mxu0
        %4710 = vrot.lane.b32.xlu0 %v3868, 120
        %v4711 = vpop.permute.xlu0 %4710
        %4712 = vrot.lane.b32.xlu0 %v3962, 120
        %v4713 = vpop.permute.xlu0 %4712
        %v4714 = vsel %vm932, %v4711, 0
        %v4716 = vsel %vm932, %v4713, 0
        %4718 = vmatprep.subr.mxu0 0.0
        %4719 = vmatpush1.xpose.msra.mxu0 0.0
        %4720 = vmatprep.subr.mxu0 0.0
        %4721 = vmatpush1.xpose.msra.mxu0 0.0
        %4722 = vmatprep.subr.mxu0 0.0
        %4723 = vmatpush1.xpose.msra.mxu0 0.0
        %4724 = vmatprep.subr.mxu0 0.0
        %4725 = vmatpush1.xpose.msra.mxu0 0.0
        %4726 = vmatprep.subr.mxu0 0.0
        %4727 = vmatpush1.xpose.msra.mxu0 0.0
        %4728 = vmatprep.subr.mxu0 0.0
        %4729 = vmatpush1.xpose.msra.mxu0 0.0
        %4730 = vmatprep.subr.mxu0 0.0
        %4731 = vmatpush1.xpose.msra.mxu0 0.0
        %4732 = vmatprep.subr.mxu0 0.0
        %4733 = vmatpush1.xpose.msra.mxu0 0.0
        %4734 = vmatprep.subr.mxu0 0.0
        %4735 = vmatpush1.xpose.msra.mxu0 0.0
        %4736 = vmatprep.subr.mxu0 0.0
        %4737 = vmatpush1.xpose.msra.mxu0 0.0
        %4738 = vmatprep.subr.mxu0 0.0
        %4739 = vmatpush1.xpose.msra.mxu0 0.0
        %4740 = vmatprep.subr.mxu0 0.0
        %4741 = vmatpush1.xpose.msra.mxu0 0.0
        %4742 = vmatprep.subr.mxu0 0.0
        %4743 = vmatpush1.xpose.msra.mxu0 0.0
        %4744 = vmatprep.subr.mxu0 0.0
        %4745 = vmatpush1.xpose.msra.mxu0 0.0
        %4746 = vmatprep.subr.mxu0 0.0
        %4747 = vmatpush1.xpose.msra.mxu0 0.0
        %4748 = vmatprep.subr.mxu0 0.0
        %4749 = vmatpush1.xpose.msra.mxu0 %v4716
        %4750 = vmatprep.subr.mxu0 0.0
        %4751 = vmatpush2.xpose.msra.mxu0 0.0
        %4752 = vmatprep.subr.mxu0 0.0
        %4753 = vmatpush2.xpose.msra.mxu0 0.0
        %4754 = vmatprep.subr.mxu0 0.0
        %4755 = vmatpush2.xpose.msra.mxu0 0.0
        %4756 = vmatprep.subr.mxu0 0.0
        %4757 = vmatpush2.xpose.msra.mxu0 0.0
        %4758 = vmatprep.subr.mxu0 0.0
        %4759 = vmatpush2.xpose.msra.mxu0 0.0
        %4760 = vmatprep.subr.mxu0 0.0
        %4761 = vmatpush2.xpose.msra.mxu0 0.0
        %4762 = vmatprep.subr.mxu0 0.0
        %4763 = vmatpush2.xpose.msra.mxu0 0.0
        %4764 = vmatprep.subr.mxu0 0.0
        %4765 = vmatpush2.xpose.msra.mxu0 0.0
        %4766 = vmatprep.subr.mxu0 0.0
        %4767 = vmatpush2.xpose.msra.mxu0 0.0
        %4768 = vmatprep.subr.mxu0 0.0
        %4769 = vmatpush2.xpose.msra.mxu0 0.0
        %4770 = vmatprep.subr.mxu0 0.0
        %4771 = vmatpush2.xpose.msra.mxu0 0.0
        %4772 = vmatprep.subr.mxu0 0.0
        %4773 = vmatpush2.xpose.msra.mxu0 0.0
        %4774 = vmatprep.subr.mxu0 0.0
        %4775 = vmatpush2.xpose.msra.mxu0 0.0
        %4776 = vmatprep.subr.mxu0 0.0
        %4777 = vmatpush2.xpose.msra.mxu0 0.0
        %4778 = vmatprep.subr.mxu0 0.0
        %4779 = vmatpush2.xpose.msra.mxu0 0.0
        %4780 = vmatprep.subr.mxu0 0.0
        %4781 = vmatpush2.xpose.msra.mxu0 0.0
        %4782 = vmatprep.mubr.f32.mxu0 0.0
        %4783 = vmatmul.mubr.f32.gmra.mxu0 %v4714
        %v4784 = vpop.f32.mrf.mxu0
        %v4785 = vadd.f32 0.0, %v4784
        %v4786 = vpop.f32.mrf.mxu0
        %4787 = vdwg.mxu0
        %4788 = vrot.lane.b32.xlu0 %v3873, 120
        %v4789 = vpop.permute.xlu0 %4788
        %4790 = vrot.lane.b32.xlu0 %v3967, 120
        %v4791 = vpop.permute.xlu0 %4790
        %v4792 = vsel %vm932, %v4789, 0
        %v4794 = vsel %vm932, %v4791, 0
        %4796 = vmatprep.subr.mxu0 0.0
        %4797 = vmatpush1.xpose.msra.mxu0 0.0
        %4798 = vmatprep.subr.mxu0 0.0
        %4799 = vmatpush1.xpose.msra.mxu0 0.0
        %4800 = vmatprep.subr.mxu0 0.0
        %4801 = vmatpush1.xpose.msra.mxu0 0.0
        %4802 = vmatprep.subr.mxu0 0.0
        %4803 = vmatpush1.xpose.msra.mxu0 0.0
        %4804 = vmatprep.subr.mxu0 0.0
        %4805 = vmatpush1.xpose.msra.mxu0 0.0
        %4806 = vmatprep.subr.mxu0 0.0
        %4807 = vmatpush1.xpose.msra.mxu0 0.0
        %4808 = vmatprep.subr.mxu0 0.0
        %4809 = vmatpush1.xpose.msra.mxu0 0.0
        %4810 = vmatprep.subr.mxu0 0.0
        %4811 = vmatpush1.xpose.msra.mxu0 0.0
        %4812 = vmatprep.subr.mxu0 0.0
        %4813 = vmatpush1.xpose.msra.mxu0 0.0
        %4814 = vmatprep.subr.mxu0 0.0
        %4815 = vmatpush1.xpose.msra.mxu0 0.0
        %4816 = vmatprep.subr.mxu0 0.0
        %4817 = vmatpush1.xpose.msra.mxu0 0.0
        %4818 = vmatprep.subr.mxu0 0.0
        %4819 = vmatpush1.xpose.msra.mxu0 0.0
        %4820 = vmatprep.subr.mxu0 0.0
        %4821 = vmatpush1.xpose.msra.mxu0 0.0
        %4822 = vmatprep.subr.mxu0 0.0
        %4823 = vmatpush1.xpose.msra.mxu0 0.0
        %4824 = vmatprep.subr.mxu0 0.0
        %4825 = vmatpush1.xpose.msra.mxu0 0.0
        %4826 = vmatprep.subr.mxu0 0.0
        %4827 = vmatpush1.xpose.msra.mxu0 %v4794
        %4828 = vmatprep.subr.mxu0 0.0
        %4829 = vmatpush2.xpose.msra.mxu0 0.0
        %4830 = vmatprep.subr.mxu0 0.0
        %4831 = vmatpush2.xpose.msra.mxu0 0.0
        %4832 = vmatprep.subr.mxu0 0.0
        %4833 = vmatpush2.xpose.msra.mxu0 0.0
        %4834 = vmatprep.subr.mxu0 0.0
        %4835 = vmatpush2.xpose.msra.mxu0 0.0
        %4836 = vmatprep.subr.mxu0 0.0
        %4837 = vmatpush2.xpose.msra.mxu0 0.0
        %4838 = vmatprep.subr.mxu0 0.0
        %4839 = vmatpush2.xpose.msra.mxu0 0.0
        %4840 = vmatprep.subr.mxu0 0.0
        %4841 = vmatpush2.xpose.msra.mxu0 0.0
        %4842 = vmatprep.subr.mxu0 0.0
        %4843 = vmatpush2.xpose.msra.mxu0 0.0
        %4844 = vmatprep.subr.mxu0 0.0
        %4845 = vmatpush2.xpose.msra.mxu0 0.0
        %4846 = vmatprep.subr.mxu0 0.0
        %4847 = vmatpush2.xpose.msra.mxu0 0.0
        %4848 = vmatprep.subr.mxu0 0.0
        %4849 = vmatpush2.xpose.msra.mxu0 0.0
        %4850 = vmatprep.subr.mxu0 0.0
        %4851 = vmatpush2.xpose.msra.mxu0 0.0
        %4852 = vmatprep.subr.mxu0 0.0
        %4853 = vmatpush2.xpose.msra.mxu0 0.0
        %4854 = vmatprep.subr.mxu0 0.0
        %4855 = vmatpush2.xpose.msra.mxu0 0.0
        %4856 = vmatprep.subr.mxu0 0.0
        %4857 = vmatpush2.xpose.msra.mxu0 0.0
        %4858 = vmatprep.subr.mxu0 0.0
        %4859 = vmatpush2.xpose.msra.mxu0 0.0
        %4860 = vmatprep.mubr.f32.mxu0 0.0
        %4861 = vmatmul.mubr.f32.gmra.mxu0 %v4792
        %v4862 = vpop.f32.mrf.mxu0
        %v4863 = vadd.f32 0.0, %v4862
        %v4864 = vpop.f32.mrf.mxu0
        %4865 = vdwg.mxu0
        %v4866 = vsel %vm1085, %v4785, -inf
        %4867 = vmax.xlane.f32.xlu0 %v4866
        %v4868 = vpop.xlane.xlu0 %4867
        %v4869 = vsel %vm1085, %v4863, -inf
        %4870 = vmax.xlane.f32.xlu0 %v4869
        %v4871 = vpop.xlane.xlu0 %4870
        %v4872 = vsub.f32 %v4785, %v4868
        %v4873 = vsub.f32 %v4863, %v4871
        %v4874 = vmul.f32 %v4872, 1.442695
        %v4875 = vpow.pop %v4874
        %v4876 = vmul.f32 %v4873, 1.442695
        %v4877 = vpow.pop %v4876
        %v4878 = vsel %vm1085, %v4875, 0.0
        %4879 = vadd.xlane.f32.xlu0 %v4878
        %v4880 = vpop.xlane.xlu0 %4879
        %v4881 = vsel %vm1085, %v4877, 0.0
        %4882 = vadd.xlane.f32.xlu0 %v4881
        %v4883 = vpop.xlane.xlu0 %4882
        %v4884 = vrcp.pop %v4880
        %v4885 = vmul.f32 %v4875, %v4884
        %v4886 = vrcp.pop %v4883
        %v4887 = vmul.f32 %v4877, %v4886
        %4888 = vrot.lane.b32.xlu0 %v4050, 120
        %v4889 = vpop.permute.xlu0 %4888
        %v4892 = vsel %vm1085, %v4885, 0
        %4894 = vmatprep.subr.mxu0 0.0
        %4895 = vmatpush1.msra.mxu0 0.0
        %4896 = vmatprep.subr.mxu0 0.0
        %4897 = vmatpush1.msra.mxu0 0.0
        %4898 = vmatprep.subr.mxu0 0.0
        %4899 = vmatpush1.msra.mxu0 0.0
        %4900 = vmatprep.subr.mxu0 0.0
        %4901 = vmatpush1.msra.mxu0 0.0
        %4902 = vmatprep.subr.mxu0 0.0
        %4903 = vmatpush1.msra.mxu0 0.0
        %4904 = vmatprep.subr.mxu0 0.0
        %4905 = vmatpush1.msra.mxu0 0.0
        %4906 = vmatprep.subr.mxu0 0.0
        %4907 = vmatpush1.msra.mxu0 0.0
        %4908 = vmatprep.subr.mxu0 0.0
        %4909 = vmatpush1.msra.mxu0 0.0
        %4910 = vmatprep.subr.mxu0 0.0
        %4911 = vmatpush1.msra.mxu0 0.0
        %4912 = vmatprep.subr.mxu0 0.0
        %4913 = vmatpush1.msra.mxu0 0.0
        %4914 = vmatprep.subr.mxu0 0.0
        %4915 = vmatpush1.msra.mxu0 0.0
        %4916 = vmatprep.subr.mxu0 0.0
        %4917 = vmatpush1.msra.mxu0 0.0
        %4918 = vmatprep.subr.mxu0 0.0
        %4919 = vmatpush1.msra.mxu0 0.0
        %4920 = vmatprep.subr.mxu0 0.0
        %4921 = vmatpush1.msra.mxu0 0.0
        %4922 = vmatprep.subr.mxu0 0.0
        %4923 = vmatpush1.msra.mxu0 0.0
        %4924 = vmatprep.subr.mxu0 0.0
        %4925 = vmatpush1.msra.mxu0 %v4889
        %4926 = vmatprep.subr.mxu0 0.0
        %4927 = vmatpush2.msra.mxu0 0.0
        %4928 = vmatprep.subr.mxu0 0.0
        %4929 = vmatpush2.msra.mxu0 0.0
        %4930 = vmatprep.subr.mxu0 0.0
        %4931 = vmatpush2.msra.mxu0 0.0
        %4932 = vmatprep.subr.mxu0 0.0
        %4933 = vmatpush2.msra.mxu0 0.0
        %4934 = vmatprep.subr.mxu0 0.0
        %4935 = vmatpush2.msra.mxu0 0.0
        %4936 = vmatprep.subr.mxu0 0.0
        %4937 = vmatpush2.msra.mxu0 0.0
        %4938 = vmatprep.subr.mxu0 0.0
        %4939 = vmatpush2.msra.mxu0 0.0
        %4940 = vmatprep.subr.mxu0 0.0
        %4941 = vmatpush2.msra.mxu0 0.0
        %4942 = vmatprep.subr.mxu0 0.0
        %4943 = vmatpush2.msra.mxu0 0.0
        %4944 = vmatprep.subr.mxu0 0.0
        %4945 = vmatpush2.msra.mxu0 0.0
        %4946 = vmatprep.subr.mxu0 0.0
        %4947 = vmatpush2.msra.mxu0 0.0
        %4948 = vmatprep.subr.mxu0 0.0
        %4949 = vmatpush2.msra.mxu0 0.0
        %4950 = vmatprep.subr.mxu0 0.0
        %4951 = vmatpush2.msra.mxu0 0.0
        %4952 = vmatprep.subr.mxu0 0.0
        %4953 = vmatpush2.msra.mxu0 0.0
        %4954 = vmatprep.subr.mxu0 0.0
        %4955 = vmatpush2.msra.mxu0 0.0
        %4956 = vmatprep.subr.mxu0 0.0
        %4957 = vmatpush2.msra.mxu0 0.0
        %4958 = vmatprep.mubr.f32.mxu0 0.0
        %4959 = vmatmul.mubr.f32.gmra.mxu0 %v4892
        %v4960 = vpop.f32.mrf.mxu0
        %v4961 = vadd.f32 0.0, %v4960
        %v4962 = vpop.f32.mrf.mxu0
        %4963 = vdwg.mxu0
        %4964 = vrot.lane.b32.xlu0 %v4055, 120
        %v4965 = vpop.permute.xlu0 %4964
        %v4968 = vsel %vm1085, %v4887, 0
        %4970 = vmatprep.subr.mxu0 0.0
        %4971 = vmatpush1.msra.mxu0 0.0
        %4972 = vmatprep.subr.mxu0 0.0
        %4973 = vmatpush1.msra.mxu0 0.0
        %4974 = vmatprep.subr.mxu0 0.0
        %4975 = vmatpush1.msra.mxu0 0.0
        %4976 = vmatprep.subr.mxu0 0.0
        %4977 = vmatpush1.msra.mxu0 0.0
        %4978 = vmatprep.subr.mxu0 0.0
        %4979 = vmatpush1.msra.mxu0 0.0
        %4980 = vmatprep.subr.mxu0 0.0
        %4981 = vmatpush1.msra.mxu0 0.0
        %4982 = vmatprep.subr.mxu0 0.0
        %4983 = vmatpush1.msra.mxu0 0.0
        %4984 = vmatprep.subr.mxu0 0.0
        %4985 = vmatpush1.msra.mxu0 0.0
        %4986 = vmatprep.subr.mxu0 0.0
        %4987 = vmatpush1.msra.mxu0 0.0
        %4988 = vmatprep.subr.mxu0 0.0
        %4989 = vmatpush1.msra.mxu0 0.0
        %4990 = vmatprep.subr.mxu0 0.0
        %4991 = vmatpush1.msra.mxu0 0.0
        %4992 = vmatprep.subr.mxu0 0.0
        %4993 = vmatpush1.msra.mxu0 0.0
        %4994 = vmatprep.subr.mxu0 0.0
        %4995 = vmatpush1.msra.mxu0 0.0
        %4996 = vmatprep.subr.mxu0 0.0
        %4997 = vmatpush1.msra.mxu0 0.0
        %4998 = vmatprep.subr.mxu0 0.0
        %4999 = vmatpush1.msra.mxu0 0.0
        %5000 = vmatprep.subr.mxu0 0.0
        %5001 = vmatpush1.msra.mxu0 %v4965
        %5002 = vmatprep.subr.mxu0 0.0
        %5003 = vmatpush2.msra.mxu0 0.0
        %5004 = vmatprep.subr.mxu0 0.0
        %5005 = vmatpush2.msra.mxu0 0.0
        %5006 = vmatprep.subr.mxu0 0.0
        %5007 = vmatpush2.msra.mxu0 0.0
        %5008 = vmatprep.subr.mxu0 0.0
        %5009 = vmatpush2.msra.mxu0 0.0
        %5010 = vmatprep.subr.mxu0 0.0
        %5011 = vmatpush2.msra.mxu0 0.0
        %5012 = vmatprep.subr.mxu0 0.0
        %5013 = vmatpush2.msra.mxu0 0.0
        %5014 = vmatprep.subr.mxu0 0.0
        %5015 = vmatpush2.msra.mxu0 0.0
        %5016 = vmatprep.subr.mxu0 0.0
        %5017 = vmatpush2.msra.mxu0 0.0
        %5018 = vmatprep.subr.mxu0 0.0
        %5019 = vmatpush2.msra.mxu0 0.0
        %5020 = vmatprep.subr.mxu0 0.0
        %5021 = vmatpush2.msra.mxu0 0.0
        %5022 = vmatprep.subr.mxu0 0.0
        %5023 = vmatpush2.msra.mxu0 0.0
        %5024 = vmatprep.subr.mxu0 0.0
        %5025 = vmatpush2.msra.mxu0 0.0
        %5026 = vmatprep.subr.mxu0 0.0
        %5027 = vmatpush2.msra.mxu0 0.0
        %5028 = vmatprep.subr.mxu0 0.0
        %5029 = vmatpush2.msra.mxu0 0.0
        %5030 = vmatprep.subr.mxu0 0.0
        %5031 = vmatpush2.msra.mxu0 0.0
        %5032 = vmatprep.subr.mxu0 0.0
        %5033 = vmatpush2.msra.mxu0 0.0
        %5034 = vmatprep.mubr.f32.mxu0 0.0
        %5035 = vmatmul.mubr.f32.gmra.mxu0 %v4968
        %v5036 = vpop.f32.mrf.mxu0
        %v5037 = vadd.f32 0.0, %v5036
        %v5038 = vpop.f32.mrf.mxu0
        %5039 = vdwg.mxu0
        %5040 = vrot.lane.b32.xlu0 %v3868, 116
        %v5041 = vpop.permute.xlu0 %5040
        %5042 = vrot.lane.b32.xlu0 %v3962, 116
        %v5043 = vpop.permute.xlu0 %5042
        %v5044 = vsel %vm932, %v5041, 0
        %v5046 = vsel %vm932, %v5043, 0
        %5048 = vmatprep.subr.mxu0 0.0
        %5049 = vmatpush1.xpose.msra.mxu0 0.0
        %5050 = vmatprep.subr.mxu0 0.0
        %5051 = vmatpush1.xpose.msra.mxu0 0.0
        %5052 = vmatprep.subr.mxu0 0.0
        %5053 = vmatpush1.xpose.msra.mxu0 0.0
        %5054 = vmatprep.subr.mxu0 0.0
        %5055 = vmatpush1.xpose.msra.mxu0 0.0
        %5056 = vmatprep.subr.mxu0 0.0
        %5057 = vmatpush1.xpose.msra.mxu0 0.0
        %5058 = vmatprep.subr.mxu0 0.0
        %5059 = vmatpush1.xpose.msra.mxu0 0.0
        %5060 = vmatprep.subr.mxu0 0.0
        %5061 = vmatpush1.xpose.msra.mxu0 0.0
        %5062 = vmatprep.subr.mxu0 0.0
        %5063 = vmatpush1.xpose.msra.mxu0 0.0
        %5064 = vmatprep.subr.mxu0 0.0
        %5065 = vmatpush1.xpose.msra.mxu0 0.0
        %5066 = vmatprep.subr.mxu0 0.0
        %5067 = vmatpush1.xpose.msra.mxu0 0.0
        %5068 = vmatprep.subr.mxu0 0.0
        %5069 = vmatpush1.xpose.msra.mxu0 0.0
        %5070 = vmatprep.subr.mxu0 0.0
        %5071 = vmatpush1.xpose.msra.mxu0 0.0
        %5072 = vmatprep.subr.mxu0 0.0
        %5073 = vmatpush1.xpose.msra.mxu0 0.0
        %5074 = vmatprep.subr.mxu0 0.0
        %5075 = vmatpush1.xpose.msra.mxu0 0.0
        %5076 = vmatprep.subr.mxu0 0.0
        %5077 = vmatpush1.xpose.msra.mxu0 0.0
        %5078 = vmatprep.subr.mxu0 0.0
        %5079 = vmatpush1.xpose.msra.mxu0 %v5046
        %5080 = vmatprep.subr.mxu0 0.0
        %5081 = vmatpush2.xpose.msra.mxu0 0.0
        %5082 = vmatprep.subr.mxu0 0.0
        %5083 = vmatpush2.xpose.msra.mxu0 0.0
        %5084 = vmatprep.subr.mxu0 0.0
        %5085 = vmatpush2.xpose.msra.mxu0 0.0
        %5086 = vmatprep.subr.mxu0 0.0
        %5087 = vmatpush2.xpose.msra.mxu0 0.0
        %5088 = vmatprep.subr.mxu0 0.0
        %5089 = vmatpush2.xpose.msra.mxu0 0.0
        %5090 = vmatprep.subr.mxu0 0.0
        %5091 = vmatpush2.xpose.msra.mxu0 0.0
        %5092 = vmatprep.subr.mxu0 0.0
        %5093 = vmatpush2.xpose.msra.mxu0 0.0
        %5094 = vmatprep.subr.mxu0 0.0
        %5095 = vmatpush2.xpose.msra.mxu0 0.0
        %5096 = vmatprep.subr.mxu0 0.0
        %5097 = vmatpush2.xpose.msra.mxu0 0.0
        %5098 = vmatprep.subr.mxu0 0.0
        %5099 = vmatpush2.xpose.msra.mxu0 0.0
        %5100 = vmatprep.subr.mxu0 0.0
        %5101 = vmatpush2.xpose.msra.mxu0 0.0
        %5102 = vmatprep.subr.mxu0 0.0
        %5103 = vmatpush2.xpose.msra.mxu0 0.0
        %5104 = vmatprep.subr.mxu0 0.0
        %5105 = vmatpush2.xpose.msra.mxu0 0.0
        %5106 = vmatprep.subr.mxu0 0.0
        %5107 = vmatpush2.xpose.msra.mxu0 0.0
        %5108 = vmatprep.subr.mxu0 0.0
        %5109 = vmatpush2.xpose.msra.mxu0 0.0
        %5110 = vmatprep.subr.mxu0 0.0
        %5111 = vmatpush2.xpose.msra.mxu0 0.0
        %5112 = vmatprep.mubr.f32.mxu0 0.0
        %5113 = vmatmul.mubr.f32.gmra.mxu0 %v5044
        %v5114 = vpop.f32.mrf.mxu0
        %v5115 = vadd.f32 0.0, %v5114
        %v5116 = vpop.f32.mrf.mxu0
        %5117 = vdwg.mxu0
        %5118 = vrot.lane.b32.xlu0 %v3873, 116
        %v5119 = vpop.permute.xlu0 %5118
        %5120 = vrot.lane.b32.xlu0 %v3967, 116
        %v5121 = vpop.permute.xlu0 %5120
        %v5122 = vsel %vm932, %v5119, 0
        %v5124 = vsel %vm932, %v5121, 0
        %5126 = vmatprep.subr.mxu0 0.0
        %5127 = vmatpush1.xpose.msra.mxu0 0.0
        %5128 = vmatprep.subr.mxu0 0.0
        %5129 = vmatpush1.xpose.msra.mxu0 0.0
        %5130 = vmatprep.subr.mxu0 0.0
        %5131 = vmatpush1.xpose.msra.mxu0 0.0
        %5132 = vmatprep.subr.mxu0 0.0
        %5133 = vmatpush1.xpose.msra.mxu0 0.0
        %5134 = vmatprep.subr.mxu0 0.0
        %5135 = vmatpush1.xpose.msra.mxu0 0.0
        %5136 = vmatprep.subr.mxu0 0.0
        %5137 = vmatpush1.xpose.msra.mxu0 0.0
        %5138 = vmatprep.subr.mxu0 0.0
        %5139 = vmatpush1.xpose.msra.mxu0 0.0
        %5140 = vmatprep.subr.mxu0 0.0
        %5141 = vmatpush1.xpose.msra.mxu0 0.0
        %5142 = vmatprep.subr.mxu0 0.0
        %5143 = vmatpush1.xpose.msra.mxu0 0.0
        %5144 = vmatprep.subr.mxu0 0.0
        %5145 = vmatpush1.xpose.msra.mxu0 0.0
        %5146 = vmatprep.subr.mxu0 0.0
        %5147 = vmatpush1.xpose.msra.mxu0 0.0
        %5148 = vmatprep.subr.mxu0 0.0
        %5149 = vmatpush1.xpose.msra.mxu0 0.0
        %5150 = vmatprep.subr.mxu0 0.0
        %5151 = vmatpush1.xpose.msra.mxu0 0.0
        %5152 = vmatprep.subr.mxu0 0.0
        %5153 = vmatpush1.xpose.msra.mxu0 0.0
        %5154 = vmatprep.subr.mxu0 0.0
        %5155 = vmatpush1.xpose.msra.mxu0 0.0
        %5156 = vmatprep.subr.mxu0 0.0
        %5157 = vmatpush1.xpose.msra.mxu0 %v5124
        %5158 = vmatprep.subr.mxu0 0.0
        %5159 = vmatpush2.xpose.msra.mxu0 0.0
        %5160 = vmatprep.subr.mxu0 0.0
        %5161 = vmatpush2.xpose.msra.mxu0 0.0
        %5162 = vmatprep.subr.mxu0 0.0
        %5163 = vmatpush2.xpose.msra.mxu0 0.0
        %5164 = vmatprep.subr.mxu0 0.0
        %5165 = vmatpush2.xpose.msra.mxu0 0.0
        %5166 = vmatprep.subr.mxu0 0.0
        %5167 = vmatpush2.xpose.msra.mxu0 0.0
        %5168 = vmatprep.subr.mxu0 0.0
        %5169 = vmatpush2.xpose.msra.mxu0 0.0
        %5170 = vmatprep.subr.mxu0 0.0
        %5171 = vmatpush2.xpose.msra.mxu0 0.0
        %5172 = vmatprep.subr.mxu0 0.0
        %5173 = vmatpush2.xpose.msra.mxu0 0.0
        %5174 = vmatprep.subr.mxu0 0.0
        %5175 = vmatpush2.xpose.msra.mxu0 0.0
        %5176 = vmatprep.subr.mxu0 0.0
        %5177 = vmatpush2.xpose.msra.mxu0 0.0
        %5178 = vmatprep.subr.mxu0 0.0
        %5179 = vmatpush2.xpose.msra.mxu0 0.0
        %5180 = vmatprep.subr.mxu0 0.0
        %5181 = vmatpush2.xpose.msra.mxu0 0.0
        %5182 = vmatprep.subr.mxu0 0.0
        %5183 = vmatpush2.xpose.msra.mxu0 0.0
        %5184 = vmatprep.subr.mxu0 0.0
        %5185 = vmatpush2.xpose.msra.mxu0 0.0
        %5186 = vmatprep.subr.mxu0 0.0
        %5187 = vmatpush2.xpose.msra.mxu0 0.0
        %5188 = vmatprep.subr.mxu0 0.0
        %5189 = vmatpush2.xpose.msra.mxu0 0.0
        %5190 = vmatprep.mubr.f32.mxu0 0.0
        %5191 = vmatmul.mubr.f32.gmra.mxu0 %v5122
        %v5192 = vpop.f32.mrf.mxu0
        %v5193 = vadd.f32 0.0, %v5192
        %v5194 = vpop.f32.mrf.mxu0
        %5195 = vdwg.mxu0
        %v5196 = vsel %vm1085, %v5115, -inf
        %5197 = vmax.xlane.f32.xlu0 %v5196
        %v5198 = vpop.xlane.xlu0 %5197
        %v5199 = vsel %vm1085, %v5193, -inf
        %5200 = vmax.xlane.f32.xlu0 %v5199
        %v5201 = vpop.xlane.xlu0 %5200
        %v5202 = vsub.f32 %v5115, %v5198
        %v5203 = vsub.f32 %v5193, %v5201
        %v5204 = vmul.f32 %v5202, 1.442695
        %v5205 = vpow.pop %v5204
        %v5206 = vmul.f32 %v5203, 1.442695
        %v5207 = vpow.pop %v5206
        %v5208 = vsel %vm1085, %v5205, 0.0
        %5209 = vadd.xlane.f32.xlu0 %v5208
        %v5210 = vpop.xlane.xlu0 %5209
        %v5211 = vsel %vm1085, %v5207, 0.0
        %5212 = vadd.xlane.f32.xlu0 %v5211
        %v5213 = vpop.xlane.xlu0 %5212
        %v5214 = vrcp.pop %v5210
        %v5215 = vmul.f32 %v5205, %v5214
        %v5216 = vrcp.pop %v5213
        %v5217 = vmul.f32 %v5207, %v5216
        %5218 = vrot.lane.b32.xlu0 %v4050, 116
        %v5219 = vpop.permute.xlu0 %5218
        %v5222 = vsel %vm1085, %v5215, 0
        %5224 = vmatprep.subr.mxu0 0.0
        %5225 = vmatpush1.msra.mxu0 0.0
        %5226 = vmatprep.subr.mxu0 0.0
        %5227 = vmatpush1.msra.mxu0 0.0
        %5228 = vmatprep.subr.mxu0 0.0
        %5229 = vmatpush1.msra.mxu0 0.0
        %5230 = vmatprep.subr.mxu0 0.0
        %5231 = vmatpush1.msra.mxu0 0.0
        %5232 = vmatprep.subr.mxu0 0.0
        %5233 = vmatpush1.msra.mxu0 0.0
        %5234 = vmatprep.subr.mxu0 0.0
        %5235 = vmatpush1.msra.mxu0 0.0
        %5236 = vmatprep.subr.mxu0 0.0
        %5237 = vmatpush1.msra.mxu0 0.0
        %5238 = vmatprep.subr.mxu0 0.0
        %5239 = vmatpush1.msra.mxu0 0.0
        %5240 = vmatprep.subr.mxu0 0.0
        %5241 = vmatpush1.msra.mxu0 0.0
        %5242 = vmatprep.subr.mxu0 0.0
        %5243 = vmatpush1.msra.mxu0 0.0
        %5244 = vmatprep.subr.mxu0 0.0
        %5245 = vmatpush1.msra.mxu0 0.0
        %5246 = vmatprep.subr.mxu0 0.0
        %5247 = vmatpush1.msra.mxu0 0.0
        %5248 = vmatprep.subr.mxu0 0.0
        %5249 = vmatpush1.msra.mxu0 0.0
        %5250 = vmatprep.subr.mxu0 0.0
        %5251 = vmatpush1.msra.mxu0 0.0
        %5252 = vmatprep.subr.mxu0 0.0
        %5253 = vmatpush1.msra.mxu0 0.0
        %5254 = vmatprep.subr.mxu0 0.0
        %5255 = vmatpush1.msra.mxu0 %v5219
        %5256 = vmatprep.subr.mxu0 0.0
        %5257 = vmatpush2.msra.mxu0 0.0
        %5258 = vmatprep.subr.mxu0 0.0
        %5259 = vmatpush2.msra.mxu0 0.0
        %5260 = vmatprep.subr.mxu0 0.0
        %5261 = vmatpush2.msra.mxu0 0.0
        %5262 = vmatprep.subr.mxu0 0.0
        %5263 = vmatpush2.msra.mxu0 0.0
        %5264 = vmatprep.subr.mxu0 0.0
        %5265 = vmatpush2.msra.mxu0 0.0
        %5266 = vmatprep.subr.mxu0 0.0
        %5267 = vmatpush2.msra.mxu0 0.0
        %5268 = vmatprep.subr.mxu0 0.0
        %5269 = vmatpush2.msra.mxu0 0.0
        %5270 = vmatprep.subr.mxu0 0.0
        %5271 = vmatpush2.msra.mxu0 0.0
        %5272 = vmatprep.subr.mxu0 0.0
        %5273 = vmatpush2.msra.mxu0 0.0
        %5274 = vmatprep.subr.mxu0 0.0
        %5275 = vmatpush2.msra.mxu0 0.0
        %5276 = vmatprep.subr.mxu0 0.0
        %5277 = vmatpush2.msra.mxu0 0.0
        %5278 = vmatprep.subr.mxu0 0.0
        %5279 = vmatpush2.msra.mxu0 0.0
        %5280 = vmatprep.subr.mxu0 0.0
        %5281 = vmatpush2.msra.mxu0 0.0
        %5282 = vmatprep.subr.mxu0 0.0
        %5283 = vmatpush2.msra.mxu0 0.0
        %5284 = vmatprep.subr.mxu0 0.0
        %5285 = vmatpush2.msra.mxu0 0.0
        %5286 = vmatprep.subr.mxu0 0.0
        %5287 = vmatpush2.msra.mxu0 0.0
        %5288 = vmatprep.mubr.f32.mxu0 0.0
        %5289 = vmatmul.mubr.f32.gmra.mxu0 %v5222
        %v5290 = vpop.f32.mrf.mxu0
        %v5291 = vadd.f32 0.0, %v5290
        %v5292 = vpop.f32.mrf.mxu0
        %5293 = vdwg.mxu0
        %5294 = vrot.lane.b32.xlu0 %v4055, 116
        %v5295 = vpop.permute.xlu0 %5294
        %v5298 = vsel %vm1085, %v5217, 0
        %5300 = vmatprep.subr.mxu0 0.0
        %5301 = vmatpush1.msra.mxu0 0.0
        %5302 = vmatprep.subr.mxu0 0.0
        %5303 = vmatpush1.msra.mxu0 0.0
        %5304 = vmatprep.subr.mxu0 0.0
        %5305 = vmatpush1.msra.mxu0 0.0
        %5306 = vmatprep.subr.mxu0 0.0
        %5307 = vmatpush1.msra.mxu0 0.0
        %5308 = vmatprep.subr.mxu0 0.0
        %5309 = vmatpush1.msra.mxu0 0.0
        %5310 = vmatprep.subr.mxu0 0.0
        %5311 = vmatpush1.msra.mxu0 0.0
        %5312 = vmatprep.subr.mxu0 0.0
        %5313 = vmatpush1.msra.mxu0 0.0
        %5314 = vmatprep.subr.mxu0 0.0
        %5315 = vmatpush1.msra.mxu0 0.0
        %5316 = vmatprep.subr.mxu0 0.0
        %5317 = vmatpush1.msra.mxu0 0.0
        %5318 = vmatprep.subr.mxu0 0.0
        %5319 = vmatpush1.msra.mxu0 0.0
        %5320 = vmatprep.subr.mxu0 0.0
        %5321 = vmatpush1.msra.mxu0 0.0
        %5322 = vmatprep.subr.mxu0 0.0
        %5323 = vmatpush1.msra.mxu0 0.0
        %5324 = vmatprep.subr.mxu0 0.0
        %5325 = vmatpush1.msra.mxu0 0.0
        %5326 = vmatprep.subr.mxu0 0.0
        %5327 = vmatpush1.msra.mxu0 0.0
        %5328 = vmatprep.subr.mxu0 0.0
        %5329 = vmatpush1.msra.mxu0 0.0
        %5330 = vmatprep.subr.mxu0 0.0
        %5331 = vmatpush1.msra.mxu0 %v5295
        %5332 = vmatprep.subr.mxu0 0.0
        %5333 = vmatpush2.msra.mxu0 0.0
        %5334 = vmatprep.subr.mxu0 0.0
        %5335 = vmatpush2.msra.mxu0 0.0
        %5336 = vmatprep.subr.mxu0 0.0
        %5337 = vmatpush2.msra.mxu0 0.0
        %5338 = vmatprep.subr.mxu0 0.0
        %5339 = vmatpush2.msra.mxu0 0.0
        %5340 = vmatprep.subr.mxu0 0.0
        %5341 = vmatpush2.msra.mxu0 0.0
        %5342 = vmatprep.subr.mxu0 0.0
        %5343 = vmatpush2.msra.mxu0 0.0
        %5344 = vmatprep.subr.mxu0 0.0
        %5345 = vmatpush2.msra.mxu0 0.0
        %5346 = vmatprep.subr.mxu0 0.0
        %5347 = vmatpush2.msra.mxu0 0.0
        %5348 = vmatprep.subr.mxu0 0.0
        %5349 = vmatpush2.msra.mxu0 0.0
        %5350 = vmatprep.subr.mxu0 0.0
        %5351 = vmatpush2.msra.mxu0 0.0
        %5352 = vmatprep.subr.mxu0 0.0
        %5353 = vmatpush2.msra.mxu0 0.0
        %5354 = vmatprep.subr.mxu0 0.0
        %5355 = vmatpush2.msra.mxu0 0.0
        %5356 = vmatprep.subr.mxu0 0.0
        %5357 = vmatpush2.msra.mxu0 0.0
        %5358 = vmatprep.subr.mxu0 0.0
        %5359 = vmatpush2.msra.mxu0 0.0
        %5360 = vmatprep.subr.mxu0 0.0
        %5361 = vmatpush2.msra.mxu0 0.0
        %5362 = vmatprep.subr.mxu0 0.0
        %5363 = vmatpush2.msra.mxu0 0.0
        %5364 = vmatprep.mubr.f32.mxu0 0.0
        %5365 = vmatmul.mubr.f32.gmra.mxu0 %v5298
        %v5366 = vpop.f32.mrf.mxu0
        %v5367 = vadd.f32 0.0, %v5366
        %v5368 = vpop.f32.mrf.mxu0
        %5369 = vdwg.mxu0
        %5370 = vrot.lane.b32.xlu0 %v3868, 112
        %v5371 = vpop.permute.xlu0 %5370
        %5372 = vrot.lane.b32.xlu0 %v3962, 112
        %v5373 = vpop.permute.xlu0 %5372
        %v5374 = vsel %vm932, %v5371, 0
        %v5376 = vsel %vm932, %v5373, 0
        %5378 = vmatprep.subr.mxu0 0.0
        %5379 = vmatpush1.xpose.msra.mxu0 0.0
        %5380 = vmatprep.subr.mxu0 0.0
        %5381 = vmatpush1.xpose.msra.mxu0 0.0
        %5382 = vmatprep.subr.mxu0 0.0
        %5383 = vmatpush1.xpose.msra.mxu0 0.0
        %5384 = vmatprep.subr.mxu0 0.0
        %5385 = vmatpush1.xpose.msra.mxu0 0.0
        %5386 = vmatprep.subr.mxu0 0.0
        %5387 = vmatpush1.xpose.msra.mxu0 0.0
        %5388 = vmatprep.subr.mxu0 0.0
        %5389 = vmatpush1.xpose.msra.mxu0 0.0
        %5390 = vmatprep.subr.mxu0 0.0
        %5391 = vmatpush1.xpose.msra.mxu0 0.0
        %5392 = vmatprep.subr.mxu0 0.0
        %5393 = vmatpush1.xpose.msra.mxu0 0.0
        %5394 = vmatprep.subr.mxu0 0.0
        %5395 = vmatpush1.xpose.msra.mxu0 0.0
        %5396 = vmatprep.subr.mxu0 0.0
        %5397 = vmatpush1.xpose.msra.mxu0 0.0
        %5398 = vmatprep.subr.mxu0 0.0
        %5399 = vmatpush1.xpose.msra.mxu0 0.0
        %5400 = vmatprep.subr.mxu0 0.0
        %5401 = vmatpush1.xpose.msra.mxu0 0.0
        %5402 = vmatprep.subr.mxu0 0.0
        %5403 = vmatpush1.xpose.msra.mxu0 0.0
        %5404 = vmatprep.subr.mxu0 0.0
        %5405 = vmatpush1.xpose.msra.mxu0 0.0
        %5406 = vmatprep.subr.mxu0 0.0
        %5407 = vmatpush1.xpose.msra.mxu0 0.0
        %5408 = vmatprep.subr.mxu0 0.0
        %5409 = vmatpush1.xpose.msra.mxu0 %v5376
        %5410 = vmatprep.subr.mxu0 0.0
        %5411 = vmatpush2.xpose.msra.mxu0 0.0
        %5412 = vmatprep.subr.mxu0 0.0
        %5413 = vmatpush2.xpose.msra.mxu0 0.0
        %5414 = vmatprep.subr.mxu0 0.0
        %5415 = vmatpush2.xpose.msra.mxu0 0.0
        %5416 = vmatprep.subr.mxu0 0.0
        %5417 = vmatpush2.xpose.msra.mxu0 0.0
        %5418 = vmatprep.subr.mxu0 0.0
        %5419 = vmatpush2.xpose.msra.mxu0 0.0
        %5420 = vmatprep.subr.mxu0 0.0
        %5421 = vmatpush2.xpose.msra.mxu0 0.0
        %5422 = vmatprep.subr.mxu0 0.0
        %5423 = vmatpush2.xpose.msra.mxu0 0.0
        %5424 = vmatprep.subr.mxu0 0.0
        %5425 = vmatpush2.xpose.msra.mxu0 0.0
        %5426 = vmatprep.subr.mxu0 0.0
        %5427 = vmatpush2.xpose.msra.mxu0 0.0
        %5428 = vmatprep.subr.mxu0 0.0
        %5429 = vmatpush2.xpose.msra.mxu0 0.0
        %5430 = vmatprep.subr.mxu0 0.0
        %5431 = vmatpush2.xpose.msra.mxu0 0.0
        %5432 = vmatprep.subr.mxu0 0.0
        %5433 = vmatpush2.xpose.msra.mxu0 0.0
        %5434 = vmatprep.subr.mxu0 0.0
        %5435 = vmatpush2.xpose.msra.mxu0 0.0
        %5436 = vmatprep.subr.mxu0 0.0
        %5437 = vmatpush2.xpose.msra.mxu0 0.0
        %5438 = vmatprep.subr.mxu0 0.0
        %5439 = vmatpush2.xpose.msra.mxu0 0.0
        %5440 = vmatprep.subr.mxu0 0.0
        %5441 = vmatpush2.xpose.msra.mxu0 0.0
        %5442 = vmatprep.mubr.f32.mxu0 0.0
        %5443 = vmatmul.mubr.f32.gmra.mxu0 %v5374
        %v5444 = vpop.f32.mrf.mxu0
        %v5445 = vadd.f32 0.0, %v5444
        %v5446 = vpop.f32.mrf.mxu0
        %5447 = vdwg.mxu0
        %5448 = vrot.lane.b32.xlu0 %v3873, 112
        %v5449 = vpop.permute.xlu0 %5448
        %5450 = vrot.lane.b32.xlu0 %v3967, 112
        %v5451 = vpop.permute.xlu0 %5450
        %v5452 = vsel %vm932, %v5449, 0
        %v5454 = vsel %vm932, %v5451, 0
        %5456 = vmatprep.subr.mxu0 0.0
        %5457 = vmatpush1.xpose.msra.mxu0 0.0
        %5458 = vmatprep.subr.mxu0 0.0
        %5459 = vmatpush1.xpose.msra.mxu0 0.0
        %5460 = vmatprep.subr.mxu0 0.0
        %5461 = vmatpush1.xpose.msra.mxu0 0.0
        %5462 = vmatprep.subr.mxu0 0.0
        %5463 = vmatpush1.xpose.msra.mxu0 0.0
        %5464 = vmatprep.subr.mxu0 0.0
        %5465 = vmatpush1.xpose.msra.mxu0 0.0
        %5466 = vmatprep.subr.mxu0 0.0
        %5467 = vmatpush1.xpose.msra.mxu0 0.0
        %5468 = vmatprep.subr.mxu0 0.0
        %5469 = vmatpush1.xpose.msra.mxu0 0.0
        %5470 = vmatprep.subr.mxu0 0.0
        %5471 = vmatpush1.xpose.msra.mxu0 0.0
        %5472 = vmatprep.subr.mxu0 0.0
        %5473 = vmatpush1.xpose.msra.mxu0 0.0
        %5474 = vmatprep.subr.mxu0 0.0
        %5475 = vmatpush1.xpose.msra.mxu0 0.0
        %5476 = vmatprep.subr.mxu0 0.0
        %5477 = vmatpush1.xpose.msra.mxu0 0.0
        %5478 = vmatprep.subr.mxu0 0.0
        %5479 = vmatpush1.xpose.msra.mxu0 0.0
        %5480 = vmatprep.subr.mxu0 0.0
        %5481 = vmatpush1.xpose.msra.mxu0 0.0
        %5482 = vmatprep.subr.mxu0 0.0
        %5483 = vmatpush1.xpose.msra.mxu0 0.0
        %5484 = vmatprep.subr.mxu0 0.0
        %5485 = vmatpush1.xpose.msra.mxu0 0.0
        %5486 = vmatprep.subr.mxu0 0.0
        %5487 = vmatpush1.xpose.msra.mxu0 %v5454
        %5488 = vmatprep.subr.mxu0 0.0
        %5489 = vmatpush2.xpose.msra.mxu0 0.0
        %5490 = vmatprep.subr.mxu0 0.0
        %5491 = vmatpush2.xpose.msra.mxu0 0.0
        %5492 = vmatprep.subr.mxu0 0.0
        %5493 = vmatpush2.xpose.msra.mxu0 0.0
        %5494 = vmatprep.subr.mxu0 0.0
        %5495 = vmatpush2.xpose.msra.mxu0 0.0
        %5496 = vmatprep.subr.mxu0 0.0
        %5497 = vmatpush2.xpose.msra.mxu0 0.0
        %5498 = vmatprep.subr.mxu0 0.0
        %5499 = vmatpush2.xpose.msra.mxu0 0.0
        %5500 = vmatprep.subr.mxu0 0.0
        %5501 = vmatpush2.xpose.msra.mxu0 0.0
        %5502 = vmatprep.subr.mxu0 0.0
        %5503 = vmatpush2.xpose.msra.mxu0 0.0
        %5504 = vmatprep.subr.mxu0 0.0
        %5505 = vmatpush2.xpose.msra.mxu0 0.0
        %5506 = vmatprep.subr.mxu0 0.0
        %5507 = vmatpush2.xpose.msra.mxu0 0.0
        %5508 = vmatprep.subr.mxu0 0.0
        %5509 = vmatpush2.xpose.msra.mxu0 0.0
        %5510 = vmatprep.subr.mxu0 0.0
        %5511 = vmatpush2.xpose.msra.mxu0 0.0
        %5512 = vmatprep.subr.mxu0 0.0
        %5513 = vmatpush2.xpose.msra.mxu0 0.0
        %5514 = vmatprep.subr.mxu0 0.0
        %5515 = vmatpush2.xpose.msra.mxu0 0.0
        %5516 = vmatprep.subr.mxu0 0.0
        %5517 = vmatpush2.xpose.msra.mxu0 0.0
        %5518 = vmatprep.subr.mxu0 0.0
        %5519 = vmatpush2.xpose.msra.mxu0 0.0
        %5520 = vmatprep.mubr.f32.mxu0 0.0
        %5521 = vmatmul.mubr.f32.gmra.mxu0 %v5452
        %v5522 = vpop.f32.mrf.mxu0
        %v5523 = vadd.f32 0.0, %v5522
        %v5524 = vpop.f32.mrf.mxu0
        %5525 = vdwg.mxu0
        %v5526 = vsel %vm1085, %v5445, -inf
        %5527 = vmax.xlane.f32.xlu0 %v5526
        %v5528 = vpop.xlane.xlu0 %5527
        %v5529 = vsel %vm1085, %v5523, -inf
        %5530 = vmax.xlane.f32.xlu0 %v5529
        %v5531 = vpop.xlane.xlu0 %5530
        %v5532 = vsub.f32 %v5445, %v5528
        %v5533 = vsub.f32 %v5523, %v5531
        %v5534 = vmul.f32 %v5532, 1.442695
        %v5535 = vpow.pop %v5534
        %v5536 = vmul.f32 %v5533, 1.442695
        %v5537 = vpow.pop %v5536
        %v5538 = vsel %vm1085, %v5535, 0.0
        %5539 = vadd.xlane.f32.xlu0 %v5538
        %v5540 = vpop.xlane.xlu0 %5539
        %v5541 = vsel %vm1085, %v5537, 0.0
        %5542 = vadd.xlane.f32.xlu0 %v5541
        %v5543 = vpop.xlane.xlu0 %5542
        %v5544 = vrcp.pop %v5540
        %v5545 = vmul.f32 %v5535, %v5544
        %v5546 = vrcp.pop %v5543
        %v5547 = vmul.f32 %v5537, %v5546
        %5548 = vrot.lane.b32.xlu0 %v4050, 112
        %v5549 = vpop.permute.xlu0 %5548
        %v5552 = vsel %vm1085, %v5545, 0
        %5554 = vmatprep.subr.mxu0 0.0
        %5555 = vmatpush1.msra.mxu0 0.0
        %5556 = vmatprep.subr.mxu0 0.0
        %5557 = vmatpush1.msra.mxu0 0.0
        %5558 = vmatprep.subr.mxu0 0.0
        %5559 = vmatpush1.msra.mxu0 0.0
        %5560 = vmatprep.subr.mxu0 0.0
        %5561 = vmatpush1.msra.mxu0 0.0
        %5562 = vmatprep.subr.mxu0 0.0
        %5563 = vmatpush1.msra.mxu0 0.0
        %5564 = vmatprep.subr.mxu0 0.0
        %5565 = vmatpush1.msra.mxu0 0.0
        %5566 = vmatprep.subr.mxu0 0.0
        %5567 = vmatpush1.msra.mxu0 0.0
        %5568 = vmatprep.subr.mxu0 0.0
        %5569 = vmatpush1.msra.mxu0 0.0
        %5570 = vmatprep.subr.mxu0 0.0
        %5571 = vmatpush1.msra.mxu0 0.0
        %5572 = vmatprep.subr.mxu0 0.0
        %5573 = vmatpush1.msra.mxu0 0.0
        %5574 = vmatprep.subr.mxu0 0.0
        %5575 = vmatpush1.msra.mxu0 0.0
        %5576 = vmatprep.subr.mxu0 0.0
        %5577 = vmatpush1.msra.mxu0 0.0
        %5578 = vmatprep.subr.mxu0 0.0
        %5579 = vmatpush1.msra.mxu0 0.0
        %5580 = vmatprep.subr.mxu0 0.0
        %5581 = vmatpush1.msra.mxu0 0.0
        %5582 = vmatprep.subr.mxu0 0.0
        %5583 = vmatpush1.msra.mxu0 0.0
        %5584 = vmatprep.subr.mxu0 0.0
        %5585 = vmatpush1.msra.mxu0 %v5549
        %5586 = vmatprep.subr.mxu0 0.0
        %5587 = vmatpush2.msra.mxu0 0.0
        %5588 = vmatprep.subr.mxu0 0.0
        %5589 = vmatpush2.msra.mxu0 0.0
        %5590 = vmatprep.subr.mxu0 0.0
        %5591 = vmatpush2.msra.mxu0 0.0
        %5592 = vmatprep.subr.mxu0 0.0
        %5593 = vmatpush2.msra.mxu0 0.0
        %5594 = vmatprep.subr.mxu0 0.0
        %5595 = vmatpush2.msra.mxu0 0.0
        %5596 = vmatprep.subr.mxu0 0.0
        %5597 = vmatpush2.msra.mxu0 0.0
        %5598 = vmatprep.subr.mxu0 0.0
        %5599 = vmatpush2.msra.mxu0 0.0
        %5600 = vmatprep.subr.mxu0 0.0
        %5601 = vmatpush2.msra.mxu0 0.0
        %5602 = vmatprep.subr.mxu0 0.0
        %5603 = vmatpush2.msra.mxu0 0.0
        %5604 = vmatprep.subr.mxu0 0.0
        %5605 = vmatpush2.msra.mxu0 0.0
        %5606 = vmatprep.subr.mxu0 0.0
        %5607 = vmatpush2.msra.mxu0 0.0
        %5608 = vmatprep.subr.mxu0 0.0
        %5609 = vmatpush2.msra.mxu0 0.0
        %5610 = vmatprep.subr.mxu0 0.0
        %5611 = vmatpush2.msra.mxu0 0.0
        %5612 = vmatprep.subr.mxu0 0.0
        %5613 = vmatpush2.msra.mxu0 0.0
        %5614 = vmatprep.subr.mxu0 0.0
        %5615 = vmatpush2.msra.mxu0 0.0
        %5616 = vmatprep.subr.mxu0 0.0
        %5617 = vmatpush2.msra.mxu0 0.0
        %5618 = vmatprep.mubr.f32.mxu0 0.0
        %5619 = vmatmul.mubr.f32.gmra.mxu0 %v5552
        %v5620 = vpop.f32.mrf.mxu0
        %v5621 = vadd.f32 0.0, %v5620
        %v5622 = vpop.f32.mrf.mxu0
        %5623 = vdwg.mxu0
        %5624 = vrot.lane.b32.xlu0 %v4055, 112
        %v5625 = vpop.permute.xlu0 %5624
        %v5628 = vsel %vm1085, %v5547, 0
        %5630 = vmatprep.subr.mxu0 0.0
        %5631 = vmatpush1.msra.mxu0 0.0
        %5632 = vmatprep.subr.mxu0 0.0
        %5633 = vmatpush1.msra.mxu0 0.0
        %5634 = vmatprep.subr.mxu0 0.0
        %5635 = vmatpush1.msra.mxu0 0.0
        %5636 = vmatprep.subr.mxu0 0.0
        %5637 = vmatpush1.msra.mxu0 0.0
        %5638 = vmatprep.subr.mxu0 0.0
        %5639 = vmatpush1.msra.mxu0 0.0
        %5640 = vmatprep.subr.mxu0 0.0
        %5641 = vmatpush1.msra.mxu0 0.0
        %5642 = vmatprep.subr.mxu0 0.0
        %5643 = vmatpush1.msra.mxu0 0.0
        %5644 = vmatprep.subr.mxu0 0.0
        %5645 = vmatpush1.msra.mxu0 0.0
        %5646 = vmatprep.subr.mxu0 0.0
        %5647 = vmatpush1.msra.mxu0 0.0
        %5648 = vmatprep.subr.mxu0 0.0
        %5649 = vmatpush1.msra.mxu0 0.0
        %5650 = vmatprep.subr.mxu0 0.0
        %5651 = vmatpush1.msra.mxu0 0.0
        %5652 = vmatprep.subr.mxu0 0.0
        %5653 = vmatpush1.msra.mxu0 0.0
        %5654 = vmatprep.subr.mxu0 0.0
        %5655 = vmatpush1.msra.mxu0 0.0
        %5656 = vmatprep.subr.mxu0 0.0
        %5657 = vmatpush1.msra.mxu0 0.0
        %5658 = vmatprep.subr.mxu0 0.0
        %5659 = vmatpush1.msra.mxu0 0.0
        %5660 = vmatprep.subr.mxu0 0.0
        %5661 = vmatpush1.msra.mxu0 %v5625
        %5662 = vmatprep.subr.mxu0 0.0
        %5663 = vmatpush2.msra.mxu0 0.0
        %5664 = vmatprep.subr.mxu0 0.0
        %5665 = vmatpush2.msra.mxu0 0.0
        %5666 = vmatprep.subr.mxu0 0.0
        %5667 = vmatpush2.msra.mxu0 0.0
        %5668 = vmatprep.subr.mxu0 0.0
        %5669 = vmatpush2.msra.mxu0 0.0
        %5670 = vmatprep.subr.mxu0 0.0
        %5671 = vmatpush2.msra.mxu0 0.0
        %5672 = vmatprep.subr.mxu0 0.0
        %5673 = vmatpush2.msra.mxu0 0.0
        %5674 = vmatprep.subr.mxu0 0.0
        %5675 = vmatpush2.msra.mxu0 0.0
        %5676 = vmatprep.subr.mxu0 0.0
        %5677 = vmatpush2.msra.mxu0 0.0
        %5678 = vmatprep.subr.mxu0 0.0
        %5679 = vmatpush2.msra.mxu0 0.0
        %5680 = vmatprep.subr.mxu0 0.0
        %5681 = vmatpush2.msra.mxu0 0.0
        %5682 = vmatprep.subr.mxu0 0.0
        %5683 = vmatpush2.msra.mxu0 0.0
        %5684 = vmatprep.subr.mxu0 0.0
        %5685 = vmatpush2.msra.mxu0 0.0
        %5686 = vmatprep.subr.mxu0 0.0
        %5687 = vmatpush2.msra.mxu0 0.0
        %5688 = vmatprep.subr.mxu0 0.0
        %5689 = vmatpush2.msra.mxu0 0.0
        %5690 = vmatprep.subr.mxu0 0.0
        %5691 = vmatpush2.msra.mxu0 0.0
        %5692 = vmatprep.subr.mxu0 0.0
        %5693 = vmatpush2.msra.mxu0 0.0
        %5694 = vmatprep.mubr.f32.mxu0 0.0
        %5695 = vmatmul.mubr.f32.gmra.mxu0 %v5628
        %v5696 = vpop.f32.mrf.mxu0
        %v5697 = vadd.f32 0.0, %v5696
        %v5698 = vpop.f32.mrf.mxu0
        %5699 = vdwg.mxu0
        %5700 = vrot.lane.b32.xlu0 %v3868, 108
        %v5701 = vpop.permute.xlu0 %5700
        %5702 = vrot.lane.b32.xlu0 %v3962, 108
        %v5703 = vpop.permute.xlu0 %5702
        %v5704 = vsel %vm932, %v5701, 0
        %v5706 = vsel %vm932, %v5703, 0
        %5708 = vmatprep.subr.mxu0 0.0
        %5709 = vmatpush1.xpose.msra.mxu0 0.0
        %5710 = vmatprep.subr.mxu0 0.0
        %5711 = vmatpush1.xpose.msra.mxu0 0.0
        %5712 = vmatprep.subr.mxu0 0.0
        %5713 = vmatpush1.xpose.msra.mxu0 0.0
        %5714 = vmatprep.subr.mxu0 0.0
        %5715 = vmatpush1.xpose.msra.mxu0 0.0
        %5716 = vmatprep.subr.mxu0 0.0
        %5717 = vmatpush1.xpose.msra.mxu0 0.0
        %5718 = vmatprep.subr.mxu0 0.0
        %5719 = vmatpush1.xpose.msra.mxu0 0.0
        %5720 = vmatprep.subr.mxu0 0.0
        %5721 = vmatpush1.xpose.msra.mxu0 0.0
        %5722 = vmatprep.subr.mxu0 0.0
        %5723 = vmatpush1.xpose.msra.mxu0 0.0
        %5724 = vmatprep.subr.mxu0 0.0
        %5725 = vmatpush1.xpose.msra.mxu0 0.0
        %5726 = vmatprep.subr.mxu0 0.0
        %5727 = vmatpush1.xpose.msra.mxu0 0.0
        %5728 = vmatprep.subr.mxu0 0.0
        %5729 = vmatpush1.xpose.msra.mxu0 0.0
        %5730 = vmatprep.subr.mxu0 0.0
        %5731 = vmatpush1.xpose.msra.mxu0 0.0
        %5732 = vmatprep.subr.mxu0 0.0
        %5733 = vmatpush1.xpose.msra.mxu0 0.0
        %5734 = vmatprep.subr.mxu0 0.0
        %5735 = vmatpush1.xpose.msra.mxu0 0.0
        %5736 = vmatprep.subr.mxu0 0.0
        %5737 = vmatpush1.xpose.msra.mxu0 0.0
        %5738 = vmatprep.subr.mxu0 0.0
        %5739 = vmatpush1.xpose.msra.mxu0 %v5706
        %5740 = vmatprep.subr.mxu0 0.0
        %5741 = vmatpush2.xpose.msra.mxu0 0.0
        %5742 = vmatprep.subr.mxu0 0.0
        %5743 = vmatpush2.xpose.msra.mxu0 0.0
        %5744 = vmatprep.subr.mxu0 0.0
        %5745 = vmatpush2.xpose.msra.mxu0 0.0
        %5746 = vmatprep.subr.mxu0 0.0
        %5747 = vmatpush2.xpose.msra.mxu0 0.0
        %5748 = vmatprep.subr.mxu0 0.0
        %5749 = vmatpush2.xpose.msra.mxu0 0.0
        %5750 = vmatprep.subr.mxu0 0.0
        %5751 = vmatpush2.xpose.msra.mxu0 0.0
        %5752 = vmatprep.subr.mxu0 0.0
        %5753 = vmatpush2.xpose.msra.mxu0 0.0
        %5754 = vmatprep.subr.mxu0 0.0
        %5755 = vmatpush2.xpose.msra.mxu0 0.0
        %5756 = vmatprep.subr.mxu0 0.0
        %5757 = vmatpush2.xpose.msra.mxu0 0.0
        %5758 = vmatprep.subr.mxu0 0.0
        %5759 = vmatpush2.xpose.msra.mxu0 0.0
        %5760 = vmatprep.subr.mxu0 0.0
        %5761 = vmatpush2.xpose.msra.mxu0 0.0
        %5762 = vmatprep.subr.mxu0 0.0
        %5763 = vmatpush2.xpose.msra.mxu0 0.0
        %5764 = vmatprep.subr.mxu0 0.0
        %5765 = vmatpush2.xpose.msra.mxu0 0.0
        %5766 = vmatprep.subr.mxu0 0.0
        %5767 = vmatpush2.xpose.msra.mxu0 0.0
        %5768 = vmatprep.subr.mxu0 0.0
        %5769 = vmatpush2.xpose.msra.mxu0 0.0
        %5770 = vmatprep.subr.mxu0 0.0
        %5771 = vmatpush2.xpose.msra.mxu0 0.0
        %5772 = vmatprep.mubr.f32.mxu0 0.0
        %5773 = vmatmul.mubr.f32.gmra.mxu0 %v5704
        %v5774 = vpop.f32.mrf.mxu0
        %v5775 = vadd.f32 0.0, %v5774
        %v5776 = vpop.f32.mrf.mxu0
        %5777 = vdwg.mxu0
        %5778 = vrot.lane.b32.xlu0 %v3873, 108
        %v5779 = vpop.permute.xlu0 %5778
        %5780 = vrot.lane.b32.xlu0 %v3967, 108
        %v5781 = vpop.permute.xlu0 %5780
        %v5782 = vsel %vm932, %v5779, 0
        %v5784 = vsel %vm932, %v5781, 0
        %5786 = vmatprep.subr.mxu0 0.0
        %5787 = vmatpush1.xpose.msra.mxu0 0.0
        %5788 = vmatprep.subr.mxu0 0.0
        %5789 = vmatpush1.xpose.msra.mxu0 0.0
        %5790 = vmatprep.subr.mxu0 0.0
        %5791 = vmatpush1.xpose.msra.mxu0 0.0
        %5792 = vmatprep.subr.mxu0 0.0
        %5793 = vmatpush1.xpose.msra.mxu0 0.0
        %5794 = vmatprep.subr.mxu0 0.0
        %5795 = vmatpush1.xpose.msra.mxu0 0.0
        %5796 = vmatprep.subr.mxu0 0.0
        %5797 = vmatpush1.xpose.msra.mxu0 0.0
        %5798 = vmatprep.subr.mxu0 0.0
        %5799 = vmatpush1.xpose.msra.mxu0 0.0
        %5800 = vmatprep.subr.mxu0 0.0
        %5801 = vmatpush1.xpose.msra.mxu0 0.0
        %5802 = vmatprep.subr.mxu0 0.0
        %5803 = vmatpush1.xpose.msra.mxu0 0.0
        %5804 = vmatprep.subr.mxu0 0.0
        %5805 = vmatpush1.xpose.msra.mxu0 0.0
        %5806 = vmatprep.subr.mxu0 0.0
        %5807 = vmatpush1.xpose.msra.mxu0 0.0
        %5808 = vmatprep.subr.mxu0 0.0
        %5809 = vmatpush1.xpose.msra.mxu0 0.0
        %5810 = vmatprep.subr.mxu0 0.0
        %5811 = vmatpush1.xpose.msra.mxu0 0.0
        %5812 = vmatprep.subr.mxu0 0.0
        %5813 = vmatpush1.xpose.msra.mxu0 0.0
        %5814 = vmatprep.subr.mxu0 0.0
        %5815 = vmatpush1.xpose.msra.mxu0 0.0
        %5816 = vmatprep.subr.mxu0 0.0
        %5817 = vmatpush1.xpose.msra.mxu0 %v5784
        %5818 = vmatprep.subr.mxu0 0.0
        %5819 = vmatpush2.xpose.msra.mxu0 0.0
        %5820 = vmatprep.subr.mxu0 0.0
        %5821 = vmatpush2.xpose.msra.mxu0 0.0
        %5822 = vmatprep.subr.mxu0 0.0
        %5823 = vmatpush2.xpose.msra.mxu0 0.0
        %5824 = vmatprep.subr.mxu0 0.0
        %5825 = vmatpush2.xpose.msra.mxu0 0.0
        %5826 = vmatprep.subr.mxu0 0.0
        %5827 = vmatpush2.xpose.msra.mxu0 0.0
        %5828 = vmatprep.subr.mxu0 0.0
        %5829 = vmatpush2.xpose.msra.mxu0 0.0
        %5830 = vmatprep.subr.mxu0 0.0
        %5831 = vmatpush2.xpose.msra.mxu0 0.0
        %5832 = vmatprep.subr.mxu0 0.0
        %5833 = vmatpush2.xpose.msra.mxu0 0.0
        %5834 = vmatprep.subr.mxu0 0.0
        %5835 = vmatpush2.xpose.msra.mxu0 0.0
        %5836 = vmatprep.subr.mxu0 0.0
        %5837 = vmatpush2.xpose.msra.mxu0 0.0
        %5838 = vmatprep.subr.mxu0 0.0
        %5839 = vmatpush2.xpose.msra.mxu0 0.0
        %5840 = vmatprep.subr.mxu0 0.0
        %5841 = vmatpush2.xpose.msra.mxu0 0.0
        %5842 = vmatprep.subr.mxu0 0.0
        %5843 = vmatpush2.xpose.msra.mxu0 0.0
        %5844 = vmatprep.subr.mxu0 0.0
        %5845 = vmatpush2.xpose.msra.mxu0 0.0
        %5846 = vmatprep.subr.mxu0 0.0
        %5847 = vmatpush2.xpose.msra.mxu0 0.0
        %5848 = vmatprep.subr.mxu0 0.0
        %5849 = vmatpush2.xpose.msra.mxu0 0.0
        %5850 = vmatprep.mubr.f32.mxu0 0.0
        %5851 = vmatmul.mubr.f32.gmra.mxu0 %v5782
        %v5852 = vpop.f32.mrf.mxu0
        %v5853 = vadd.f32 0.0, %v5852
        %v5854 = vpop.f32.mrf.mxu0
        %5855 = vdwg.mxu0
        %v5856 = vsel %vm1085, %v5775, -inf
        %5857 = vmax.xlane.f32.xlu0 %v5856
        %v5858 = vpop.xlane.xlu0 %5857
        %v5859 = vsel %vm1085, %v5853, -inf
        %5860 = vmax.xlane.f32.xlu0 %v5859
        %v5861 = vpop.xlane.xlu0 %5860
        %v5862 = vsub.f32 %v5775, %v5858
        %v5863 = vsub.f32 %v5853, %v5861
        %v5864 = vmul.f32 %v5862, 1.442695
        %v5865 = vpow.pop %v5864
        %v5866 = vmul.f32 %v5863, 1.442695
        %v5867 = vpow.pop %v5866
        %v5868 = vsel %vm1085, %v5865, 0.0
        %5869 = vadd.xlane.f32.xlu0 %v5868
        %v5870 = vpop.xlane.xlu0 %5869
        %v5871 = vsel %vm1085, %v5867, 0.0
        %5872 = vadd.xlane.f32.xlu0 %v5871
        %v5873 = vpop.xlane.xlu0 %5872
        %v5874 = vrcp.pop %v5870
        %v5875 = vmul.f32 %v5865, %v5874
        %v5876 = vrcp.pop %v5873
        %v5877 = vmul.f32 %v5867, %v5876
        %5878 = vrot.lane.b32.xlu0 %v4050, 108
        %v5879 = vpop.permute.xlu0 %5878
        %v5882 = vsel %vm1085, %v5875, 0
        %5884 = vmatprep.subr.mxu0 0.0
        %5885 = vmatpush1.msra.mxu0 0.0
        %5886 = vmatprep.subr.mxu0 0.0
        %5887 = vmatpush1.msra.mxu0 0.0
        %5888 = vmatprep.subr.mxu0 0.0
        %5889 = vmatpush1.msra.mxu0 0.0
        %5890 = vmatprep.subr.mxu0 0.0
        %5891 = vmatpush1.msra.mxu0 0.0
        %5892 = vmatprep.subr.mxu0 0.0
        %5893 = vmatpush1.msra.mxu0 0.0
        %5894 = vmatprep.subr.mxu0 0.0
        %5895 = vmatpush1.msra.mxu0 0.0
        %5896 = vmatprep.subr.mxu0 0.0
        %5897 = vmatpush1.msra.mxu0 0.0
        %5898 = vmatprep.subr.mxu0 0.0
        %5899 = vmatpush1.msra.mxu0 0.0
        %5900 = vmatprep.subr.mxu0 0.0
        %5901 = vmatpush1.msra.mxu0 0.0
        %5902 = vmatprep.subr.mxu0 0.0
        %5903 = vmatpush1.msra.mxu0 0.0
        %5904 = vmatprep.subr.mxu0 0.0
        %5905 = vmatpush1.msra.mxu0 0.0
        %5906 = vmatprep.subr.mxu0 0.0
        %5907 = vmatpush1.msra.mxu0 0.0
        %5908 = vmatprep.subr.mxu0 0.0
        %5909 = vmatpush1.msra.mxu0 0.0
        %5910 = vmatprep.subr.mxu0 0.0
        %5911 = vmatpush1.msra.mxu0 0.0
        %5912 = vmatprep.subr.mxu0 0.0
        %5913 = vmatpush1.msra.mxu0 0.0
        %5914 = vmatprep.subr.mxu0 0.0
        %5915 = vmatpush1.msra.mxu0 %v5879
        %5916 = vmatprep.subr.mxu0 0.0
        %5917 = vmatpush2.msra.mxu0 0.0
        %5918 = vmatprep.subr.mxu0 0.0
        %5919 = vmatpush2.msra.mxu0 0.0
        %5920 = vmatprep.subr.mxu0 0.0
        %5921 = vmatpush2.msra.mxu0 0.0
        %5922 = vmatprep.subr.mxu0 0.0
        %5923 = vmatpush2.msra.mxu0 0.0
        %5924 = vmatprep.subr.mxu0 0.0
        %5925 = vmatpush2.msra.mxu0 0.0
        %5926 = vmatprep.subr.mxu0 0.0
        %5927 = vmatpush2.msra.mxu0 0.0
        %5928 = vmatprep.subr.mxu0 0.0
        %5929 = vmatpush2.msra.mxu0 0.0
        %5930 = vmatprep.subr.mxu0 0.0
        %5931 = vmatpush2.msra.mxu0 0.0
        %5932 = vmatprep.subr.mxu0 0.0
        %5933 = vmatpush2.msra.mxu0 0.0
        %5934 = vmatprep.subr.mxu0 0.0
        %5935 = vmatpush2.msra.mxu0 0.0
        %5936 = vmatprep.subr.mxu0 0.0
        %5937 = vmatpush2.msra.mxu0 0.0
        %5938 = vmatprep.subr.mxu0 0.0
        %5939 = vmatpush2.msra.mxu0 0.0
        %5940 = vmatprep.subr.mxu0 0.0
        %5941 = vmatpush2.msra.mxu0 0.0
        %5942 = vmatprep.subr.mxu0 0.0
        %5943 = vmatpush2.msra.mxu0 0.0
        %5944 = vmatprep.subr.mxu0 0.0
        %5945 = vmatpush2.msra.mxu0 0.0
        %5946 = vmatprep.subr.mxu0 0.0
        %5947 = vmatpush2.msra.mxu0 0.0
        %5948 = vmatprep.mubr.f32.mxu0 0.0
        %5949 = vmatmul.mubr.f32.gmra.mxu0 %v5882
        %v5950 = vpop.f32.mrf.mxu0
        %v5951 = vadd.f32 0.0, %v5950
        %v5952 = vpop.f32.mrf.mxu0
        %5953 = vdwg.mxu0
        %5954 = vrot.lane.b32.xlu0 %v4055, 108
        %v5955 = vpop.permute.xlu0 %5954
        %v5958 = vsel %vm1085, %v5877, 0
        %5960 = vmatprep.subr.mxu0 0.0
        %5961 = vmatpush1.msra.mxu0 0.0
        %5962 = vmatprep.subr.mxu0 0.0
        %5963 = vmatpush1.msra.mxu0 0.0
        %5964 = vmatprep.subr.mxu0 0.0
        %5965 = vmatpush1.msra.mxu0 0.0
        %5966 = vmatprep.subr.mxu0 0.0
        %5967 = vmatpush1.msra.mxu0 0.0
        %5968 = vmatprep.subr.mxu0 0.0
        %5969 = vmatpush1.msra.mxu0 0.0
        %5970 = vmatprep.subr.mxu0 0.0
        %5971 = vmatpush1.msra.mxu0 0.0
        %5972 = vmatprep.subr.mxu0 0.0
        %5973 = vmatpush1.msra.mxu0 0.0
        %5974 = vmatprep.subr.mxu0 0.0
        %5975 = vmatpush1.msra.mxu0 0.0
        %5976 = vmatprep.subr.mxu0 0.0
        %5977 = vmatpush1.msra.mxu0 0.0
        %5978 = vmatprep.subr.mxu0 0.0
        %5979 = vmatpush1.msra.mxu0 0.0
        %5980 = vmatprep.subr.mxu0 0.0
        %5981 = vmatpush1.msra.mxu0 0.0
        %5982 = vmatprep.subr.mxu0 0.0
        %5983 = vmatpush1.msra.mxu0 0.0
        %5984 = vmatprep.subr.mxu0 0.0
        %5985 = vmatpush1.msra.mxu0 0.0
        %5986 = vmatprep.subr.mxu0 0.0
        %5987 = vmatpush1.msra.mxu0 0.0
        %5988 = vmatprep.subr.mxu0 0.0
        %5989 = vmatpush1.msra.mxu0 0.0
        %5990 = vmatprep.subr.mxu0 0.0
        %5991 = vmatpush1.msra.mxu0 %v5955
        %5992 = vmatprep.subr.mxu0 0.0
        %5993 = vmatpush2.msra.mxu0 0.0
        %5994 = vmatprep.subr.mxu0 0.0
        %5995 = vmatpush2.msra.mxu0 0.0
        %5996 = vmatprep.subr.mxu0 0.0
        %5997 = vmatpush2.msra.mxu0 0.0
        %5998 = vmatprep.subr.mxu0 0.0
        %5999 = vmatpush2.msra.mxu0 0.0
        %6000 = vmatprep.subr.mxu0 0.0
        %6001 = vmatpush2.msra.mxu0 0.0
        %6002 = vmatprep.subr.mxu0 0.0
        %6003 = vmatpush2.msra.mxu0 0.0
        %6004 = vmatprep.subr.mxu0 0.0
        %6005 = vmatpush2.msra.mxu0 0.0
        %6006 = vmatprep.subr.mxu0 0.0
        %6007 = vmatpush2.msra.mxu0 0.0
        %6008 = vmatprep.subr.mxu0 0.0
        %6009 = vmatpush2.msra.mxu0 0.0
        %6010 = vmatprep.subr.mxu0 0.0
        %6011 = vmatpush2.msra.mxu0 0.0
        %6012 = vmatprep.subr.mxu0 0.0
        %6013 = vmatpush2.msra.mxu0 0.0
        %6014 = vmatprep.subr.mxu0 0.0
        %6015 = vmatpush2.msra.mxu0 0.0
        %6016 = vmatprep.subr.mxu0 0.0
        %6017 = vmatpush2.msra.mxu0 0.0
        %6018 = vmatprep.subr.mxu0 0.0
        %6019 = vmatpush2.msra.mxu0 0.0
        %6020 = vmatprep.subr.mxu0 0.0
        %6021 = vmatpush2.msra.mxu0 0.0
        %6022 = vmatprep.subr.mxu0 0.0
        %6023 = vmatpush2.msra.mxu0 0.0
        %6024 = vmatprep.mubr.f32.mxu0 0.0
        %6025 = vmatmul.mubr.f32.gmra.mxu0 %v5958
        %v6026 = vpop.f32.mrf.mxu0
        %v6027 = vadd.f32 0.0, %v6026
        %v6028 = vpop.f32.mrf.mxu0
        %6029 = vdwg.mxu0
        %6030 = vrot.lane.b32.xlu0 %v3868, 104
        %v6031 = vpop.permute.xlu0 %6030
        %6032 = vrot.lane.b32.xlu0 %v3962, 104
        %v6033 = vpop.permute.xlu0 %6032
        %v6034 = vsel %vm932, %v6031, 0
        %v6036 = vsel %vm932, %v6033, 0
        %6038 = vmatprep.subr.mxu0 0.0
        %6039 = vmatpush1.xpose.msra.mxu0 0.0
        %6040 = vmatprep.subr.mxu0 0.0
        %6041 = vmatpush1.xpose.msra.mxu0 0.0
        %6042 = vmatprep.subr.mxu0 0.0
        %6043 = vmatpush1.xpose.msra.mxu0 0.0
        %6044 = vmatprep.subr.mxu0 0.0
        %6045 = vmatpush1.xpose.msra.mxu0 0.0
        %6046 = vmatprep.subr.mxu0 0.0
        %6047 = vmatpush1.xpose.msra.mxu0 0.0
        %6048 = vmatprep.subr.mxu0 0.0
        %6049 = vmatpush1.xpose.msra.mxu0 0.0
        %6050 = vmatprep.subr.mxu0 0.0
        %6051 = vmatpush1.xpose.msra.mxu0 0.0
        %6052 = vmatprep.subr.mxu0 0.0
        %6053 = vmatpush1.xpose.msra.mxu0 0.0
        %6054 = vmatprep.subr.mxu0 0.0
        %6055 = vmatpush1.xpose.msra.mxu0 0.0
        %6056 = vmatprep.subr.mxu0 0.0
        %6057 = vmatpush1.xpose.msra.mxu0 0.0
        %6058 = vmatprep.subr.mxu0 0.0
        %6059 = vmatpush1.xpose.msra.mxu0 0.0
        %6060 = vmatprep.subr.mxu0 0.0
        %6061 = vmatpush1.xpose.msra.mxu0 0.0
        %6062 = vmatprep.subr.mxu0 0.0
        %6063 = vmatpush1.xpose.msra.mxu0 0.0
        %6064 = vmatprep.subr.mxu0 0.0
        %6065 = vmatpush1.xpose.msra.mxu0 0.0
        %6066 = vmatprep.subr.mxu0 0.0
        %6067 = vmatpush1.xpose.msra.mxu0 0.0
        %6068 = vmatprep.subr.mxu0 0.0
        %6069 = vmatpush1.xpose.msra.mxu0 %v6036
        %6070 = vmatprep.subr.mxu0 0.0
        %6071 = vmatpush2.xpose.msra.mxu0 0.0
        %6072 = vmatprep.subr.mxu0 0.0
        %6073 = vmatpush2.xpose.msra.mxu0 0.0
        %6074 = vmatprep.subr.mxu0 0.0
        %6075 = vmatpush2.xpose.msra.mxu0 0.0
        %6076 = vmatprep.subr.mxu0 0.0
        %6077 = vmatpush2.xpose.msra.mxu0 0.0
        %6078 = vmatprep.subr.mxu0 0.0
        %6079 = vmatpush2.xpose.msra.mxu0 0.0
        %6080 = vmatprep.subr.mxu0 0.0
        %6081 = vmatpush2.xpose.msra.mxu0 0.0
        %6082 = vmatprep.subr.mxu0 0.0
        %6083 = vmatpush2.xpose.msra.mxu0 0.0
        %6084 = vmatprep.subr.mxu0 0.0
        %6085 = vmatpush2.xpose.msra.mxu0 0.0
        %6086 = vmatprep.subr.mxu0 0.0
        %6087 = vmatpush2.xpose.msra.mxu0 0.0
        %6088 = vmatprep.subr.mxu0 0.0
        %6089 = vmatpush2.xpose.msra.mxu0 0.0
        %6090 = vmatprep.subr.mxu0 0.0
        %6091 = vmatpush2.xpose.msra.mxu0 0.0
        %6092 = vmatprep.subr.mxu0 0.0
        %6093 = vmatpush2.xpose.msra.mxu0 0.0
        %6094 = vmatprep.subr.mxu0 0.0
        %6095 = vmatpush2.xpose.msra.mxu0 0.0
        %6096 = vmatprep.subr.mxu0 0.0
        %6097 = vmatpush2.xpose.msra.mxu0 0.0
        %6098 = vmatprep.subr.mxu0 0.0
        %6099 = vmatpush2.xpose.msra.mxu0 0.0
        %6100 = vmatprep.subr.mxu0 0.0
        %6101 = vmatpush2.xpose.msra.mxu0 0.0
        %6102 = vmatprep.mubr.f32.mxu0 0.0
        %6103 = vmatmul.mubr.f32.gmra.mxu0 %v6034
        %v6104 = vpop.f32.mrf.mxu0
        %v6105 = vadd.f32 0.0, %v6104
        %v6106 = vpop.f32.mrf.mxu0
        %6107 = vdwg.mxu0
        %6108 = vrot.lane.b32.xlu0 %v3873, 104
        %v6109 = vpop.permute.xlu0 %6108
        %6110 = vrot.lane.b32.xlu0 %v3967, 104
        %v6111 = vpop.permute.xlu0 %6110
        %v6112 = vsel %vm932, %v6109, 0
        %v6114 = vsel %vm932, %v6111, 0
        %6116 = vmatprep.subr.mxu0 0.0
        %6117 = vmatpush1.xpose.msra.mxu0 0.0
        %6118 = vmatprep.subr.mxu0 0.0
        %6119 = vmatpush1.xpose.msra.mxu0 0.0
        %6120 = vmatprep.subr.mxu0 0.0
        %6121 = vmatpush1.xpose.msra.mxu0 0.0
        %6122 = vmatprep.subr.mxu0 0.0
        %6123 = vmatpush1.xpose.msra.mxu0 0.0
        %6124 = vmatprep.subr.mxu0 0.0
        %6125 = vmatpush1.xpose.msra.mxu0 0.0
        %6126 = vmatprep.subr.mxu0 0.0
        %6127 = vmatpush1.xpose.msra.mxu0 0.0
        %6128 = vmatprep.subr.mxu0 0.0
        %6129 = vmatpush1.xpose.msra.mxu0 0.0
        %6130 = vmatprep.subr.mxu0 0.0
        %6131 = vmatpush1.xpose.msra.mxu0 0.0
        %6132 = vmatprep.subr.mxu0 0.0
        %6133 = vmatpush1.xpose.msra.mxu0 0.0
        %6134 = vmatprep.subr.mxu0 0.0
        %6135 = vmatpush1.xpose.msra.mxu0 0.0
        %6136 = vmatprep.subr.mxu0 0.0
        %6137 = vmatpush1.xpose.msra.mxu0 0.0
        %6138 = vmatprep.subr.mxu0 0.0
        %6139 = vmatpush1.xpose.msra.mxu0 0.0
        %6140 = vmatprep.subr.mxu0 0.0
        %6141 = vmatpush1.xpose.msra.mxu0 0.0
        %6142 = vmatprep.subr.mxu0 0.0
        %6143 = vmatpush1.xpose.msra.mxu0 0.0
        %6144 = vmatprep.subr.mxu0 0.0
        %6145 = vmatpush1.xpose.msra.mxu0 0.0
        %6146 = vmatprep.subr.mxu0 0.0
        %6147 = vmatpush1.xpose.msra.mxu0 %v6114
        %6148 = vmatprep.subr.mxu0 0.0
        %6149 = vmatpush2.xpose.msra.mxu0 0.0
        %6150 = vmatprep.subr.mxu0 0.0
        %6151 = vmatpush2.xpose.msra.mxu0 0.0
        %6152 = vmatprep.subr.mxu0 0.0
        %6153 = vmatpush2.xpose.msra.mxu0 0.0
        %6154 = vmatprep.subr.mxu0 0.0
        %6155 = vmatpush2.xpose.msra.mxu0 0.0
        %6156 = vmatprep.subr.mxu0 0.0
        %6157 = vmatpush2.xpose.msra.mxu0 0.0
        %6158 = vmatprep.subr.mxu0 0.0
        %6159 = vmatpush2.xpose.msra.mxu0 0.0
        %6160 = vmatprep.subr.mxu0 0.0
        %6161 = vmatpush2.xpose.msra.mxu0 0.0
        %6162 = vmatprep.subr.mxu0 0.0
        %6163 = vmatpush2.xpose.msra.mxu0 0.0
        %6164 = vmatprep.subr.mxu0 0.0
        %6165 = vmatpush2.xpose.msra.mxu0 0.0
        %6166 = vmatprep.subr.mxu0 0.0
        %6167 = vmatpush2.xpose.msra.mxu0 0.0
        %6168 = vmatprep.subr.mxu0 0.0
        %6169 = vmatpush2.xpose.msra.mxu0 0.0
        %6170 = vmatprep.subr.mxu0 0.0
        %6171 = vmatpush2.xpose.msra.mxu0 0.0
        %6172 = vmatprep.subr.mxu0 0.0
        %6173 = vmatpush2.xpose.msra.mxu0 0.0
        %6174 = vmatprep.subr.mxu0 0.0
        %6175 = vmatpush2.xpose.msra.mxu0 0.0
        %6176 = vmatprep.subr.mxu0 0.0
        %6177 = vmatpush2.xpose.msra.mxu0 0.0
        %6178 = vmatprep.subr.mxu0 0.0
        %6179 = vmatpush2.xpose.msra.mxu0 0.0
        %6180 = vmatprep.mubr.f32.mxu0 0.0
        %6181 = vmatmul.mubr.f32.gmra.mxu0 %v6112
        %v6182 = vpop.f32.mrf.mxu0
        %v6183 = vadd.f32 0.0, %v6182
        %v6184 = vpop.f32.mrf.mxu0
        %6185 = vdwg.mxu0
        %v6186 = vsel %vm1085, %v6105, -inf
        %6187 = vmax.xlane.f32.xlu0 %v6186
        %v6188 = vpop.xlane.xlu0 %6187
        %v6189 = vsel %vm1085, %v6183, -inf
        %6190 = vmax.xlane.f32.xlu0 %v6189
        %v6191 = vpop.xlane.xlu0 %6190
        %v6192 = vsub.f32 %v6105, %v6188
        %v6193 = vsub.f32 %v6183, %v6191
        %v6194 = vmul.f32 %v6192, 1.442695
        %v6195 = vpow.pop %v6194
        %v6196 = vmul.f32 %v6193, 1.442695
        %v6197 = vpow.pop %v6196
        %v6198 = vsel %vm1085, %v6195, 0.0
        %6199 = vadd.xlane.f32.xlu0 %v6198
        %v6200 = vpop.xlane.xlu0 %6199
        %v6201 = vsel %vm1085, %v6197, 0.0
        %6202 = vadd.xlane.f32.xlu0 %v6201
        %v6203 = vpop.xlane.xlu0 %6202
        %v6204 = vrcp.pop %v6200
        %v6205 = vmul.f32 %v6195, %v6204
        %v6206 = vrcp.pop %v6203
        %v6207 = vmul.f32 %v6197, %v6206
        %6208 = vrot.lane.b32.xlu0 %v4050, 104
        %v6209 = vpop.permute.xlu0 %6208
        %v6212 = vsel %vm1085, %v6205, 0
        %6214 = vmatprep.subr.mxu0 0.0
        %6215 = vmatpush1.msra.mxu0 0.0
        %6216 = vmatprep.subr.mxu0 0.0
        %6217 = vmatpush1.msra.mxu0 0.0
        %6218 = vmatprep.subr.mxu0 0.0
        %6219 = vmatpush1.msra.mxu0 0.0
        %6220 = vmatprep.subr.mxu0 0.0
        %6221 = vmatpush1.msra.mxu0 0.0
        %6222 = vmatprep.subr.mxu0 0.0
        %6223 = vmatpush1.msra.mxu0 0.0
        %6224 = vmatprep.subr.mxu0 0.0
        %6225 = vmatpush1.msra.mxu0 0.0
        %6226 = vmatprep.subr.mxu0 0.0
        %6227 = vmatpush1.msra.mxu0 0.0
        %6228 = vmatprep.subr.mxu0 0.0
        %6229 = vmatpush1.msra.mxu0 0.0
        %6230 = vmatprep.subr.mxu0 0.0
        %6231 = vmatpush1.msra.mxu0 0.0
        %6232 = vmatprep.subr.mxu0 0.0
        %6233 = vmatpush1.msra.mxu0 0.0
        %6234 = vmatprep.subr.mxu0 0.0
        %6235 = vmatpush1.msra.mxu0 0.0
        %6236 = vmatprep.subr.mxu0 0.0
        %6237 = vmatpush1.msra.mxu0 0.0
        %6238 = vmatprep.subr.mxu0 0.0
        %6239 = vmatpush1.msra.mxu0 0.0
        %6240 = vmatprep.subr.mxu0 0.0
        %6241 = vmatpush1.msra.mxu0 0.0
        %6242 = vmatprep.subr.mxu0 0.0
        %6243 = vmatpush1.msra.mxu0 0.0
        %6244 = vmatprep.subr.mxu0 0.0
        %6245 = vmatpush1.msra.mxu0 %v6209
        %6246 = vmatprep.subr.mxu0 0.0
        %6247 = vmatpush2.msra.mxu0 0.0
        %6248 = vmatprep.subr.mxu0 0.0
        %6249 = vmatpush2.msra.mxu0 0.0
        %6250 = vmatprep.subr.mxu0 0.0
        %6251 = vmatpush2.msra.mxu0 0.0
        %6252 = vmatprep.subr.mxu0 0.0
        %6253 = vmatpush2.msra.mxu0 0.0
        %6254 = vmatprep.subr.mxu0 0.0
        %6255 = vmatpush2.msra.mxu0 0.0
        %6256 = vmatprep.subr.mxu0 0.0
        %6257 = vmatpush2.msra.mxu0 0.0
        %6258 = vmatprep.subr.mxu0 0.0
        %6259 = vmatpush2.msra.mxu0 0.0
        %6260 = vmatprep.subr.mxu0 0.0
        %6261 = vmatpush2.msra.mxu0 0.0
        %6262 = vmatprep.subr.mxu0 0.0
        %6263 = vmatpush2.msra.mxu0 0.0
        %6264 = vmatprep.subr.mxu0 0.0
        %6265 = vmatpush2.msra.mxu0 0.0
        %6266 = vmatprep.subr.mxu0 0.0
        %6267 = vmatpush2.msra.mxu0 0.0
        %6268 = vmatprep.subr.mxu0 0.0
        %6269 = vmatpush2.msra.mxu0 0.0
        %6270 = vmatprep.subr.mxu0 0.0
        %6271 = vmatpush2.msra.mxu0 0.0
        %6272 = vmatprep.subr.mxu0 0.0
        %6273 = vmatpush2.msra.mxu0 0.0
        %6274 = vmatprep.subr.mxu0 0.0
        %6275 = vmatpush2.msra.mxu0 0.0
        %6276 = vmatprep.subr.mxu0 0.0
        %6277 = vmatpush2.msra.mxu0 0.0
        %6278 = vmatprep.mubr.f32.mxu0 0.0
        %6279 = vmatmul.mubr.f32.gmra.mxu0 %v6212
        %v6280 = vpop.f32.mrf.mxu0
        %v6281 = vadd.f32 0.0, %v6280
        %v6282 = vpop.f32.mrf.mxu0
        %6283 = vdwg.mxu0
        %6284 = vrot.lane.b32.xlu0 %v4055, 104
        %v6285 = vpop.permute.xlu0 %6284
        %v6288 = vsel %vm1085, %v6207, 0
        %6290 = vmatprep.subr.mxu0 0.0
        %6291 = vmatpush1.msra.mxu0 0.0
        %6292 = vmatprep.subr.mxu0 0.0
        %6293 = vmatpush1.msra.mxu0 0.0
        %6294 = vmatprep.subr.mxu0 0.0
        %6295 = vmatpush1.msra.mxu0 0.0
        %6296 = vmatprep.subr.mxu0 0.0
        %6297 = vmatpush1.msra.mxu0 0.0
        %6298 = vmatprep.subr.mxu0 0.0
        %6299 = vmatpush1.msra.mxu0 0.0
        %6300 = vmatprep.subr.mxu0 0.0
        %6301 = vmatpush1.msra.mxu0 0.0
        %6302 = vmatprep.subr.mxu0 0.0
        %6303 = vmatpush1.msra.mxu0 0.0
        %6304 = vmatprep.subr.mxu0 0.0
        %6305 = vmatpush1.msra.mxu0 0.0
        %6306 = vmatprep.subr.mxu0 0.0
        %6307 = vmatpush1.msra.mxu0 0.0
        %6308 = vmatprep.subr.mxu0 0.0
        %6309 = vmatpush1.msra.mxu0 0.0
        %6310 = vmatprep.subr.mxu0 0.0
        %6311 = vmatpush1.msra.mxu0 0.0
        %6312 = vmatprep.subr.mxu0 0.0
        %6313 = vmatpush1.msra.mxu0 0.0
        %6314 = vmatprep.subr.mxu0 0.0
        %6315 = vmatpush1.msra.mxu0 0.0
        %6316 = vmatprep.subr.mxu0 0.0
        %6317 = vmatpush1.msra.mxu0 0.0
        %6318 = vmatprep.subr.mxu0 0.0
        %6319 = vmatpush1.msra.mxu0 0.0
        %6320 = vmatprep.subr.mxu0 0.0
        %6321 = vmatpush1.msra.mxu0 %v6285
        %6322 = vmatprep.subr.mxu0 0.0
        %6323 = vmatpush2.msra.mxu0 0.0
        %6324 = vmatprep.subr.mxu0 0.0
        %6325 = vmatpush2.msra.mxu0 0.0
        %6326 = vmatprep.subr.mxu0 0.0
        %6327 = vmatpush2.msra.mxu0 0.0
        %6328 = vmatprep.subr.mxu0 0.0
        %6329 = vmatpush2.msra.mxu0 0.0
        %6330 = vmatprep.subr.mxu0 0.0
        %6331 = vmatpush2.msra.mxu0 0.0
        %6332 = vmatprep.subr.mxu0 0.0
        %6333 = vmatpush2.msra.mxu0 0.0
        %6334 = vmatprep.subr.mxu0 0.0
        %6335 = vmatpush2.msra.mxu0 0.0
        %6336 = vmatprep.subr.mxu0 0.0
        %6337 = vmatpush2.msra.mxu0 0.0
        %6338 = vmatprep.subr.mxu0 0.0
        %6339 = vmatpush2.msra.mxu0 0.0
        %6340 = vmatprep.subr.mxu0 0.0
        %6341 = vmatpush2.msra.mxu0 0.0
        %6342 = vmatprep.subr.mxu0 0.0
        %6343 = vmatpush2.msra.mxu0 0.0
        %6344 = vmatprep.subr.mxu0 0.0
        %6345 = vmatpush2.msra.mxu0 0.0
        %6346 = vmatprep.subr.mxu0 0.0
        %6347 = vmatpush2.msra.mxu0 0.0
        %6348 = vmatprep.subr.mxu0 0.0
        %6349 = vmatpush2.msra.mxu0 0.0
        %6350 = vmatprep.subr.mxu0 0.0
        %6351 = vmatpush2.msra.mxu0 0.0
        %6352 = vmatprep.subr.mxu0 0.0
        %6353 = vmatpush2.msra.mxu0 0.0
        %6354 = vmatprep.mubr.f32.mxu0 0.0
        %6355 = vmatmul.mubr.f32.gmra.mxu0 %v6288
        %v6356 = vpop.f32.mrf.mxu0
        %v6357 = vadd.f32 0.0, %v6356
        %v6358 = vpop.f32.mrf.mxu0
        %6359 = vdwg.mxu0
        %6360 = vrot.lane.b32.xlu0 %v3868, 100
        %v6361 = vpop.permute.xlu0 %6360
        %6362 = vrot.lane.b32.xlu0 %v3962, 100
        %v6363 = vpop.permute.xlu0 %6362
        %v6364 = vsel %vm932, %v6361, 0
        %v6366 = vsel %vm932, %v6363, 0
        %6368 = vmatprep.subr.mxu0 0.0
        %6369 = vmatpush1.xpose.msra.mxu0 0.0
        %6370 = vmatprep.subr.mxu0 0.0
        %6371 = vmatpush1.xpose.msra.mxu0 0.0
        %6372 = vmatprep.subr.mxu0 0.0
        %6373 = vmatpush1.xpose.msra.mxu0 0.0
        %6374 = vmatprep.subr.mxu0 0.0
        %6375 = vmatpush1.xpose.msra.mxu0 0.0
        %6376 = vmatprep.subr.mxu0 0.0
        %6377 = vmatpush1.xpose.msra.mxu0 0.0
        %6378 = vmatprep.subr.mxu0 0.0
        %6379 = vmatpush1.xpose.msra.mxu0 0.0
        %6380 = vmatprep.subr.mxu0 0.0
        %6381 = vmatpush1.xpose.msra.mxu0 0.0
        %6382 = vmatprep.subr.mxu0 0.0
        %6383 = vmatpush1.xpose.msra.mxu0 0.0
        %6384 = vmatprep.subr.mxu0 0.0
        %6385 = vmatpush1.xpose.msra.mxu0 0.0
        %6386 = vmatprep.subr.mxu0 0.0
        %6387 = vmatpush1.xpose.msra.mxu0 0.0
        %6388 = vmatprep.subr.mxu0 0.0
        %6389 = vmatpush1.xpose.msra.mxu0 0.0
        %6390 = vmatprep.subr.mxu0 0.0
        %6391 = vmatpush1.xpose.msra.mxu0 0.0
        %6392 = vmatprep.subr.mxu0 0.0
        %6393 = vmatpush1.xpose.msra.mxu0 0.0
        %6394 = vmatprep.subr.mxu0 0.0
        %6395 = vmatpush1.xpose.msra.mxu0 0.0
        %6396 = vmatprep.subr.mxu0 0.0
        %6397 = vmatpush1.xpose.msra.mxu0 0.0
        %6398 = vmatprep.subr.mxu0 0.0
        %6399 = vmatpush1.xpose.msra.mxu0 %v6366
        %6400 = vmatprep.subr.mxu0 0.0
        %6401 = vmatpush2.xpose.msra.mxu0 0.0
        %6402 = vmatprep.subr.mxu0 0.0
        %6403 = vmatpush2.xpose.msra.mxu0 0.0
        %6404 = vmatprep.subr.mxu0 0.0
        %6405 = vmatpush2.xpose.msra.mxu0 0.0
        %6406 = vmatprep.subr.mxu0 0.0
        %6407 = vmatpush2.xpose.msra.mxu0 0.0
        %6408 = vmatprep.subr.mxu0 0.0
        %6409 = vmatpush2.xpose.msra.mxu0 0.0
        %6410 = vmatprep.subr.mxu0 0.0
        %6411 = vmatpush2.xpose.msra.mxu0 0.0
        %6412 = vmatprep.subr.mxu0 0.0
        %6413 = vmatpush2.xpose.msra.mxu0 0.0
        %6414 = vmatprep.subr.mxu0 0.0
        %6415 = vmatpush2.xpose.msra.mxu0 0.0
        %6416 = vmatprep.subr.mxu0 0.0
        %6417 = vmatpush2.xpose.msra.mxu0 0.0
        %6418 = vmatprep.subr.mxu0 0.0
        %6419 = vmatpush2.xpose.msra.mxu0 0.0
        %6420 = vmatprep.subr.mxu0 0.0
        %6421 = vmatpush2.xpose.msra.mxu0 0.0
        %6422 = vmatprep.subr.mxu0 0.0
        %6423 = vmatpush2.xpose.msra.mxu0 0.0
        %6424 = vmatprep.subr.mxu0 0.0
        %6425 = vmatpush2.xpose.msra.mxu0 0.0
        %6426 = vmatprep.subr.mxu0 0.0
        %6427 = vmatpush2.xpose.msra.mxu0 0.0
        %6428 = vmatprep.subr.mxu0 0.0
        %6429 = vmatpush2.xpose.msra.mxu0 0.0
        %6430 = vmatprep.subr.mxu0 0.0
        %6431 = vmatpush2.xpose.msra.mxu0 0.0
        %6432 = vmatprep.mubr.f32.mxu0 0.0
        %6433 = vmatmul.mubr.f32.gmra.mxu0 %v6364
        %v6434 = vpop.f32.mrf.mxu0
        %v6435 = vadd.f32 0.0, %v6434
        %v6436 = vpop.f32.mrf.mxu0
        %6437 = vdwg.mxu0
        %6438 = vrot.lane.b32.xlu0 %v3873, 100
        %v6439 = vpop.permute.xlu0 %6438
        %6440 = vrot.lane.b32.xlu0 %v3967, 100
        %v6441 = vpop.permute.xlu0 %6440
        %v6442 = vsel %vm932, %v6439, 0
        %v6444 = vsel %vm932, %v6441, 0
        %6446 = vmatprep.subr.mxu0 0.0
        %6447 = vmatpush1.xpose.msra.mxu0 0.0
        %6448 = vmatprep.subr.mxu0 0.0
        %6449 = vmatpush1.xpose.msra.mxu0 0.0
        %6450 = vmatprep.subr.mxu0 0.0
        %6451 = vmatpush1.xpose.msra.mxu0 0.0
        %6452 = vmatprep.subr.mxu0 0.0
        %6453 = vmatpush1.xpose.msra.mxu0 0.0
        %6454 = vmatprep.subr.mxu0 0.0
        %6455 = vmatpush1.xpose.msra.mxu0 0.0
        %6456 = vmatprep.subr.mxu0 0.0
        %6457 = vmatpush1.xpose.msra.mxu0 0.0
        %6458 = vmatprep.subr.mxu0 0.0
        %6459 = vmatpush1.xpose.msra.mxu0 0.0
        %6460 = vmatprep.subr.mxu0 0.0
        %6461 = vmatpush1.xpose.msra.mxu0 0.0
        %6462 = vmatprep.subr.mxu0 0.0
        %6463 = vmatpush1.xpose.msra.mxu0 0.0
        %6464 = vmatprep.subr.mxu0 0.0
        %6465 = vmatpush1.xpose.msra.mxu0 0.0
        %6466 = vmatprep.subr.mxu0 0.0
        %6467 = vmatpush1.xpose.msra.mxu0 0.0
        %6468 = vmatprep.subr.mxu0 0.0
        %6469 = vmatpush1.xpose.msra.mxu0 0.0
        %6470 = vmatprep.subr.mxu0 0.0
        %6471 = vmatpush1.xpose.msra.mxu0 0.0
        %6472 = vmatprep.subr.mxu0 0.0
        %6473 = vmatpush1.xpose.msra.mxu0 0.0
        %6474 = vmatprep.subr.mxu0 0.0
        %6475 = vmatpush1.xpose.msra.mxu0 0.0
        %6476 = vmatprep.subr.mxu0 0.0
        %6477 = vmatpush1.xpose.msra.mxu0 %v6444
        %6478 = vmatprep.subr.mxu0 0.0
        %6479 = vmatpush2.xpose.msra.mxu0 0.0
        %6480 = vmatprep.subr.mxu0 0.0
        %6481 = vmatpush2.xpose.msra.mxu0 0.0
        %6482 = vmatprep.subr.mxu0 0.0
        %6483 = vmatpush2.xpose.msra.mxu0 0.0
        %6484 = vmatprep.subr.mxu0 0.0
        %6485 = vmatpush2.xpose.msra.mxu0 0.0
        %6486 = vmatprep.subr.mxu0 0.0
        %6487 = vmatpush2.xpose.msra.mxu0 0.0
        %6488 = vmatprep.subr.mxu0 0.0
        %6489 = vmatpush2.xpose.msra.mxu0 0.0
        %6490 = vmatprep.subr.mxu0 0.0
        %6491 = vmatpush2.xpose.msra.mxu0 0.0
        %6492 = vmatprep.subr.mxu0 0.0
        %6493 = vmatpush2.xpose.msra.mxu0 0.0
        %6494 = vmatprep.subr.mxu0 0.0
        %6495 = vmatpush2.xpose.msra.mxu0 0.0
        %6496 = vmatprep.subr.mxu0 0.0
        %6497 = vmatpush2.xpose.msra.mxu0 0.0
        %6498 = vmatprep.subr.mxu0 0.0
        %6499 = vmatpush2.xpose.msra.mxu0 0.0
        %6500 = vmatprep.subr.mxu0 0.0
        %6501 = vmatpush2.xpose.msra.mxu0 0.0
        %6502 = vmatprep.subr.mxu0 0.0
        %6503 = vmatpush2.xpose.msra.mxu0 0.0
        %6504 = vmatprep.subr.mxu0 0.0
        %6505 = vmatpush2.xpose.msra.mxu0 0.0
        %6506 = vmatprep.subr.mxu0 0.0
        %6507 = vmatpush2.xpose.msra.mxu0 0.0
        %6508 = vmatprep.subr.mxu0 0.0
        %6509 = vmatpush2.xpose.msra.mxu0 0.0
        %6510 = vmatprep.mubr.f32.mxu0 0.0
        %6511 = vmatmul.mubr.f32.gmra.mxu0 %v6442
        %v6512 = vpop.f32.mrf.mxu0
        %v6513 = vadd.f32 0.0, %v6512
        %v6514 = vpop.f32.mrf.mxu0
        %6515 = vdwg.mxu0
        %v6516 = vsel %vm1085, %v6435, -inf
        %6517 = vmax.xlane.f32.xlu0 %v6516
        %v6518 = vpop.xlane.xlu0 %6517
        %v6519 = vsel %vm1085, %v6513, -inf
        %6520 = vmax.xlane.f32.xlu0 %v6519
        %v6521 = vpop.xlane.xlu0 %6520
        %v6522 = vsub.f32 %v6435, %v6518
        %v6523 = vsub.f32 %v6513, %v6521
        %v6524 = vmul.f32 %v6522, 1.442695
        %v6525 = vpow.pop %v6524
        %v6526 = vmul.f32 %v6523, 1.442695
        %v6527 = vpow.pop %v6526
        %v6528 = vsel %vm1085, %v6525, 0.0
        %6529 = vadd.xlane.f32.xlu0 %v6528
        %v6530 = vpop.xlane.xlu0 %6529
        %v6531 = vsel %vm1085, %v6527, 0.0
        %6532 = vadd.xlane.f32.xlu0 %v6531
        %v6533 = vpop.xlane.xlu0 %6532
        %v6534 = vrcp.pop %v6530
        %v6535 = vmul.f32 %v6525, %v6534
        %v6536 = vrcp.pop %v6533
        %v6537 = vmul.f32 %v6527, %v6536
        %6538 = vrot.lane.b32.xlu0 %v4050, 100
        %v6539 = vpop.permute.xlu0 %6538
        %v6542 = vsel %vm1085, %v6535, 0
        %6544 = vmatprep.subr.mxu0 0.0
        %6545 = vmatpush1.msra.mxu0 0.0
        %6546 = vmatprep.subr.mxu0 0.0
        %6547 = vmatpush1.msra.mxu0 0.0
        %6548 = vmatprep.subr.mxu0 0.0
        %6549 = vmatpush1.msra.mxu0 0.0
        %6550 = vmatprep.subr.mxu0 0.0
        %6551 = vmatpush1.msra.mxu0 0.0
        %6552 = vmatprep.subr.mxu0 0.0
        %6553 = vmatpush1.msra.mxu0 0.0
        %6554 = vmatprep.subr.mxu0 0.0
        %6555 = vmatpush1.msra.mxu0 0.0
        %6556 = vmatprep.subr.mxu0 0.0
        %6557 = vmatpush1.msra.mxu0 0.0
        %6558 = vmatprep.subr.mxu0 0.0
        %6559 = vmatpush1.msra.mxu0 0.0
        %6560 = vmatprep.subr.mxu0 0.0
        %6561 = vmatpush1.msra.mxu0 0.0
        %6562 = vmatprep.subr.mxu0 0.0
        %6563 = vmatpush1.msra.mxu0 0.0
        %6564 = vmatprep.subr.mxu0 0.0
        %6565 = vmatpush1.msra.mxu0 0.0
        %6566 = vmatprep.subr.mxu0 0.0
        %6567 = vmatpush1.msra.mxu0 0.0
        %6568 = vmatprep.subr.mxu0 0.0
        %6569 = vmatpush1.msra.mxu0 0.0
        %6570 = vmatprep.subr.mxu0 0.0
        %6571 = vmatpush1.msra.mxu0 0.0
        %6572 = vmatprep.subr.mxu0 0.0
        %6573 = vmatpush1.msra.mxu0 0.0
        %6574 = vmatprep.subr.mxu0 0.0
        %6575 = vmatpush1.msra.mxu0 %v6539
        %6576 = vmatprep.subr.mxu0 0.0
        %6577 = vmatpush2.msra.mxu0 0.0
        %6578 = vmatprep.subr.mxu0 0.0
        %6579 = vmatpush2.msra.mxu0 0.0
        %6580 = vmatprep.subr.mxu0 0.0
        %6581 = vmatpush2.msra.mxu0 0.0
        %6582 = vmatprep.subr.mxu0 0.0
        %6583 = vmatpush2.msra.mxu0 0.0
        %6584 = vmatprep.subr.mxu0 0.0
        %6585 = vmatpush2.msra.mxu0 0.0
        %6586 = vmatprep.subr.mxu0 0.0
        %6587 = vmatpush2.msra.mxu0 0.0
        %6588 = vmatprep.subr.mxu0 0.0
        %6589 = vmatpush2.msra.mxu0 0.0
        %6590 = vmatprep.subr.mxu0 0.0
        %6591 = vmatpush2.msra.mxu0 0.0
        %6592 = vmatprep.subr.mxu0 0.0
        %6593 = vmatpush2.msra.mxu0 0.0
        %6594 = vmatprep.subr.mxu0 0.0
        %6595 = vmatpush2.msra.mxu0 0.0
        %6596 = vmatprep.subr.mxu0 0.0
        %6597 = vmatpush2.msra.mxu0 0.0
        %6598 = vmatprep.subr.mxu0 0.0
        %6599 = vmatpush2.msra.mxu0 0.0
        %6600 = vmatprep.subr.mxu0 0.0
        %6601 = vmatpush2.msra.mxu0 0.0
        %6602 = vmatprep.subr.mxu0 0.0
        %6603 = vmatpush2.msra.mxu0 0.0
        %6604 = vmatprep.subr.mxu0 0.0
        %6605 = vmatpush2.msra.mxu0 0.0
        %6606 = vmatprep.subr.mxu0 0.0
        %6607 = vmatpush2.msra.mxu0 0.0
        %6608 = vmatprep.mubr.f32.mxu0 0.0
        %6609 = vmatmul.mubr.f32.gmra.mxu0 %v6542
        %v6610 = vpop.f32.mrf.mxu0
        %v6611 = vadd.f32 0.0, %v6610
        %v6612 = vpop.f32.mrf.mxu0
        %6613 = vdwg.mxu0
        %6614 = vrot.lane.b32.xlu0 %v4055, 100
        %v6615 = vpop.permute.xlu0 %6614
        %v6618 = vsel %vm1085, %v6537, 0
        %6620 = vmatprep.subr.mxu0 0.0
        %6621 = vmatpush1.msra.mxu0 0.0
        %6622 = vmatprep.subr.mxu0 0.0
        %6623 = vmatpush1.msra.mxu0 0.0
        %6624 = vmatprep.subr.mxu0 0.0
        %6625 = vmatpush1.msra.mxu0 0.0
        %6626 = vmatprep.subr.mxu0 0.0
        %6627 = vmatpush1.msra.mxu0 0.0
        %6628 = vmatprep.subr.mxu0 0.0
        %6629 = vmatpush1.msra.mxu0 0.0
        %6630 = vmatprep.subr.mxu0 0.0
        %6631 = vmatpush1.msra.mxu0 0.0
        %6632 = vmatprep.subr.mxu0 0.0
        %6633 = vmatpush1.msra.mxu0 0.0
        %6634 = vmatprep.subr.mxu0 0.0
        %6635 = vmatpush1.msra.mxu0 0.0
        %6636 = vmatprep.subr.mxu0 0.0
        %6637 = vmatpush1.msra.mxu0 0.0
        %6638 = vmatprep.subr.mxu0 0.0
        %6639 = vmatpush1.msra.mxu0 0.0
        %6640 = vmatprep.subr.mxu0 0.0
        %6641 = vmatpush1.msra.mxu0 0.0
        %6642 = vmatprep.subr.mxu0 0.0
        %6643 = vmatpush1.msra.mxu0 0.0
        %6644 = vmatprep.subr.mxu0 0.0
        %6645 = vmatpush1.msra.mxu0 0.0
        %6646 = vmatprep.subr.mxu0 0.0
        %6647 = vmatpush1.msra.mxu0 0.0
        %6648 = vmatprep.subr.mxu0 0.0
        %6649 = vmatpush1.msra.mxu0 0.0
        %6650 = vmatprep.subr.mxu0 0.0
        %6651 = vmatpush1.msra.mxu0 %v6615
        %6652 = vmatprep.subr.mxu0 0.0
        %6653 = vmatpush2.msra.mxu0 0.0
        %6654 = vmatprep.subr.mxu0 0.0
        %6655 = vmatpush2.msra.mxu0 0.0
        %6656 = vmatprep.subr.mxu0 0.0
        %6657 = vmatpush2.msra.mxu0 0.0
        %6658 = vmatprep.subr.mxu0 0.0
        %6659 = vmatpush2.msra.mxu0 0.0
        %6660 = vmatprep.subr.mxu0 0.0
        %6661 = vmatpush2.msra.mxu0 0.0
        %6662 = vmatprep.subr.mxu0 0.0
        %6663 = vmatpush2.msra.mxu0 0.0
        %6664 = vmatprep.subr.mxu0 0.0
        %6665 = vmatpush2.msra.mxu0 0.0
        %6666 = vmatprep.subr.mxu0 0.0
        %6667 = vmatpush2.msra.mxu0 0.0
        %6668 = vmatprep.subr.mxu0 0.0
        %6669 = vmatpush2.msra.mxu0 0.0
        %6670 = vmatprep.subr.mxu0 0.0
        %6671 = vmatpush2.msra.mxu0 0.0
        %6672 = vmatprep.subr.mxu0 0.0
        %6673 = vmatpush2.msra.mxu0 0.0
        %6674 = vmatprep.subr.mxu0 0.0
        %6675 = vmatpush2.msra.mxu0 0.0
        %6676 = vmatprep.subr.mxu0 0.0
        %6677 = vmatpush2.msra.mxu0 0.0
        %6678 = vmatprep.subr.mxu0 0.0
        %6679 = vmatpush2.msra.mxu0 0.0
        %6680 = vmatprep.subr.mxu0 0.0
        %6681 = vmatpush2.msra.mxu0 0.0
        %6682 = vmatprep.subr.mxu0 0.0
        %6683 = vmatpush2.msra.mxu0 0.0
        %6684 = vmatprep.mubr.f32.mxu0 0.0
        %6685 = vmatmul.mubr.f32.gmra.mxu0 %v6618
        %v6686 = vpop.f32.mrf.mxu0
        %v6687 = vadd.f32 0.0, %v6686
        %v6688 = vpop.f32.mrf.mxu0
        %6689 = vdwg.mxu0
        %6692 = vrot.lane.b32.xlu0 %v4630, 4
        %v6693 = vpop.permute.xlu0 %6692
        %6694 = vrot.lane.b32.xlu0 %v4707, 4
        %v6695 = vpop.permute.xlu0 %6694
        %6700 = vrot.lane.b32.xlu0 %v4961, 8
        %v6701 = vpop.permute.xlu0 %6700
        %6702 = vrot.lane.b32.xlu0 %v5037, 8
        %v6703 = vpop.permute.xlu0 %6702
        %6708 = vrot.lane.b32.xlu0 %v5291, 12
        %v6709 = vpop.permute.xlu0 %6708
        %6710 = vrot.lane.b32.xlu0 %v5367, 12
        %v6711 = vpop.permute.xlu0 %6710
        %6716 = vrot.lane.b32.xlu0 %v5621, 16
        %v6717 = vpop.permute.xlu0 %6716
        %6718 = vrot.lane.b32.xlu0 %v5697, 16
        %v6719 = vpop.permute.xlu0 %6718
        %6724 = vrot.lane.b32.xlu0 %v5951, 20
        %v6725 = vpop.permute.xlu0 %6724
        %6726 = vrot.lane.b32.xlu0 %v6027, 20
        %v6727 = vpop.permute.xlu0 %6726
        %6732 = vrot.lane.b32.xlu0 %v6281, 24
        %v6733 = vpop.permute.xlu0 %6732
        %6734 = vrot.lane.b32.xlu0 %v6357, 24
        %v6735 = vpop.permute.xlu0 %6734
        %6740 = vrot.lane.b32.xlu0 %v6611, 28
        %v6741 = vpop.permute.xlu0 %6740
        %6742 = vrot.lane.b32.xlu0 %v6687, 28
        %v6743 = vpop.permute.xlu0 %6742
        %v6746 = vsel %vm932, %v4302, %v6693
        %v6747 = vsel %vm932, %v4375, %v6695
        %v6748 = vsel %vm1085, %v6746, %v6701
        %v6749 = vsel %vm1085, %v6747, %v6703
        %v6750 = vsel %vm3626, %v6748, %v6709
        %v6751 = vsel %vm3626, %v6749, %v6711
        %v6752 = vsel %vm3629, %v6750, %v6717
        %v6753 = vsel %vm3629, %v6751, %v6719
        %v6754 = vsel %vm3632, %v6752, %v6725
        %v6755 = vsel %vm3632, %v6753, %v6727
        %v6756 = vsel %vm3635, %v6754, %v6733
        %v6757 = vsel %vm3635, %v6755, %v6735
        %v6758 = vsel %vm3638, %v6756, %v6741
        %v6759 = vsel %vm3638, %v6757, %v6743
        %s6760 = scalar_lea.vmem %s610, 224
        %v6761 = vld [vmem:[%s6760] sm:$0xff]
        %v6762 = vld [vmem:[%s6760 + $0x8] sm:$0xff]
        %v6763 = vld [vmem:[%s6760 + $0x10] sm:$0xff]
        %v6764 = vld [vmem:[%s6760 + $0x18] sm:$0xff]
        %s6765 = scalar_lea.vmem %s614, 7
        %v6766 = vld [vmem:[%s6765] sm:$0x1]
        %v6768 = vlaneseq
        %v6769 = vshrl.u32 %v6768, 7
        %v6770 = vsub.s32 0, %v6769
        %v6771 = vrot.slane %v6766, %v6770
        %v6774 = vsel %vm674, %v6758, 0
        %v6777 = vsel %vm674, %v6759, 0
        %6779 = vmatprep.subr.mxu0 0.0
        %6780 = vmatpush1.msra.mxu0 0.0
        %6781 = vmatprep.subr.mxu0 0.0
        %6782 = vmatpush1.msra.mxu0 0.0
        %6783 = vmatprep.subr.mxu0 0.0
        %6784 = vmatpush1.msra.mxu0 0.0
        %6785 = vmatprep.subr.mxu0 0.0
        %6786 = vmatpush1.msra.mxu0 0.0
        %6787 = vmatprep.subr.mxu0 0.0
        %6788 = vmatpush1.msra.mxu0 0.0
        %6789 = vmatprep.subr.mxu0 0.0
        %6790 = vmatpush1.msra.mxu0 0.0
        %6791 = vmatprep.subr.mxu0 0.0
        %6792 = vmatpush1.msra.mxu0 0.0
        %6793 = vmatprep.subr.mxu0 0.0
        %6794 = vmatpush1.msra.mxu0 0.0
        %6795 = vmatprep.subr.mxu0 0.0
        %6796 = vmatpush1.msra.mxu0 0.0
        %6797 = vmatprep.subr.mxu0 0.0
        %6798 = vmatpush1.msra.mxu0 0.0
        %6799 = vmatprep.subr.mxu0 0.0
        %6800 = vmatpush1.msra.mxu0 0.0
        %6801 = vmatprep.subr.mxu0 0.0
        %6802 = vmatpush1.msra.mxu0 0.0
        %6803 = vmatprep.subr.mxu0 0.0
        %6804 = vmatpush1.msra.mxu0 %v6764
        %6805 = vmatprep.subr.mxu0 0.0
        %6806 = vmatpush1.msra.mxu0 %v6763
        %6807 = vmatprep.subr.mxu0 0.0
        %6808 = vmatpush1.msra.mxu0 %v6762
        %6809 = vmatprep.subr.mxu0 0.0
        %6810 = vmatpush1.msra.mxu0 %v6761
        %6811 = vmatprep.subr.mxu0 0.0
        %6812 = vmatpush2.msra.mxu0 0.0
        %6813 = vmatprep.subr.mxu0 0.0
        %6814 = vmatpush2.msra.mxu0 0.0
        %6815 = vmatprep.subr.mxu0 0.0
        %6816 = vmatpush2.msra.mxu0 0.0
        %6817 = vmatprep.subr.mxu0 0.0
        %6818 = vmatpush2.msra.mxu0 0.0
        %6819 = vmatprep.subr.mxu0 0.0
        %6820 = vmatpush2.msra.mxu0 0.0
        %6821 = vmatprep.subr.mxu0 0.0
        %6822 = vmatpush2.msra.mxu0 0.0
        %6823 = vmatprep.subr.mxu0 0.0
        %6824 = vmatpush2.msra.mxu0 0.0
        %6825 = vmatprep.subr.mxu0 0.0
        %6826 = vmatpush2.msra.mxu0 0.0
        %6827 = vmatprep.subr.mxu0 0.0
        %6828 = vmatpush2.msra.mxu0 0.0
        %6829 = vmatprep.subr.mxu0 0.0
        %6830 = vmatpush2.msra.mxu0 0.0
        %6831 = vmatprep.subr.mxu0 0.0
        %6832 = vmatpush2.msra.mxu0 0.0
        %6833 = vmatprep.subr.mxu0 0.0
        %6834 = vmatpush2.msra.mxu0 0.0
        %6835 = vmatprep.subr.mxu0 0.0
        %6836 = vmatpush2.msra.mxu0 0.0
        %6837 = vmatprep.subr.mxu0 0.0
        %6838 = vmatpush2.msra.mxu0 0.0
        %6839 = vmatprep.subr.mxu0 0.0
        %6840 = vmatpush2.msra.mxu0 0.0
        %6841 = vmatprep.subr.mxu0 0.0
        %6842 = vmatpush2.msra.mxu0 0.0
        %6843 = vmatprep.mubr.f32.mxu0 0.0
        %6844 = vmatmul.mubr.f32.gmra.mxu0 %v6774
        %v6845 = vpop.f32.mrf.mxu0
        %v6846 = vadd.f32 %v6771, %v6845
        %v6847 = vpop.f32.mrf.mxu0
        %6848 = vmatprep.mubr.f32.mxu0 0.0
        %6849 = vmatmul.mubr.f32.gmra.mxu0 %v6777
        %v6850 = vpop.f32.mrf.mxu0
        %v6851 = vadd.f32 %v6771, %v6850
        %v6852 = vpop.f32.mrf.mxu0
        %6853 = vdwg.mxu0
        %v6854 = vld [vmem:[%s619] sm:$0xff]
        %v6855 = vld [vmem:[%s619 + $0x8] sm:$0xff]
        %v6856 = vld [vmem:[%s619 + $0x10] sm:$0xff]
        %v6857 = vld [vmem:[%s619 + $0x18] sm:$0xff]
        %s6858 = scalar_lea.vmem %s619, 32
        %v6859 = vld [vmem:[%s6858] sm:$0xff]
        %v6860 = vld [vmem:[%s6858 + $0x8] sm:$0xff]
        %v6861 = vld [vmem:[%s6858 + $0x10] sm:$0xff]
        %v6862 = vld [vmem:[%s6858 + $0x18] sm:$0xff]
        %v6864 = vsel %vm674, %v6846, 0
        %v6867 = vsel %vm674, %v6851, 0
        %6869 = vmatprep.subr.mxu0 0.0
        %6870 = vmatpush1.msra.mxu0 0.0
        %6871 = vmatprep.subr.mxu0 0.0
        %6872 = vmatpush1.msra.mxu0 0.0
        %6873 = vmatprep.subr.mxu0 0.0
        %6874 = vmatpush1.msra.mxu0 0.0
        %6875 = vmatprep.subr.mxu0 0.0
        %6876 = vmatpush1.msra.mxu0 0.0
        %6877 = vmatprep.subr.mxu0 0.0
        %6878 = vmatpush1.msra.mxu0 0.0
        %6879 = vmatprep.subr.mxu0 0.0
        %6880 = vmatpush1.msra.mxu0 0.0
        %6881 = vmatprep.subr.mxu0 0.0
        %6882 = vmatpush1.msra.mxu0 0.0
        %6883 = vmatprep.subr.mxu0 0.0
        %6884 = vmatpush1.msra.mxu0 0.0
        %6885 = vmatprep.subr.mxu0 0.0
        %6886 = vmatpush1.msra.mxu0 0.0
        %6887 = vmatprep.subr.mxu0 0.0
        %6888 = vmatpush1.msra.mxu0 0.0
        %6889 = vmatprep.subr.mxu0 0.0
        %6890 = vmatpush1.msra.mxu0 0.0
        %6891 = vmatprep.subr.mxu0 0.0
        %6892 = vmatpush1.msra.mxu0 0.0
        %6893 = vmatprep.subr.mxu0 0.0
        %6894 = vmatpush1.msra.mxu0 %v6862
        %6895 = vmatprep.subr.mxu0 0.0
        %6896 = vmatpush1.msra.mxu0 %v6861
        %6897 = vmatprep.subr.mxu0 0.0
        %6898 = vmatpush1.msra.mxu0 %v6860
        %6899 = vmatprep.subr.mxu0 0.0
        %6900 = vmatpush1.msra.mxu0 %v6859
        %6901 = vmatprep.subr.mxu0 0.0
        %6902 = vmatpush2.msra.mxu0 0.0
        %6903 = vmatprep.subr.mxu0 0.0
        %6904 = vmatpush2.msra.mxu0 0.0
        %6905 = vmatprep.subr.mxu0 0.0
        %6906 = vmatpush2.msra.mxu0 0.0
        %6907 = vmatprep.subr.mxu0 0.0
        %6908 = vmatpush2.msra.mxu0 0.0
        %6909 = vmatprep.subr.mxu0 0.0
        %6910 = vmatpush2.msra.mxu0 0.0
        %6911 = vmatprep.subr.mxu0 0.0
        %6912 = vmatpush2.msra.mxu0 0.0
        %6913 = vmatprep.subr.mxu0 0.0
        %6914 = vmatpush2.msra.mxu0 0.0
        %6915 = vmatprep.subr.mxu0 0.0
        %6916 = vmatpush2.msra.mxu0 0.0
        %6917 = vmatprep.subr.mxu0 0.0
        %6918 = vmatpush2.msra.mxu0 0.0
        %6919 = vmatprep.subr.mxu0 0.0
        %6920 = vmatpush2.msra.mxu0 0.0
        %6921 = vmatprep.subr.mxu0 0.0
        %6922 = vmatpush2.msra.mxu0 0.0
        %6923 = vmatprep.subr.mxu0 0.0
        %6924 = vmatpush2.msra.mxu0 0.0
        %6925 = vmatprep.subr.mxu0 0.0
        %6926 = vmatpush2.msra.mxu0 0.0
        %6927 = vmatprep.subr.mxu0 0.0
        %6928 = vmatpush2.msra.mxu0 0.0
        %6929 = vmatprep.subr.mxu0 0.0
        %6930 = vmatpush2.msra.mxu0 0.0
        %6931 = vmatprep.subr.mxu0 0.0
        %6932 = vmatpush2.msra.mxu0 0.0
        %6933 = vmatprep.mubr.f32.mxu0 0.0
        %6934 = vmatmul.mubr.f32.gmra.mxu0 %v6864
        %v6935 = vpop.f32.mrf.mxu0
        %v6936 = vadd.f32 0.0, %v6935
        %v6937 = vpop.f32.mrf.mxu0
        %6938 = vmatprep.mubr.f32.mxu0 0.0
        %6939 = vmatmul.mubr.f32.gmra.mxu0 %v6867
        %v6940 = vpop.f32.mrf.mxu0
        %v6941 = vadd.f32 0.0, %v6940
        %v6942 = vpop.f32.mrf.mxu0
        %6943 = vdwg.mxu0
        %6944 = vmatprep.subr.mxu0 0.0
        %6945 = vmatpush1.msra.mxu0 0.0
        %6946 = vmatprep.subr.mxu0 0.0
        %6947 = vmatpush1.msra.mxu0 0.0
        %6948 = vmatprep.subr.mxu0 0.0
        %6949 = vmatpush1.msra.mxu0 0.0
        %6950 = vmatprep.subr.mxu0 0.0
        %6951 = vmatpush1.msra.mxu0 0.0
        %6952 = vmatprep.subr.mxu0 0.0
        %6953 = vmatpush1.msra.mxu0 0.0
        %6954 = vmatprep.subr.mxu0 0.0
        %6955 = vmatpush1.msra.mxu0 0.0
        %6956 = vmatprep.subr.mxu0 0.0
        %6957 = vmatpush1.msra.mxu0 0.0
        %6958 = vmatprep.subr.mxu0 0.0
        %6959 = vmatpush1.msra.mxu0 0.0
        %6960 = vmatprep.subr.mxu0 0.0
        %6961 = vmatpush1.msra.mxu0 0.0
        %6962 = vmatprep.subr.mxu0 0.0
        %6963 = vmatpush1.msra.mxu0 0.0
        %6964 = vmatprep.subr.mxu0 0.0
        %6965 = vmatpush1.msra.mxu0 0.0
        %6966 = vmatprep.subr.mxu0 0.0
        %6967 = vmatpush1.msra.mxu0 0.0
        %6968 = vmatprep.subr.mxu0 0.0
        %6969 = vmatpush1.msra.mxu0 %v6857
        %6970 = vmatprep.subr.mxu0 0.0
        %6971 = vmatpush1.msra.mxu0 %v6856
        %6972 = vmatprep.subr.mxu0 0.0
        %6973 = vmatpush1.msra.mxu0 %v6855
        %6974 = vmatprep.subr.mxu0 0.0
        %6975 = vmatpush1.msra.mxu0 %v6854
        %6976 = vmatprep.subr.mxu0 0.0
        %6977 = vmatpush2.msra.mxu0 0.0
        %6978 = vmatprep.subr.mxu0 0.0
        %6979 = vmatpush2.msra.mxu0 0.0
        %6980 = vmatprep.subr.mxu0 0.0
        %6981 = vmatpush2.msra.mxu0 0.0
        %6982 = vmatprep.subr.mxu0 0.0
        %6983 = vmatpush2.msra.mxu0 0.0
        %6984 = vmatprep.subr.mxu0 0.0
        %6985 = vmatpush2.msra.mxu0 0.0
        %6986 = vmatprep.subr.mxu0 0.0
        %6987 = vmatpush2.msra.mxu0 0.0
        %6988 = vmatprep.subr.mxu0 0.0
        %6989 = vmatpush2.msra.mxu0 0.0
        %6990 = vmatprep.subr.mxu0 0.0
        %6991 = vmatpush2.msra.mxu0 0.0
        %6992 = vmatprep.subr.mxu0 0.0
        %6993 = vmatpush2.msra.mxu0 0.0
        %6994 = vmatprep.subr.mxu0 0.0
        %6995 = vmatpush2.msra.mxu0 0.0
        %6996 = vmatprep.subr.mxu0 0.0
        %6997 = vmatpush2.msra.mxu0 0.0
        %6998 = vmatprep.subr.mxu0 0.0
        %6999 = vmatpush2.msra.mxu0 0.0
        %7000 = vmatprep.subr.mxu0 0.0
        %7001 = vmatpush2.msra.mxu0 0.0
        %7002 = vmatprep.subr.mxu0 0.0
        %7003 = vmatpush2.msra.mxu0 0.0
        %7004 = vmatprep.subr.mxu0 0.0
        %7005 = vmatpush2.msra.mxu0 0.0
        %7006 = vmatprep.subr.mxu0 0.0
        %7007 = vmatpush2.msra.mxu0 0.0
        %7008 = vmatprep.mubr.f32.mxu0 0.0
        %7009 = vmatmul.mubr.f32.gmra.mxu0 %v3796
        %v7010 = vpop.f32.mrf.mxu0
        %v7011 = vadd.f32 %v6936, %v7010
        %v7012 = vpop.f32.mrf.mxu0
        %7013 = vmatprep.mubr.f32.mxu0 0.0
        %7014 = vmatmul.mubr.f32.gmra.mxu0 %v3799
        %v7015 = vpop.f32.mrf.mxu0
        %v7016 = vadd.f32 %v6941, %v7015
        %v7017 = vpop.f32.mrf.mxu0
        %7018 = vdwg.mxu0
        %v7019 = vld [vmem:[%s622] sm:$0x1]
        %v7021 = vlaneseq
        %v7022 = vshrl.u32 %v7021, 7
        %v7023 = vsub.s32 0, %v7022
        %v7024 = vrot.slane %v7019, %v7023
        %v7026 = vadd.f32 %v7011, %v7024
        %v7027 = vadd.f32 %v7016, %v7024
        %v7028 = vxor.u32 %v7026, 2147483648
        %v7029 = vxor.u32 %v7027, 2147483648
        %v7030 = vmul.f32 %v7028, 1.442695
        %v7031 = vpow.pop %v7030
        %v7032 = vmul.f32 %v7029, 1.442695
        %v7033 = vpow.pop %v7032
        %v7034 = vadd.f32 %v7031, 1.0
        %v7035 = vadd.f32 %v7033, 1.0
        %v7036 = vrcp.pop %v7034
        %v7037 = vmul.f32 1.0, %v7036
        %v7038 = vrcp.pop %v7035
        %v7039 = vmul.f32 1.0, %v7038
        %v7040 = vmul.f32 %v7037, %v6846
        %v7041 = vmul.f32 %v7039, %v6851
        %v7042 = vadd.f32 %v3780, %v7040
        %v7043 = vadd.f32 %v3781, %v7041
        %v7044 = vsel %vm674, %v7042, 0.0
        %7045 = vadd.xlane.f32.xlu0 %v7044
        %v7046 = vpop.xlane.xlu0 %7045
        %v7047 = vsel %vm674, %v7043, 0.0
        %7048 = vadd.xlane.f32.xlu0 %v7047
        %v7049 = vpop.xlane.xlu0 %7048
        %v7050 = vmul.f32 %v7046, %v3743
        %v7051 = vmul.f32 %v7049, %v3743
        %v7052 = vsub.f32 %v7042, %v7050
        %v7053 = vsub.f32 %v7043, %v7051
        %v7054 = vmul.f32 %v7052, %v7052
        %v7055 = vmul.f32 %v7053, %v7053
        %v7056 = vsel %vm674, %v7054, 0.0
        %7057 = vadd.xlane.f32.xlu0 %v7056
        %v7058 = vpop.xlane.xlu0 %7057
        %v7059 = vsel %vm674, %v7055, 0.0
        %7060 = vadd.xlane.f32.xlu0 %v7059
        %v7061 = vpop.xlane.xlu0 %7060
        %v7062 = vmul.f32 %v7058, %v3743
        %v7063 = vmul.f32 %v7061, %v3743
        %v7064 = vadd.f32 %v7062, 1e-05
        %v7065 = vadd.f32 %v7063, 1e-05
        %v7066 = vrsqrt.pop %v7064
        %v7067 = vrsqrt.pop %v7065
        %v7068 = vmul.f32 %v7052, %v7066
        %v7069 = vmul.f32 %v7053, %v7067
        %s7070 = scalar_lea.vmem %s626, 1
        %v7071 = vld [vmem:[%s7070] sm:$0x1]
        %v7073 = vlaneseq
        %v7074 = vshrl.u32 %v7073, 7
        %v7075 = vsub.s32 0, %v7074
        %v7076 = vrot.slane %v7071, %v7075
        %v7078 = vmul.f32 %v7068, %v7076
        %v7079 = vmul.f32 %v7069, %v7076
        %s7080 = scalar_lea.vmem %s630, 1
        %v7081 = vld [vmem:[%s7080] sm:$0x1]
        %v7083 = vlaneseq
        %v7084 = vshrl.u32 %v7083, 7
        %v7085 = vsub.s32 0, %v7084
        %v7086 = vrot.slane %v7081, %v7085
        %v7088 = vadd.f32 %v7078, %v7086
        %v7089 = vadd.f32 %v7079, %v7086
        %v7090 = vld [vmem:[%s635] sm:$0xff]
        %v7091 = vld [vmem:[%s635 + $0x8] sm:$0xff]
        %v7092 = vld [vmem:[%s635 + $0x10] sm:$0xff]
        %v7093 = vld [vmem:[%s635 + $0x18] sm:$0xff]
        %v7094 = vld [vmem:[%s635 + $0x20] sm:$0xff]
        %v7095 = vld [vmem:[%s635 + $0x28] sm:$0xff]
        %v7096 = vld [vmem:[%s635 + $0x30] sm:$0xff]
        %v7097 = vld [vmem:[%s635 + $0x38] sm:$0xff]
        %v7098 = vld [vmem:[%s635 + $0x40] sm:$0xff]
        %v7099 = vld [vmem:[%s635 + $0x48] sm:$0xff]
        %v7100 = vld [vmem:[%s635 + $0x50] sm:$0xff]
        %v7101 = vld [vmem:[%s635 + $0x58] sm:$0xff]
        %v7102 = vld [vmem:[%s635 + $0x60] sm:$0xff]
        %v7103 = vld [vmem:[%s635 + $0x68] sm:$0xff]
        %v7104 = vld [vmem:[%s635 + $0x70] sm:$0xff]
        %v7105 = vld [vmem:[%s635 + $0x78] sm:$0xff]
        %v7106 = vld [vmem:[%s635 + $0x80] sm:$0xff]
        %v7107 = vld [vmem:[%s635 + $0x88] sm:$0xff]
        %v7108 = vld [vmem:[%s635 + $0x90] sm:$0xff]
        %v7109 = vld [vmem:[%s635 + $0x98] sm:$0xff]
        %v7110 = vld [vmem:[%s635 + $0xa0] sm:$0xff]
        %v7111 = vld [vmem:[%s635 + $0xa8] sm:$0xff]
        %v7112 = vld [vmem:[%s635 + $0xb0] sm:$0xff]
        %v7113 = vld [vmem:[%s635 + $0xb8] sm:$0xff]
        %v7114 = vld [vmem:[%s635 + $0xc0] sm:$0xff]
        %v7115 = vld [vmem:[%s635 + $0xc8] sm:$0xff]
        %v7116 = vld [vmem:[%s635 + $0xd0] sm:$0xff]
        %v7117 = vld [vmem:[%s635 + $0xd8] sm:$0xff]
        %v7118 = vld [vmem:[%s635 + $0xe0] sm:$0xff]
        %v7119 = vld [vmem:[%s635 + $0xe8] sm:$0xff]
        %v7120 = vld [vmem:[%s635 + $0xf0] sm:$0xff]
        %v7121 = vld [vmem:[%s635 + $0xf8] sm:$0xff]
        %v7122 = vld [vmem:[%s635 + $0x100] sm:$0xff]
        %v7123 = vld [vmem:[%s635 + $0x108] sm:$0xff]
        %v7124 = vld [vmem:[%s635 + $0x110] sm:$0xff]
        %v7125 = vld [vmem:[%s635 + $0x118] sm:$0xff]
        %v7126 = vld [vmem:[%s635 + $0x120] sm:$0xff]
        %v7127 = vld [vmem:[%s635 + $0x128] sm:$0xff]
        %v7128 = vld [vmem:[%s635 + $0x130] sm:$0xff]
        %v7129 = vld [vmem:[%s635 + $0x138] sm:$0xff]
        %v7130 = vld [vmem:[%s635 + $0x140] sm:$0xff]
        %v7131 = vld [vmem:[%s635 + $0x148] sm:$0xff]
        %v7132 = vld [vmem:[%s635 + $0x150] sm:$0xff]
        %v7133 = vld [vmem:[%s635 + $0x158] sm:$0xff]
        %v7134 = vld [vmem:[%s635 + $0x160] sm:$0xff]
        %v7135 = vld [vmem:[%s635 + $0x168] sm:$0xff]
        %v7136 = vld [vmem:[%s635 + $0x170] sm:$0xff]
        %v7137 = vld [vmem:[%s635 + $0x178] sm:$0xff]
        %v7138 = vld [vmem:[%s635 + $0x180] sm:$0xff]
        %v7139 = vld [vmem:[%s635 + $0x188] sm:$0xff]
        %v7140 = vld [vmem:[%s635 + $0x190] sm:$0xff]
        %v7141 = vld [vmem:[%s635 + $0x198] sm:$0xff]
        %v7142 = vld [vmem:[%s635 + $0x1a0] sm:$0xff]
        %v7143 = vld [vmem:[%s635 + $0x1a8] sm:$0xff]
        %v7144 = vld [vmem:[%s635 + $0x1b0] sm:$0xff]
        %v7145 = vld [vmem:[%s635 + $0x1b8] sm:$0xff]
        %v7146 = vld [vmem:[%s635 + $0x1c0] sm:$0xff]
        %v7147 = vld [vmem:[%s635 + $0x1c8] sm:$0xff]
        %v7148 = vld [vmem:[%s635 + $0x1d0] sm:$0xff]
        %v7149 = vld [vmem:[%s635 + $0x1d8] sm:$0xff]
        %v7150 = vld [vmem:[%s635 + $0x1e0] sm:$0xff]
        %v7151 = vld [vmem:[%s635 + $0x1e8] sm:$0xff]
        %v7152 = vld [vmem:[%s635 + $0x1f0] sm:$0xff]
        %v7153 = vld [vmem:[%s635 + $0x1f8] sm:$0xff]
        %v7154 = vld [vmem:[%s635 + $0x200] sm:$0xff]
        %v7155 = vld [vmem:[%s635 + $0x208] sm:$0xff]
        %v7156 = vld [vmem:[%s635 + $0x210] sm:$0xff]
        %v7157 = vld [vmem:[%s635 + $0x218] sm:$0xff]
        %v7158 = vld [vmem:[%s635 + $0x220] sm:$0xff]
        %v7159 = vld [vmem:[%s635 + $0x228] sm:$0xff]
        %v7160 = vld [vmem:[%s635 + $0x230] sm:$0xff]
        %v7161 = vld [vmem:[%s635 + $0x238] sm:$0xff]
        %v7162 = vld [vmem:[%s635 + $0x240] sm:$0xff]
        %v7163 = vld [vmem:[%s635 + $0x248] sm:$0xff]
        %v7164 = vld [vmem:[%s635 + $0x250] sm:$0xff]
        %v7165 = vld [vmem:[%s635 + $0x258] sm:$0xff]
        %v7166 = vld [vmem:[%s635 + $0x260] sm:$0xff]
        %v7167 = vld [vmem:[%s635 + $0x268] sm:$0xff]
        %v7168 = vld [vmem:[%s635 + $0x270] sm:$0xff]
        %v7169 = vld [vmem:[%s635 + $0x278] sm:$0xff]
        %v7170 = vld [vmem:[%s635 + $0x280] sm:$0xff]
        %v7171 = vld [vmem:[%s635 + $0x288] sm:$0xff]
        %v7172 = vld [vmem:[%s635 + $0x290] sm:$0xff]
        %v7173 = vld [vmem:[%s635 + $0x298] sm:$0xff]
        %v7174 = vld [vmem:[%s635 + $0x2a0] sm:$0xff]
        %v7175 = vld [vmem:[%s635 + $0x2a8] sm:$0xff]
        %v7176 = vld [vmem:[%s635 + $0x2b0] sm:$0xff]
        %v7177 = vld [vmem:[%s635 + $0x2b8] sm:$0xff]
        %v7178 = vld [vmem:[%s635 + $0x2c0] sm:$0xff]
        %v7179 = vld [vmem:[%s635 + $0x2c8] sm:$0xff]
        %v7180 = vld [vmem:[%s635 + $0x2d0] sm:$0xff]
        %v7181 = vld [vmem:[%s635 + $0x2d8] sm:$0xff]
        %v7182 = vld [vmem:[%s635 + $0x2e0] sm:$0xff]
        %v7183 = vld [vmem:[%s635 + $0x2e8] sm:$0xff]
        %v7184 = vld [vmem:[%s635 + $0x2f0] sm:$0xff]
        %v7185 = vld [vmem:[%s635 + $0x2f8] sm:$0xff]
        %v7186 = vld [vmem:[%s639] sm:$0xff]
        %v7187 = vld [vmem:[%s639 + $0x8] sm:$0xff]
        %v7188 = vld [vmem:[%s639 + $0x10] sm:$0xff]
        %v7192 = vlaneseq
        %v7193 = vshrl.u32 %v7192, 7
        %v7194 = vsub.s32 0, %v7193
        %v7195 = vrot.slane %v7186, %v7194
        %v7196 = vlaneseq
        %v7197 = vshrl.u32 %v7196, 7
        %v7198 = vsub.s32 1, %v7197
        %v7199 = vrot.slane %v7186, %v7198
        %v7200 = vlaneseq
        %v7201 = vshrl.u32 %v7200, 7
        %v7202 = vsub.s32 2, %v7201
        %v7203 = vrot.slane %v7186, %v7202
        %v7204 = vlaneseq
        %v7205 = vshrl.u32 %v7204, 7
        %v7206 = vsub.s32 3, %v7205
        %v7207 = vrot.slane %v7186, %v7206
        %v7208 = vlaneseq
        %v7209 = vshrl.u32 %v7208, 7
        %v7210 = vsub.s32 4, %v7209
        %v7211 = vrot.slane %v7186, %v7210
        %v7212 = vlaneseq
        %v7213 = vshrl.u32 %v7212, 7
        %v7214 = vsub.s32 5, %v7213
        %v7215 = vrot.slane %v7186, %v7214
        %v7216 = vlaneseq
        %v7217 = vshrl.u32 %v7216, 7
        %v7218 = vsub.s32 6, %v7217
        %v7219 = vrot.slane %v7186, %v7218
        %v7220 = vlaneseq
        %v7221 = vshrl.u32 %v7220, 7
        %v7222 = vsub.s32 7, %v7221
        %v7223 = vrot.slane %v7186, %v7222
        %v7224 = vlaneseq
        %v7225 = vshrl.u32 %v7224, 7
        %v7226 = vsub.s32 0, %v7225
        %v7227 = vrot.slane %v7187, %v7226
        %v7228 = vlaneseq
        %v7229 = vshrl.u32 %v7228, 7
        %v7230 = vsub.s32 1, %v7229
        %v7231 = vrot.slane %v7187, %v7230
        %v7232 = vlaneseq
        %v7233 = vshrl.u32 %v7232, 7
        %v7234 = vsub.s32 2, %v7233
        %v7235 = vrot.slane %v7187, %v7234
        %v7236 = vlaneseq
        %v7237 = vshrl.u32 %v7236, 7
        %v7238 = vsub.s32 3, %v7237
        %v7239 = vrot.slane %v7187, %v7238
        %v7240 = vlaneseq
        %v7241 = vshrl.u32 %v7240, 7
        %v7242 = vsub.s32 4, %v7241
        %v7243 = vrot.slane %v7187, %v7242
        %v7244 = vlaneseq
        %v7245 = vshrl.u32 %v7244, 7
        %v7246 = vsub.s32 5, %v7245
        %v7247 = vrot.slane %v7187, %v7246
        %v7248 = vlaneseq
        %v7249 = vshrl.u32 %v7248, 7
        %v7250 = vsub.s32 6, %v7249
        %v7251 = vrot.slane %v7187, %v7250
        %v7252 = vlaneseq
        %v7253 = vshrl.u32 %v7252, 7
        %v7254 = vsub.s32 7, %v7253
        %v7255 = vrot.slane %v7187, %v7254
        %v7256 = vlaneseq
        %v7257 = vshrl.u32 %v7256, 7
        %v7258 = vsub.s32 0, %v7257
        %v7259 = vrot.slane %v7188, %v7258
        %v7260 = vlaneseq
        %v7261 = vshrl.u32 %v7260, 7
        %v7262 = vsub.s32 1, %v7261
        %v7263 = vrot.slane %v7188, %v7262
        %v7264 = vlaneseq
        %v7265 = vshrl.u32 %v7264, 7
        %v7266 = vsub.s32 2, %v7265
        %v7267 = vrot.slane %v7188, %v7266
        %v7268 = vlaneseq
        %v7269 = vshrl.u32 %v7268, 7
        %v7270 = vsub.s32 3, %v7269
        %v7271 = vrot.slane %v7188, %v7270
        %v7272 = vlaneseq
        %v7273 = vshrl.u32 %v7272, 7
        %v7274 = vsub.s32 4, %v7273
        %v7275 = vrot.slane %v7188, %v7274
        %v7276 = vlaneseq
        %v7277 = vshrl.u32 %v7276, 7
        %v7278 = vsub.s32 5, %v7277
        %v7279 = vrot.slane %v7188, %v7278
        %v7280 = vlaneseq
        %v7281 = vshrl.u32 %v7280, 7
        %v7282 = vsub.s32 6, %v7281
        %v7283 = vrot.slane %v7188, %v7282
        %v7284 = vlaneseq
        %v7285 = vshrl.u32 %v7284, 7
        %v7286 = vsub.s32 7, %v7285
        %v7287 = vrot.slane %v7188, %v7286
        %v7313 = vsel %vm674, %v7088, 0
        %v7316 = vsel %vm674, %v7089, 0
        %7318 = vmatprep.subr.mxu0 0.0
        %7319 = vmatpush1.msra.mxu0 0.0
        %7320 = vmatprep.subr.mxu0 0.0
        %7321 = vmatpush1.msra.mxu0 0.0
        %7322 = vmatprep.subr.mxu0 0.0
        %7323 = vmatpush1.msra.mxu0 0.0
        %7324 = vmatprep.subr.mxu0 0.0
        %7325 = vmatpush1.msra.mxu0 0.0
        %7326 = vmatprep.subr.mxu0 0.0
        %7327 = vmatpush1.msra.mxu0 0.0
        %7328 = vmatprep.subr.mxu0 0.0
        %7329 = vmatpush1.msra.mxu0 0.0
        %7330 = vmatprep.subr.mxu0 0.0
        %7331 = vmatpush1.msra.mxu0 0.0
        %7332 = vmatprep.subr.mxu0 0.0
        %7333 = vmatpush1.msra.mxu0 0.0
        %7334 = vmatprep.subr.mxu0 0.0
        %7335 = vmatpush1.msra.mxu0 0.0
        %7336 = vmatprep.subr.mxu0 0.0
        %7337 = vmatpush1.msra.mxu0 0.0
        %7338 = vmatprep.subr.mxu0 0.0
        %7339 = vmatpush1.msra.mxu0 0.0
        %7340 = vmatprep.subr.mxu0 0.0
        %7341 = vmatpush1.msra.mxu0 0.0
        %7342 = vmatprep.subr.mxu0 %v7163
        %7343 = vmatpush1.msra.mxu0 %v7162
        %7344 = vmatprep.subr.mxu0 %v7139
        %7345 = vmatpush1.msra.mxu0 %v7138
        %7346 = vmatprep.subr.mxu0 %v7115
        %7347 = vmatpush1.msra.mxu0 %v7114
        %7348 = vmatprep.subr.mxu0 %v7091
        %7349 = vmatpush1.msra.mxu0 %v7090
        %7350 = vmatprep.subr.mxu0 0.0
        %7351 = vmatpush2.msra.mxu0 0.0
        %7352 = vmatprep.subr.mxu0 0.0
        %7353 = vmatpush2.msra.mxu0 0.0
        %7354 = vmatprep.subr.mxu0 0.0
        %7355 = vmatpush2.msra.mxu0 0.0
        %7356 = vmatprep.subr.mxu0 0.0
        %7357 = vmatpush2.msra.mxu0 0.0
        %7358 = vmatprep.subr.mxu0 0.0
        %7359 = vmatpush2.msra.mxu0 0.0
        %7360 = vmatprep.subr.mxu0 0.0
        %7361 = vmatpush2.msra.mxu0 0.0
        %7362 = vmatprep.subr.mxu0 0.0
        %7363 = vmatpush2.msra.mxu0 0.0
        %7364 = vmatprep.subr.mxu0 0.0
        %7365 = vmatpush2.msra.mxu0 0.0
        %7366 = vmatprep.subr.mxu0 0.0
        %7367 = vmatpush2.msra.mxu0 0.0
        %7368 = vmatprep.subr.mxu0 0.0
        %7369 = vmatpush2.msra.mxu0 0.0
        %7370 = vmatprep.subr.mxu0 0.0
        %7371 = vmatpush2.msra.mxu0 0.0
        %7372 = vmatprep.subr.mxu0 0.0
        %7373 = vmatpush2.msra.mxu0 0.0
        %7374 = vmatprep.subr.mxu0 0.0
        %7375 = vmatpush2.msra.mxu0 0.0
        %7376 = vmatprep.subr.mxu0 0.0
        %7377 = vmatpush2.msra.mxu0 0.0
        %7378 = vmatprep.subr.mxu0 0.0
        %7379 = vmatpush2.msra.mxu0 0.0
        %7380 = vmatprep.subr.mxu0 0.0
        %7381 = vmatpush2.msra.mxu0 0.0
        %7382 = vmatprep.mubr.f32.mxu0 0.0
        %7383 = vmatmul.mubr.f32.gmra.mxu0 %v7313
        %v7384 = vpop.f32.mrf.mxu0
        %v7385 = vadd.f32 %v7195, %v7384
        %v7386 = vpop.f32.mrf.mxu0
        %v7387 = vadd.f32 %v7199, %v7386
        %7388 = vmatprep.mubr.f32.mxu0 0.0
        %7389 = vmatmul.mubr.f32.gmra.mxu0 %v7316
        %v7390 = vpop.f32.mrf.mxu0
        %v7391 = vadd.f32 %v7195, %v7390
        %v7392 = vpop.f32.mrf.mxu0
        %v7393 = vadd.f32 %v7199, %v7392
        %7394 = vdwg.mxu0
        %7395 = vmatprep.subr.mxu0 0.0
        %7396 = vmatpush1.msra.mxu0 0.0
        %7397 = vmatprep.subr.mxu0 0.0
        %7398 = vmatpush1.msra.mxu0 0.0
        %7399 = vmatprep.subr.mxu0 0.0
        %7400 = vmatpush1.msra.mxu0 0.0
        %7401 = vmatprep.subr.mxu0 0.0
        %7402 = vmatpush1.msra.mxu0 0.0
        %7403 = vmatprep.subr.mxu0 0.0
        %7404 = vmatpush1.msra.mxu0 0.0
        %7405 = vmatprep.subr.mxu0 0.0
        %7406 = vmatpush1.msra.mxu0 0.0
        %7407 = vmatprep.subr.mxu0 0.0
        %7408 = vmatpush1.msra.mxu0 0.0
        %7409 = vmatprep.subr.mxu0 0.0
        %7410 = vmatpush1.msra.mxu0 0.0
        %7411 = vmatprep.subr.mxu0 0.0
        %7412 = vmatpush1.msra.mxu0 0.0
        %7413 = vmatprep.subr.mxu0 0.0
        %7414 = vmatpush1.msra.mxu0 0.0
        %7415 = vmatprep.subr.mxu0 0.0
        %7416 = vmatpush1.msra.mxu0 0.0
        %7417 = vmatprep.subr.mxu0 0.0
        %7418 = vmatpush1.msra.mxu0 0.0
        %7419 = vmatprep.subr.mxu0 %v7165
        %7420 = vmatpush1.msra.mxu0 %v7164
        %7421 = vmatprep.subr.mxu0 %v7141
        %7422 = vmatpush1.msra.mxu0 %v7140
        %7423 = vmatprep.subr.mxu0 %v7117
        %7424 = vmatpush1.msra.mxu0 %v7116
        %7425 = vmatprep.subr.mxu0 %v7093
        %7426 = vmatpush1.msra.mxu0 %v7092
        %7427 = vmatprep.subr.mxu0 0.0
        %7428 = vmatpush2.msra.mxu0 0.0
        %7429 = vmatprep.subr.mxu0 0.0
        %7430 = vmatpush2.msra.mxu0 0.0
        %7431 = vmatprep.subr.mxu0 0.0
        %7432 = vmatpush2.msra.mxu0 0.0
        %7433 = vmatprep.subr.mxu0 0.0
        %7434 = vmatpush2.msra.mxu0 0.0
        %7435 = vmatprep.subr.mxu0 0.0
        %7436 = vmatpush2.msra.mxu0 0.0
        %7437 = vmatprep.subr.mxu0 0.0
        %7438 = vmatpush2.msra.mxu0 0.0
        %7439 = vmatprep.subr.mxu0 0.0
        %7440 = vmatpush2.msra.mxu0 0.0
        %7441 = vmatprep.subr.mxu0 0.0
        %7442 = vmatpush2.msra.mxu0 0.0
        %7443 = vmatprep.subr.mxu0 0.0
        %7444 = vmatpush2.msra.mxu0 0.0
        %7445 = vmatprep.subr.mxu0 0.0
        %7446 = vmatpush2.msra.mxu0 0.0
        %7447 = vmatprep.subr.mxu0 0.0
        %7448 = vmatpush2.msra.mxu0 0.0
        %7449 = vmatprep.subr.mxu0 0.0
        %7450 = vmatpush2.msra.mxu0 0.0
        %7451 = vmatprep.subr.mxu0 0.0
        %7452 = vmatpush2.msra.mxu0 0.0
        %7453 = vmatprep.subr.mxu0 0.0
        %7454 = vmatpush2.msra.mxu0 0.0
        %7455 = vmatprep.subr.mxu0 0.0
        %7456 = vmatpush2.msra.mxu0 0.0
        %7457 = vmatprep.subr.mxu0 0.0
        %7458 = vmatpush2.msra.mxu0 0.0
        %7459 = vmatprep.mubr.f32.mxu0 0.0
        %7460 = vmatmul.mubr.f32.gmra.mxu0 %v7313
        %v7461 = vpop.f32.mrf.mxu0
        %v7462 = vadd.f32 %v7203, %v7461
        %v7463 = vpop.f32.mrf.mxu0
        %v7464 = vadd.f32 %v7207, %v7463
        %7465 = vmatprep.mubr.f32.mxu0 0.0
        %7466 = vmatmul.mubr.f32.gmra.mxu0 %v7316
        %v7467 = vpop.f32.mrf.mxu0
        %v7468 = vadd.f32 %v7203, %v7467
        %v7469 = vpop.f32.mrf.mxu0
        %v7470 = vadd.f32 %v7207, %v7469
        %7471 = vdwg.mxu0
        %7472 = vmatprep.subr.mxu0 0.0
        %7473 = vmatpush1.msra.mxu0 0.0
        %7474 = vmatprep.subr.mxu0 0.0
        %7475 = vmatpush1.msra.mxu0 0.0
        %7476 = vmatprep.subr.mxu0 0.0
        %7477 = vmatpush1.msra.mxu0 0.0
        %7478 = vmatprep.subr.mxu0 0.0
        %7479 = vmatpush1.msra.mxu0 0.0
        %7480 = vmatprep.subr.mxu0 0.0
        %7481 = vmatpush1.msra.mxu0 0.0
        %7482 = vmatprep.subr.mxu0 0.0
        %7483 = vmatpush1.msra.mxu0 0.0
        %7484 = vmatprep.subr.mxu0 0.0
        %7485 = vmatpush1.msra.mxu0 0.0
        %7486 = vmatprep.subr.mxu0 0.0
        %7487 = vmatpush1.msra.mxu0 0.0
        %7488 = vmatprep.subr.mxu0 0.0
        %7489 = vmatpush1.msra.mxu0 0.0
        %7490 = vmatprep.subr.mxu0 0.0
        %7491 = vmatpush1.msra.mxu0 0.0
        %7492 = vmatprep.subr.mxu0 0.0
        %7493 = vmatpush1.msra.mxu0 0.0
        %7494 = vmatprep.subr.mxu0 0.0
        %7495 = vmatpush1.msra.mxu0 0.0
        %7496 = vmatprep.subr.mxu0 %v7167
        %7497 = vmatpush1.msra.mxu0 %v7166
        %7498 = vmatprep.subr.mxu0 %v7143
        %7499 = vmatpush1.msra.mxu0 %v7142
        %7500 = vmatprep.subr.mxu0 %v7119
        %7501 = vmatpush1.msra.mxu0 %v7118
        %7502 = vmatprep.subr.mxu0 %v7095
        %7503 = vmatpush1.msra.mxu0 %v7094
        %7504 = vmatprep.subr.mxu0 0.0
        %7505 = vmatpush2.msra.mxu0 0.0
        %7506 = vmatprep.subr.mxu0 0.0
        %7507 = vmatpush2.msra.mxu0 0.0
        %7508 = vmatprep.subr.mxu0 0.0
        %7509 = vmatpush2.msra.mxu0 0.0
        %7510 = vmatprep.subr.mxu0 0.0
        %7511 = vmatpush2.msra.mxu0 0.0
        %7512 = vmatprep.subr.mxu0 0.0
        %7513 = vmatpush2.msra.mxu0 0.0
        %7514 = vmatprep.subr.mxu0 0.0
        %7515 = vmatpush2.msra.mxu0 0.0
        %7516 = vmatprep.subr.mxu0 0.0
        %7517 = vmatpush2.msra.mxu0 0.0
        %7518 = vmatprep.subr.mxu0 0.0
        %7519 = vmatpush2.msra.mxu0 0.0
        %7520 = vmatprep.subr.mxu0 0.0
        %7521 = vmatpush2.msra.mxu0 0.0
        %7522 = vmatprep.subr.mxu0 0.0
        %7523 = vmatpush2.msra.mxu0 0.0
        %7524 = vmatprep.subr.mxu0 0.0
        %7525 = vmatpush2.msra.mxu0 0.0
        %7526 = vmatprep.subr.mxu0 0.0
        %7527 = vmatpush2.msra.mxu0 0.0
        %7528 = vmatprep.subr.mxu0 0.0
        %7529 = vmatpush2.msra.mxu0 0.0
        %7530 = vmatprep.subr.mxu0 0.0
        %7531 = vmatpush2.msra.mxu0 0.0
        %7532 = vmatprep.subr.mxu0 0.0
        %7533 = vmatpush2.msra.mxu0 0.0
        %7534 = vmatprep.subr.mxu0 0.0
        %7535 = vmatpush2.msra.mxu0 0.0
        %7536 = vmatprep.mubr.f32.mxu0 0.0
        %7537 = vmatmul.mubr.f32.gmra.mxu0 %v7313
        %v7538 = vpop.f32.mrf.mxu0
        %v7539 = vadd.f32 %v7211, %v7538
        %v7540 = vpop.f32.mrf.mxu0
        %v7541 = vadd.f32 %v7215, %v7540
        %7542 = vmatprep.mubr.f32.mxu0 0.0
        %7543 = vmatmul.mubr.f32.gmra.mxu0 %v7316
        %v7544 = vpop.f32.mrf.mxu0
        %v7545 = vadd.f32 %v7211, %v7544
        %v7546 = vpop.f32.mrf.mxu0
        %v7547 = vadd.f32 %v7215, %v7546
        %7548 = vdwg.mxu0
        %7549 = vmatprep.subr.mxu0 0.0
        %7550 = vmatpush1.msra.mxu0 0.0
        %7551 = vmatprep.subr.mxu0 0.0
        %7552 = vmatpush1.msra.mxu0 0.0
        %7553 = vmatprep.subr.mxu0 0.0
        %7554 = vmatpush1.msra.mxu0 0.0
        %7555 = vmatprep.subr.mxu0 0.0
        %7556 = vmatpush1.msra.mxu0 0.0
        %7557 = vmatprep.subr.mxu0 0.0
        %7558 = vmatpush1.msra.mxu0 0.0
        %7559 = vmatprep.subr.mxu0 0.0
        %7560 = vmatpush1.msra.mxu0 0.0
        %7561 = vmatprep.subr.mxu0 0.0
        %7562 = vmatpush1.msra.mxu0 0.0
        %7563 = vmatprep.subr.mxu0 0.0
        %7564 = vmatpush1.msra.mxu0 0.0
        %7565 = vmatprep.subr.mxu0 0.0
        %7566 = vmatpush1.msra.mxu0 0.0
        %7567 = vmatprep.subr.mxu0 0.0
        %7568 = vmatpush1.msra.mxu0 0.0
        %7569 = vmatprep.subr.mxu0 0.0
        %7570 = vmatpush1.msra.mxu0 0.0
        %7571 = vmatprep.subr.mxu0 0.0
        %7572 = vmatpush1.msra.mxu0 0.0
        %7573 = vmatprep.subr.mxu0 %v7169
        %7574 = vmatpush1.msra.mxu0 %v7168
        %7575 = vmatprep.subr.mxu0 %v7145
        %7576 = vmatpush1.msra.mxu0 %v7144
        %7577 = vmatprep.subr.mxu0 %v7121
        %7578 = vmatpush1.msra.mxu0 %v7120
        %7579 = vmatprep.subr.mxu0 %v7097
        %7580 = vmatpush1.msra.mxu0 %v7096
        %7581 = vmatprep.subr.mxu0 0.0
        %7582 = vmatpush2.msra.mxu0 0.0
        %7583 = vmatprep.subr.mxu0 0.0
        %7584 = vmatpush2.msra.mxu0 0.0
        %7585 = vmatprep.subr.mxu0 0.0
        %7586 = vmatpush2.msra.mxu0 0.0
        %7587 = vmatprep.subr.mxu0 0.0
        %7588 = vmatpush2.msra.mxu0 0.0
        %7589 = vmatprep.subr.mxu0 0.0
        %7590 = vmatpush2.msra.mxu0 0.0
        %7591 = vmatprep.subr.mxu0 0.0
        %7592 = vmatpush2.msra.mxu0 0.0
        %7593 = vmatprep.subr.mxu0 0.0
        %7594 = vmatpush2.msra.mxu0 0.0
        %7595 = vmatprep.subr.mxu0 0.0
        %7596 = vmatpush2.msra.mxu0 0.0
        %7597 = vmatprep.subr.mxu0 0.0
        %7598 = vmatpush2.msra.mxu0 0.0
        %7599 = vmatprep.subr.mxu0 0.0
        %7600 = vmatpush2.msra.mxu0 0.0
        %7601 = vmatprep.subr.mxu0 0.0
        %7602 = vmatpush2.msra.mxu0 0.0
        %7603 = vmatprep.subr.mxu0 0.0
        %7604 = vmatpush2.msra.mxu0 0.0
        %7605 = vmatprep.subr.mxu0 0.0
        %7606 = vmatpush2.msra.mxu0 0.0
        %7607 = vmatprep.subr.mxu0 0.0
        %7608 = vmatpush2.msra.mxu0 0.0
        %7609 = vmatprep.subr.mxu0 0.0
        %7610 = vmatpush2.msra.mxu0 0.0
        %7611 = vmatprep.subr.mxu0 0.0
        %7612 = vmatpush2.msra.mxu0 0.0
        %7613 = vmatprep.mubr.f32.mxu0 0.0
        %7614 = vmatmul.mubr.f32.gmra.mxu0 %v7313
        %v7615 = vpop.f32.mrf.mxu0
        %v7616 = vadd.f32 %v7219, %v7615
        %v7617 = vpop.f32.mrf.mxu0
        %v7618 = vadd.f32 %v7223, %v7617
        %7619 = vmatprep.mubr.f32.mxu0 0.0
        %7620 = vmatmul.mubr.f32.gmra.mxu0 %v7316
        %v7621 = vpop.f32.mrf.mxu0
        %v7622 = vadd.f32 %v7219, %v7621
        %v7623 = vpop.f32.mrf.mxu0
        %v7624 = vadd.f32 %v7223, %v7623
        %7625 = vdwg.mxu0
        %7626 = vmatprep.subr.mxu0 0.0
        %7627 = vmatpush1.msra.mxu0 0.0
        %7628 = vmatprep.subr.mxu0 0.0
        %7629 = vmatpush1.msra.mxu0 0.0
        %7630 = vmatprep.subr.mxu0 0.0
        %7631 = vmatpush1.msra.mxu0 0.0
        %7632 = vmatprep.subr.mxu0 0.0
        %7633 = vmatpush1.msra.mxu0 0.0
        %7634 = vmatprep.subr.mxu0 0.0
        %7635 = vmatpush1.msra.mxu0 0.0
        %7636 = vmatprep.subr.mxu0 0.0
        %7637 = vmatpush1.msra.mxu0 0.0
        %7638 = vmatprep.subr.mxu0 0.0
        %7639 = vmatpush1.msra.mxu0 0.0
        %7640 = vmatprep.subr.mxu0 0.0
        %7641 = vmatpush1.msra.mxu0 0.0
        %7642 = vmatprep.subr.mxu0 0.0
        %7643 = vmatpush1.msra.mxu0 0.0
        %7644 = vmatprep.subr.mxu0 0.0
        %7645 = vmatpush1.msra.mxu0 0.0
        %7646 = vmatprep.subr.mxu0 0.0
        %7647 = vmatpush1.msra.mxu0 0.0
        %7648 = vmatprep.subr.mxu0 0.0
        %7649 = vmatpush1.msra.mxu0 0.0
        %7650 = vmatprep.subr.mxu0 %v7171
        %7651 = vmatpush1.msra.mxu0 %v7170
        %7652 = vmatprep.subr.mxu0 %v7147
        %7653 = vmatpush1.msra.mxu0 %v7146
        %7654 = vmatprep.subr.mxu0 %v7123
        %7655 = vmatpush1.msra.mxu0 %v7122
        %7656 = vmatprep.subr.mxu0 %v7099
        %7657 = vmatpush1.msra.mxu0 %v7098
        %7658 = vmatprep.subr.mxu0 0.0
        %7659 = vmatpush2.msra.mxu0 0.0
        %7660 = vmatprep.subr.mxu0 0.0
        %7661 = vmatpush2.msra.mxu0 0.0
        %7662 = vmatprep.subr.mxu0 0.0
        %7663 = vmatpush2.msra.mxu0 0.0
        %7664 = vmatprep.subr.mxu0 0.0
        %7665 = vmatpush2.msra.mxu0 0.0
        %7666 = vmatprep.subr.mxu0 0.0
        %7667 = vmatpush2.msra.mxu0 0.0
        %7668 = vmatprep.subr.mxu0 0.0
        %7669 = vmatpush2.msra.mxu0 0.0
        %7670 = vmatprep.subr.mxu0 0.0
        %7671 = vmatpush2.msra.mxu0 0.0
        %7672 = vmatprep.subr.mxu0 0.0
        %7673 = vmatpush2.msra.mxu0 0.0
        %7674 = vmatprep.subr.mxu0 0.0
        %7675 = vmatpush2.msra.mxu0 0.0
        %7676 = vmatprep.subr.mxu0 0.0
        %7677 = vmatpush2.msra.mxu0 0.0
        %7678 = vmatprep.subr.mxu0 0.0
        %7679 = vmatpush2.msra.mxu0 0.0
        %7680 = vmatprep.subr.mxu0 0.0
        %7681 = vmatpush2.msra.mxu0 0.0
        %7682 = vmatprep.subr.mxu0 0.0
        %7683 = vmatpush2.msra.mxu0 0.0
        %7684 = vmatprep.subr.mxu0 0.0
        %7685 = vmatpush2.msra.mxu0 0.0
        %7686 = vmatprep.subr.mxu0 0.0
        %7687 = vmatpush2.msra.mxu0 0.0
        %7688 = vmatprep.subr.mxu0 0.0
        %7689 = vmatpush2.msra.mxu0 0.0
        %7690 = vmatprep.mubr.f32.mxu0 0.0
        %7691 = vmatmul.mubr.f32.gmra.mxu0 %v7313
        %v7692 = vpop.f32.mrf.mxu0
        %v7693 = vadd.f32 %v7227, %v7692
        %v7694 = vpop.f32.mrf.mxu0
        %v7695 = vadd.f32 %v7231, %v7694
        %7696 = vmatprep.mubr.f32.mxu0 0.0
        %7697 = vmatmul.mubr.f32.gmra.mxu0 %v7316
        %v7698 = vpop.f32.mrf.mxu0
        %v7699 = vadd.f32 %v7227, %v7698
        %v7700 = vpop.f32.mrf.mxu0
        %v7701 = vadd.f32 %v7231, %v7700
        %7702 = vdwg.mxu0
        %7703 = vmatprep.subr.mxu0 0.0
        %7704 = vmatpush1.msra.mxu0 0.0
        %7705 = vmatprep.subr.mxu0 0.0
        %7706 = vmatpush1.msra.mxu0 0.0
        %7707 = vmatprep.subr.mxu0 0.0
        %7708 = vmatpush1.msra.mxu0 0.0
        %7709 = vmatprep.subr.mxu0 0.0
        %7710 = vmatpush1.msra.mxu0 0.0
        %7711 = vmatprep.subr.mxu0 0.0
        %7712 = vmatpush1.msra.mxu0 0.0
        %7713 = vmatprep.subr.mxu0 0.0
        %7714 = vmatpush1.msra.mxu0 0.0
        %7715 = vmatprep.subr.mxu0 0.0
        %7716 = vmatpush1.msra.mxu0 0.0
        %7717 = vmatprep.subr.mxu0 0.0
        %7718 = vmatpush1.msra.mxu0 0.0
        %7719 = vmatprep.subr.mxu0 0.0
        %7720 = vmatpush1.msra.mxu0 0.0
        %7721 = vmatprep.subr.mxu0 0.0
        %7722 = vmatpush1.msra.mxu0 0.0
        %7723 = vmatprep.subr.mxu0 0.0
        %7724 = vmatpush1.msra.mxu0 0.0
        %7725 = vmatprep.subr.mxu0 0.0
        %7726 = vmatpush1.msra.mxu0 0.0
        %7727 = vmatprep.subr.mxu0 %v7173
        %7728 = vmatpush1.msra.mxu0 %v7172
        %7729 = vmatprep.subr.mxu0 %v7149
        %7730 = vmatpush1.msra.mxu0 %v7148
        %7731 = vmatprep.subr.mxu0 %v7125
        %7732 = vmatpush1.msra.mxu0 %v7124
        %7733 = vmatprep.subr.mxu0 %v7101
        %7734 = vmatpush1.msra.mxu0 %v7100
        %7735 = vmatprep.subr.mxu0 0.0
        %7736 = vmatpush2.msra.mxu0 0.0
        %7737 = vmatprep.subr.mxu0 0.0
        %7738 = vmatpush2.msra.mxu0 0.0
        %7739 = vmatprep.subr.mxu0 0.0
        %7740 = vmatpush2.msra.mxu0 0.0
        %7741 = vmatprep.subr.mxu0 0.0
        %7742 = vmatpush2.msra.mxu0 0.0
        %7743 = vmatprep.subr.mxu0 0.0
        %7744 = vmatpush2.msra.mxu0 0.0
        %7745 = vmatprep.subr.mxu0 0.0
        %7746 = vmatpush2.msra.mxu0 0.0
        %7747 = vmatprep.subr.mxu0 0.0
        %7748 = vmatpush2.msra.mxu0 0.0
        %7749 = vmatprep.subr.mxu0 0.0
        %7750 = vmatpush2.msra.mxu0 0.0
        %7751 = vmatprep.subr.mxu0 0.0
        %7752 = vmatpush2.msra.mxu0 0.0
        %7753 = vmatprep.subr.mxu0 0.0
        %7754 = vmatpush2.msra.mxu0 0.0
        %7755 = vmatprep.subr.mxu0 0.0
        %7756 = vmatpush2.msra.mxu0 0.0
        %7757 = vmatprep.subr.mxu0 0.0
        %7758 = vmatpush2.msra.mxu0 0.0
        %7759 = vmatprep.subr.mxu0 0.0
        %7760 = vmatpush2.msra.mxu0 0.0
        %7761 = vmatprep.subr.mxu0 0.0
        %7762 = vmatpush2.msra.mxu0 0.0
        %7763 = vmatprep.subr.mxu0 0.0
        %7764 = vmatpush2.msra.mxu0 0.0
        %7765 = vmatprep.subr.mxu0 0.0
        %7766 = vmatpush2.msra.mxu0 0.0
        %7767 = vmatprep.mubr.f32.mxu0 0.0
        %7768 = vmatmul.mubr.f32.gmra.mxu0 %v7313
        %v7769 = vpop.f32.mrf.mxu0
        %v7770 = vadd.f32 %v7235, %v7769
        %v7771 = vpop.f32.mrf.mxu0
        %v7772 = vadd.f32 %v7239, %v7771
        %7773 = vmatprep.mubr.f32.mxu0 0.0
        %7774 = vmatmul.mubr.f32.gmra.mxu0 %v7316
        %v7775 = vpop.f32.mrf.mxu0
        %v7776 = vadd.f32 %v7235, %v7775
        %v7777 = vpop.f32.mrf.mxu0
        %v7778 = vadd.f32 %v7239, %v7777
        %7779 = vdwg.mxu0
        %7780 = vmatprep.subr.mxu0 0.0
        %7781 = vmatpush1.msra.mxu0 0.0
        %7782 = vmatprep.subr.mxu0 0.0
        %7783 = vmatpush1.msra.mxu0 0.0
        %7784 = vmatprep.subr.mxu0 0.0
        %7785 = vmatpush1.msra.mxu0 0.0
        %7786 = vmatprep.subr.mxu0 0.0
        %7787 = vmatpush1.msra.mxu0 0.0
        %7788 = vmatprep.subr.mxu0 0.0
        %7789 = vmatpush1.msra.mxu0 0.0
        %7790 = vmatprep.subr.mxu0 0.0
        %7791 = vmatpush1.msra.mxu0 0.0
        %7792 = vmatprep.subr.mxu0 0.0
        %7793 = vmatpush1.msra.mxu0 0.0
        %7794 = vmatprep.subr.mxu0 0.0
        %7795 = vmatpush1.msra.mxu0 0.0
        %7796 = vmatprep.subr.mxu0 0.0
        %7797 = vmatpush1.msra.mxu0 0.0
        %7798 = vmatprep.subr.mxu0 0.0
        %7799 = vmatpush1.msra.mxu0 0.0
        %7800 = vmatprep.subr.mxu0 0.0
        %7801 = vmatpush1.msra.mxu0 0.0
        %7802 = vmatprep.subr.mxu0 0.0
        %7803 = vmatpush1.msra.mxu0 0.0
        %7804 = vmatprep.subr.mxu0 %v7175
        %7805 = vmatpush1.msra.mxu0 %v7174
        %7806 = vmatprep.subr.mxu0 %v7151
        %7807 = vmatpush1.msra.mxu0 %v7150
        %7808 = vmatprep.subr.mxu0 %v7127
        %7809 = vmatpush1.msra.mxu0 %v7126
        %7810 = vmatprep.subr.mxu0 %v7103
        %7811 = vmatpush1.msra.mxu0 %v7102
        %7812 = vmatprep.subr.mxu0 0.0
        %7813 = vmatpush2.msra.mxu0 0.0
        %7814 = vmatprep.subr.mxu0 0.0
        %7815 = vmatpush2.msra.mxu0 0.0
        %7816 = vmatprep.subr.mxu0 0.0
        %7817 = vmatpush2.msra.mxu0 0.0
        %7818 = vmatprep.subr.mxu0 0.0
        %7819 = vmatpush2.msra.mxu0 0.0
        %7820 = vmatprep.subr.mxu0 0.0
        %7821 = vmatpush2.msra.mxu0 0.0
        %7822 = vmatprep.subr.mxu0 0.0
        %7823 = vmatpush2.msra.mxu0 0.0
        %7824 = vmatprep.subr.mxu0 0.0
        %7825 = vmatpush2.msra.mxu0 0.0
        %7826 = vmatprep.subr.mxu0 0.0
        %7827 = vmatpush2.msra.mxu0 0.0
        %7828 = vmatprep.subr.mxu0 0.0
        %7829 = vmatpush2.msra.mxu0 0.0
        %7830 = vmatprep.subr.mxu0 0.0
        %7831 = vmatpush2.msra.mxu0 0.0
        %7832 = vmatprep.subr.mxu0 0.0
        %7833 = vmatpush2.msra.mxu0 0.0
        %7834 = vmatprep.subr.mxu0 0.0
        %7835 = vmatpush2.msra.mxu0 0.0
        %7836 = vmatprep.subr.mxu0 0.0
        %7837 = vmatpush2.msra.mxu0 0.0
        %7838 = vmatprep.subr.mxu0 0.0
        %7839 = vmatpush2.msra.mxu0 0.0
        %7840 = vmatprep.subr.mxu0 0.0
        %7841 = vmatpush2.msra.mxu0 0.0
        %7842 = vmatprep.subr.mxu0 0.0
        %7843 = vmatpush2.msra.mxu0 0.0
        %7844 = vmatprep.mubr.f32.mxu0 0.0
        %7845 = vmatmul.mubr.f32.gmra.mxu0 %v7313
        %v7846 = vpop.f32.mrf.mxu0
        %v7847 = vadd.f32 %v7243, %v7846
        %v7848 = vpop.f32.mrf.mxu0
        %v7849 = vadd.f32 %v7247, %v7848
        %7850 = vmatprep.mubr.f32.mxu0 0.0
        %7851 = vmatmul.mubr.f32.gmra.mxu0 %v7316
        %v7852 = vpop.f32.mrf.mxu0
        %v7853 = vadd.f32 %v7243, %v7852
        %v7854 = vpop.f32.mrf.mxu0
        %v7855 = vadd.f32 %v7247, %v7854
        %7856 = vdwg.mxu0
        %7857 = vmatprep.subr.mxu0 0.0
        %7858 = vmatpush1.msra.mxu0 0.0
        %7859 = vmatprep.subr.mxu0 0.0
        %7860 = vmatpush1.msra.mxu0 0.0
        %7861 = vmatprep.subr.mxu0 0.0
        %7862 = vmatpush1.msra.mxu0 0.0
        %7863 = vmatprep.subr.mxu0 0.0
        %7864 = vmatpush1.msra.mxu0 0.0
        %7865 = vmatprep.subr.mxu0 0.0
        %7866 = vmatpush1.msra.mxu0 0.0
        %7867 = vmatprep.subr.mxu0 0.0
        %7868 = vmatpush1.msra.mxu0 0.0
        %7869 = vmatprep.subr.mxu0 0.0
        %7870 = vmatpush1.msra.mxu0 0.0
        %7871 = vmatprep.subr.mxu0 0.0
        %7872 = vmatpush1.msra.mxu0 0.0
        %7873 = vmatprep.subr.mxu0 0.0
        %7874 = vmatpush1.msra.mxu0 0.0
        %7875 = vmatprep.subr.mxu0 0.0
        %7876 = vmatpush1.msra.mxu0 0.0
        %7877 = vmatprep.subr.mxu0 0.0
        %7878 = vmatpush1.msra.mxu0 0.0
        %7879 = vmatprep.subr.mxu0 0.0
        %7880 = vmatpush1.msra.mxu0 0.0
        %7881 = vmatprep.subr.mxu0 %v7177
        %7882 = vmatpush1.msra.mxu0 %v7176
        %7883 = vmatprep.subr.mxu0 %v7153
        %7884 = vmatpush1.msra.mxu0 %v7152
        %7885 = vmatprep.subr.mxu0 %v7129
        %7886 = vmatpush1.msra.mxu0 %v7128
        %7887 = vmatprep.subr.mxu0 %v7105
        %7888 = vmatpush1.msra.mxu0 %v7104
        %7889 = vmatprep.subr.mxu0 0.0
        %7890 = vmatpush2.msra.mxu0 0.0
        %7891 = vmatprep.subr.mxu0 0.0
        %7892 = vmatpush2.msra.mxu0 0.0
        %7893 = vmatprep.subr.mxu0 0.0
        %7894 = vmatpush2.msra.mxu0 0.0
        %7895 = vmatprep.subr.mxu0 0.0
        %7896 = vmatpush2.msra.mxu0 0.0
        %7897 = vmatprep.subr.mxu0 0.0
        %7898 = vmatpush2.msra.mxu0 0.0
        %7899 = vmatprep.subr.mxu0 0.0
        %7900 = vmatpush2.msra.mxu0 0.0
        %7901 = vmatprep.subr.mxu0 0.0
        %7902 = vmatpush2.msra.mxu0 0.0
        %7903 = vmatprep.subr.mxu0 0.0
        %7904 = vmatpush2.msra.mxu0 0.0
        %7905 = vmatprep.subr.mxu0 0.0
        %7906 = vmatpush2.msra.mxu0 0.0
        %7907 = vmatprep.subr.mxu0 0.0
        %7908 = vmatpush2.msra.mxu0 0.0
        %7909 = vmatprep.subr.mxu0 0.0
        %7910 = vmatpush2.msra.mxu0 0.0
        %7911 = vmatprep.subr.mxu0 0.0
        %7912 = vmatpush2.msra.mxu0 0.0
        %7913 = vmatprep.subr.mxu0 0.0
        %7914 = vmatpush2.msra.mxu0 0.0
        %7915 = vmatprep.subr.mxu0 0.0
        %7916 = vmatpush2.msra.mxu0 0.0
        %7917 = vmatprep.subr.mxu0 0.0
        %7918 = vmatpush2.msra.mxu0 0.0
        %7919 = vmatprep.subr.mxu0 0.0
        %7920 = vmatpush2.msra.mxu0 0.0
        %7921 = vmatprep.mubr.f32.mxu0 0.0
        %7922 = vmatmul.mubr.f32.gmra.mxu0 %v7313
        %v7923 = vpop.f32.mrf.mxu0
        %v7924 = vadd.f32 %v7251, %v7923
        %v7925 = vpop.f32.mrf.mxu0
        %v7926 = vadd.f32 %v7255, %v7925
        %7927 = vmatprep.mubr.f32.mxu0 0.0
        %7928 = vmatmul.mubr.f32.gmra.mxu0 %v7316
        %v7929 = vpop.f32.mrf.mxu0
        %v7930 = vadd.f32 %v7251, %v7929
        %v7931 = vpop.f32.mrf.mxu0
        %v7932 = vadd.f32 %v7255, %v7931
        %7933 = vdwg.mxu0
        %7934 = vmatprep.subr.mxu0 0.0
        %7935 = vmatpush1.msra.mxu0 0.0
        %7936 = vmatprep.subr.mxu0 0.0
        %7937 = vmatpush1.msra.mxu0 0.0
        %7938 = vmatprep.subr.mxu0 0.0
        %7939 = vmatpush1.msra.mxu0 0.0
        %7940 = vmatprep.subr.mxu0 0.0
        %7941 = vmatpush1.msra.mxu0 0.0
        %7942 = vmatprep.subr.mxu0 0.0
        %7943 = vmatpush1.msra.mxu0 0.0
        %7944 = vmatprep.subr.mxu0 0.0
        %7945 = vmatpush1.msra.mxu0 0.0
        %7946 = vmatprep.subr.mxu0 0.0
        %7947 = vmatpush1.msra.mxu0 0.0
        %7948 = vmatprep.subr.mxu0 0.0
        %7949 = vmatpush1.msra.mxu0 0.0
        %7950 = vmatprep.subr.mxu0 0.0
        %7951 = vmatpush1.msra.mxu0 0.0
        %7952 = vmatprep.subr.mxu0 0.0
        %7953 = vmatpush1.msra.mxu0 0.0
        %7954 = vmatprep.subr.mxu0 0.0
        %7955 = vmatpush1.msra.mxu0 0.0
        %7956 = vmatprep.subr.mxu0 0.0
        %7957 = vmatpush1.msra.mxu0 0.0
        %7958 = vmatprep.subr.mxu0 %v7179
        %7959 = vmatpush1.msra.mxu0 %v7178
        %7960 = vmatprep.subr.mxu0 %v7155
        %7961 = vmatpush1.msra.mxu0 %v7154
        %7962 = vmatprep.subr.mxu0 %v7131
        %7963 = vmatpush1.msra.mxu0 %v7130
        %7964 = vmatprep.subr.mxu0 %v7107
        %7965 = vmatpush1.msra.mxu0 %v7106
        %7966 = vmatprep.subr.mxu0 0.0
        %7967 = vmatpush2.msra.mxu0 0.0
        %7968 = vmatprep.subr.mxu0 0.0
        %7969 = vmatpush2.msra.mxu0 0.0
        %7970 = vmatprep.subr.mxu0 0.0
        %7971 = vmatpush2.msra.mxu0 0.0
        %7972 = vmatprep.subr.mxu0 0.0
        %7973 = vmatpush2.msra.mxu0 0.0
        %7974 = vmatprep.subr.mxu0 0.0
        %7975 = vmatpush2.msra.mxu0 0.0
        %7976 = vmatprep.subr.mxu0 0.0
        %7977 = vmatpush2.msra.mxu0 0.0
        %7978 = vmatprep.subr.mxu0 0.0
        %7979 = vmatpush2.msra.mxu0 0.0
        %7980 = vmatprep.subr.mxu0 0.0
        %7981 = vmatpush2.msra.mxu0 0.0
        %7982 = vmatprep.subr.mxu0 0.0
        %7983 = vmatpush2.msra.mxu0 0.0
        %7984 = vmatprep.subr.mxu0 0.0
        %7985 = vmatpush2.msra.mxu0 0.0
        %7986 = vmatprep.subr.mxu0 0.0
        %7987 = vmatpush2.msra.mxu0 0.0
        %7988 = vmatprep.subr.mxu0 0.0
        %7989 = vmatpush2.msra.mxu0 0.0
        %7990 = vmatprep.subr.mxu0 0.0
        %7991 = vmatpush2.msra.mxu0 0.0
        %7992 = vmatprep.subr.mxu0 0.0
        %7993 = vmatpush2.msra.mxu0 0.0
        %7994 = vmatprep.subr.mxu0 0.0
        %7995 = vmatpush2.msra.mxu0 0.0
        %7996 = vmatprep.subr.mxu0 0.0
        %7997 = vmatpush2.msra.mxu0 0.0
        %7998 = vmatprep.mubr.f32.mxu0 0.0
        %7999 = vmatmul.mubr.f32.gmra.mxu0 %v7313
        %v8000 = vpop.f32.mrf.mxu0
        %v8001 = vadd.f32 %v7259, %v8000
        %v8002 = vpop.f32.mrf.mxu0
        %v8003 = vadd.f32 %v7263, %v8002
        %8004 = vmatprep.mubr.f32.mxu0 0.0
        %8005 = vmatmul.mubr.f32.gmra.mxu0 %v7316
        %v8006 = vpop.f32.mrf.mxu0
        %v8007 = vadd.f32 %v7259, %v8006
        %v8008 = vpop.f32.mrf.mxu0
        %v8009 = vadd.f32 %v7263, %v8008
        %8010 = vdwg.mxu0
        %8011 = vmatprep.subr.mxu0 0.0
        %8012 = vmatpush1.msra.mxu0 0.0
        %8013 = vmatprep.subr.mxu0 0.0
        %8014 = vmatpush1.msra.mxu0 0.0
        %8015 = vmatprep.subr.mxu0 0.0
        %8016 = vmatpush1.msra.mxu0 0.0
        %8017 = vmatprep.subr.mxu0 0.0
        %8018 = vmatpush1.msra.mxu0 0.0
        %8019 = vmatprep.subr.mxu0 0.0
        %8020 = vmatpush1.msra.mxu0 0.0
        %8021 = vmatprep.subr.mxu0 0.0
        %8022 = vmatpush1.msra.mxu0 0.0
        %8023 = vmatprep.subr.mxu0 0.0
        %8024 = vmatpush1.msra.mxu0 0.0
        %8025 = vmatprep.subr.mxu0 0.0
        %8026 = vmatpush1.msra.mxu0 0.0
        %8027 = vmatprep.subr.mxu0 0.0
        %8028 = vmatpush1.msra.mxu0 0.0
        %8029 = vmatprep.subr.mxu0 0.0
        %8030 = vmatpush1.msra.mxu0 0.0
        %8031 = vmatprep.subr.mxu0 0.0
        %8032 = vmatpush1.msra.mxu0 0.0
        %8033 = vmatprep.subr.mxu0 0.0
        %8034 = vmatpush1.msra.mxu0 0.0
        %8035 = vmatprep.subr.mxu0 %v7181
        %8036 = vmatpush1.msra.mxu0 %v7180
        %8037 = vmatprep.subr.mxu0 %v7157
        %8038 = vmatpush1.msra.mxu0 %v7156
        %8039 = vmatprep.subr.mxu0 %v7133
        %8040 = vmatpush1.msra.mxu0 %v7132
        %8041 = vmatprep.subr.mxu0 %v7109
        %8042 = vmatpush1.msra.mxu0 %v7108
        %8043 = vmatprep.subr.mxu0 0.0
        %8044 = vmatpush2.msra.mxu0 0.0
        %8045 = vmatprep.subr.mxu0 0.0
        %8046 = vmatpush2.msra.mxu0 0.0
        %8047 = vmatprep.subr.mxu0 0.0
        %8048 = vmatpush2.msra.mxu0 0.0
        %8049 = vmatprep.subr.mxu0 0.0
        %8050 = vmatpush2.msra.mxu0 0.0
        %8051 = vmatprep.subr.mxu0 0.0
        %8052 = vmatpush2.msra.mxu0 0.0
        %8053 = vmatprep.subr.mxu0 0.0
        %8054 = vmatpush2.msra.mxu0 0.0
        %8055 = vmatprep.subr.mxu0 0.0
        %8056 = vmatpush2.msra.mxu0 0.0
        %8057 = vmatprep.subr.mxu0 0.0
        %8058 = vmatpush2.msra.mxu0 0.0
        %8059 = vmatprep.subr.mxu0 0.0
        %8060 = vmatpush2.msra.mxu0 0.0
        %8061 = vmatprep.subr.mxu0 0.0
        %8062 = vmatpush2.msra.mxu0 0.0
        %8063 = vmatprep.subr.mxu0 0.0
        %8064 = vmatpush2.msra.mxu0 0.0
        %8065 = vmatprep.subr.mxu0 0.0
        %8066 = vmatpush2.msra.mxu0 0.0
        %8067 = vmatprep.subr.mxu0 0.0
        %8068 = vmatpush2.msra.mxu0 0.0
        %8069 = vmatprep.subr.mxu0 0.0
        %8070 = vmatpush2.msra.mxu0 0.0
        %8071 = vmatprep.subr.mxu0 0.0
        %8072 = vmatpush2.msra.mxu0 0.0
        %8073 = vmatprep.subr.mxu0 0.0
        %8074 = vmatpush2.msra.mxu0 0.0
        %8075 = vmatprep.mubr.f32.mxu0 0.0
        %8076 = vmatmul.mubr.f32.gmra.mxu0 %v7313
        %v8077 = vpop.f32.mrf.mxu0
        %v8078 = vadd.f32 %v7267, %v8077
        %v8079 = vpop.f32.mrf.mxu0
        %v8080 = vadd.f32 %v7271, %v8079
        %8081 = vmatprep.mubr.f32.mxu0 0.0
        %8082 = vmatmul.mubr.f32.gmra.mxu0 %v7316
        %v8083 = vpop.f32.mrf.mxu0
        %v8084 = vadd.f32 %v7267, %v8083
        %v8085 = vpop.f32.mrf.mxu0
        %v8086 = vadd.f32 %v7271, %v8085
        %8087 = vdwg.mxu0
        %8088 = vmatprep.subr.mxu0 0.0
        %8089 = vmatpush1.msra.mxu0 0.0
        %8090 = vmatprep.subr.mxu0 0.0
        %8091 = vmatpush1.msra.mxu0 0.0
        %8092 = vmatprep.subr.mxu0 0.0
        %8093 = vmatpush1.msra.mxu0 0.0
        %8094 = vmatprep.subr.mxu0 0.0
        %8095 = vmatpush1.msra.mxu0 0.0
        %8096 = vmatprep.subr.mxu0 0.0
        %8097 = vmatpush1.msra.mxu0 0.0
        %8098 = vmatprep.subr.mxu0 0.0
        %8099 = vmatpush1.msra.mxu0 0.0
        %8100 = vmatprep.subr.mxu0 0.0
        %8101 = vmatpush1.msra.mxu0 0.0
        %8102 = vmatprep.subr.mxu0 0.0
        %8103 = vmatpush1.msra.mxu0 0.0
        %8104 = vmatprep.subr.mxu0 0.0
        %8105 = vmatpush1.msra.mxu0 0.0
        %8106 = vmatprep.subr.mxu0 0.0
        %8107 = vmatpush1.msra.mxu0 0.0
        %8108 = vmatprep.subr.mxu0 0.0
        %8109 = vmatpush1.msra.mxu0 0.0
        %8110 = vmatprep.subr.mxu0 0.0
        %8111 = vmatpush1.msra.mxu0 0.0
        %8112 = vmatprep.subr.mxu0 %v7183
        %8113 = vmatpush1.msra.mxu0 %v7182
        %8114 = vmatprep.subr.mxu0 %v7159
        %8115 = vmatpush1.msra.mxu0 %v7158
        %8116 = vmatprep.subr.mxu0 %v7135
        %8117 = vmatpush1.msra.mxu0 %v7134
        %8118 = vmatprep.subr.mxu0 %v7111
        %8119 = vmatpush1.msra.mxu0 %v7110
        %8120 = vmatprep.subr.mxu0 0.0
        %8121 = vmatpush2.msra.mxu0 0.0
        %8122 = vmatprep.subr.mxu0 0.0
        %8123 = vmatpush2.msra.mxu0 0.0
        %8124 = vmatprep.subr.mxu0 0.0
        %8125 = vmatpush2.msra.mxu0 0.0
        %8126 = vmatprep.subr.mxu0 0.0
        %8127 = vmatpush2.msra.mxu0 0.0
        %8128 = vmatprep.subr.mxu0 0.0
        %8129 = vmatpush2.msra.mxu0 0.0
        %8130 = vmatprep.subr.mxu0 0.0
        %8131 = vmatpush2.msra.mxu0 0.0
        %8132 = vmatprep.subr.mxu0 0.0
        %8133 = vmatpush2.msra.mxu0 0.0
        %8134 = vmatprep.subr.mxu0 0.0
        %8135 = vmatpush2.msra.mxu0 0.0
        %8136 = vmatprep.subr.mxu0 0.0
        %8137 = vmatpush2.msra.mxu0 0.0
        %8138 = vmatprep.subr.mxu0 0.0
        %8139 = vmatpush2.msra.mxu0 0.0
        %8140 = vmatprep.subr.mxu0 0.0
        %8141 = vmatpush2.msra.mxu0 0.0
        %8142 = vmatprep.subr.mxu0 0.0
        %8143 = vmatpush2.msra.mxu0 0.0
        %8144 = vmatprep.subr.mxu0 0.0
        %8145 = vmatpush2.msra.mxu0 0.0
        %8146 = vmatprep.subr.mxu0 0.0
        %8147 = vmatpush2.msra.mxu0 0.0
        %8148 = vmatprep.subr.mxu0 0.0
        %8149 = vmatpush2.msra.mxu0 0.0
        %8150 = vmatprep.subr.mxu0 0.0
        %8151 = vmatpush2.msra.mxu0 0.0
        %8152 = vmatprep.mubr.f32.mxu0 0.0
        %8153 = vmatmul.mubr.f32.gmra.mxu0 %v7313
        %v8154 = vpop.f32.mrf.mxu0
        %v8155 = vadd.f32 %v7275, %v8154
        %v8156 = vpop.f32.mrf.mxu0
        %v8157 = vadd.f32 %v7279, %v8156
        %8158 = vmatprep.mubr.f32.mxu0 0.0
        %8159 = vmatmul.mubr.f32.gmra.mxu0 %v7316
        %v8160 = vpop.f32.mrf.mxu0
        %v8161 = vadd.f32 %v7275, %v8160
        %v8162 = vpop.f32.mrf.mxu0
        %v8163 = vadd.f32 %v7279, %v8162
        %8164 = vdwg.mxu0
        %8165 = vmatprep.subr.mxu0 0.0
        %8166 = vmatpush1.msra.mxu0 0.0
        %8167 = vmatprep.subr.mxu0 0.0
        %8168 = vmatpush1.msra.mxu0 0.0
        %8169 = vmatprep.subr.mxu0 0.0
        %8170 = vmatpush1.msra.mxu0 0.0
        %8171 = vmatprep.subr.mxu0 0.0
        %8172 = vmatpush1.msra.mxu0 0.0
        %8173 = vmatprep.subr.mxu0 0.0
        %8174 = vmatpush1.msra.mxu0 0.0
        %8175 = vmatprep.subr.mxu0 0.0
        %8176 = vmatpush1.msra.mxu0 0.0
        %8177 = vmatprep.subr.mxu0 0.0
        %8178 = vmatpush1.msra.mxu0 0.0
        %8179 = vmatprep.subr.mxu0 0.0
        %8180 = vmatpush1.msra.mxu0 0.0
        %8181 = vmatprep.subr.mxu0 0.0
        %8182 = vmatpush1.msra.mxu0 0.0
        %8183 = vmatprep.subr.mxu0 0.0
        %8184 = vmatpush1.msra.mxu0 0.0
        %8185 = vmatprep.subr.mxu0 0.0
        %8186 = vmatpush1.msra.mxu0 0.0
        %8187 = vmatprep.subr.mxu0 0.0
        %8188 = vmatpush1.msra.mxu0 0.0
        %8189 = vmatprep.subr.mxu0 %v7185
        %8190 = vmatpush1.msra.mxu0 %v7184
        %8191 = vmatprep.subr.mxu0 %v7161
        %8192 = vmatpush1.msra.mxu0 %v7160
        %8193 = vmatprep.subr.mxu0 %v7137
        %8194 = vmatpush1.msra.mxu0 %v7136
        %8195 = vmatprep.subr.mxu0 %v7113
        %8196 = vmatpush1.msra.mxu0 %v7112
        %8197 = vmatprep.subr.mxu0 0.0
        %8198 = vmatpush2.msra.mxu0 0.0
        %8199 = vmatprep.subr.mxu0 0.0
        %8200 = vmatpush2.msra.mxu0 0.0
        %8201 = vmatprep.subr.mxu0 0.0
        %8202 = vmatpush2.msra.mxu0 0.0
        %8203 = vmatprep.subr.mxu0 0.0
        %8204 = vmatpush2.msra.mxu0 0.0
        %8205 = vmatprep.subr.mxu0 0.0
        %8206 = vmatpush2.msra.mxu0 0.0
        %8207 = vmatprep.subr.mxu0 0.0
        %8208 = vmatpush2.msra.mxu0 0.0
        %8209 = vmatprep.subr.mxu0 0.0
        %8210 = vmatpush2.msra.mxu0 0.0
        %8211 = vmatprep.subr.mxu0 0.0
        %8212 = vmatpush2.msra.mxu0 0.0
        %8213 = vmatprep.subr.mxu0 0.0
        %8214 = vmatpush2.msra.mxu0 0.0
        %8215 = vmatprep.subr.mxu0 0.0
        %8216 = vmatpush2.msra.mxu0 0.0
        %8217 = vmatprep.subr.mxu0 0.0
        %8218 = vmatpush2.msra.mxu0 0.0
        %8219 = vmatprep.subr.mxu0 0.0
        %8220 = vmatpush2.msra.mxu0 0.0
        %8221 = vmatprep.subr.mxu0 0.0
        %8222 = vmatpush2.msra.mxu0 0.0
        %8223 = vmatprep.subr.mxu0 0.0
        %8224 = vmatpush2.msra.mxu0 0.0
        %8225 = vmatprep.subr.mxu0 0.0
        %8226 = vmatpush2.msra.mxu0 0.0
        %8227 = vmatprep.subr.mxu0 0.0
        %8228 = vmatpush2.msra.mxu0 0.0
        %8229 = vmatprep.mubr.f32.mxu0 0.0
        %8230 = vmatmul.mubr.f32.gmra.mxu0 %v7313
        %v8231 = vpop.f32.mrf.mxu0
        %v8232 = vadd.f32 %v7283, %v8231
        %v8233 = vpop.f32.mrf.mxu0
        %v8234 = vadd.f32 %v7287, %v8233
        %8235 = vmatprep.mubr.f32.mxu0 0.0
        %8236 = vmatmul.mubr.f32.gmra.mxu0 %v7316
        %v8237 = vpop.f32.mrf.mxu0
        %v8238 = vadd.f32 %v7283, %v8237
        %v8239 = vpop.f32.mrf.mxu0
        %v8240 = vadd.f32 %v7287, %v8239
        %8241 = vdwg.mxu0
        %v8242 = vmul.f32 %v7385, 0.5
        %v8243 = vmul.f32 %v7387, 0.5
        %v8244 = vmul.f32 %v7462, 0.5
        %v8245 = vmul.f32 %v7464, 0.5
        %v8246 = vmul.f32 %v7539, 0.5
        %v8247 = vmul.f32 %v7541, 0.5
        %v8248 = vmul.f32 %v7616, 0.5
        %v8249 = vmul.f32 %v7618, 0.5
        %v8250 = vmul.f32 %v7693, 0.5
        %v8251 = vmul.f32 %v7695, 0.5
        %v8252 = vmul.f32 %v7770, 0.5
        %v8253 = vmul.f32 %v7772, 0.5
        %v8254 = vmul.f32 %v7847, 0.5
        %v8255 = vmul.f32 %v7849, 0.5
        %v8256 = vmul.f32 %v7924, 0.5
        %v8257 = vmul.f32 %v7926, 0.5
        %v8258 = vmul.f32 %v8001, 0.5
        %v8259 = vmul.f32 %v8003, 0.5
        %v8260 = vmul.f32 %v8078, 0.5
        %v8261 = vmul.f32 %v8080, 0.5
        %v8262 = vmul.f32 %v8155, 0.5
        %v8263 = vmul.f32 %v8157, 0.5
        %v8264 = vmul.f32 %v8232, 0.5
        %v8265 = vmul.f32 %v8234, 0.5
        %v8266 = vmul.f32 %v7391, 0.5
        %v8267 = vmul.f32 %v7393, 0.5
        %v8268 = vmul.f32 %v7468, 0.5
        %v8269 = vmul.f32 %v7470, 0.5
        %v8270 = vmul.f32 %v7545, 0.5
        %v8271 = vmul.f32 %v7547, 0.5
        %v8272 = vmul.f32 %v7622, 0.5
        %v8273 = vmul.f32 %v7624, 0.5
        %v8274 = vmul.f32 %v7699, 0.5
        %v8275 = vmul.f32 %v7701, 0.5
        %v8276 = vmul.f32 %v7776, 0.5
        %v8277 = vmul.f32 %v7778, 0.5
        %v8278 = vmul.f32 %v7853, 0.5
        %v8279 = vmul.f32 %v7855, 0.5
        %v8280 = vmul.f32 %v7930, 0.5
        %v8281 = vmul.f32 %v7932, 0.5
        %v8282 = vmul.f32 %v8007, 0.5
        %v8283 = vmul.f32 %v8009, 0.5
        %v8284 = vmul.f32 %v8084, 0.5
        %v8285 = vmul.f32 %v8086, 0.5
        %v8286 = vmul.f32 %v8161, 0.5
        %v8287 = vmul.f32 %v8163, 0.5
        %v8288 = vmul.f32 %v8238, 0.5
        %v8289 = vmul.f32 %v8240, 0.5
        %v8290 = vmul.f32 %v7385, 0.70710677
        %v8291 = vmul.f32 %v7387, 0.70710677
        %v8292 = vmul.f32 %v7462, 0.70710677
        %v8293 = vmul.f32 %v7464, 0.70710677
        %v8294 = vmul.f32 %v7539, 0.70710677
        %v8295 = vmul.f32 %v7541, 0.70710677
        %v8296 = vmul.f32 %v7616, 0.70710677
        %v8297 = vmul.f32 %v7618, 0.70710677
        %v8298 = vmul.f32 %v7693, 0.70710677
        %v8299 = vmul.f32 %v7695, 0.70710677
        %v8300 = vmul.f32 %v7770, 0.70710677
        %v8301 = vmul.f32 %v7772, 0.70710677
        %v8302 = vmul.f32 %v7847, 0.70710677
        %v8303 = vmul.f32 %v7849, 0.70710677
        %v8304 = vmul.f32 %v7924, 0.70710677
        %v8305 = vmul.f32 %v7926, 0.70710677
        %v8306 = vmul.f32 %v8001, 0.70710677
        %v8307 = vmul.f32 %v8003, 0.70710677
        %v8308 = vmul.f32 %v8078, 0.70710677
        %v8309 = vmul.f32 %v8080, 0.70710677
        %v8310 = vmul.f32 %v8155, 0.70710677
        %v8311 = vmul.f32 %v8157, 0.70710677
        %v8312 = vmul.f32 %v8232, 0.70710677
        %v8313 = vmul.f32 %v8234, 0.70710677
        %v8314 = vmul.f32 %v7391, 0.70710677
        %v8315 = vmul.f32 %v7393, 0.70710677
        %v8316 = vmul.f32 %v7468, 0.70710677
        %v8317 = vmul.f32 %v7470, 0.70710677
        %v8318 = vmul.f32 %v7545, 0.70710677
        %v8319 = vmul.f32 %v7547, 0.70710677
        %v8320 = vmul.f32 %v7622, 0.70710677
        %v8321 = vmul.f32 %v7624, 0.70710677
        %v8322 = vmul.f32 %v7699, 0.70710677
        %v8323 = vmul.f32 %v7701, 0.70710677
        %v8324 = vmul.f32 %v7776, 0.70710677
        %v8325 = vmul.f32 %v7778, 0.70710677
        %v8326 = vmul.f32 %v7853, 0.70710677
        %v8327 = vmul.f32 %v7855, 0.70710677
        %v8328 = vmul.f32 %v7930, 0.70710677
        %v8329 = vmul.f32 %v7932, 0.70710677
        %v8330 = vmul.f32 %v8007, 0.70710677
        %v8331 = vmul.f32 %v8009, 0.70710677
        %v8332 = vmul.f32 %v8084, 0.70710677
        %v8333 = vmul.f32 %v8086, 0.70710677
        %v8334 = vmul.f32 %v8161, 0.70710677
        %v8335 = vmul.f32 %v8163, 0.70710677
        %v8336 = vmul.f32 %v8238, 0.70710677
        %v8337 = vmul.f32 %v8240, 0.70710677
        %v8338 = verf.f32.pop %v8290
        %v8339 = verf.f32.pop %v8291
        %v8340 = verf.f32.pop %v8292
        %v8341 = verf.f32.pop %v8293
        %v8342 = verf.f32.pop %v8294
        %v8343 = verf.f32.pop %v8295
        %v8344 = verf.f32.pop %v8296
        %v8345 = verf.f32.pop %v8297
        %v8346 = verf.f32.pop %v8298
        %v8347 = verf.f32.pop %v8299
        %v8348 = verf.f32.pop %v8300
        %v8349 = verf.f32.pop %v8301
        %v8350 = verf.f32.pop %v8302
        %v8351 = verf.f32.pop %v8303
        %v8352 = verf.f32.pop %v8304
        %v8353 = verf.f32.pop %v8305
        %v8354 = verf.f32.pop %v8306
        %v8355 = verf.f32.pop %v8307
        %v8356 = verf.f32.pop %v8308
        %v8357 = verf.f32.pop %v8309
        %v8358 = verf.f32.pop %v8310
        %v8359 = verf.f32.pop %v8311
        %v8360 = verf.f32.pop %v8312
        %v8361 = verf.f32.pop %v8313
        %v8362 = verf.f32.pop %v8314
        %v8363 = verf.f32.pop %v8315
        %v8364 = verf.f32.pop %v8316
        %v8365 = verf.f32.pop %v8317
        %v8366 = verf.f32.pop %v8318
        %v8367 = verf.f32.pop %v8319
        %v8368 = verf.f32.pop %v8320
        %v8369 = verf.f32.pop %v8321
        %v8370 = verf.f32.pop %v8322
        %v8371 = verf.f32.pop %v8323
        %v8372 = verf.f32.pop %v8324
        %v8373 = verf.f32.pop %v8325
        %v8374 = verf.f32.pop %v8326
        %v8375 = verf.f32.pop %v8327
        %v8376 = verf.f32.pop %v8328
        %v8377 = verf.f32.pop %v8329
        %v8378 = verf.f32.pop %v8330
        %v8379 = verf.f32.pop %v8331
        %v8380 = verf.f32.pop %v8332
        %v8381 = verf.f32.pop %v8333
        %v8382 = verf.f32.pop %v8334
        %v8383 = verf.f32.pop %v8335
        %v8384 = verf.f32.pop %v8336
        %v8385 = verf.f32.pop %v8337
        %v8386 = vadd.f32 %v8338, 1.0
        %v8387 = vadd.f32 %v8339, 1.0
        %v8388 = vadd.f32 %v8340, 1.0
        %v8389 = vadd.f32 %v8341, 1.0
        %v8390 = vadd.f32 %v8342, 1.0
        %v8391 = vadd.f32 %v8343, 1.0
        %v8392 = vadd.f32 %v8344, 1.0
        %v8393 = vadd.f32 %v8345, 1.0
        %v8394 = vadd.f32 %v8346, 1.0
        %v8395 = vadd.f32 %v8347, 1.0
        %v8396 = vadd.f32 %v8348, 1.0
        %v8397 = vadd.f32 %v8349, 1.0
        %v8398 = vadd.f32 %v8350, 1.0
        %v8399 = vadd.f32 %v8351, 1.0
        %v8400 = vadd.f32 %v8352, 1.0
        %v8401 = vadd.f32 %v8353, 1.0
        %v8402 = vadd.f32 %v8354, 1.0
        %v8403 = vadd.f32 %v8355, 1.0
        %v8404 = vadd.f32 %v8356, 1.0
        %v8405 = vadd.f32 %v8357, 1.0
        %v8406 = vadd.f32 %v8358, 1.0
        %v8407 = vadd.f32 %v8359, 1.0
        %v8408 = vadd.f32 %v8360, 1.0
        %v8409 = vadd.f32 %v8361, 1.0
        %v8410 = vadd.f32 %v8362, 1.0
        %v8411 = vadd.f32 %v8363, 1.0
        %v8412 = vadd.f32 %v8364, 1.0
        %v8413 = vadd.f32 %v8365, 1.0
        %v8414 = vadd.f32 %v8366, 1.0
        %v8415 = vadd.f32 %v8367, 1.0
        %v8416 = vadd.f32 %v8368, 1.0
        %v8417 = vadd.f32 %v8369, 1.0
        %v8418 = vadd.f32 %v8370, 1.0
        %v8419 = vadd.f32 %v8371, 1.0
        %v8420 = vadd.f32 %v8372, 1.0
        %v8421 = vadd.f32 %v8373, 1.0
        %v8422 = vadd.f32 %v8374, 1.0
        %v8423 = vadd.f32 %v8375, 1.0
        %v8424 = vadd.f32 %v8376, 1.0
        %v8425 = vadd.f32 %v8377, 1.0
        %v8426 = vadd.f32 %v8378, 1.0
        %v8427 = vadd.f32 %v8379, 1.0
        %v8428 = vadd.f32 %v8380, 1.0
        %v8429 = vadd.f32 %v8381, 1.0
        %v8430 = vadd.f32 %v8382, 1.0
        %v8431 = vadd.f32 %v8383, 1.0
        %v8432 = vadd.f32 %v8384, 1.0
        %v8433 = vadd.f32 %v8385, 1.0
        %v8434 = vmul.f32 %v8242, %v8386
        %v8435 = vmul.f32 %v8243, %v8387
        %v8436 = vmul.f32 %v8244, %v8388
        %v8437 = vmul.f32 %v8245, %v8389
        %v8438 = vmul.f32 %v8246, %v8390
        %v8439 = vmul.f32 %v8247, %v8391
        %v8440 = vmul.f32 %v8248, %v8392
        %v8441 = vmul.f32 %v8249, %v8393
        %v8442 = vmul.f32 %v8250, %v8394
        %v8443 = vmul.f32 %v8251, %v8395
        %v8444 = vmul.f32 %v8252, %v8396
        %v8445 = vmul.f32 %v8253, %v8397
        %v8446 = vmul.f32 %v8254, %v8398
        %v8447 = vmul.f32 %v8255, %v8399
        %v8448 = vmul.f32 %v8256, %v8400
        %v8449 = vmul.f32 %v8257, %v8401
        %v8450 = vmul.f32 %v8258, %v8402
        %v8451 = vmul.f32 %v8259, %v8403
        %v8452 = vmul.f32 %v8260, %v8404
        %v8453 = vmul.f32 %v8261, %v8405
        %v8454 = vmul.f32 %v8262, %v8406
        %v8455 = vmul.f32 %v8263, %v8407
        %v8456 = vmul.f32 %v8264, %v8408
        %v8457 = vmul.f32 %v8265, %v8409
        %v8458 = vmul.f32 %v8266, %v8410
        %v8459 = vmul.f32 %v8267, %v8411
        %v8460 = vmul.f32 %v8268, %v8412
        %v8461 = vmul.f32 %v8269, %v8413
        %v8462 = vmul.f32 %v8270, %v8414
        %v8463 = vmul.f32 %v8271, %v8415
        %v8464 = vmul.f32 %v8272, %v8416
        %v8465 = vmul.f32 %v8273, %v8417
        %v8466 = vmul.f32 %v8274, %v8418
        %v8467 = vmul.f32 %v8275, %v8419
        %v8468 = vmul.f32 %v8276, %v8420
        %v8469 = vmul.f32 %v8277, %v8421
        %v8470 = vmul.f32 %v8278, %v8422
        %v8471 = vmul.f32 %v8279, %v8423
        %v8472 = vmul.f32 %v8280, %v8424
        %v8473 = vmul.f32 %v8281, %v8425
        %v8474 = vmul.f32 %v8282, %v8426
        %v8475 = vmul.f32 %v8283, %v8427
        %v8476 = vmul.f32 %v8284, %v8428
        %v8477 = vmul.f32 %v8285, %v8429
        %v8478 = vmul.f32 %v8286, %v8430
        %v8479 = vmul.f32 %v8287, %v8431
        %v8480 = vmul.f32 %v8288, %v8432
        %v8481 = vmul.f32 %v8289, %v8433
        %v8482 = vld [vmem:[%s644] sm:$0xff]
        %v8483 = vld [vmem:[%s644 + $0x8] sm:$0xff]
        %v8484 = vld [vmem:[%s644 + $0x10] sm:$0xff]
        %v8485 = vld [vmem:[%s644 + $0x18] sm:$0xff]
        %v8486 = vld [vmem:[%s644 + $0x20] sm:$0xff]
        %v8487 = vld [vmem:[%s644 + $0x28] sm:$0xff]
        %v8488 = vld [vmem:[%s644 + $0x30] sm:$0xff]
        %v8489 = vld [vmem:[%s644 + $0x38] sm:$0xff]
        %v8490 = vld [vmem:[%s644 + $0x40] sm:$0xff]
        %v8491 = vld [vmem:[%s644 + $0x48] sm:$0xff]
        %v8492 = vld [vmem:[%s644 + $0x50] sm:$0xff]
        %v8493 = vld [vmem:[%s644 + $0x58] sm:$0xff]
        %v8494 = vld [vmem:[%s644 + $0x60] sm:$0xff]
        %v8495 = vld [vmem:[%s644 + $0x68] sm:$0xff]
        %v8496 = vld [vmem:[%s644 + $0x70] sm:$0xff]
        %v8497 = vld [vmem:[%s644 + $0x78] sm:$0xff]
        %v8498 = vld [vmem:[%s644 + $0x80] sm:$0xff]
        %v8499 = vld [vmem:[%s644 + $0x88] sm:$0xff]
        %v8500 = vld [vmem:[%s644 + $0x90] sm:$0xff]
        %v8501 = vld [vmem:[%s644 + $0x98] sm:$0xff]
        %v8502 = vld [vmem:[%s644 + $0xa0] sm:$0xff]
        %v8503 = vld [vmem:[%s644 + $0xa8] sm:$0xff]
        %v8504 = vld [vmem:[%s644 + $0xb0] sm:$0xff]
        %v8505 = vld [vmem:[%s644 + $0xb8] sm:$0xff]
        %v8506 = vld [vmem:[%s644 + $0xc0] sm:$0xff]
        %v8507 = vld [vmem:[%s644 + $0xc8] sm:$0xff]
        %v8508 = vld [vmem:[%s644 + $0xd0] sm:$0xff]
        %v8509 = vld [vmem:[%s644 + $0xd8] sm:$0xff]
        %v8510 = vld [vmem:[%s644 + $0xe0] sm:$0xff]
        %v8511 = vld [vmem:[%s644 + $0xe8] sm:$0xff]
        %v8512 = vld [vmem:[%s644 + $0xf0] sm:$0xff]
        %v8513 = vld [vmem:[%s644 + $0xf8] sm:$0xff]
        %v8514 = vld [vmem:[%s644 + $0x100] sm:$0xff]
        %v8515 = vld [vmem:[%s644 + $0x108] sm:$0xff]
        %v8516 = vld [vmem:[%s644 + $0x110] sm:$0xff]
        %v8517 = vld [vmem:[%s644 + $0x118] sm:$0xff]
        %v8518 = vld [vmem:[%s644 + $0x120] sm:$0xff]
        %v8519 = vld [vmem:[%s644 + $0x128] sm:$0xff]
        %v8520 = vld [vmem:[%s644 + $0x130] sm:$0xff]
        %v8521 = vld [vmem:[%s644 + $0x138] sm:$0xff]
        %v8522 = vld [vmem:[%s644 + $0x140] sm:$0xff]
        %v8523 = vld [vmem:[%s644 + $0x148] sm:$0xff]
        %v8524 = vld [vmem:[%s644 + $0x150] sm:$0xff]
        %v8525 = vld [vmem:[%s644 + $0x158] sm:$0xff]
        %v8526 = vld [vmem:[%s644 + $0x160] sm:$0xff]
        %v8527 = vld [vmem:[%s644 + $0x168] sm:$0xff]
        %v8528 = vld [vmem:[%s644 + $0x170] sm:$0xff]
        %v8529 = vld [vmem:[%s644 + $0x178] sm:$0xff]
        %v8530 = vld [vmem:[%s644 + $0x180] sm:$0xff]
        %v8531 = vld [vmem:[%s644 + $0x188] sm:$0xff]
        %v8532 = vld [vmem:[%s644 + $0x190] sm:$0xff]
        %v8533 = vld [vmem:[%s644 + $0x198] sm:$0xff]
        %v8534 = vld [vmem:[%s644 + $0x1a0] sm:$0xff]
        %v8535 = vld [vmem:[%s644 + $0x1a8] sm:$0xff]
        %v8536 = vld [vmem:[%s644 + $0x1b0] sm:$0xff]
        %v8537 = vld [vmem:[%s644 + $0x1b8] sm:$0xff]
        %v8538 = vld [vmem:[%s644 + $0x1c0] sm:$0xff]
        %v8539 = vld [vmem:[%s644 + $0x1c8] sm:$0xff]
        %v8540 = vld [vmem:[%s644 + $0x1d0] sm:$0xff]
        %v8541 = vld [vmem:[%s644 + $0x1d8] sm:$0xff]
        %v8542 = vld [vmem:[%s644 + $0x1e0] sm:$0xff]
        %v8543 = vld [vmem:[%s644 + $0x1e8] sm:$0xff]
        %v8544 = vld [vmem:[%s644 + $0x1f0] sm:$0xff]
        %v8545 = vld [vmem:[%s644 + $0x1f8] sm:$0xff]
        %v8546 = vld [vmem:[%s644 + $0x200] sm:$0xff]
        %v8547 = vld [vmem:[%s644 + $0x208] sm:$0xff]
        %v8548 = vld [vmem:[%s644 + $0x210] sm:$0xff]
        %v8549 = vld [vmem:[%s644 + $0x218] sm:$0xff]
        %v8550 = vld [vmem:[%s644 + $0x220] sm:$0xff]
        %v8551 = vld [vmem:[%s644 + $0x228] sm:$0xff]
        %v8552 = vld [vmem:[%s644 + $0x230] sm:$0xff]
        %v8553 = vld [vmem:[%s644 + $0x238] sm:$0xff]
        %v8554 = vld [vmem:[%s644 + $0x240] sm:$0xff]
        %v8555 = vld [vmem:[%s644 + $0x248] sm:$0xff]
        %v8556 = vld [vmem:[%s644 + $0x250] sm:$0xff]
        %v8557 = vld [vmem:[%s644 + $0x258] sm:$0xff]
        %v8558 = vld [vmem:[%s644 + $0x260] sm:$0xff]
        %v8559 = vld [vmem:[%s644 + $0x268] sm:$0xff]
        %v8560 = vld [vmem:[%s644 + $0x270] sm:$0xff]
        %v8561 = vld [vmem:[%s644 + $0x278] sm:$0xff]
        %v8562 = vld [vmem:[%s644 + $0x280] sm:$0xff]
        %v8563 = vld [vmem:[%s644 + $0x288] sm:$0xff]
        %v8564 = vld [vmem:[%s644 + $0x290] sm:$0xff]
        %v8565 = vld [vmem:[%s644 + $0x298] sm:$0xff]
        %v8566 = vld [vmem:[%s644 + $0x2a0] sm:$0xff]
        %v8567 = vld [vmem:[%s644 + $0x2a8] sm:$0xff]
        %v8568 = vld [vmem:[%s644 + $0x2b0] sm:$0xff]
        %v8569 = vld [vmem:[%s644 + $0x2b8] sm:$0xff]
        %v8570 = vld [vmem:[%s644 + $0x2c0] sm:$0xff]
        %v8571 = vld [vmem:[%s644 + $0x2c8] sm:$0xff]
        %v8572 = vld [vmem:[%s644 + $0x2d0] sm:$0xff]
        %v8573 = vld [vmem:[%s644 + $0x2d8] sm:$0xff]
        %v8574 = vld [vmem:[%s644 + $0x2e0] sm:$0xff]
        %v8575 = vld [vmem:[%s644 + $0x2e8] sm:$0xff]
        %v8576 = vld [vmem:[%s644 + $0x2f0] sm:$0xff]
        %v8577 = vld [vmem:[%s644 + $0x2f8] sm:$0xff]
        %v8578 = vld [vmem:[%s644 + $0x300] sm:$0xff]
        %v8579 = vld [vmem:[%s644 + $0x308] sm:$0xff]
        %v8580 = vld [vmem:[%s644 + $0x310] sm:$0xff]
        %v8581 = vld [vmem:[%s644 + $0x318] sm:$0xff]
        %v8582 = vld [vmem:[%s644 + $0x320] sm:$0xff]
        %v8583 = vld [vmem:[%s644 + $0x328] sm:$0xff]
        %v8584 = vld [vmem:[%s644 + $0x330] sm:$0xff]
        %v8585 = vld [vmem:[%s644 + $0x338] sm:$0xff]
        %v8586 = vld [vmem:[%s644 + $0x340] sm:$0xff]
        %v8587 = vld [vmem:[%s644 + $0x348] sm:$0xff]
        %v8588 = vld [vmem:[%s644 + $0x350] sm:$0xff]
        %v8589 = vld [vmem:[%s644 + $0x358] sm:$0xff]
        %v8590 = vld [vmem:[%s644 + $0x360] sm:$0xff]
        %v8591 = vld [vmem:[%s644 + $0x368] sm:$0xff]
        %v8592 = vld [vmem:[%s644 + $0x370] sm:$0xff]
        %v8593 = vld [vmem:[%s644 + $0x378] sm:$0xff]
        %v8594 = vld [vmem:[%s644 + $0x380] sm:$0xff]
        %v8595 = vld [vmem:[%s644 + $0x388] sm:$0xff]
        %v8596 = vld [vmem:[%s644 + $0x390] sm:$0xff]
        %v8597 = vld [vmem:[%s644 + $0x398] sm:$0xff]
        %v8598 = vld [vmem:[%s644 + $0x3a0] sm:$0xff]
        %v8599 = vld [vmem:[%s644 + $0x3a8] sm:$0xff]
        %v8600 = vld [vmem:[%s644 + $0x3b0] sm:$0xff]
        %v8601 = vld [vmem:[%s644 + $0x3b8] sm:$0xff]
        %v8602 = vld [vmem:[%s644 + $0x3c0] sm:$0xff]
        %v8603 = vld [vmem:[%s644 + $0x3c8] sm:$0xff]
        %v8604 = vld [vmem:[%s644 + $0x3d0] sm:$0xff]
        %v8605 = vld [vmem:[%s644 + $0x3d8] sm:$0xff]
        %v8606 = vld [vmem:[%s644 + $0x3e0] sm:$0xff]
        %v8607 = vld [vmem:[%s644 + $0x3e8] sm:$0xff]
        %v8608 = vld [vmem:[%s644 + $0x3f0] sm:$0xff]
        %v8609 = vld [vmem:[%s644 + $0x3f8] sm:$0xff]
        %v8610 = vld [vmem:[%s644 + $0x400] sm:$0xff]
        %v8611 = vld [vmem:[%s644 + $0x408] sm:$0xff]
        %v8612 = vld [vmem:[%s644 + $0x410] sm:$0xff]
        %v8613 = vld [vmem:[%s644 + $0x418] sm:$0xff]
        %v8614 = vld [vmem:[%s644 + $0x420] sm:$0xff]
        %v8615 = vld [vmem:[%s644 + $0x428] sm:$0xff]
        %v8616 = vld [vmem:[%s644 + $0x430] sm:$0xff]
        %v8617 = vld [vmem:[%s644 + $0x438] sm:$0xff]
        %v8618 = vld [vmem:[%s644 + $0x440] sm:$0xff]
        %v8619 = vld [vmem:[%s644 + $0x448] sm:$0xff]
        %v8620 = vld [vmem:[%s644 + $0x450] sm:$0xff]
        %v8621 = vld [vmem:[%s644 + $0x458] sm:$0xff]
        %v8622 = vld [vmem:[%s644 + $0x460] sm:$0xff]
        %v8623 = vld [vmem:[%s644 + $0x468] sm:$0xff]
        %v8624 = vld [vmem:[%s644 + $0x470] sm:$0xff]
        %v8625 = vld [vmem:[%s644 + $0x478] sm:$0xff]
        %v8626 = vld [vmem:[%s644 + $0x480] sm:$0xff]
        %v8627 = vld [vmem:[%s644 + $0x488] sm:$0xff]
        %v8628 = vld [vmem:[%s644 + $0x490] sm:$0xff]
        %v8629 = vld [vmem:[%s644 + $0x498] sm:$0xff]
        %v8630 = vld [vmem:[%s644 + $0x4a0] sm:$0xff]
        %v8631 = vld [vmem:[%s644 + $0x4a8] sm:$0xff]
        %v8632 = vld [vmem:[%s644 + $0x4b0] sm:$0xff]
        %v8633 = vld [vmem:[%s644 + $0x4b8] sm:$0xff]
        %v8634 = vld [vmem:[%s644 + $0x4c0] sm:$0xff]
        %v8635 = vld [vmem:[%s644 + $0x4c8] sm:$0xff]
        %v8636 = vld [vmem:[%s644 + $0x4d0] sm:$0xff]
        %v8637 = vld [vmem:[%s644 + $0x4d8] sm:$0xff]
        %v8638 = vld [vmem:[%s644 + $0x4e0] sm:$0xff]
        %v8639 = vld [vmem:[%s644 + $0x4e8] sm:$0xff]
        %v8640 = vld [vmem:[%s644 + $0x4f0] sm:$0xff]
        %v8641 = vld [vmem:[%s644 + $0x4f8] sm:$0xff]
        %v8642 = vld [vmem:[%s644 + $0x500] sm:$0xff]
        %v8643 = vld [vmem:[%s644 + $0x508] sm:$0xff]
        %v8644 = vld [vmem:[%s644 + $0x510] sm:$0xff]
        %v8645 = vld [vmem:[%s644 + $0x518] sm:$0xff]
        %v8646 = vld [vmem:[%s644 + $0x520] sm:$0xff]
        %v8647 = vld [vmem:[%s644 + $0x528] sm:$0xff]
        %v8648 = vld [vmem:[%s644 + $0x530] sm:$0xff]
        %v8649 = vld [vmem:[%s644 + $0x538] sm:$0xff]
        %v8650 = vld [vmem:[%s644 + $0x540] sm:$0xff]
        %v8651 = vld [vmem:[%s644 + $0x548] sm:$0xff]
        %v8652 = vld [vmem:[%s644 + $0x550] sm:$0xff]
        %v8653 = vld [vmem:[%s644 + $0x558] sm:$0xff]
        %v8654 = vld [vmem:[%s644 + $0x560] sm:$0xff]
        %v8655 = vld [vmem:[%s644 + $0x568] sm:$0xff]
        %v8656 = vld [vmem:[%s644 + $0x570] sm:$0xff]
        %v8657 = vld [vmem:[%s644 + $0x578] sm:$0xff]
        %v8658 = vld [vmem:[%s644 + $0x580] sm:$0xff]
        %v8659 = vld [vmem:[%s644 + $0x588] sm:$0xff]
        %v8660 = vld [vmem:[%s644 + $0x590] sm:$0xff]
        %v8661 = vld [vmem:[%s644 + $0x598] sm:$0xff]
        %v8662 = vld [vmem:[%s644 + $0x5a0] sm:$0xff]
        %v8663 = vld [vmem:[%s644 + $0x5a8] sm:$0xff]
        %v8664 = vld [vmem:[%s644 + $0x5b0] sm:$0xff]
        %v8665 = vld [vmem:[%s644 + $0x5b8] sm:$0xff]
        %v8666 = vld [vmem:[%s644 + $0x5c0] sm:$0xff]
        %v8667 = vld [vmem:[%s644 + $0x5c8] sm:$0xff]
        %v8668 = vld [vmem:[%s644 + $0x5d0] sm:$0xff]
        %v8669 = vld [vmem:[%s644 + $0x5d8] sm:$0xff]
        %v8670 = vld [vmem:[%s644 + $0x5e0] sm:$0xff]
        %v8671 = vld [vmem:[%s644 + $0x5e8] sm:$0xff]
        %v8672 = vld [vmem:[%s644 + $0x5f0] sm:$0xff]
        %v8673 = vld [vmem:[%s644 + $0x5f8] sm:$0xff]
        %v8674 = vld [vmem:[%s644 + $0x600] sm:$0xff]
        %v8675 = vld [vmem:[%s644 + $0x608] sm:$0xff]
        %v8676 = vld [vmem:[%s644 + $0x610] sm:$0xff]
        %v8677 = vld [vmem:[%s644 + $0x618] sm:$0xff]
        %v8678 = vld [vmem:[%s644 + $0x620] sm:$0xff]
        %v8679 = vld [vmem:[%s644 + $0x628] sm:$0xff]
        %v8680 = vld [vmem:[%s644 + $0x630] sm:$0xff]
        %v8681 = vld [vmem:[%s644 + $0x638] sm:$0xff]
        %v8682 = vld [vmem:[%s644 + $0x640] sm:$0xff]
        %v8683 = vld [vmem:[%s644 + $0x648] sm:$0xff]
        %v8684 = vld [vmem:[%s644 + $0x650] sm:$0xff]
        %v8685 = vld [vmem:[%s644 + $0x658] sm:$0xff]
        %v8686 = vld [vmem:[%s644 + $0x660] sm:$0xff]
        %v8687 = vld [vmem:[%s644 + $0x668] sm:$0xff]
        %v8688 = vld [vmem:[%s644 + $0x670] sm:$0xff]
        %v8689 = vld [vmem:[%s644 + $0x678] sm:$0xff]
        %v8690 = vld [vmem:[%s644 + $0x680] sm:$0xff]
        %v8691 = vld [vmem:[%s644 + $0x688] sm:$0xff]
        %v8692 = vld [vmem:[%s644 + $0x690] sm:$0xff]
        %v8693 = vld [vmem:[%s644 + $0x698] sm:$0xff]
        %v8694 = vld [vmem:[%s644 + $0x6a0] sm:$0xff]
        %v8695 = vld [vmem:[%s644 + $0x6a8] sm:$0xff]
        %v8696 = vld [vmem:[%s644 + $0x6b0] sm:$0xff]
        %v8697 = vld [vmem:[%s644 + $0x6b8] sm:$0xff]
        %v8698 = vld [vmem:[%s644 + $0x6c0] sm:$0xff]
        %v8699 = vld [vmem:[%s644 + $0x6c8] sm:$0xff]
        %v8700 = vld [vmem:[%s644 + $0x6d0] sm:$0xff]
        %v8701 = vld [vmem:[%s644 + $0x6d8] sm:$0xff]
        %v8702 = vld [vmem:[%s644 + $0x6e0] sm:$0xff]
        %v8703 = vld [vmem:[%s644 + $0x6e8] sm:$0xff]
        %v8704 = vld [vmem:[%s644 + $0x6f0] sm:$0xff]
        %v8705 = vld [vmem:[%s644 + $0x6f8] sm:$0xff]
        %v8706 = vld [vmem:[%s644 + $0x700] sm:$0xff]
        %v8707 = vld [vmem:[%s644 + $0x708] sm:$0xff]
        %v8708 = vld [vmem:[%s644 + $0x710] sm:$0xff]
        %v8709 = vld [vmem:[%s644 + $0x718] sm:$0xff]
        %v8710 = vld [vmem:[%s644 + $0x720] sm:$0xff]
        %v8711 = vld [vmem:[%s644 + $0x728] sm:$0xff]
        %v8712 = vld [vmem:[%s644 + $0x730] sm:$0xff]
        %v8713 = vld [vmem:[%s644 + $0x738] sm:$0xff]
        %v8714 = vld [vmem:[%s644 + $0x740] sm:$0xff]
        %v8715 = vld [vmem:[%s644 + $0x748] sm:$0xff]
        %v8716 = vld [vmem:[%s644 + $0x750] sm:$0xff]
        %v8717 = vld [vmem:[%s644 + $0x758] sm:$0xff]
        %v8718 = vld [vmem:[%s644 + $0x760] sm:$0xff]
        %v8719 = vld [vmem:[%s644 + $0x768] sm:$0xff]
        %v8720 = vld [vmem:[%s644 + $0x770] sm:$0xff]
        %v8721 = vld [vmem:[%s644 + $0x778] sm:$0xff]
        %v8722 = vld [vmem:[%s644 + $0x780] sm:$0xff]
        %v8723 = vld [vmem:[%s644 + $0x788] sm:$0xff]
        %v8724 = vld [vmem:[%s644 + $0x790] sm:$0xff]
        %v8725 = vld [vmem:[%s644 + $0x798] sm:$0xff]
        %v8726 = vld [vmem:[%s644 + $0x7a0] sm:$0xff]
        %v8727 = vld [vmem:[%s644 + $0x7a8] sm:$0xff]
        %v8728 = vld [vmem:[%s644 + $0x7b0] sm:$0xff]
        %v8729 = vld [vmem:[%s644 + $0x7b8] sm:$0xff]
        %v8730 = vld [vmem:[%s644 + $0x7c0] sm:$0xff]
        %v8731 = vld [vmem:[%s644 + $0x7c8] sm:$0xff]
        %v8732 = vld [vmem:[%s644 + $0x7d0] sm:$0xff]
        %v8733 = vld [vmem:[%s644 + $0x7d8] sm:$0xff]
        %v8734 = vld [vmem:[%s644 + $0x7e0] sm:$0xff]
        %v8735 = vld [vmem:[%s644 + $0x7e8] sm:$0xff]
        %v8736 = vld [vmem:[%s644 + $0x7f0] sm:$0xff]
        %v8737 = vld [vmem:[%s644 + $0x7f8] sm:$0xff]
        %v8738 = vld [vmem:[%s644 + $0x800] sm:$0xff]
        %v8739 = vld [vmem:[%s644 + $0x808] sm:$0xff]
        %v8740 = vld [vmem:[%s644 + $0x810] sm:$0xff]
        %v8741 = vld [vmem:[%s644 + $0x818] sm:$0xff]
        %v8742 = vld [vmem:[%s644 + $0x820] sm:$0xff]
        %v8743 = vld [vmem:[%s644 + $0x828] sm:$0xff]
        %v8744 = vld [vmem:[%s644 + $0x830] sm:$0xff]
        %v8745 = vld [vmem:[%s644 + $0x838] sm:$0xff]
        %v8746 = vld [vmem:[%s644 + $0x840] sm:$0xff]
        %v8747 = vld [vmem:[%s644 + $0x848] sm:$0xff]
        %v8748 = vld [vmem:[%s644 + $0x850] sm:$0xff]
        %v8749 = vld [vmem:[%s644 + $0x858] sm:$0xff]
        %v8750 = vld [vmem:[%s644 + $0x860] sm:$0xff]
        %v8751 = vld [vmem:[%s644 + $0x868] sm:$0xff]
        %v8752 = vld [vmem:[%s644 + $0x870] sm:$0xff]
        %v8753 = vld [vmem:[%s644 + $0x878] sm:$0xff]
        %v8754 = vld [vmem:[%s644 + $0x880] sm:$0xff]
        %v8755 = vld [vmem:[%s644 + $0x888] sm:$0xff]
        %v8756 = vld [vmem:[%s644 + $0x890] sm:$0xff]
        %v8757 = vld [vmem:[%s644 + $0x898] sm:$0xff]
        %v8758 = vld [vmem:[%s644 + $0x8a0] sm:$0xff]
        %v8759 = vld [vmem:[%s644 + $0x8a8] sm:$0xff]
        %v8760 = vld [vmem:[%s644 + $0x8b0] sm:$0xff]
        %v8761 = vld [vmem:[%s644 + $0x8b8] sm:$0xff]
        %v8762 = vld [vmem:[%s644 + $0x8c0] sm:$0xff]
        %v8763 = vld [vmem:[%s644 + $0x8c8] sm:$0xff]
        %v8764 = vld [vmem:[%s644 + $0x8d0] sm:$0xff]
        %v8765 = vld [vmem:[%s644 + $0x8d8] sm:$0xff]
        %v8766 = vld [vmem:[%s644 + $0x8e0] sm:$0xff]
        %v8767 = vld [vmem:[%s644 + $0x8e8] sm:$0xff]
        %v8768 = vld [vmem:[%s644 + $0x8f0] sm:$0xff]
        %v8769 = vld [vmem:[%s644 + $0x8f8] sm:$0xff]
        %v8770 = vld [vmem:[%s644 + $0x900] sm:$0xff]
        %v8771 = vld [vmem:[%s644 + $0x908] sm:$0xff]
        %v8772 = vld [vmem:[%s644 + $0x910] sm:$0xff]
        %v8773 = vld [vmem:[%s644 + $0x918] sm:$0xff]
        %v8774 = vld [vmem:[%s644 + $0x920] sm:$0xff]
        %v8775 = vld [vmem:[%s644 + $0x928] sm:$0xff]
        %v8776 = vld [vmem:[%s644 + $0x930] sm:$0xff]
        %v8777 = vld [vmem:[%s644 + $0x938] sm:$0xff]
        %v8778 = vld [vmem:[%s644 + $0x940] sm:$0xff]
        %v8779 = vld [vmem:[%s644 + $0x948] sm:$0xff]
        %v8780 = vld [vmem:[%s644 + $0x950] sm:$0xff]
        %v8781 = vld [vmem:[%s644 + $0x958] sm:$0xff]
        %v8782 = vld [vmem:[%s644 + $0x960] sm:$0xff]
        %v8783 = vld [vmem:[%s644 + $0x968] sm:$0xff]
        %v8784 = vld [vmem:[%s644 + $0x970] sm:$0xff]
        %v8785 = vld [vmem:[%s644 + $0x978] sm:$0xff]
        %v8786 = vld [vmem:[%s644 + $0x980] sm:$0xff]
        %v8787 = vld [vmem:[%s644 + $0x988] sm:$0xff]
        %v8788 = vld [vmem:[%s644 + $0x990] sm:$0xff]
        %v8789 = vld [vmem:[%s644 + $0x998] sm:$0xff]
        %v8790 = vld [vmem:[%s644 + $0x9a0] sm:$0xff]
        %v8791 = vld [vmem:[%s644 + $0x9a8] sm:$0xff]
        %v8792 = vld [vmem:[%s644 + $0x9b0] sm:$0xff]
        %v8793 = vld [vmem:[%s644 + $0x9b8] sm:$0xff]
        %v8794 = vld [vmem:[%s644 + $0x9c0] sm:$0xff]
        %v8795 = vld [vmem:[%s644 + $0x9c8] sm:$0xff]
        %v8796 = vld [vmem:[%s644 + $0x9d0] sm:$0xff]
        %v8797 = vld [vmem:[%s644 + $0x9d8] sm:$0xff]
        %v8798 = vld [vmem:[%s644 + $0x9e0] sm:$0xff]
        %v8799 = vld [vmem:[%s644 + $0x9e8] sm:$0xff]
        %v8800 = vld [vmem:[%s644 + $0x9f0] sm:$0xff]
        %v8801 = vld [vmem:[%s644 + $0x9f8] sm:$0xff]
        %v8802 = vld [vmem:[%s644 + $0xa00] sm:$0xff]
        %v8803 = vld [vmem:[%s644 + $0xa08] sm:$0xff]
        %v8804 = vld [vmem:[%s644 + $0xa10] sm:$0xff]
        %v8805 = vld [vmem:[%s644 + $0xa18] sm:$0xff]
        %v8806 = vld [vmem:[%s644 + $0xa20] sm:$0xff]
        %v8807 = vld [vmem:[%s644 + $0xa28] sm:$0xff]
        %v8808 = vld [vmem:[%s644 + $0xa30] sm:$0xff]
        %v8809 = vld [vmem:[%s644 + $0xa38] sm:$0xff]
        %v8810 = vld [vmem:[%s644 + $0xa40] sm:$0xff]
        %v8811 = vld [vmem:[%s644 + $0xa48] sm:$0xff]
        %v8812 = vld [vmem:[%s644 + $0xa50] sm:$0xff]
        %v8813 = vld [vmem:[%s644 + $0xa58] sm:$0xff]
        %v8814 = vld [vmem:[%s644 + $0xa60] sm:$0xff]
        %v8815 = vld [vmem:[%s644 + $0xa68] sm:$0xff]
        %v8816 = vld [vmem:[%s644 + $0xa70] sm:$0xff]
        %v8817 = vld [vmem:[%s644 + $0xa78] sm:$0xff]
        %v8818 = vld [vmem:[%s644 + $0xa80] sm:$0xff]
        %v8819 = vld [vmem:[%s644 + $0xa88] sm:$0xff]
        %v8820 = vld [vmem:[%s644 + $0xa90] sm:$0xff]
        %v8821 = vld [vmem:[%s644 + $0xa98] sm:$0xff]
        %v8822 = vld [vmem:[%s644 + $0xaa0] sm:$0xff]
        %v8823 = vld [vmem:[%s644 + $0xaa8] sm:$0xff]
        %v8824 = vld [vmem:[%s644 + $0xab0] sm:$0xff]
        %v8825 = vld [vmem:[%s644 + $0xab8] sm:$0xff]
        %v8826 = vld [vmem:[%s644 + $0xac0] sm:$0xff]
        %v8827 = vld [vmem:[%s644 + $0xac8] sm:$0xff]
        %v8828 = vld [vmem:[%s644 + $0xad0] sm:$0xff]
        %v8829 = vld [vmem:[%s644 + $0xad8] sm:$0xff]
        %v8830 = vld [vmem:[%s644 + $0xae0] sm:$0xff]
        %v8831 = vld [vmem:[%s644 + $0xae8] sm:$0xff]
        %v8832 = vld [vmem:[%s644 + $0xaf0] sm:$0xff]
        %v8833 = vld [vmem:[%s644 + $0xaf8] sm:$0xff]
        %v8834 = vld [vmem:[%s644 + $0xb00] sm:$0xff]
        %v8835 = vld [vmem:[%s644 + $0xb08] sm:$0xff]
        %v8836 = vld [vmem:[%s644 + $0xb10] sm:$0xff]
        %v8837 = vld [vmem:[%s644 + $0xb18] sm:$0xff]
        %v8838 = vld [vmem:[%s644 + $0xb20] sm:$0xff]
        %v8839 = vld [vmem:[%s644 + $0xb28] sm:$0xff]
        %v8840 = vld [vmem:[%s644 + $0xb30] sm:$0xff]
        %v8841 = vld [vmem:[%s644 + $0xb38] sm:$0xff]
        %v8842 = vld [vmem:[%s644 + $0xb40] sm:$0xff]
        %v8843 = vld [vmem:[%s644 + $0xb48] sm:$0xff]
        %v8844 = vld [vmem:[%s644 + $0xb50] sm:$0xff]
        %v8845 = vld [vmem:[%s644 + $0xb58] sm:$0xff]
        %v8846 = vld [vmem:[%s644 + $0xb60] sm:$0xff]
        %v8847 = vld [vmem:[%s644 + $0xb68] sm:$0xff]
        %v8848 = vld [vmem:[%s644 + $0xb70] sm:$0xff]
        %v8849 = vld [vmem:[%s644 + $0xb78] sm:$0xff]
        %v8850 = vld [vmem:[%s644 + $0xb80] sm:$0xff]
        %v8851 = vld [vmem:[%s644 + $0xb88] sm:$0xff]
        %v8852 = vld [vmem:[%s644 + $0xb90] sm:$0xff]
        %v8853 = vld [vmem:[%s644 + $0xb98] sm:$0xff]
        %v8854 = vld [vmem:[%s644 + $0xba0] sm:$0xff]
        %v8855 = vld [vmem:[%s644 + $0xba8] sm:$0xff]
        %v8856 = vld [vmem:[%s644 + $0xbb0] sm:$0xff]
        %v8857 = vld [vmem:[%s644 + $0xbb8] sm:$0xff]
        %v8858 = vld [vmem:[%s644 + $0xbc0] sm:$0xff]
        %v8859 = vld [vmem:[%s644 + $0xbc8] sm:$0xff]
        %v8860 = vld [vmem:[%s644 + $0xbd0] sm:$0xff]
        %v8861 = vld [vmem:[%s644 + $0xbd8] sm:$0xff]
        %v8862 = vld [vmem:[%s644 + $0xbe0] sm:$0xff]
        %v8863 = vld [vmem:[%s644 + $0xbe8] sm:$0xff]
        %v8864 = vld [vmem:[%s644 + $0xbf0] sm:$0xff]
        %v8865 = vld [vmem:[%s644 + $0xbf8] sm:$0xff]
        %v8866 = vld [vmem:[%s647] sm:$0x1]
        %v8868 = vlaneseq
        %v8869 = vshrl.u32 %v8868, 7
        %v8870 = vsub.s32 0, %v8869
        %v8871 = vrot.slane %v8866, %v8870
        %8873 = vmatprep.subr.mxu0 0.0
        %8874 = vmatpush1.msra.mxu0 %v8497
        %8875 = vmatprep.subr.mxu0 0.0
        %8876 = vmatpush1.msra.mxu0 %v8496
        %8877 = vmatprep.subr.mxu0 0.0
        %8878 = vmatpush1.msra.mxu0 %v8495
        %8879 = vmatprep.subr.mxu0 0.0
        %8880 = vmatpush1.msra.mxu0 %v8494
        %8881 = vmatprep.subr.mxu0 0.0
        %8882 = vmatpush1.msra.mxu0 %v8493
        %8883 = vmatprep.subr.mxu0 0.0
        %8884 = vmatpush1.msra.mxu0 %v8492
        %8885 = vmatprep.subr.mxu0 0.0
        %8886 = vmatpush1.msra.mxu0 %v8491
        %8887 = vmatprep.subr.mxu0 0.0
        %8888 = vmatpush1.msra.mxu0 %v8490
        %8889 = vmatprep.subr.mxu0 0.0
        %8890 = vmatpush1.msra.mxu0 %v8489
        %8891 = vmatprep.subr.mxu0 0.0
        %8892 = vmatpush1.msra.mxu0 %v8488
        %8893 = vmatprep.subr.mxu0 0.0
        %8894 = vmatpush1.msra.mxu0 %v8487
        %8895 = vmatprep.subr.mxu0 0.0
        %8896 = vmatpush1.msra.mxu0 %v8486
        %8897 = vmatprep.subr.mxu0 0.0
        %8898 = vmatpush1.msra.mxu0 %v8485
        %8899 = vmatprep.subr.mxu0 0.0
        %8900 = vmatpush1.msra.mxu0 %v8484
        %8901 = vmatprep.subr.mxu0 0.0
        %8902 = vmatpush1.msra.mxu0 %v8483
        %8903 = vmatprep.subr.mxu0 0.0
        %8904 = vmatpush1.msra.mxu0 %v8482
        %8905 = vmatprep.subr.mxu0 0.0
        %8906 = vmatpush2.msra.mxu0 %v8513
        %8907 = vmatprep.subr.mxu0 0.0
        %8908 = vmatpush2.msra.mxu0 %v8512
        %8909 = vmatprep.subr.mxu0 0.0
        %8910 = vmatpush2.msra.mxu0 %v8511
        %8911 = vmatprep.subr.mxu0 0.0
        %8912 = vmatpush2.msra.mxu0 %v8510
        %8913 = vmatprep.subr.mxu0 0.0
        %8914 = vmatpush2.msra.mxu0 %v8509
        %8915 = vmatprep.subr.mxu0 0.0
        %8916 = vmatpush2.msra.mxu0 %v8508
        %8917 = vmatprep.subr.mxu0 0.0
        %8918 = vmatpush2.msra.mxu0 %v8507
        %8919 = vmatprep.subr.mxu0 0.0
        %8920 = vmatpush2.msra.mxu0 %v8506
        %8921 = vmatprep.subr.mxu0 0.0
        %8922 = vmatpush2.msra.mxu0 %v8505
        %8923 = vmatprep.subr.mxu0 0.0
        %8924 = vmatpush2.msra.mxu0 %v8504
        %8925 = vmatprep.subr.mxu0 0.0
        %8926 = vmatpush2.msra.mxu0 %v8503
        %8927 = vmatprep.subr.mxu0 0.0
        %8928 = vmatpush2.msra.mxu0 %v8502
        %8929 = vmatprep.subr.mxu0 0.0
        %8930 = vmatpush2.msra.mxu0 %v8501
        %8931 = vmatprep.subr.mxu0 0.0
        %8932 = vmatpush2.msra.mxu0 %v8500
        %8933 = vmatprep.subr.mxu0 0.0
        %8934 = vmatpush2.msra.mxu0 %v8499
        %8935 = vmatprep.subr.mxu0 0.0
        %8936 = vmatpush2.msra.mxu0 %v8498
        %8937 = vmatprep.mubr.f32.mxu0 %v8435
        %8938 = vmatmul.mubr.f32.gmra.mxu0 %v8434
        %v8939 = vpop.f32.mrf.mxu0
        %v8940 = vadd.f32 %v8871, %v8939
        %v8941 = vpop.f32.mrf.mxu0
        %8942 = vmatprep.mubr.f32.mxu0 %v8459
        %8943 = vmatmul.mubr.f32.gmra.mxu0 %v8458
        %v8944 = vpop.f32.mrf.mxu0
        %v8945 = vadd.f32 %v8871, %v8944
        %v8946 = vpop.f32.mrf.mxu0
        %8947 = vdwg.mxu0
        %8948 = vmatprep.subr.mxu0 0.0
        %8949 = vmatpush1.msra.mxu0 %v8529
        %8950 = vmatprep.subr.mxu0 0.0
        %8951 = vmatpush1.msra.mxu0 %v8528
        %8952 = vmatprep.subr.mxu0 0.0
        %8953 = vmatpush1.msra.mxu0 %v8527
        %8954 = vmatprep.subr.mxu0 0.0
        %8955 = vmatpush1.msra.mxu0 %v8526
        %8956 = vmatprep.subr.mxu0 0.0
        %8957 = vmatpush1.msra.mxu0 %v8525
        %8958 = vmatprep.subr.mxu0 0.0
        %8959 = vmatpush1.msra.mxu0 %v8524
        %8960 = vmatprep.subr.mxu0 0.0
        %8961 = vmatpush1.msra.mxu0 %v8523
        %8962 = vmatprep.subr.mxu0 0.0
        %8963 = vmatpush1.msra.mxu0 %v8522
        %8964 = vmatprep.subr.mxu0 0.0
        %8965 = vmatpush1.msra.mxu0 %v8521
        %8966 = vmatprep.subr.mxu0 0.0
        %8967 = vmatpush1.msra.mxu0 %v8520
        %8968 = vmatprep.subr.mxu0 0.0
        %8969 = vmatpush1.msra.mxu0 %v8519
        %8970 = vmatprep.subr.mxu0 0.0
        %8971 = vmatpush1.msra.mxu0 %v8518
        %8972 = vmatprep.subr.mxu0 0.0
        %8973 = vmatpush1.msra.mxu0 %v8517
        %8974 = vmatprep.subr.mxu0 0.0
        %8975 = vmatpush1.msra.mxu0 %v8516
        %8976 = vmatprep.subr.mxu0 0.0
        %8977 = vmatpush1.msra.mxu0 %v8515
        %8978 = vmatprep.subr.mxu0 0.0
        %8979 = vmatpush1.msra.mxu0 %v8514
        %8980 = vmatprep.subr.mxu0 0.0
        %8981 = vmatpush2.msra.mxu0 %v8545
        %8982 = vmatprep.subr.mxu0 0.0
        %8983 = vmatpush2.msra.mxu0 %v8544
        %8984 = vmatprep.subr.mxu0 0.0
        %8985 = vmatpush2.msra.mxu0 %v8543
        %8986 = vmatprep.subr.mxu0 0.0
        %8987 = vmatpush2.msra.mxu0 %v8542
        %8988 = vmatprep.subr.mxu0 0.0
        %8989 = vmatpush2.msra.mxu0 %v8541
        %8990 = vmatprep.subr.mxu0 0.0
        %8991 = vmatpush2.msra.mxu0 %v8540
        %8992 = vmatprep.subr.mxu0 0.0
        %8993 = vmatpush2.msra.mxu0 %v8539
        %8994 = vmatprep.subr.mxu0 0.0
        %8995 = vmatpush2.msra.mxu0 %v8538
        %8996 = vmatprep.subr.mxu0 0.0
        %8997 = vmatpush2.msra.mxu0 %v8537
        %8998 = vmatprep.subr.mxu0 0.0
        %8999 = vmatpush2.msra.mxu0 %v8536
        %9000 = vmatprep.subr.mxu0 0.0
        %9001 = vmatpush2.msra.mxu0 %v8535
        %9002 = vmatprep.subr.mxu0 0.0
        %9003 = vmatpush2.msra.mxu0 %v8534
        %9004 = vmatprep.subr.mxu0 0.0
        %9005 = vmatpush2.msra.mxu0 %v8533
        %9006 = vmatprep.subr.mxu0 0.0
        %9007 = vmatpush2.msra.mxu0 %v8532
        %9008 = vmatprep.subr.mxu0 0.0
        %9009 = vmatpush2.msra.mxu0 %v8531
        %9010 = vmatprep.subr.mxu0 0.0
        %9011 = vmatpush2.msra.mxu0 %v8530
        %9012 = vmatprep.mubr.f32.mxu0 %v8437
        %9013 = vmatmul.mubr.f32.gmra.mxu0 %v8436
        %v9014 = vpop.f32.mrf.mxu0
        %v9015 = vadd.f32 %v8940, %v9014
        %v9016 = vpop.f32.mrf.mxu0
        %9017 = vmatprep.mubr.f32.mxu0 %v8461
        %9018 = vmatmul.mubr.f32.gmra.mxu0 %v8460
        %v9019 = vpop.f32.mrf.mxu0
        %v9020 = vadd.f32 %v8945, %v9019
        %v9021 = vpop.f32.mrf.mxu0
        %9022 = vdwg.mxu0
        %9023 = vmatprep.subr.mxu0 0.0
        %9024 = vmatpush1.msra.mxu0 %v8561
        %9025 = vmatprep.subr.mxu0 0.0
        %9026 = vmatpush1.msra.mxu0 %v8560
        %9027 = vmatprep.subr.mxu0 0.0
        %9028 = vmatpush1.msra.mxu0 %v8559
        %9029 = vmatprep.subr.mxu0 0.0
        %9030 = vmatpush1.msra.mxu0 %v8558
        %9031 = vmatprep.subr.mxu0 0.0
        %9032 = vmatpush1.msra.mxu0 %v8557
        %9033 = vmatprep.subr.mxu0 0.0
        %9034 = vmatpush1.msra.mxu0 %v8556
        %9035 = vmatprep.subr.mxu0 0.0
        %9036 = vmatpush1.msra.mxu0 %v8555
        %9037 = vmatprep.subr.mxu0 0.0
        %9038 = vmatpush1.msra.mxu0 %v8554
        %9039 = vmatprep.subr.mxu0 0.0
        %9040 = vmatpush1.msra.mxu0 %v8553
        %9041 = vmatprep.subr.mxu0 0.0
        %9042 = vmatpush1.msra.mxu0 %v8552
        %9043 = vmatprep.subr.mxu0 0.0
        %9044 = vmatpush1.msra.mxu0 %v8551
        %9045 = vmatprep.subr.mxu0 0.0
        %9046 = vmatpush1.msra.mxu0 %v8550
        %9047 = vmatprep.subr.mxu0 0.0
        %9048 = vmatpush1.msra.mxu0 %v8549
        %9049 = vmatprep.subr.mxu0 0.0
        %9050 = vmatpush1.msra.mxu0 %v8548
        %9051 = vmatprep.subr.mxu0 0.0
        %9052 = vmatpush1.msra.mxu0 %v8547
        %9053 = vmatprep.subr.mxu0 0.0
        %9054 = vmatpush1.msra.mxu0 %v8546
        %9055 = vmatprep.subr.mxu0 0.0
        %9056 = vmatpush2.msra.mxu0 %v8577
        %9057 = vmatprep.subr.mxu0 0.0
        %9058 = vmatpush2.msra.mxu0 %v8576
        %9059 = vmatprep.subr.mxu0 0.0
        %9060 = vmatpush2.msra.mxu0 %v8575
        %9061 = vmatprep.subr.mxu0 0.0
        %9062 = vmatpush2.msra.mxu0 %v8574
        %9063 = vmatprep.subr.mxu0 0.0
        %9064 = vmatpush2.msra.mxu0 %v8573
        %9065 = vmatprep.subr.mxu0 0.0
        %9066 = vmatpush2.msra.mxu0 %v8572
        %9067 = vmatprep.subr.mxu0 0.0
        %9068 = vmatpush2.msra.mxu0 %v8571
        %9069 = vmatprep.subr.mxu0 0.0
        %9070 = vmatpush2.msra.mxu0 %v8570
        %9071 = vmatprep.subr.mxu0 0.0
        %9072 = vmatpush2.msra.mxu0 %v8569
        %9073 = vmatprep.subr.mxu0 0.0
        %9074 = vmatpush2.msra.mxu0 %v8568
        %9075 = vmatprep.subr.mxu0 0.0
        %9076 = vmatpush2.msra.mxu0 %v8567
        %9077 = vmatprep.subr.mxu0 0.0
        %9078 = vmatpush2.msra.mxu0 %v8566
        %9079 = vmatprep.subr.mxu0 0.0
        %9080 = vmatpush2.msra.mxu0 %v8565
        %9081 = vmatprep.subr.mxu0 0.0
        %9082 = vmatpush2.msra.mxu0 %v8564
        %9083 = vmatprep.subr.mxu0 0.0
        %9084 = vmatpush2.msra.mxu0 %v8563
        %9085 = vmatprep.subr.mxu0 0.0
        %9086 = vmatpush2.msra.mxu0 %v8562
        %9087 = vmatprep.mubr.f32.mxu0 %v8439
        %9088 = vmatmul.mubr.f32.gmra.mxu0 %v8438
        %v9089 = vpop.f32.mrf.mxu0
        %v9090 = vadd.f32 %v9015, %v9089
        %v9091 = vpop.f32.mrf.mxu0
        %9092 = vmatprep.mubr.f32.mxu0 %v8463
        %9093 = vmatmul.mubr.f32.gmra.mxu0 %v8462
        %v9094 = vpop.f32.mrf.mxu0
        %v9095 = vadd.f32 %v9020, %v9094
        %v9096 = vpop.f32.mrf.mxu0
        %9097 = vdwg.mxu0
        %9098 = vmatprep.subr.mxu0 0.0
        %9099 = vmatpush1.msra.mxu0 %v8593
        %9100 = vmatprep.subr.mxu0 0.0
        %9101 = vmatpush1.msra.mxu0 %v8592
        %9102 = vmatprep.subr.mxu0 0.0
        %9103 = vmatpush1.msra.mxu0 %v8591
        %9104 = vmatprep.subr.mxu0 0.0
        %9105 = vmatpush1.msra.mxu0 %v8590
        %9106 = vmatprep.subr.mxu0 0.0
        %9107 = vmatpush1.msra.mxu0 %v8589
        %9108 = vmatprep.subr.mxu0 0.0
        %9109 = vmatpush1.msra.mxu0 %v8588
        %9110 = vmatprep.subr.mxu0 0.0
        %9111 = vmatpush1.msra.mxu0 %v8587
        %9112 = vmatprep.subr.mxu0 0.0
        %9113 = vmatpush1.msra.mxu0 %v8586
        %9114 = vmatprep.subr.mxu0 0.0
        %9115 = vmatpush1.msra.mxu0 %v8585
        %9116 = vmatprep.subr.mxu0 0.0
        %9117 = vmatpush1.msra.mxu0 %v8584
        %9118 = vmatprep.subr.mxu0 0.0
        %9119 = vmatpush1.msra.mxu0 %v8583
        %9120 = vmatprep.subr.mxu0 0.0
        %9121 = vmatpush1.msra.mxu0 %v8582
        %9122 = vmatprep.subr.mxu0 0.0
        %9123 = vmatpush1.msra.mxu0 %v8581
        %9124 = vmatprep.subr.mxu0 0.0
        %9125 = vmatpush1.msra.mxu0 %v8580
        %9126 = vmatprep.subr.mxu0 0.0
        %9127 = vmatpush1.msra.mxu0 %v8579
        %9128 = vmatprep.subr.mxu0 0.0
        %9129 = vmatpush1.msra.mxu0 %v8578
        %9130 = vmatprep.subr.mxu0 0.0
        %9131 = vmatpush2.msra.mxu0 %v8609
        %9132 = vmatprep.subr.mxu0 0.0
        %9133 = vmatpush2.msra.mxu0 %v8608
        %9134 = vmatprep.subr.mxu0 0.0
        %9135 = vmatpush2.msra.mxu0 %v8607
        %9136 = vmatprep.subr.mxu0 0.0
        %9137 = vmatpush2.msra.mxu0 %v8606
        %9138 = vmatprep.subr.mxu0 0.0
        %9139 = vmatpush2.msra.mxu0 %v8605
        %9140 = vmatprep.subr.mxu0 0.0
        %9141 = vmatpush2.msra.mxu0 %v8604
        %9142 = vmatprep.subr.mxu0 0.0
        %9143 = vmatpush2.msra.mxu0 %v8603
        %9144 = vmatprep.subr.mxu0 0.0
        %9145 = vmatpush2.msra.mxu0 %v8602
        %9146 = vmatprep.subr.mxu0 0.0
        %9147 = vmatpush2.msra.mxu0 %v8601
        %9148 = vmatprep.subr.mxu0 0.0
        %9149 = vmatpush2.msra.mxu0 %v8600
        %9150 = vmatprep.subr.mxu0 0.0
        %9151 = vmatpush2.msra.mxu0 %v8599
        %9152 = vmatprep.subr.mxu0 0.0
        %9153 = vmatpush2.msra.mxu0 %v8598
        %9154 = vmatprep.subr.mxu0 0.0
        %9155 = vmatpush2.msra.mxu0 %v8597
        %9156 = vmatprep.subr.mxu0 0.0
        %9157 = vmatpush2.msra.mxu0 %v8596
        %9158 = vmatprep.subr.mxu0 0.0
        %9159 = vmatpush2.msra.mxu0 %v8595
        %9160 = vmatprep.subr.mxu0 0.0
        %9161 = vmatpush2.msra.mxu0 %v8594
        %9162 = vmatprep.mubr.f32.mxu0 %v8441
        %9163 = vmatmul.mubr.f32.gmra.mxu0 %v8440
        %v9164 = vpop.f32.mrf.mxu0
        %v9165 = vadd.f32 %v9090, %v9164
        %v9166 = vpop.f32.mrf.mxu0
        %9167 = vmatprep.mubr.f32.mxu0 %v8465
        %9168 = vmatmul.mubr.f32.gmra.mxu0 %v8464
        %v9169 = vpop.f32.mrf.mxu0
        %v9170 = vadd.f32 %v9095, %v9169
        %v9171 = vpop.f32.mrf.mxu0
        %9172 = vdwg.mxu0
        %9173 = vmatprep.subr.mxu0 0.0
        %9174 = vmatpush1.msra.mxu0 %v8625
        %9175 = vmatprep.subr.mxu0 0.0
        %9176 = vmatpush1.msra.mxu0 %v8624
        %9177 = vmatprep.subr.mxu0 0.0
        %9178 = vmatpush1.msra.mxu0 %v8623
        %9179 = vmatprep.subr.mxu0 0.0
        %9180 = vmatpush1.msra.mxu0 %v8622
        %9181 = vmatprep.subr.mxu0 0.0
        %9182 = vmatpush1.msra.mxu0 %v8621
        %9183 = vmatprep.subr.mxu0 0.0
        %9184 = vmatpush1.msra.mxu0 %v8620
        %9185 = vmatprep.subr.mxu0 0.0
        %9186 = vmatpush1.msra.mxu0 %v8619
        %9187 = vmatprep.subr.mxu0 0.0
        %9188 = vmatpush1.msra.mxu0 %v8618
        %9189 = vmatprep.subr.mxu0 0.0
        %9190 = vmatpush1.msra.mxu0 %v8617
        %9191 = vmatprep.subr.mxu0 0.0
        %9192 = vmatpush1.msra.mxu0 %v8616
        %9193 = vmatprep.subr.mxu0 0.0
        %9194 = vmatpush1.msra.mxu0 %v8615
        %9195 = vmatprep.subr.mxu0 0.0
        %9196 = vmatpush1.msra.mxu0 %v8614
        %9197 = vmatprep.subr.mxu0 0.0
        %9198 = vmatpush1.msra.mxu0 %v8613
        %9199 = vmatprep.subr.mxu0 0.0
        %9200 = vmatpush1.msra.mxu0 %v8612
        %9201 = vmatprep.subr.mxu0 0.0
        %9202 = vmatpush1.msra.mxu0 %v8611
        %9203 = vmatprep.subr.mxu0 0.0
        %9204 = vmatpush1.msra.mxu0 %v8610
        %9205 = vmatprep.subr.mxu0 0.0
        %9206 = vmatpush2.msra.mxu0 %v8641
        %9207 = vmatprep.subr.mxu0 0.0
        %9208 = vmatpush2.msra.mxu0 %v8640
        %9209 = vmatprep.subr.mxu0 0.0
        %9210 = vmatpush2.msra.mxu0 %v8639
        %9211 = vmatprep.subr.mxu0 0.0
        %9212 = vmatpush2.msra.mxu0 %v8638
        %9213 = vmatprep.subr.mxu0 0.0
        %9214 = vmatpush2.msra.mxu0 %v8637
        %9215 = vmatprep.subr.mxu0 0.0
        %9216 = vmatpush2.msra.mxu0 %v8636
        %9217 = vmatprep.subr.mxu0 0.0
        %9218 = vmatpush2.msra.mxu0 %v8635
        %9219 = vmatprep.subr.mxu0 0.0
        %9220 = vmatpush2.msra.mxu0 %v8634
        %9221 = vmatprep.subr.mxu0 0.0
        %9222 = vmatpush2.msra.mxu0 %v8633
        %9223 = vmatprep.subr.mxu0 0.0
        %9224 = vmatpush2.msra.mxu0 %v8632
        %9225 = vmatprep.subr.mxu0 0.0
        %9226 = vmatpush2.msra.mxu0 %v8631
        %9227 = vmatprep.subr.mxu0 0.0
        %9228 = vmatpush2.msra.mxu0 %v8630
        %9229 = vmatprep.subr.mxu0 0.0
        %9230 = vmatpush2.msra.mxu0 %v8629
        %9231 = vmatprep.subr.mxu0 0.0
        %9232 = vmatpush2.msra.mxu0 %v8628
        %9233 = vmatprep.subr.mxu0 0.0
        %9234 = vmatpush2.msra.mxu0 %v8627
        %9235 = vmatprep.subr.mxu0 0.0
        %9236 = vmatpush2.msra.mxu0 %v8626
        %9237 = vmatprep.mubr.f32.mxu0 %v8443
        %9238 = vmatmul.mubr.f32.gmra.mxu0 %v8442
        %v9239 = vpop.f32.mrf.mxu0
        %v9240 = vadd.f32 %v9165, %v9239
        %v9241 = vpop.f32.mrf.mxu0
        %9242 = vmatprep.mubr.f32.mxu0 %v8467
        %9243 = vmatmul.mubr.f32.gmra.mxu0 %v8466
        %v9244 = vpop.f32.mrf.mxu0
        %v9245 = vadd.f32 %v9170, %v9244
        %v9246 = vpop.f32.mrf.mxu0
        %9247 = vdwg.mxu0
        %9248 = vmatprep.subr.mxu0 0.0
        %9249 = vmatpush1.msra.mxu0 %v8657
        %9250 = vmatprep.subr.mxu0 0.0
        %9251 = vmatpush1.msra.mxu0 %v8656
        %9252 = vmatprep.subr.mxu0 0.0
        %9253 = vmatpush1.msra.mxu0 %v8655
        %9254 = vmatprep.subr.mxu0 0.0
        %9255 = vmatpush1.msra.mxu0 %v8654
        %9256 = vmatprep.subr.mxu0 0.0
        %9257 = vmatpush1.msra.mxu0 %v8653
        %9258 = vmatprep.subr.mxu0 0.0
        %9259 = vmatpush1.msra.mxu0 %v8652
        %9260 = vmatprep.subr.mxu0 0.0
        %9261 = vmatpush1.msra.mxu0 %v8651
        %9262 = vmatprep.subr.mxu0 0.0
        %9263 = vmatpush1.msra.mxu0 %v8650
        %9264 = vmatprep.subr.mxu0 0.0
        %9265 = vmatpush1.msra.mxu0 %v8649
        %9266 = vmatprep.subr.mxu0 0.0
        %9267 = vmatpush1.msra.mxu0 %v8648
        %9268 = vmatprep.subr.mxu0 0.0
        %9269 = vmatpush1.msra.mxu0 %v8647
        %9270 = vmatprep.subr.mxu0 0.0
        %9271 = vmatpush1.msra.mxu0 %v8646
        %9272 = vmatprep.subr.mxu0 0.0
        %9273 = vmatpush1.msra.mxu0 %v8645
        %9274 = vmatprep.subr.mxu0 0.0
        %9275 = vmatpush1.msra.mxu0 %v8644
        %9276 = vmatprep.subr.mxu0 0.0
        %9277 = vmatpush1.msra.mxu0 %v8643
        %9278 = vmatprep.subr.mxu0 0.0
        %9279 = vmatpush1.msra.mxu0 %v8642
        %9280 = vmatprep.subr.mxu0 0.0
        %9281 = vmatpush2.msra.mxu0 %v8673
        %9282 = vmatprep.subr.mxu0 0.0
        %9283 = vmatpush2.msra.mxu0 %v8672
        %9284 = vmatprep.subr.mxu0 0.0
        %9285 = vmatpush2.msra.mxu0 %v8671
        %9286 = vmatprep.subr.mxu0 0.0
        %9287 = vmatpush2.msra.mxu0 %v8670
        %9288 = vmatprep.subr.mxu0 0.0
        %9289 = vmatpush2.msra.mxu0 %v8669
        %9290 = vmatprep.subr.mxu0 0.0
        %9291 = vmatpush2.msra.mxu0 %v8668
        %9292 = vmatprep.subr.mxu0 0.0
        %9293 = vmatpush2.msra.mxu0 %v8667
        %9294 = vmatprep.subr.mxu0 0.0
        %9295 = vmatpush2.msra.mxu0 %v8666
        %9296 = vmatprep.subr.mxu0 0.0
        %9297 = vmatpush2.msra.mxu0 %v8665
        %9298 = vmatprep.subr.mxu0 0.0
        %9299 = vmatpush2.msra.mxu0 %v8664
        %9300 = vmatprep.subr.mxu0 0.0
        %9301 = vmatpush2.msra.mxu0 %v8663
        %9302 = vmatprep.subr.mxu0 0.0
        %9303 = vmatpush2.msra.mxu0 %v8662
        %9304 = vmatprep.subr.mxu0 0.0
        %9305 = vmatpush2.msra.mxu0 %v8661
        %9306 = vmatprep.subr.mxu0 0.0
        %9307 = vmatpush2.msra.mxu0 %v8660
        %9308 = vmatprep.subr.mxu0 0.0
        %9309 = vmatpush2.msra.mxu0 %v8659
        %9310 = vmatprep.subr.mxu0 0.0
        %9311 = vmatpush2.msra.mxu0 %v8658
        %9312 = vmatprep.mubr.f32.mxu0 %v8445
        %9313 = vmatmul.mubr.f32.gmra.mxu0 %v8444
        %v9314 = vpop.f32.mrf.mxu0
        %v9315 = vadd.f32 %v9240, %v9314
        %v9316 = vpop.f32.mrf.mxu0
        %9317 = vmatprep.mubr.f32.mxu0 %v8469
        %9318 = vmatmul.mubr.f32.gmra.mxu0 %v8468
        %v9319 = vpop.f32.mrf.mxu0
        %v9320 = vadd.f32 %v9245, %v9319
        %v9321 = vpop.f32.mrf.mxu0
        %9322 = vdwg.mxu0
        %9323 = vmatprep.subr.mxu0 0.0
        %9324 = vmatpush1.msra.mxu0 %v8689
        %9325 = vmatprep.subr.mxu0 0.0
        %9326 = vmatpush1.msra.mxu0 %v8688
        %9327 = vmatprep.subr.mxu0 0.0
        %9328 = vmatpush1.msra.mxu0 %v8687
        %9329 = vmatprep.subr.mxu0 0.0
        %9330 = vmatpush1.msra.mxu0 %v8686
        %9331 = vmatprep.subr.mxu0 0.0
        %9332 = vmatpush1.msra.mxu0 %v8685
        %9333 = vmatprep.subr.mxu0 0.0
        %9334 = vmatpush1.msra.mxu0 %v8684
        %9335 = vmatprep.subr.mxu0 0.0
        %9336 = vmatpush1.msra.mxu0 %v8683
        %9337 = vmatprep.subr.mxu0 0.0
        %9338 = vmatpush1.msra.mxu0 %v8682
        %9339 = vmatprep.subr.mxu0 0.0
        %9340 = vmatpush1.msra.mxu0 %v8681
        %9341 = vmatprep.subr.mxu0 0.0
        %9342 = vmatpush1.msra.mxu0 %v8680
        %9343 = vmatprep.subr.mxu0 0.0
        %9344 = vmatpush1.msra.mxu0 %v8679
        %9345 = vmatprep.subr.mxu0 0.0
        %9346 = vmatpush1.msra.mxu0 %v8678
        %9347 = vmatprep.subr.mxu0 0.0
        %9348 = vmatpush1.msra.mxu0 %v8677
        %9349 = vmatprep.subr.mxu0 0.0
        %9350 = vmatpush1.msra.mxu0 %v8676
        %9351 = vmatprep.subr.mxu0 0.0
        %9352 = vmatpush1.msra.mxu0 %v8675
        %9353 = vmatprep.subr.mxu0 0.0
        %9354 = vmatpush1.msra.mxu0 %v8674
        %9355 = vmatprep.subr.mxu0 0.0
        %9356 = vmatpush2.msra.mxu0 %v8705
        %9357 = vmatprep.subr.mxu0 0.0
        %9358 = vmatpush2.msra.mxu0 %v8704
        %9359 = vmatprep.subr.mxu0 0.0
        %9360 = vmatpush2.msra.mxu0 %v8703
        %9361 = vmatprep.subr.mxu0 0.0
        %9362 = vmatpush2.msra.mxu0 %v8702
        %9363 = vmatprep.subr.mxu0 0.0
        %9364 = vmatpush2.msra.mxu0 %v8701
        %9365 = vmatprep.subr.mxu0 0.0
        %9366 = vmatpush2.msra.mxu0 %v8700
        %9367 = vmatprep.subr.mxu0 0.0
        %9368 = vmatpush2.msra.mxu0 %v8699
        %9369 = vmatprep.subr.mxu0 0.0
        %9370 = vmatpush2.msra.mxu0 %v8698
        %9371 = vmatprep.subr.mxu0 0.0
        %9372 = vmatpush2.msra.mxu0 %v8697
        %9373 = vmatprep.subr.mxu0 0.0
        %9374 = vmatpush2.msra.mxu0 %v8696
        %9375 = vmatprep.subr.mxu0 0.0
        %9376 = vmatpush2.msra.mxu0 %v8695
        %9377 = vmatprep.subr.mxu0 0.0
        %9378 = vmatpush2.msra.mxu0 %v8694
        %9379 = vmatprep.subr.mxu0 0.0
        %9380 = vmatpush2.msra.mxu0 %v8693
        %9381 = vmatprep.subr.mxu0 0.0
        %9382 = vmatpush2.msra.mxu0 %v8692
        %9383 = vmatprep.subr.mxu0 0.0
        %9384 = vmatpush2.msra.mxu0 %v8691
        %9385 = vmatprep.subr.mxu0 0.0
        %9386 = vmatpush2.msra.mxu0 %v8690
        %9387 = vmatprep.mubr.f32.mxu0 %v8447
        %9388 = vmatmul.mubr.f32.gmra.mxu0 %v8446
        %v9389 = vpop.f32.mrf.mxu0
        %v9390 = vadd.f32 %v9315, %v9389
        %v9391 = vpop.f32.mrf.mxu0
        %9392 = vmatprep.mubr.f32.mxu0 %v8471
        %9393 = vmatmul.mubr.f32.gmra.mxu0 %v8470
        %v9394 = vpop.f32.mrf.mxu0
        %v9395 = vadd.f32 %v9320, %v9394
        %v9396 = vpop.f32.mrf.mxu0
        %9397 = vdwg.mxu0
        %9398 = vmatprep.subr.mxu0 0.0
        %9399 = vmatpush1.msra.mxu0 %v8721
        %9400 = vmatprep.subr.mxu0 0.0
        %9401 = vmatpush1.msra.mxu0 %v8720
        %9402 = vmatprep.subr.mxu0 0.0
        %9403 = vmatpush1.msra.mxu0 %v8719
        %9404 = vmatprep.subr.mxu0 0.0
        %9405 = vmatpush1.msra.mxu0 %v8718
        %9406 = vmatprep.subr.mxu0 0.0
        %9407 = vmatpush1.msra.mxu0 %v8717
        %9408 = vmatprep.subr.mxu0 0.0
        %9409 = vmatpush1.msra.mxu0 %v8716
        %9410 = vmatprep.subr.mxu0 0.0
        %9411 = vmatpush1.msra.mxu0 %v8715
        %9412 = vmatprep.subr.mxu0 0.0
        %9413 = vmatpush1.msra.mxu0 %v8714
        %9414 = vmatprep.subr.mxu0 0.0
        %9415 = vmatpush1.msra.mxu0 %v8713
        %9416 = vmatprep.subr.mxu0 0.0
        %9417 = vmatpush1.msra.mxu0 %v8712
        %9418 = vmatprep.subr.mxu0 0.0
        %9419 = vmatpush1.msra.mxu0 %v8711
        %9420 = vmatprep.subr.mxu0 0.0
        %9421 = vmatpush1.msra.mxu0 %v8710
        %9422 = vmatprep.subr.mxu0 0.0
        %9423 = vmatpush1.msra.mxu0 %v8709
        %9424 = vmatprep.subr.mxu0 0.0
        %9425 = vmatpush1.msra.mxu0 %v8708
        %9426 = vmatprep.subr.mxu0 0.0
        %9427 = vmatpush1.msra.mxu0 %v8707
        %9428 = vmatprep.subr.mxu0 0.0
        %9429 = vmatpush1.msra.mxu0 %v8706
        %9430 = vmatprep.subr.mxu0 0.0
        %9431 = vmatpush2.msra.mxu0 %v8737
        %9432 = vmatprep.subr.mxu0 0.0
        %9433 = vmatpush2.msra.mxu0 %v8736
        %9434 = vmatprep.subr.mxu0 0.0
        %9435 = vmatpush2.msra.mxu0 %v8735
        %9436 = vmatprep.subr.mxu0 0.0
        %9437 = vmatpush2.msra.mxu0 %v8734
        %9438 = vmatprep.subr.mxu0 0.0
        %9439 = vmatpush2.msra.mxu0 %v8733
        %9440 = vmatprep.subr.mxu0 0.0
        %9441 = vmatpush2.msra.mxu0 %v8732
        %9442 = vmatprep.subr.mxu0 0.0
        %9443 = vmatpush2.msra.mxu0 %v8731
        %9444 = vmatprep.subr.mxu0 0.0
        %9445 = vmatpush2.msra.mxu0 %v8730
        %9446 = vmatprep.subr.mxu0 0.0
        %9447 = vmatpush2.msra.mxu0 %v8729
        %9448 = vmatprep.subr.mxu0 0.0
        %9449 = vmatpush2.msra.mxu0 %v8728
        %9450 = vmatprep.subr.mxu0 0.0
        %9451 = vmatpush2.msra.mxu0 %v8727
        %9452 = vmatprep.subr.mxu0 0.0
        %9453 = vmatpush2.msra.mxu0 %v8726
        %9454 = vmatprep.subr.mxu0 0.0
        %9455 = vmatpush2.msra.mxu0 %v8725
        %9456 = vmatprep.subr.mxu0 0.0
        %9457 = vmatpush2.msra.mxu0 %v8724
        %9458 = vmatprep.subr.mxu0 0.0
        %9459 = vmatpush2.msra.mxu0 %v8723
        %9460 = vmatprep.subr.mxu0 0.0
        %9461 = vmatpush2.msra.mxu0 %v8722
        %9462 = vmatprep.mubr.f32.mxu0 %v8449
        %9463 = vmatmul.mubr.f32.gmra.mxu0 %v8448
        %v9464 = vpop.f32.mrf.mxu0
        %v9465 = vadd.f32 %v9390, %v9464
        %v9466 = vpop.f32.mrf.mxu0
        %9467 = vmatprep.mubr.f32.mxu0 %v8473
        %9468 = vmatmul.mubr.f32.gmra.mxu0 %v8472
        %v9469 = vpop.f32.mrf.mxu0
        %v9470 = vadd.f32 %v9395, %v9469
        %v9471 = vpop.f32.mrf.mxu0
        %9472 = vdwg.mxu0
        %9473 = vmatprep.subr.mxu0 0.0
        %9474 = vmatpush1.msra.mxu0 %v8753
        %9475 = vmatprep.subr.mxu0 0.0
        %9476 = vmatpush1.msra.mxu0 %v8752
        %9477 = vmatprep.subr.mxu0 0.0
        %9478 = vmatpush1.msra.mxu0 %v8751
        %9479 = vmatprep.subr.mxu0 0.0
        %9480 = vmatpush1.msra.mxu0 %v8750
        %9481 = vmatprep.subr.mxu0 0.0
        %9482 = vmatpush1.msra.mxu0 %v8749
        %9483 = vmatprep.subr.mxu0 0.0
        %9484 = vmatpush1.msra.mxu0 %v8748
        %9485 = vmatprep.subr.mxu0 0.0
        %9486 = vmatpush1.msra.mxu0 %v8747
        %9487 = vmatprep.subr.mxu0 0.0
        %9488 = vmatpush1.msra.mxu0 %v8746
        %9489 = vmatprep.subr.mxu0 0.0
        %9490 = vmatpush1.msra.mxu0 %v8745
        %9491 = vmatprep.subr.mxu0 0.0
        %9492 = vmatpush1.msra.mxu0 %v8744
        %9493 = vmatprep.subr.mxu0 0.0
        %9494 = vmatpush1.msra.mxu0 %v8743
        %9495 = vmatprep.subr.mxu0 0.0
        %9496 = vmatpush1.msra.mxu0 %v8742
        %9497 = vmatprep.subr.mxu0 0.0
        %9498 = vmatpush1.msra.mxu0 %v8741
        %9499 = vmatprep.subr.mxu0 0.0
        %9500 = vmatpush1.msra.mxu0 %v8740
        %9501 = vmatprep.subr.mxu0 0.0
        %9502 = vmatpush1.msra.mxu0 %v8739
        %9503 = vmatprep.subr.mxu0 0.0
        %9504 = vmatpush1.msra.mxu0 %v8738
        %9505 = vmatprep.subr.mxu0 0.0
        %9506 = vmatpush2.msra.mxu0 %v8769
        %9507 = vmatprep.subr.mxu0 0.0
        %9508 = vmatpush2.msra.mxu0 %v8768
        %9509 = vmatprep.subr.mxu0 0.0
        %9510 = vmatpush2.msra.mxu0 %v8767
        %9511 = vmatprep.subr.mxu0 0.0
        %9512 = vmatpush2.msra.mxu0 %v8766
        %9513 = vmatprep.subr.mxu0 0.0
        %9514 = vmatpush2.msra.mxu0 %v8765
        %9515 = vmatprep.subr.mxu0 0.0
        %9516 = vmatpush2.msra.mxu0 %v8764
        %9517 = vmatprep.subr.mxu0 0.0
        %9518 = vmatpush2.msra.mxu0 %v8763
        %9519 = vmatprep.subr.mxu0 0.0
        %9520 = vmatpush2.msra.mxu0 %v8762
        %9521 = vmatprep.subr.mxu0 0.0
        %9522 = vmatpush2.msra.mxu0 %v8761
        %9523 = vmatprep.subr.mxu0 0.0
        %9524 = vmatpush2.msra.mxu0 %v8760
        %9525 = vmatprep.subr.mxu0 0.0
        %9526 = vmatpush2.msra.mxu0 %v8759
        %9527 = vmatprep.subr.mxu0 0.0
        %9528 = vmatpush2.msra.mxu0 %v8758
        %9529 = vmatprep.subr.mxu0 0.0
        %9530 = vmatpush2.msra.mxu0 %v8757
        %9531 = vmatprep.subr.mxu0 0.0
        %9532 = vmatpush2.msra.mxu0 %v8756
        %9533 = vmatprep.subr.mxu0 0.0
        %9534 = vmatpush2.msra.mxu0 %v8755
        %9535 = vmatprep.subr.mxu0 0.0
        %9536 = vmatpush2.msra.mxu0 %v8754
        %9537 = vmatprep.mubr.f32.mxu0 %v8451
        %9538 = vmatmul.mubr.f32.gmra.mxu0 %v8450
        %v9539 = vpop.f32.mrf.mxu0
        %v9540 = vadd.f32 %v9465, %v9539
        %v9541 = vpop.f32.mrf.mxu0
        %9542 = vmatprep.mubr.f32.mxu0 %v8475
        %9543 = vmatmul.mubr.f32.gmra.mxu0 %v8474
        %v9544 = vpop.f32.mrf.mxu0
        %v9545 = vadd.f32 %v9470, %v9544
        %v9546 = vpop.f32.mrf.mxu0
        %9547 = vdwg.mxu0
        %9548 = vmatprep.subr.mxu0 0.0
        %9549 = vmatpush1.msra.mxu0 %v8785
        %9550 = vmatprep.subr.mxu0 0.0
        %9551 = vmatpush1.msra.mxu0 %v8784
        %9552 = vmatprep.subr.mxu0 0.0
        %9553 = vmatpush1.msra.mxu0 %v8783
        %9554 = vmatprep.subr.mxu0 0.0
        %9555 = vmatpush1.msra.mxu0 %v8782
        %9556 = vmatprep.subr.mxu0 0.0
        %9557 = vmatpush1.msra.mxu0 %v8781
        %9558 = vmatprep.subr.mxu0 0.0
        %9559 = vmatpush1.msra.mxu0 %v8780
        %9560 = vmatprep.subr.mxu0 0.0
        %9561 = vmatpush1.msra.mxu0 %v8779
        %9562 = vmatprep.subr.mxu0 0.0
        %9563 = vmatpush1.msra.mxu0 %v8778
        %9564 = vmatprep.subr.mxu0 0.0
        %9565 = vmatpush1.msra.mxu0 %v8777
        %9566 = vmatprep.subr.mxu0 0.0
        %9567 = vmatpush1.msra.mxu0 %v8776
        %9568 = vmatprep.subr.mxu0 0.0
        %9569 = vmatpush1.msra.mxu0 %v8775
        %9570 = vmatprep.subr.mxu0 0.0
        %9571 = vmatpush1.msra.mxu0 %v8774
        %9572 = vmatprep.subr.mxu0 0.0
        %9573 = vmatpush1.msra.mxu0 %v8773
        %9574 = vmatprep.subr.mxu0 0.0
        %9575 = vmatpush1.msra.mxu0 %v8772
        %9576 = vmatprep.subr.mxu0 0.0
        %9577 = vmatpush1.msra.mxu0 %v8771
        %9578 = vmatprep.subr.mxu0 0.0
        %9579 = vmatpush1.msra.mxu0 %v8770
        %9580 = vmatprep.subr.mxu0 0.0
        %9581 = vmatpush2.msra.mxu0 %v8801
        %9582 = vmatprep.subr.mxu0 0.0
        %9583 = vmatpush2.msra.mxu0 %v8800
        %9584 = vmatprep.subr.mxu0 0.0
        %9585 = vmatpush2.msra.mxu0 %v8799
        %9586 = vmatprep.subr.mxu0 0.0
        %9587 = vmatpush2.msra.mxu0 %v8798
        %9588 = vmatprep.subr.mxu0 0.0
        %9589 = vmatpush2.msra.mxu0 %v8797
        %9590 = vmatprep.subr.mxu0 0.0
        %9591 = vmatpush2.msra.mxu0 %v8796
        %9592 = vmatprep.subr.mxu0 0.0
        %9593 = vmatpush2.msra.mxu0 %v8795
        %9594 = vmatprep.subr.mxu0 0.0
        %9595 = vmatpush2.msra.mxu0 %v8794
        %9596 = vmatprep.subr.mxu0 0.0
        %9597 = vmatpush2.msra.mxu0 %v8793
        %9598 = vmatprep.subr.mxu0 0.0
        %9599 = vmatpush2.msra.mxu0 %v8792
        %9600 = vmatprep.subr.mxu0 0.0
        %9601 = vmatpush2.msra.mxu0 %v8791
        %9602 = vmatprep.subr.mxu0 0.0
        %9603 = vmatpush2.msra.mxu0 %v8790
        %9604 = vmatprep.subr.mxu0 0.0
        %9605 = vmatpush2.msra.mxu0 %v8789
        %9606 = vmatprep.subr.mxu0 0.0
        %9607 = vmatpush2.msra.mxu0 %v8788
        %9608 = vmatprep.subr.mxu0 0.0
        %9609 = vmatpush2.msra.mxu0 %v8787
        %9610 = vmatprep.subr.mxu0 0.0
        %9611 = vmatpush2.msra.mxu0 %v8786
        %9612 = vmatprep.mubr.f32.mxu0 %v8453
        %9613 = vmatmul.mubr.f32.gmra.mxu0 %v8452
        %v9614 = vpop.f32.mrf.mxu0
        %v9615 = vadd.f32 %v9540, %v9614
        %v9616 = vpop.f32.mrf.mxu0
        %9617 = vmatprep.mubr.f32.mxu0 %v8477
        %9618 = vmatmul.mubr.f32.gmra.mxu0 %v8476
        %v9619 = vpop.f32.mrf.mxu0
        %v9620 = vadd.f32 %v9545, %v9619
        %v9621 = vpop.f32.mrf.mxu0
        %9622 = vdwg.mxu0
        %9623 = vmatprep.subr.mxu0 0.0
        %9624 = vmatpush1.msra.mxu0 %v8817
        %9625 = vmatprep.subr.mxu0 0.0
        %9626 = vmatpush1.msra.mxu0 %v8816
        %9627 = vmatprep.subr.mxu0 0.0
        %9628 = vmatpush1.msra.mxu0 %v8815
        %9629 = vmatprep.subr.mxu0 0.0
        %9630 = vmatpush1.msra.mxu0 %v8814
        %9631 = vmatprep.subr.mxu0 0.0
        %9632 = vmatpush1.msra.mxu0 %v8813
        %9633 = vmatprep.subr.mxu0 0.0
        %9634 = vmatpush1.msra.mxu0 %v8812
        %9635 = vmatprep.subr.mxu0 0.0
        %9636 = vmatpush1.msra.mxu0 %v8811
        %9637 = vmatprep.subr.mxu0 0.0
        %9638 = vmatpush1.msra.mxu0 %v8810
        %9639 = vmatprep.subr.mxu0 0.0
        %9640 = vmatpush1.msra.mxu0 %v8809
        %9641 = vmatprep.subr.mxu0 0.0
        %9642 = vmatpush1.msra.mxu0 %v8808
        %9643 = vmatprep.subr.mxu0 0.0
        %9644 = vmatpush1.msra.mxu0 %v8807
        %9645 = vmatprep.subr.mxu0 0.0
        %9646 = vmatpush1.msra.mxu0 %v8806
        %9647 = vmatprep.subr.mxu0 0.0
        %9648 = vmatpush1.msra.mxu0 %v8805
        %9649 = vmatprep.subr.mxu0 0.0
        %9650 = vmatpush1.msra.mxu0 %v8804
        %9651 = vmatprep.subr.mxu0 0.0
        %9652 = vmatpush1.msra.mxu0 %v8803
        %9653 = vmatprep.subr.mxu0 0.0
        %9654 = vmatpush1.msra.mxu0 %v8802
        %9655 = vmatprep.subr.mxu0 0.0
        %9656 = vmatpush2.msra.mxu0 %v8833
        %9657 = vmatprep.subr.mxu0 0.0
        %9658 = vmatpush2.msra.mxu0 %v8832
        %9659 = vmatprep.subr.mxu0 0.0
        %9660 = vmatpush2.msra.mxu0 %v8831
        %9661 = vmatprep.subr.mxu0 0.0
        %9662 = vmatpush2.msra.mxu0 %v8830
        %9663 = vmatprep.subr.mxu0 0.0
        %9664 = vmatpush2.msra.mxu0 %v8829
        %9665 = vmatprep.subr.mxu0 0.0
        %9666 = vmatpush2.msra.mxu0 %v8828
        %9667 = vmatprep.subr.mxu0 0.0
        %9668 = vmatpush2.msra.mxu0 %v8827
        %9669 = vmatprep.subr.mxu0 0.0
        %9670 = vmatpush2.msra.mxu0 %v8826
        %9671 = vmatprep.subr.mxu0 0.0
        %9672 = vmatpush2.msra.mxu0 %v8825
        %9673 = vmatprep.subr.mxu0 0.0
        %9674 = vmatpush2.msra.mxu0 %v8824
        %9675 = vmatprep.subr.mxu0 0.0
        %9676 = vmatpush2.msra.mxu0 %v8823
        %9677 = vmatprep.subr.mxu0 0.0
        %9678 = vmatpush2.msra.mxu0 %v8822
        %9679 = vmatprep.subr.mxu0 0.0
        %9680 = vmatpush2.msra.mxu0 %v8821
        %9681 = vmatprep.subr.mxu0 0.0
        %9682 = vmatpush2.msra.mxu0 %v8820
        %9683 = vmatprep.subr.mxu0 0.0
        %9684 = vmatpush2.msra.mxu0 %v8819
        %9685 = vmatprep.subr.mxu0 0.0
        %9686 = vmatpush2.msra.mxu0 %v8818
        %9687 = vmatprep.mubr.f32.mxu0 %v8455
        %9688 = vmatmul.mubr.f32.gmra.mxu0 %v8454
        %v9689 = vpop.f32.mrf.mxu0
        %v9690 = vadd.f32 %v9615, %v9689
        %v9691 = vpop.f32.mrf.mxu0
        %9692 = vmatprep.mubr.f32.mxu0 %v8479
        %9693 = vmatmul.mubr.f32.gmra.mxu0 %v8478
        %v9694 = vpop.f32.mrf.mxu0
        %v9695 = vadd.f32 %v9620, %v9694
        %v9696 = vpop.f32.mrf.mxu0
        %9697 = vdwg.mxu0
        %9698 = vmatprep.subr.mxu0 0.0
        %9699 = vmatpush1.msra.mxu0 %v8849
        %9700 = vmatprep.subr.mxu0 0.0
        %9701 = vmatpush1.msra.mxu0 %v8848
        %9702 = vmatprep.subr.mxu0 0.0
        %9703 = vmatpush1.msra.mxu0 %v8847
        %9704 = vmatprep.subr.mxu0 0.0
        %9705 = vmatpush1.msra.mxu0 %v8846
        %9706 = vmatprep.subr.mxu0 0.0
        %9707 = vmatpush1.msra.mxu0 %v8845
        %9708 = vmatprep.subr.mxu0 0.0
        %9709 = vmatpush1.msra.mxu0 %v8844
        %9710 = vmatprep.subr.mxu0 0.0
        %9711 = vmatpush1.msra.mxu0 %v8843
        %9712 = vmatprep.subr.mxu0 0.0
        %9713 = vmatpush1.msra.mxu0 %v8842
        %9714 = vmatprep.subr.mxu0 0.0
        %9715 = vmatpush1.msra.mxu0 %v8841
        %9716 = vmatprep.subr.mxu0 0.0
        %9717 = vmatpush1.msra.mxu0 %v8840
        %9718 = vmatprep.subr.mxu0 0.0
        %9719 = vmatpush1.msra.mxu0 %v8839
        %9720 = vmatprep.subr.mxu0 0.0
        %9721 = vmatpush1.msra.mxu0 %v8838
        %9722 = vmatprep.subr.mxu0 0.0
        %9723 = vmatpush1.msra.mxu0 %v8837
        %9724 = vmatprep.subr.mxu0 0.0
        %9725 = vmatpush1.msra.mxu0 %v8836
        %9726 = vmatprep.subr.mxu0 0.0
        %9727 = vmatpush1.msra.mxu0 %v8835
        %9728 = vmatprep.subr.mxu0 0.0
        %9729 = vmatpush1.msra.mxu0 %v8834
        %9730 = vmatprep.subr.mxu0 0.0
        %9731 = vmatpush2.msra.mxu0 %v8865
        %9732 = vmatprep.subr.mxu0 0.0
        %9733 = vmatpush2.msra.mxu0 %v8864
        %9734 = vmatprep.subr.mxu0 0.0
        %9735 = vmatpush2.msra.mxu0 %v8863
        %9736 = vmatprep.subr.mxu0 0.0
        %9737 = vmatpush2.msra.mxu0 %v8862
        %9738 = vmatprep.subr.mxu0 0.0
        %9739 = vmatpush2.msra.mxu0 %v8861
        %9740 = vmatprep.subr.mxu0 0.0
        %9741 = vmatpush2.msra.mxu0 %v8860
        %9742 = vmatprep.subr.mxu0 0.0
        %9743 = vmatpush2.msra.mxu0 %v8859
        %9744 = vmatprep.subr.mxu0 0.0
        %9745 = vmatpush2.msra.mxu0 %v8858
        %9746 = vmatprep.subr.mxu0 0.0
        %9747 = vmatpush2.msra.mxu0 %v8857
        %9748 = vmatprep.subr.mxu0 0.0
        %9749 = vmatpush2.msra.mxu0 %v8856
        %9750 = vmatprep.subr.mxu0 0.0
        %9751 = vmatpush2.msra.mxu0 %v8855
        %9752 = vmatprep.subr.mxu0 0.0
        %9753 = vmatpush2.msra.mxu0 %v8854
        %9754 = vmatprep.subr.mxu0 0.0
        %9755 = vmatpush2.msra.mxu0 %v8853
        %9756 = vmatprep.subr.mxu0 0.0
        %9757 = vmatpush2.msra.mxu0 %v8852
        %9758 = vmatprep.subr.mxu0 0.0
        %9759 = vmatpush2.msra.mxu0 %v8851
        %9760 = vmatprep.subr.mxu0 0.0
        %9761 = vmatpush2.msra.mxu0 %v8850
        %9762 = vmatprep.mubr.f32.mxu0 %v8457
        %9763 = vmatmul.mubr.f32.gmra.mxu0 %v8456
        %v9764 = vpop.f32.mrf.mxu0
        %v9765 = vadd.f32 %v9690, %v9764
        %v9766 = vpop.f32.mrf.mxu0
        %9767 = vmatprep.mubr.f32.mxu0 %v8481
        %9768 = vmatmul.mubr.f32.gmra.mxu0 %v8480
        %v9769 = vpop.f32.mrf.mxu0
        %v9770 = vadd.f32 %v9695, %v9769
        %v9771 = vpop.f32.mrf.mxu0
        %9772 = vdwg.mxu0
        %v9773 = vadd.f32 %v7088, %v9765
        %v9774 = vadd.f32 %v7089, %v9770
        %v9775 = vsel %vm674, %v9773, 0.0
        %9776 = vadd.xlane.f32.xlu0 %v9775
        %v9777 = vpop.xlane.xlu0 %9776
        %v9778 = vsel %vm674, %v9774, 0.0
        %9779 = vadd.xlane.f32.xlu0 %v9778
        %v9780 = vpop.xlane.xlu0 %9779
        %v9781 = vmul.f32 %v9777, %v3743
        %v9782 = vmul.f32 %v9780, %v3743
        %v9783 = vsub.f32 %v9773, %v9781
        %v9784 = vsub.f32 %v9774, %v9782
        %v9785 = vmul.f32 %v9783, %v9783
        %v9786 = vmul.f32 %v9784, %v9784
        %v9787 = vsel %vm674, %v9785, 0.0
        %9788 = vadd.xlane.f32.xlu0 %v9787
        %v9789 = vpop.xlane.xlu0 %9788
        %v9790 = vsel %vm674, %v9786, 0.0
        %9791 = vadd.xlane.f32.xlu0 %v9790
        %v9792 = vpop.xlane.xlu0 %9791
        %v9793 = vmul.f32 %v9789, %v3743
        %v9794 = vmul.f32 %v9792, %v3743
        %v9795 = vadd.f32 %v9793, 1e-05
        %v9796 = vadd.f32 %v9794, 1e-05
        %v9797 = vrsqrt.pop %v9795
        %v9798 = vrsqrt.pop %v9796
        %v9799 = vmul.f32 %v9783, %v9797
        %v9800 = vmul.f32 %v9784, %v9798
        %s9801 = scalar_lea.vmem %s626, 2
        %v9802 = vld [vmem:[%s9801] sm:$0x1]
        %v9804 = vlaneseq
        %v9805 = vshrl.u32 %v9804, 7
        %v9806 = vsub.s32 0, %v9805
        %v9807 = vrot.slane %v9802, %v9806
        %v9809 = vmul.f32 %v9799, %v9807
        %v9810 = vmul.f32 %v9800, %v9807
        %s9811 = scalar_lea.vmem %s630, 2
        %v9812 = vld [vmem:[%s9811] sm:$0x1]
        %v9814 = vlaneseq
        %v9815 = vshrl.u32 %v9814, 7
        %v9816 = vsub.s32 0, %v9815
        %v9817 = vrot.slane %v9812, %v9816
        %v9819 = vadd.f32 %v9809, %v9817
        %v9820 = vadd.f32 %v9810, %v9817
        %9821 = vst.msk [vmem:[#allocation2] sm:$0xff] %vm674, %v9819
        %9822 = vst.msk [vmem:[#allocation2 + $0x8] sm:$0xff] %vm674, %v9820
        %p9823 = scmp.eq.s32.totalorder %s32, 2
        // Predicated region
        $region73: #{gate_extractation_layers.1} parent=67 // pred_check
          %p9824 = pneg %p9823
        $region74: #{gate_extractation_layers.1} parent=67 // pred_check_branch
          %9826 = sbr.rel (%p9824) target = $region76
        $region75: #{gate_extractation_layers.1} parent=67 // pred_region
          %9827 = vst.msk [vmem:[#allocation4] sm:$0xff] %vm1085, %v4229
          %9828 = vst.msk [vmem:[#allocation4 + $0x8] sm:$0xff] %vm1085, %v4231
        $region76: #{gate_extractation_layers.1} parent=67 // pred_fallthru
          _
        // Predicated region
        $region77: #{gate_extractation_layers.1} parent=67 // pred_check
          %p9829 = pneg %p369
        $region78: #{gate_extractation_layers.1} parent=67 // pred_check_branch
          %9831 = sbr.rel (%p9829) target = $region80
        $region79: #{gate_extractation_layers.1} parent=67 // pred_region
          %s9832 = smul.u32 2, %s31
          %s9834 = ssub.s32 256, 256
          %9835 = vsyncadd [#allocation3], %s9834
          %s9836 = smul.addr %s9832, 128
          %s9837 = scalar_lea.hbm %s12, %s9836
          %s9838 = sshll.u32 [#allocation2], 4
          %s9839 = int_to_ptr.vmem [resolvable:$true] %s9838
          %9844 = dma.vmem_to_hbm [thread:$0]  %s9839, 256, %s9837, [#allocation3], 128, 128, 8
        $region80: #{gate_extractation_layers.1} parent=67 // pred_fallthru
          _
        // Predicated region
        $region81: #{gate_extractation_layers.1} parent=67 // pred_check
          %p9845 = pneg %p395
        $region82: #{gate_extractation_layers.1} parent=67 // pred_check_branch
          %9847 = sbr.rel (%p9845) target = $region84
        $region83: #{gate_extractation_layers.1} parent=67 // pred_region
          %s9848 = smul.u32 2, %s31
          %s9850 = ssub.s32 256, 256
          %9851 = vsyncadd [#allocation5], %s9850
          %s9852 = smul.addr %s9848, 128
          %s9853 = scalar_lea.hbm %s13, %s9852
          %s9854 = sshll.u32 [#allocation4], 4
          %s9855 = int_to_ptr.vmem [resolvable:$true] %s9854
          %9860 = dma.vmem_to_hbm [thread:$0]  %s9855, 256, %s9853, [#allocation5], 128, 128, 8
        $region84: #{gate_extractation_layers.1} parent=67 // pred_fallthru
          _
        // Predicated region
        $region85: #{gate_extractation_layers.1} parent=67 // pred_check
          %p9861 = pneg %p369
        $region86: #{gate_extractation_layers.1} parent=67 // pred_check_branch
          %9863 = sbr.rel (%p9861) target = $region88
        $region87: #{gate_extractation_layers.1} parent=67 // pred_region
          %9864 = dma.done [#allocation3], 256
        $region88: #{gate_extractation_layers.1} parent=67 // pred_fallthru
          _
        // Predicated region
        $region89: #{gate_extractation_layers.1} parent=67 // pred_check
          %p9865 = pneg %p395
        $region90: #{gate_extractation_layers.1} parent=67 // pred_check_branch
          %9867 = sbr.rel (%p9865) target = $region92
        $region91: #{gate_extractation_layers.1} parent=67 // pred_region
          %9868 = dma.done [#allocation5], 256
        $region92: #{gate_extractation_layers.1} parent=67 // pred_fallthru
          _
      $region68: #{gate_extractation_layers.1} parent=5 // pred_fallthru
        _
      %p9869 = scmp.le.s32.totalorder 2, %s22
      // Predicated region
      $region93: #{gate_extractation_layers.1} parent=5 // pred_check
        %p9870 = pneg %p9869
      $region94: #{gate_extractation_layers.1} parent=5 // pred_check_branch
        %9872 = sbr.rel (%p9870) target = $region96
      $region95: #{gate_extractation_layers.1} parent=5 // pred_region
        %s9873 = ssub.s32 %s22, 2
      $region96: #{gate_extractation_layers.1} parent=5 // pred_fallthru
        _
    $region6: #{gate_extractation_layers.1} parent=1 // loop_footer
      %s26 = sadd.s32 1, %s22
    $region7: #{gate_extractation_layers.1} parent=1 // loop_footer_branch
      %21 = sbr.rel target = $region3
    $region8: #{gate_extractation_layers.1} parent=1 // loop_exit
      _
    %9874 = vsyncpa [#allocation3], 1
    %s9875 = scalar_lea.sflag [#allocation3], 1
    %9876 = vsyncpa %s9875, 1
    %9877 = vsyncpa [#allocation5], 1

</llo_original>
